<compile_context>
chip_gen: v7x
topology: tpu7x:2x2x1
jax: 0.10.0
libtpu: 0.0.40
codegen_flags: <defaults>
</compile_context>

<pallas_src>
import functools

import jax
import jax.numpy as jnp
from jax.experimental import pallas as pl
from jax.experimental.pallas import tpu as pltpu

EPS = 1e-5  # PyTorch InstanceNorm2d default eps


# ------------------------------- kernel ------------------------------------ #

def _conv_block_in_kernel(x_ref, w1_ref, w2_ref, o_ref, xpad_ref, hpad_ref,
                          *, K, H, W):
    """Fused conv->IN->ReLU->conv->IN->ReLU for one batch item (NHWC).

    x_ref:    (1, H, W, Cin)      unpadded input block
    w1_ref:   (K, K, Cin, Cmid)   conv1 weight (HWIO)
    w2_ref:   (K, K, Cmid, Cout)  conv2 weight (HWIO)
    o_ref:    (1, H, W, Cout)     output block
    xpad_ref: (Hp, Wp, Cin)       VMEM scratch, zero-padded input
    hpad_ref: (Hp, Wp, Cmid)      VMEM scratch, zero-padded intermediate
    """
    pad = (K - 1) // 2
    Cin = x_ref.shape[-1]
    Cmid = w1_ref.shape[-1]
    Cout = w2_ref.shape[-1]

    def conv_in_relu(src_ref, w_ref, cin, cout):
        # 'same' conv via K*K unrolled taps, each an (H*W, cin)x(cin, cout)
        # MXU matmul accumulated in f32.  (Conv bias omitted: cancelled by IN.)
        acc = jnp.zeros((H * W, cout), jnp.float32)
        for kh in range(K):
            for kw in range(K):
                patch = src_ref[kh:kh + H, kw:kw + W, :].reshape(H * W, cin)
                acc = acc + jnp.dot(patch, w_ref[kh, kw, :, :],
                                    preferred_element_type=jnp.float32)
        # InstanceNorm2d (affine=False): per-channel mean / biased var over H*W.
        mean = jnp.mean(acc, axis=0, keepdims=True)
        var = jnp.mean((acc - mean) ** 2, axis=0, keepdims=True)
        normed = (acc - mean) * jax.lax.rsqrt(var + EPS)
        return jnp.maximum(normed, 0.0)

    # ---- stage 1: pad x into VMEM, conv1 + IN + ReLU ---------------------- #
    xpad_ref[...] = jnp.zeros_like(xpad_ref)
    xpad_ref[pad:pad + H, pad:pad + W, :] = x_ref[0]
    h1 = conv_in_relu(xpad_ref, w1_ref, Cin, Cmid)         # (H*W, Cmid)

    # ---- stage 2: h1 stays resident in VMEM (no HBM round trip) ----------- #
    hpad_ref[...] = jnp.zeros_like(hpad_ref)
    hpad_ref[pad:pad + H, pad:pad + W, :] = h1.reshape(H, W, Cmid)
    out = conv_in_relu(hpad_ref, w2_ref, Cmid, Cout)        # (H*W, Cout)

    o_ref[0] = out.reshape(H, W, Cout)


# ------------------------------- wrapper ----------------------------------- #

def conv_block_in(x_nhwc, w1, w2, *, K):
    """Fused ConvBlock_IN on NHWC input. Weights are HWIO. Conv biases omitted
    (exactly cancelled by the InstanceNorm that follows each conv)."""
    assert K % 2 == 1, "only odd kernel sizes supported for 'same' padding"
    B, H, W, Cin = x_nhwc.shape
    Cmid = w1.shape[-1]
    Cout = w2.shape[-1]
    Hp, Wp = H + K - 1, W + K - 1

    kern = functools.partial(_conv_block_in_kernel, K=K, H=H, W=W)

    # Explicit VMEM budget: double-buffered in/out blocks + weights + scratch
    # + headroom, clamped to stay within v7x's 64 MiB per-core VMEM.
    blk_bytes = 4 * (H * W * Cin + K * K * Cin * Cmid
                     + K * K * Cmid * Cout + H * W * Cout)
    scratch_bytes = 4 * (Hp * Wp * Cin + Hp * Wp * Cmid)
    vmem_limit = int(min(max(2 * blk_bytes + scratch_bytes + (8 << 20),
                             16 << 20), 64 << 20))

    return pl.pallas_call(
        kern,
        out_shape=jax.ShapeDtypeStruct((B, H, W, Cout), jnp.float32),
        grid=(B,),
        in_specs=[
            pl.BlockSpec((1, H, W, Cin), lambda b: (b, 0, 0, 0)),
            pl.BlockSpec((K, K, Cin, Cmid), lambda b: (0, 0, 0, 0)),
            pl.BlockSpec((K, K, Cmid, Cout), lambda b: (0, 0, 0, 0)),
        ],
        out_specs=pl.BlockSpec((1, H, W, Cout), lambda b: (b, 0, 0, 0)),
        scratch_shapes=[
            pltpu.VMEM((Hp, Wp, Cin), jnp.float32),    # padded input
            pltpu.VMEM((Hp, Wp, Cmid), jnp.float32),   # padded intermediate h1
        ],
        compiler_params=pltpu.CompilerParams(
            dimension_semantics=("parallel",),
            vmem_limit_bytes=vmem_limit),
    )(x_nhwc, w1, w2)


def conv_block_in_forward(x_nchw, params, *, K):
    """Full ConvBlock_IN forward. NCHW in, NCHW out (matches the PyTorch module)."""
    x = jnp.transpose(x_nchw, (0, 2, 3, 1)).astype(jnp.float32)     # -> NHWC
    y = conv_block_in(x, params["w1"], params["w2"], K=K)
    return jnp.transpose(y, (0, 3, 1, 2))                           # -> NCHW


# ----------------------------- parameter init ------------------------------ #

def init_params(key, in_channels, out_channels, K):
    k1, k2, k3, k4 = jax.random.split(key, 4)

    # conv weights: kaiming_normal_(fan_in, relu) like the PyTorch module;
    # stored directly in HWIO layout (K, K, Cin, Cout).
    fan1 = in_channels * K * K
    w1 = jax.random.normal(k1, (K, K, in_channels, out_channels),
                           jnp.float32) * jnp.sqrt(2.0 / fan1)
    b1 = jax.random.uniform(k2, (out_channels,), jnp.float32,
                            -1.0 / jnp.sqrt(fan1), 1.0 / jnp.sqrt(fan1))

    fan2 = out_channels * K * K
    w2 = jax.random.normal(k3, (K, K, out_channels, out_channels),
                           jnp.float32) * jnp.sqrt(2.0 / fan2)
    b2 = jax.random.uniform(k4, (out_channels,), jnp.float32,
                            -1.0 / jnp.sqrt(fan2), 1.0 / jnp.sqrt(fan2))

    # b1/b2 are only consumed by the reference: they are mathematically
    # cancelled by the InstanceNorm that follows each conv, so the kernel
    # skips them (saves a broadcast add and two small DMAs per step).
    return {"w1": w1, "b1": b1, "w2": w2, "b2": b2}


# ---------------------------- pure-JAX reference ---------------------------- #

def _reference_forward(x_nchw, params, *, K):
    x = jnp.transpose(x_nchw, (0, 2, 3, 1))

    def conv(h, w, b):
        y = jax.lax.conv_general_dilated(
            h, w, window_strides=(1, 1), padding="SAME",
            dimension_numbers=("NHWC", "HWIO", "NHWC"))
        return y + b[None, None, None, :]

    def inorm(y):
        m = jnp.mean(y, axis=(1, 2), keepdims=True)
        v = jnp.mean((y - m) ** 2, axis=(1, 2), keepdims=True)
        return (y - m) * jax.lax.rsqrt(v + EPS)

    h = jax.nn.relu(inorm(conv(x, params["w1"], params["b1"])))
    y = jax.nn.relu(inorm(conv(h, params["w2"], params["b2"])))
    return jnp.transpose(y, (0, 3, 1, 2))


# --------------------------------- main ------------------------------------ #

if __name__ == "__main__":
    B, Cin, Cout, H, W = 2, 4, 8, 16, 16
    K = 3

    key = jax.random.PRNGKey(0)
    kx, kp = jax.random.split(key)
    x = jax.random.normal(kx, (B, Cin, H, W), jnp.float32)   # NCHW, like PyTorch
    params = init_params(kp, Cin, Cout, K)

    out = conv_block_in_forward(x, params, K=K)
    out = jax.block_until_ready(out)
    assert out.shape == (B, Cout, H, W), out.shape

    ref = jax.block_until_ready(_reference_forward(x, params, K=K))
    assert jnp.allclose(out, ref, atol=1e-3, rtol=1e-3), (
        float(jnp.max(jnp.abs(out - ref))))

    print("KERNEL_OK")
</pallas_src>

<mosaic_0001>
module attributes {stable_mosaic.version = 11 : i64} {
  func.func @_conv_block_in_kernel(%arg0: i32, %arg1: memref<1x16x16x4xf32, #tpu.memory_space<vmem>>, %arg2: memref<3x3x4x8xf32, #tpu.memory_space<vmem>>, %arg3: memref<3x3x8x8xf32, #tpu.memory_space<vmem>>, %arg4: memref<1x16x16x8xf32, #tpu.memory_space<vmem>>, %arg5: memref<18x18x4xf32, #tpu.memory_space<vmem>>, %arg6: memref<18x18x8xf32, #tpu.memory_space<vmem>>) attributes {dimension_semantics = [#tpu.dimension_semantics<parallel>], iteration_bounds = array<i64: 2>, scalar_prefetch = 0 : i64, scratch_operands = 2 : i64, tpu.core_type = #tpu.core_type<tc>, window_params = [{transform_indices = @transform_0, window_bounds = array<i64: 1, 16, 16, 4>}, {pipeline_mode = #tpu.pipeline_mode<synchronous>, transform_indices = @transform_1, window_bounds = array<i64: 3, 3, 4, 8>}, {pipeline_mode = #tpu.pipeline_mode<synchronous>, transform_indices = @transform_2, window_bounds = array<i64: 3, 3, 8, 8>}, {transform_indices = @transform_3, window_bounds = array<i64: 1, 16, 16, 8>}]} {
    %cst = arith.constant 0.000000e+00 : f32
    %0 = vector.broadcast %cst : f32 to vector<18x18x4xf32>
    %c0 = arith.constant 0 : index
    %c0_0 = arith.constant 0 : index
    %c0_1 = arith.constant 0 : index
    %1 = vector.load %arg5[%c0, %c0_0, %c0_1] : memref<18x18x4xf32, #tpu.memory_space<vmem>>, vector<18x18x4xf32>
    tpu.vector_store %arg5[%c0, %c0_0, %c0_1], %0 {strides = array<i32>} : memref<18x18x4xf32, #tpu.memory_space<vmem>>, vector<18x18x4xf32>,
    %c0_2 = arith.constant 0 : index
    %c0_3 = arith.constant 0 : index
    %c0_4 = arith.constant 0 : index
    %c0_5 = arith.constant 0 : index
    %2 = vector.load %arg1[%c0_2, %c0_3, %c0_4, %c0_5] : memref<1x16x16x4xf32, #tpu.memory_space<vmem>>, vector<1x16x16x4xf32>
    %3 = vector.shape_cast %2 : vector<1x16x16x4xf32> to vector<16x16x4xf32>
    %c1 = arith.constant 1 : index
    %c1_6 = arith.constant 1 : index
    %c0_7 = arith.constant 0 : index
    %4 = vector.load %arg5[%c1, %c1_6, %c0_7] : memref<18x18x4xf32, #tpu.memory_space<vmem>>, vector<16x16x4xf32>
    tpu.vector_store %arg5[%c1, %c1_6, %c0_7], %3 {strides = array<i32>} : memref<18x18x4xf32, #tpu.memory_space<vmem>>, vector<16x16x4xf32>,
    %cst_8 = arith.constant 0.000000e+00 : f32
    %5 = vector.broadcast %cst_8 : f32 to vector<256x8xf32>
    %c0_9 = arith.constant 0 : index
    %c0_10 = arith.constant 0 : index
    %c0_11 = arith.constant 0 : index
    %6 = vector.load %arg5[%c0_9, %c0_10, %c0_11] : memref<18x18x4xf32, #tpu.memory_space<vmem>>, vector<16x16x4xf32>
    %7 = vector.shape_cast %6 : vector<16x16x4xf32> to vector<256x4xf32>
    %c0_12 = arith.constant 0 : index
    %c0_13 = arith.constant 0 : index
    %c0_14 = arith.constant 0 : index
    %c0_15 = arith.constant 0 : index
    %8 = vector.load %arg2[%c0_12, %c0_13, %c0_14, %c0_15] : memref<3x3x4x8xf32, #tpu.memory_space<vmem>>, vector<1x1x4x8xf32>
    %9 = vector.shape_cast %8 : vector<1x1x4x8xf32> to vector<4x8xf32>
    %cst_16 = arith.constant dense<0.000000e+00> : vector<256x8xf32>
    %10 = tpu.matmul %7, %9, %cst_16 {dimension_numbers = #tpu.dot_dimension_numbers<[1], [0], [0], [1], [0, 0, 1, 1], [], []>} : vector<256x4xf32>, vector<4x8xf32>, vector<256x8xf32> -> vector<256x8xf32>
    %11 = arith.addf %5, %10 : vector<256x8xf32>
    %c0_17 = arith.constant 0 : index
    %c1_18 = arith.constant 1 : index
    %c0_19 = arith.constant 0 : index
    %12 = vector.load %arg5[%c0_17, %c1_18, %c0_19] : memref<18x18x4xf32, #tpu.memory_space<vmem>>, vector<16x16x4xf32>
    %13 = vector.shape_cast %12 : vector<16x16x4xf32> to vector<256x4xf32>
    %c0_20 = arith.constant 0 : index
    %c1_21 = arith.constant 1 : index
    %c0_22 = arith.constant 0 : index
    %c0_23 = arith.constant 0 : index
    %14 = vector.load %arg2[%c0_20, %c1_21, %c0_22, %c0_23] : memref<3x3x4x8xf32, #tpu.memory_space<vmem>>, vector<1x1x4x8xf32>
    %15 = vector.shape_cast %14 : vector<1x1x4x8xf32> to vector<4x8xf32>
    %cst_24 = arith.constant dense<0.000000e+00> : vector<256x8xf32>
    %16 = tpu.matmul %13, %15, %cst_24 {dimension_numbers = #tpu.dot_dimension_numbers<[1], [0], [0], [1], [0, 0, 1, 1], [], []>} : vector<256x4xf32>, vector<4x8xf32>, vector<256x8xf32> -> vector<256x8xf32>
    %17 = arith.addf %11, %16 : vector<256x8xf32>
    %c0_25 = arith.constant 0 : index
    %c2 = arith.constant 2 : index
    %c0_26 = arith.constant 0 : index
    %18 = vector.load %arg5[%c0_25, %c2, %c0_26] : memref<18x18x4xf32, #tpu.memory_space<vmem>>, vector<16x16x4xf32>
    %19 = vector.shape_cast %18 : vector<16x16x4xf32> to vector<256x4xf32>
    %c0_27 = arith.constant 0 : index
    %c2_28 = arith.constant 2 : index
    %c0_29 = arith.constant 0 : index
    %c0_30 = arith.constant 0 : index
    %20 = vector.load %arg2[%c0_27, %c2_28, %c0_29, %c0_30] : memref<3x3x4x8xf32, #tpu.memory_space<vmem>>, vector<1x1x4x8xf32>
    %21 = vector.shape_cast %20 : vector<1x1x4x8xf32> to vector<4x8xf32>
    %cst_31 = arith.constant dense<0.000000e+00> : vector<256x8xf32>
    %22 = tpu.matmul %19, %21, %cst_31 {dimension_numbers = #tpu.dot_dimension_numbers<[1], [0], [0], [1], [0, 0, 1, 1], [], []>} : vector<256x4xf32>, vector<4x8xf32>, vector<256x8xf32> -> vector<256x8xf32>
    %23 = arith.addf %17, %22 : vector<256x8xf32>
    %c1_32 = arith.constant 1 : index
    %c0_33 = arith.constant 0 : index
    %c0_34 = arith.constant 0 : index
    %24 = vector.load %arg5[%c1_32, %c0_33, %c0_34] : memref<18x18x4xf32, #tpu.memory_space<vmem>>, vector<16x16x4xf32>
    %25 = vector.shape_cast %24 : vector<16x16x4xf32> to vector<256x4xf32>
    %c1_35 = arith.constant 1 : index
    %c0_36 = arith.constant 0 : index
    %c0_37 = arith.constant 0 : index
    %c0_38 = arith.constant 0 : index
    %26 = vector.load %arg2[%c1_35, %c0_36, %c0_37, %c0_38] : memref<3x3x4x8xf32, #tpu.memory_space<vmem>>, vector<1x1x4x8xf32>
    %27 = vector.shape_cast %26 : vector<1x1x4x8xf32> to vector<4x8xf32>
    %cst_39 = arith.constant dense<0.000000e+00> : vector<256x8xf32>
    %28 = tpu.matmul %25, %27, %cst_39 {dimension_numbers = #tpu.dot_dimension_numbers<[1], [0], [0], [1], [0, 0, 1, 1], [], []>} : vector<256x4xf32>, vector<4x8xf32>, vector<256x8xf32> -> vector<256x8xf32>
    %29 = arith.addf %23, %28 : vector<256x8xf32>
    %c1_40 = arith.constant 1 : index
    %c1_41 = arith.constant 1 : index
    %c0_42 = arith.constant 0 : index
    %30 = vector.load %arg5[%c1_40, %c1_41, %c0_42] : memref<18x18x4xf32, #tpu.memory_space<vmem>>, vector<16x16x4xf32>
    %31 = vector.shape_cast %30 : vector<16x16x4xf32> to vector<256x4xf32>
    %c1_43 = arith.constant 1 : index
    %c1_44 = arith.constant 1 : index
    %c0_45 = arith.constant 0 : index
    %c0_46 = arith.constant 0 : index
    %32 = vector.load %arg2[%c1_43, %c1_44, %c0_45, %c0_46] : memref<3x3x4x8xf32, #tpu.memory_space<vmem>>, vector<1x1x4x8xf32>
    %33 = vector.shape_cast %32 : vector<1x1x4x8xf32> to vector<4x8xf32>
    %cst_47 = arith.constant dense<0.000000e+00> : vector<256x8xf32>
    %34 = tpu.matmul %31, %33, %cst_47 {dimension_numbers = #tpu.dot_dimension_numbers<[1], [0], [0], [1], [0, 0, 1, 1], [], []>} : vector<256x4xf32>, vector<4x8xf32>, vector<256x8xf32> -> vector<256x8xf32>
    %35 = arith.addf %29, %34 : vector<256x8xf32>
    %c1_48 = arith.constant 1 : index
    %c2_49 = arith.constant 2 : index
    %c0_50 = arith.constant 0 : index
    %36 = vector.load %arg5[%c1_48, %c2_49, %c0_50] : memref<18x18x4xf32, #tpu.memory_space<vmem>>, vector<16x16x4xf32>
    %37 = vector.shape_cast %36 : vector<16x16x4xf32> to vector<256x4xf32>
    %c1_51 = arith.constant 1 : index
    %c2_52 = arith.constant 2 : index
    %c0_53 = arith.constant 0 : index
    %c0_54 = arith.constant 0 : index
    %38 = vector.load %arg2[%c1_51, %c2_52, %c0_53, %c0_54] : memref<3x3x4x8xf32, #tpu.memory_space<vmem>>, vector<1x1x4x8xf32>
    %39 = vector.shape_cast %38 : vector<1x1x4x8xf32> to vector<4x8xf32>
    %cst_55 = arith.constant dense<0.000000e+00> : vector<256x8xf32>
    %40 = tpu.matmul %37, %39, %cst_55 {dimension_numbers = #tpu.dot_dimension_numbers<[1], [0], [0], [1], [0, 0, 1, 1], [], []>} : vector<256x4xf32>, vector<4x8xf32>, vector<256x8xf32> -> vector<256x8xf32>
    %41 = arith.addf %35, %40 : vector<256x8xf32>
    %c2_56 = arith.constant 2 : index
    %c0_57 = arith.constant 0 : index
    %c0_58 = arith.constant 0 : index
    %42 = vector.load %arg5[%c2_56, %c0_57, %c0_58] : memref<18x18x4xf32, #tpu.memory_space<vmem>>, vector<16x16x4xf32>
    %43 = vector.shape_cast %42 : vector<16x16x4xf32> to vector<256x4xf32>
    %c2_59 = arith.constant 2 : index
    %c0_60 = arith.constant 0 : index
    %c0_61 = arith.constant 0 : index
    %c0_62 = arith.constant 0 : index
    %44 = vector.load %arg2[%c2_59, %c0_60, %c0_61, %c0_62] : memref<3x3x4x8xf32, #tpu.memory_space<vmem>>, vector<1x1x4x8xf32>
    %45 = vector.shape_cast %44 : vector<1x1x4x8xf32> to vector<4x8xf32>
    %cst_63 = arith.constant dense<0.000000e+00> : vector<256x8xf32>
    %46 = tpu.matmul %43, %45, %cst_63 {dimension_numbers = #tpu.dot_dimension_numbers<[1], [0], [0], [1], [0, 0, 1, 1], [], []>} : vector<256x4xf32>, vector<4x8xf32>, vector<256x8xf32> -> vector<256x8xf32>
    %47 = arith.addf %41, %46 : vector<256x8xf32>
    %c2_64 = arith.constant 2 : index
    %c1_65 = arith.constant 1 : index
    %c0_66 = arith.constant 0 : index
    %48 = vector.load %arg5[%c2_64, %c1_65, %c0_66] : memref<18x18x4xf32, #tpu.memory_space<vmem>>, vector<16x16x4xf32>
    %49 = vector.shape_cast %48 : vector<16x16x4xf32> to vector<256x4xf32>
    %c2_67 = arith.constant 2 : index
    %c1_68 = arith.constant 1 : index
    %c0_69 = arith.constant 0 : index
    %c0_70 = arith.constant 0 : index
    %50 = vector.load %arg2[%c2_67, %c1_68, %c0_69, %c0_70] : memref<3x3x4x8xf32, #tpu.memory_space<vmem>>, vector<1x1x4x8xf32>
    %51 = vector.shape_cast %50 : vector<1x1x4x8xf32> to vector<4x8xf32>
    %cst_71 = arith.constant dense<0.000000e+00> : vector<256x8xf32>
    %52 = tpu.matmul %49, %51, %cst_71 {dimension_numbers = #tpu.dot_dimension_numbers<[1], [0], [0], [1], [0, 0, 1, 1], [], []>} : vector<256x4xf32>, vector<4x8xf32>, vector<256x8xf32> -> vector<256x8xf32>
    %53 = arith.addf %47, %52 : vector<256x8xf32>
    %c2_72 = arith.constant 2 : index
    %c2_73 = arith.constant 2 : index
    %c0_74 = arith.constant 0 : index
    %54 = vector.load %arg5[%c2_72, %c2_73, %c0_74] : memref<18x18x4xf32, #tpu.memory_space<vmem>>, vector<16x16x4xf32>
    %55 = vector.shape_cast %54 : vector<16x16x4xf32> to vector<256x4xf32>
    %c2_75 = arith.constant 2 : index
    %c2_76 = arith.constant 2 : index
    %c0_77 = arith.constant 0 : index
    %c0_78 = arith.constant 0 : index
    %56 = vector.load %arg2[%c2_75, %c2_76, %c0_77, %c0_78] : memref<3x3x4x8xf32, #tpu.memory_space<vmem>>, vector<1x1x4x8xf32>
    %57 = vector.shape_cast %56 : vector<1x1x4x8xf32> to vector<4x8xf32>
    %cst_79 = arith.constant dense<0.000000e+00> : vector<256x8xf32>
    %58 = tpu.matmul %55, %57, %cst_79 {dimension_numbers = #tpu.dot_dimension_numbers<[1], [0], [0], [1], [0, 0, 1, 1], [], []>} : vector<256x4xf32>, vector<4x8xf32>, vector<256x8xf32> -> vector<256x8xf32>
    %59 = arith.addf %53, %58 : vector<256x8xf32>
    %cst_80 = arith.constant dense<0.000000e+00> : vector<8xf32>
    %60 = vector.multi_reduction <add>, %59, %cst_80 [0] : vector<256x8xf32> to vector<8xf32>
    %61 = vector.shape_cast %60 : vector<8xf32> to vector<1x8xf32>
    %cst_81 = arith.constant 2.560000e+02 : f32
    %62 = vector.broadcast %cst_81 : f32 to vector<1x8xf32>
    %63 = arith.divf %61, %62 : vector<1x8xf32>
    %64 = vector.broadcast %63 : vector<1x8xf32> to vector<256x8xf32>
    %65 = arith.subf %59, %64 : vector<256x8xf32>
    %66 = arith.mulf %65, %65 : vector<256x8xf32>
    %cst_82 = arith.constant dense<0.000000e+00> : vector<8xf32>
    %67 = vector.multi_reduction <add>, %66, %cst_82 [0] : vector<256x8xf32> to vector<8xf32>
    %68 = vector.shape_cast %67 : vector<8xf32> to vector<1x8xf32>
    %cst_83 = arith.constant 2.560000e+02 : f32
    %69 = vector.broadcast %cst_83 : f32 to vector<1x8xf32>
    %70 = arith.divf %68, %69 : vector<1x8xf32>
    %71 = vector.broadcast %63 : vector<1x8xf32> to vector<256x8xf32>
    %72 = arith.subf %59, %71 : vector<256x8xf32>
    %cst_84 = arith.constant 9.99999974E-6 : f32
    %73 = vector.broadcast %cst_84 : f32 to vector<1x8xf32>
    %74 = arith.addf %70, %73 : vector<1x8xf32>
    %75 = math.rsqrt %74 : vector<1x8xf32>
    %76 = vector.broadcast %75 : vector<1x8xf32> to vector<256x8xf32>
    %77 = arith.mulf %72, %76 : vector<256x8xf32>
    %cst_85 = arith.constant 0.000000e+00 : f32
    %78 = vector.broadcast %cst_85 : f32 to vector<256x8xf32>
    %79 = arith.maximumf %77, %78 : vector<256x8xf32>
    %cst_86 = arith.constant 0.000000e+00 : f32
    %80 = vector.broadcast %cst_86 : f32 to vector<18x18x8xf32>
    %c0_87 = arith.constant 0 : index
    %c0_88 = arith.constant 0 : index
    %c0_89 = arith.constant 0 : index
    %81 = vector.load %arg6[%c0_87, %c0_88, %c0_89] : memref<18x18x8xf32, #tpu.memory_space<vmem>>, vector<18x18x8xf32>
    tpu.vector_store %arg6[%c0_87, %c0_88, %c0_89], %80 {strides = array<i32>} : memref<18x18x8xf32, #tpu.memory_space<vmem>>, vector<18x18x8xf32>,
    %82 = vector.shape_cast %79 : vector<256x8xf32> to vector<16x16x8xf32>
    %c1_90 = arith.constant 1 : index
    %c1_91 = arith.constant 1 : index
    %c0_92 = arith.constant 0 : index
    %83 = vector.load %arg6[%c1_90, %c1_91, %c0_92] : memref<18x18x8xf32, #tpu.memory_space<vmem>>, vector<16x16x8xf32>
    tpu.vector_store %arg6[%c1_90, %c1_91, %c0_92], %82 {strides = array<i32>} : memref<18x18x8xf32, #tpu.memory_space<vmem>>, vector<16x16x8xf32>,
    %cst_93 = arith.constant 0.000000e+00 : f32
    %84 = vector.broadcast %cst_93 : f32 to vector<256x8xf32>
    %c0_94 = arith.constant 0 : index
    %c0_95 = arith.constant 0 : index
    %c0_96 = arith.constant 0 : index
    %85 = vector.load %arg6[%c0_94, %c0_95, %c0_96] : memref<18x18x8xf32, #tpu.memory_space<vmem>>, vector<16x16x8xf32>
    %86 = vector.shape_cast %85 : vector<16x16x8xf32> to vector<256x8xf32>
    %c0_97 = arith.constant 0 : index
    %c0_98 = arith.constant 0 : index
    %c0_99 = arith.constant 0 : index
    %c0_100 = arith.constant 0 : index
    %87 = vector.load %arg3[%c0_97, %c0_98, %c0_99, %c0_100] : memref<3x3x8x8xf32, #tpu.memory_space<vmem>>, vector<1x1x8x8xf32>
    %88 = vector.shape_cast %87 : vector<1x1x8x8xf32> to vector<8x8xf32>
    %cst_101 = arith.constant dense<0.000000e+00> : vector<256x8xf32>
    %89 = tpu.matmul %86, %88, %cst_101 {dimension_numbers = #tpu.dot_dimension_numbers<[1], [0], [0], [1], [0, 0, 1, 1], [], []>} : vector<256x8xf32>, vector<8x8xf32>, vector<256x8xf32> -> vector<256x8xf32>
    %90 = arith.addf %84, %89 : vector<256x8xf32>
    %c0_102 = arith.constant 0 : index
    %c1_103 = arith.constant 1 : index
    %c0_104 = arith.constant 0 : index
    %91 = vector.load %arg6[%c0_102, %c1_103, %c0_104] : memref<18x18x8xf32, #tpu.memory_space<vmem>>, vector<16x16x8xf32>
    %92 = vector.shape_cast %91 : vector<16x16x8xf32> to vector<256x8xf32>
    %c0_105 = arith.constant 0 : index
    %c1_106 = arith.constant 1 : index
    %c0_107 = arith.constant 0 : index
    %c0_108 = arith.constant 0 : index
    %93 = vector.load %arg3[%c0_105, %c1_106, %c0_107, %c0_108] : memref<3x3x8x8xf32, #tpu.memory_space<vmem>>, vector<1x1x8x8xf32>
    %94 = vector.shape_cast %93 : vector<1x1x8x8xf32> to vector<8x8xf32>
    %cst_109 = arith.constant dense<0.000000e+00> : vector<256x8xf32>
    %95 = tpu.matmul %92, %94, %cst_109 {dimension_numbers = #tpu.dot_dimension_numbers<[1], [0], [0], [1], [0, 0, 1, 1], [], []>} : vector<256x8xf32>, vector<8x8xf32>, vector<256x8xf32> -> vector<256x8xf32>
    %96 = arith.addf %90, %95 : vector<256x8xf32>
    %c0_110 = arith.constant 0 : index
    %c2_111 = arith.constant 2 : index
    %c0_112 = arith.constant 0 : index
    %97 = vector.load %arg6[%c0_110, %c2_111, %c0_112] : memref<18x18x8xf32, #tpu.memory_space<vmem>>, vector<16x16x8xf32>
    %98 = vector.shape_cast %97 : vector<16x16x8xf32> to vector<256x8xf32>
    %c0_113 = arith.constant 0 : index
    %c2_114 = arith.constant 2 : index
    %c0_115 = arith.constant 0 : index
    %c0_116 = arith.constant 0 : index
    %99 = vector.load %arg3[%c0_113, %c2_114, %c0_115, %c0_116] : memref<3x3x8x8xf32, #tpu.memory_space<vmem>>, vector<1x1x8x8xf32>
    %100 = vector.shape_cast %99 : vector<1x1x8x8xf32> to vector<8x8xf32>
    %cst_117 = arith.constant dense<0.000000e+00> : vector<256x8xf32>
    %101 = tpu.matmul %98, %100, %cst_117 {dimension_numbers = #tpu.dot_dimension_numbers<[1], [0], [0], [1], [0, 0, 1, 1], [], []>} : vector<256x8xf32>, vector<8x8xf32>, vector<256x8xf32> -> vector<256x8xf32>
    %102 = arith.addf %96, %101 : vector<256x8xf32>
    %c1_118 = arith.constant 1 : index
    %c0_119 = arith.constant 0 : index
    %c0_120 = arith.constant 0 : index
    %103 = vector.load %arg6[%c1_118, %c0_119, %c0_120] : memref<18x18x8xf32, #tpu.memory_space<vmem>>, vector<16x16x8xf32>
    %104 = vector.shape_cast %103 : vector<16x16x8xf32> to vector<256x8xf32>
    %c1_121 = arith.constant 1 : index
    %c0_122 = arith.constant 0 : index
    %c0_123 = arith.constant 0 : index
    %c0_124 = arith.constant 0 : index
    %105 = vector.load %arg3[%c1_121, %c0_122, %c0_123, %c0_124] : memref<3x3x8x8xf32, #tpu.memory_space<vmem>>, vector<1x1x8x8xf32>
    %106 = vector.shape_cast %105 : vector<1x1x8x8xf32> to vector<8x8xf32>
    %cst_125 = arith.constant dense<0.000000e+00> : vector<256x8xf32>
    %107 = tpu.matmul %104, %106, %cst_125 {dimension_numbers = #tpu.dot_dimension_numbers<[1], [0], [0], [1], [0, 0, 1, 1], [], []>} : vector<256x8xf32>, vector<8x8xf32>, vector<256x8xf32> -> vector<256x8xf32>
    %108 = arith.addf %102, %107 : vector<256x8xf32>
    %c1_126 = arith.constant 1 : index
    %c1_127 = arith.constant 1 : index
    %c0_128 = arith.constant 0 : index
    %109 = vector.load %arg6[%c1_126, %c1_127, %c0_128] : memref<18x18x8xf32, #tpu.memory_space<vmem>>, vector<16x16x8xf32>
    %110 = vector.shape_cast %109 : vector<16x16x8xf32> to vector<256x8xf32>
    %c1_129 = arith.constant 1 : index
    %c1_130 = arith.constant 1 : index
    %c0_131 = arith.constant 0 : index
    %c0_132 = arith.constant 0 : index
    %111 = vector.load %arg3[%c1_129, %c1_130, %c0_131, %c0_132] : memref<3x3x8x8xf32, #tpu.memory_space<vmem>>, vector<1x1x8x8xf32>
    %112 = vector.shape_cast %111 : vector<1x1x8x8xf32> to vector<8x8xf32>
    %cst_133 = arith.constant dense<0.000000e+00> : vector<256x8xf32>
    %113 = tpu.matmul %110, %112, %cst_133 {dimension_numbers = #tpu.dot_dimension_numbers<[1], [0], [0], [1], [0, 0, 1, 1], [], []>} : vector<256x8xf32>, vector<8x8xf32>, vector<256x8xf32> -> vector<256x8xf32>
    %114 = arith.addf %108, %113 : vector<256x8xf32>
    %c1_134 = arith.constant 1 : index
    %c2_135 = arith.constant 2 : index
    %c0_136 = arith.constant 0 : index
    %115 = vector.load %arg6[%c1_134, %c2_135, %c0_136] : memref<18x18x8xf32, #tpu.memory_space<vmem>>, vector<16x16x8xf32>
    %116 = vector.shape_cast %115 : vector<16x16x8xf32> to vector<256x8xf32>
    %c1_137 = arith.constant 1 : index
    %c2_138 = arith.constant 2 : index
    %c0_139 = arith.constant 0 : index
    %c0_140 = arith.constant 0 : index
    %117 = vector.load %arg3[%c1_137, %c2_138, %c0_139, %c0_140] : memref<3x3x8x8xf32, #tpu.memory_space<vmem>>, vector<1x1x8x8xf32>
    %118 = vector.shape_cast %117 : vector<1x1x8x8xf32> to vector<8x8xf32>
    %cst_141 = arith.constant dense<0.000000e+00> : vector<256x8xf32>
    %119 = tpu.matmul %116, %118, %cst_141 {dimension_numbers = #tpu.dot_dimension_numbers<[1], [0], [0], [1], [0, 0, 1, 1], [], []>} : vector<256x8xf32>, vector<8x8xf32>, vector<256x8xf32> -> vector<256x8xf32>
    %120 = arith.addf %114, %119 : vector<256x8xf32>
    %c2_142 = arith.constant 2 : index
    %c0_143 = arith.constant 0 : index
    %c0_144 = arith.constant 0 : index
    %121 = vector.load %arg6[%c2_142, %c0_143, %c0_144] : memref<18x18x8xf32, #tpu.memory_space<vmem>>, vector<16x16x8xf32>
    %122 = vector.shape_cast %121 : vector<16x16x8xf32> to vector<256x8xf32>
    %c2_145 = arith.constant 2 : index
    %c0_146 = arith.constant 0 : index
    %c0_147 = arith.constant 0 : index
    %c0_148 = arith.constant 0 : index
    %123 = vector.load %arg3[%c2_145, %c0_146, %c0_147, %c0_148] : memref<3x3x8x8xf32, #tpu.memory_space<vmem>>, vector<1x1x8x8xf32>
    %124 = vector.shape_cast %123 : vector<1x1x8x8xf32> to vector<8x8xf32>
    %cst_149 = arith.constant dense<0.000000e+00> : vector<256x8xf32>
    %125 = tpu.matmul %122, %124, %cst_149 {dimension_numbers = #tpu.dot_dimension_numbers<[1], [0], [0], [1], [0, 0, 1, 1], [], []>} : vector<256x8xf32>, vector<8x8xf32>, vector<256x8xf32> -> vector<256x8xf32>
    %126 = arith.addf %120, %125 : vector<256x8xf32>
    %c2_150 = arith.constant 2 : index
    %c1_151 = arith.constant 1 : index
    %c0_152 = arith.constant 0 : index
    %127 = vector.load %arg6[%c2_150, %c1_151, %c0_152] : memref<18x18x8xf32, #tpu.memory_space<vmem>>, vector<16x16x8xf32>
    %128 = vector.shape_cast %127 : vector<16x16x8xf32> to vector<256x8xf32>
    %c2_153 = arith.constant 2 : index
    %c1_154 = arith.constant 1 : index
    %c0_155 = arith.constant 0 : index
    %c0_156 = arith.constant 0 : index
    %129 = vector.load %arg3[%c2_153, %c1_154, %c0_155, %c0_156] : memref<3x3x8x8xf32, #tpu.memory_space<vmem>>, vector<1x1x8x8xf32>
    %130 = vector.shape_cast %129 : vector<1x1x8x8xf32> to vector<8x8xf32>
    %cst_157 = arith.constant dense<0.000000e+00> : vector<256x8xf32>
    %131 = tpu.matmul %128, %130, %cst_157 {dimension_numbers = #tpu.dot_dimension_numbers<[1], [0], [0], [1], [0, 0, 1, 1], [], []>} : vector<256x8xf32>, vector<8x8xf32>, vector<256x8xf32> -> vector<256x8xf32>
    %132 = arith.addf %126, %131 : vector<256x8xf32>
    %c2_158 = arith.constant 2 : index
    %c2_159 = arith.constant 2 : index
    %c0_160 = arith.constant 0 : index
    %133 = vector.load %arg6[%c2_158, %c2_159, %c0_160] : memref<18x18x8xf32, #tpu.memory_space<vmem>>, vector<16x16x8xf32>
    %134 = vector.shape_cast %133 : vector<16x16x8xf32> to vector<256x8xf32>
    %c2_161 = arith.constant 2 : index
    %c2_162 = arith.constant 2 : index
    %c0_163 = arith.constant 0 : index
    %c0_164 = arith.constant 0 : index
    %135 = vector.load %arg3[%c2_161, %c2_162, %c0_163, %c0_164] : memref<3x3x8x8xf32, #tpu.memory_space<vmem>>, vector<1x1x8x8xf32>
    %136 = vector.shape_cast %135 : vector<1x1x8x8xf32> to vector<8x8xf32>
    %cst_165 = arith.constant dense<0.000000e+00> : vector<256x8xf32>
    %137 = tpu.matmul %134, %136, %cst_165 {dimension_numbers = #tpu.dot_dimension_numbers<[1], [0], [0], [1], [0, 0, 1, 1], [], []>} : vector<256x8xf32>, vector<8x8xf32>, vector<256x8xf32> -> vector<256x8xf32>
    %138 = arith.addf %132, %137 : vector<256x8xf32>
    %cst_166 = arith.constant dense<0.000000e+00> : vector<8xf32>
    %139 = vector.multi_reduction <add>, %138, %cst_166 [0] : vector<256x8xf32> to vector<8xf32>
    %140 = vector.shape_cast %139 : vector<8xf32> to vector<1x8xf32>
    %cst_167 = arith.constant 2.560000e+02 : f32
    %141 = vector.broadcast %cst_167 : f32 to vector<1x8xf32>
    %142 = arith.divf %140, %141 : vector<1x8xf32>
    %143 = vector.broadcast %142 : vector<1x8xf32> to vector<256x8xf32>
    %144 = arith.subf %138, %143 : vector<256x8xf32>
    %145 = arith.mulf %144, %144 : vector<256x8xf32>
    %cst_168 = arith.constant dense<0.000000e+00> : vector<8xf32>
    %146 = vector.multi_reduction <add>, %145, %cst_168 [0] : vector<256x8xf32> to vector<8xf32>
    %147 = vector.shape_cast %146 : vector<8xf32> to vector<1x8xf32>
    %cst_169 = arith.constant 2.560000e+02 : f32
    %148 = vector.broadcast %cst_169 : f32 to vector<1x8xf32>
    %149 = arith.divf %147, %148 : vector<1x8xf32>
    %150 = vector.broadcast %142 : vector<1x8xf32> to vector<256x8xf32>
    %151 = arith.subf %138, %150 : vector<256x8xf32>
    %cst_170 = arith.constant 9.99999974E-6 : f32
    %152 = vector.broadcast %cst_170 : f32 to vector<1x8xf32>
    %153 = arith.addf %149, %152 : vector<1x8xf32>
    %154 = math.rsqrt %153 : vector<1x8xf32>
    %155 = vector.broadcast %154 : vector<1x8xf32> to vector<256x8xf32>
    %156 = arith.mulf %151, %155 : vector<256x8xf32>
    %cst_171 = arith.constant 0.000000e+00 : f32
    %157 = vector.broadcast %cst_171 : f32 to vector<256x8xf32>
    %158 = arith.maximumf %156, %157 : vector<256x8xf32>
    %159 = vector.shape_cast %158 : vector<256x8xf32> to vector<16x16x8xf32>
    %c0_172 = arith.constant 0 : index
    %c0_173 = arith.constant 0 : index
    %c0_174 = arith.constant 0 : index
    %c0_175 = arith.constant 0 : index
    %160 = vector.load %arg4[%c0_172, %c0_173, %c0_174, %c0_175] : memref<1x16x16x8xf32, #tpu.memory_space<vmem>>, vector<1x16x16x8xf32>
    %161 = vector.shape_cast %160 : vector<1x16x16x8xf32> to vector<16x16x8xf32>
    %162 = vector.shape_cast %159 : vector<16x16x8xf32> to vector<1x16x16x8xf32>
    tpu.vector_store %arg4[%c0_172, %c0_173, %c0_174, %c0_175], %162 {strides = array<i32>} : memref<1x16x16x8xf32, #tpu.memory_space<vmem>>, vector<1x16x16x8xf32>,
    return
  }
  func.func @transform_0(%arg0: i32) -> (i32, i32, i32, i32) {
    %c0_i32 = arith.constant 0 : i32
    %c0_i32_0 = arith.constant 0 : i32
    %c0_i32_1 = arith.constant 0 : i32
    %c0_i32_2 = arith.constant 0 : i32
    return %arg0, %c0_i32, %c0_i32_0, %c0_i32_1 : i32, i32, i32, i32
  }
  func.func @transform_1(%arg0: i32) -> (i32, i32, i32, i32) {
    %c0_i32 = arith.constant 0 : i32
    %c0_i32_0 = arith.constant 0 : i32
    %c0_i32_1 = arith.constant 0 : i32
    %c0_i32_2 = arith.constant 0 : i32
    %c0_i32_3 = arith.constant 0 : i32
    return %c0_i32, %c0_i32_0, %c0_i32_1, %c0_i32_2 : i32, i32, i32, i32
  }
  func.func @transform_2(%arg0: i32) -> (i32, i32, i32, i32) {
    %c0_i32 = arith.constant 0 : i32
    %c0_i32_0 = arith.constant 0 : i32
    %c0_i32_1 = arith.constant 0 : i32
    %c0_i32_2 = arith.constant 0 : i32
    %c0_i32_3 = arith.constant 0 : i32
    return %c0_i32, %c0_i32_0, %c0_i32_1, %c0_i32_2 : i32, i32, i32, i32
  }
  func.func @transform_3(%arg0: i32) -> (i32, i32, i32, i32) {
    %c0_i32 = arith.constant 0 : i32
    %c0_i32_0 = arith.constant 0 : i32
    %c0_i32_1 = arith.constant 0 : i32
    %c0_i32_2 = arith.constant 0 : i32
    return %arg0, %c0_i32, %c0_i32_0, %c0_i32_1 : i32, i32, i32, i32
  }
}

</mosaic_0001>

<llo_original>
// kernel: tpu_custom_call.1
$region0: #{tpu_custom_call.1}
  #allocation0 [shape = 'u32[]', space=smem, size = 0x4, offset = 0x4, fixed_abs, tag = 'smem constant byte address 0x4 - core index']
  #allocation1 [shape = 'u32[144,128]{1,0:T(1,128)}', space=vmem, size = 0x12000, scoped, tag = 'internal scratch']
  #allocation2 [shape = 'f32[18,18,4]{2,1,0:T(8,128)}', space=vmem, size = 0x36000, scoped, tag = 'scratch operand']
  #allocation3 [shape = 'f32[18,18,8]{2,1,0:T(8,128)}', space=vmem, size = 0x36000, scoped, tag = 'scratch operand']
  %s0 = inlined_call_operand.vmem [shape: f32[2,16,16,4], index: 0, kind: input, shape index: {}]
  %s1 = inlined_call_operand.vmem [shape: f32[3,3,4,8], index: 1, kind: input, shape index: {}]
  %s2 = inlined_call_operand.vmem [shape: f32[3,3,8,8], index: 2, kind: input, shape index: {}]
  %s3 = inlined_call_operand.vmem [shape: f32[2,16,16,8], index: 3, kind: output, shape index: {}]
  %s4 = sld [smem:[#allocation0]]
  $region45: #{tpu_custom_call.1} parent=0
    _
  %s6 = ssub.s32 1, %s4
  %s7 = scalar_select 0, %s6, %s4
  loop: start=0, step=1, limit=4
  $region2: #{tpu_custom_call.1} parent=0 // loop_pre_header
    _
  $region3: #{tpu_custom_call.1} parent=0 // loop_header
    %s9 = sphi 0, %s13
    %p10 = scmp.ge.s32.totalorder %s9, 4
    %s19 = sphi 0, %s21
    %s22 = sphi 0, %s19
    %s23 = sphi 0, %s22
    %s39 = sphi 0, %s23
    %s43 = sphi 0, %s43
    %s45 = sphi 0, %s43
    %s46 = sphi 0, %s45
    %s60 = sphi 0, %s46
    %s64 = sphi 0, %s64
    %s66 = sphi 0, %s64
    %s67 = sphi 0, %s66
    %s81 = sphi 0, %s67
    %s87 = sphi 0, %s89
    %s90 = sphi 0, %s87
    %s91 = sphi 0, %s90
    %s107 = sphi 0, %s91
  $region4: #{tpu_custom_call.1} parent=0 // loop_header_branch
    %12 = sbr.rel (%p10) target = $region8
  $region5: #{tpu_custom_call.1} parent=0 // loop_body
    %s14 = ssub.s32 %s9, 1
    %s15 = ssub.s32 %s9, 2
    %s16 = sadd.s32 %s9, 1
    %s17 = ssub.s32 %s9, %s16
    %p18 = scmp.eq.s32.totalorder %s17, 0
    %s20 = sadd.s32 %s19, 1
    %s21 = scalar_select %p18, %s19, %s20
    %p24 = pneg %p18
    %p25 = scmp.eq.s32.totalorder %s9, 1
    %p26 = por %p24, %p25
    %p27 = scmp.ne.s32.totalorder %s19, %s22
    %p28 = scmp.eq.s32.totalorder %s9, 0
    %p29 = por %p27, %p28
    %p30 = scmp.ne.s32.totalorder %s19, %s22
    %p31 = scmp.eq.s32.totalorder %s14, 1
    %p32 = por %p30, %p31
    %p33 = scmp.ne.s32.totalorder %s22, %s23
    %p34 = scmp.eq.s32.totalorder %s14, 0
    %p35 = por %p33, %p34
    %p36 = scmp.ne.s32.totalorder %s22, %s23
    %p37 = scmp.eq.s32.totalorder %s15, 1
    %p38 = por %p36, %p37
    %p40 = scmp.ne.s32.totalorder %s23, %s39
    %p41 = scmp.eq.s32.totalorder %s15, 0
    %p42 = por %p40, %p41
    %s44 = sadd.s32 %s43, 1
    %p47 = scmp.eq.s32.totalorder %s9, 1
    %p48 = scmp.ne.s32.totalorder %s43, %s45
    %p49 = scmp.eq.s32.totalorder %s9, 0
    %p50 = por %p48, %p49
    %p51 = scmp.ne.s32.totalorder %s43, %s45
    %p52 = scmp.eq.s32.totalorder %s14, 1
    %p53 = por %p51, %p52
    %p54 = scmp.ne.s32.totalorder %s45, %s46
    %p55 = scmp.eq.s32.totalorder %s14, 0
    %p56 = por %p54, %p55
    %p57 = scmp.ne.s32.totalorder %s45, %s46
    %p58 = scmp.eq.s32.totalorder %s15, 1
    %p59 = por %p57, %p58
    %p61 = scmp.ne.s32.totalorder %s46, %s60
    %p62 = scmp.eq.s32.totalorder %s15, 0
    %p63 = por %p61, %p62
    %s65 = sadd.s32 %s64, 1
    %p68 = scmp.eq.s32.totalorder %s9, 1
    %p69 = scmp.ne.s32.totalorder %s64, %s66
    %p70 = scmp.eq.s32.totalorder %s9, 0
    %p71 = por %p69, %p70
    %p72 = scmp.ne.s32.totalorder %s64, %s66
    %p73 = scmp.eq.s32.totalorder %s14, 1
    %p74 = por %p72, %p73
    %p75 = scmp.ne.s32.totalorder %s66, %s67
    %p76 = scmp.eq.s32.totalorder %s14, 0
    %p77 = por %p75, %p76
    %p78 = scmp.ne.s32.totalorder %s66, %s67
    %p79 = scmp.eq.s32.totalorder %s15, 1
    %p80 = por %p78, %p79
    %p82 = scmp.ne.s32.totalorder %s67, %s81
    %p83 = scmp.eq.s32.totalorder %s15, 0
    %p84 = por %p82, %p83
    %s85 = ssub.s32 %s9, %s16
    %p86 = scmp.eq.s32.totalorder %s85, 0
    %s88 = sadd.s32 %s87, 1
    %s89 = scalar_select %p86, %s87, %s88
    %p92 = pneg %p86
    %p93 = scmp.eq.s32.totalorder %s9, 1
    %p94 = por %p92, %p93
    %p95 = scmp.ne.s32.totalorder %s87, %s90
    %p96 = scmp.eq.s32.totalorder %s9, 0
    %p97 = por %p95, %p96
    %p98 = scmp.ne.s32.totalorder %s87, %s90
    %p99 = scmp.eq.s32.totalorder %s14, 1
    %p100 = por %p98, %p99
    %p101 = scmp.ne.s32.totalorder %s90, %s91
    %p102 = scmp.eq.s32.totalorder %s14, 0
    %p103 = por %p101, %p102
    %p104 = scmp.ne.s32.totalorder %s90, %s91
    %p105 = scmp.eq.s32.totalorder %s15, 1
    %p106 = por %p104, %p105
    %p108 = scmp.ne.s32.totalorder %s91, %s107
    %p109 = scmp.eq.s32.totalorder %s15, 0
    %p110 = por %p108, %p109
    %p111 = scmp.le.s32.totalorder 1, %s9
    %p112 = scmp.lt.s32.totalorder %s9, 3
    %p113 = pnand %p111, %p112
    %p114 = pneg %p113
    // Predicated region
    $region9: #{tpu_custom_call.1} parent=5 // pred_check
      _
    $region10: #{tpu_custom_call.1} parent=5 // pred_check_branch
      %116 = sbr.rel (%p113) target = $region12
    $region11: #{tpu_custom_call.1} parent=5 // pred_region
      %s117 = ssub.s32 %s9, 1
      // Predicated region
      $region13: #{tpu_custom_call.1} parent=11 // pred_check
        %p118 = pneg %p56
      $region14: #{tpu_custom_call.1} parent=11 // pred_check_branch
        %120 = sbr.rel (%p118) target = $region16
      $region15: #{tpu_custom_call.1} parent=11 // pred_region
        _
      $region16: #{tpu_custom_call.1} parent=11 // pred_fallthru
        _
      // Predicated region
      $region17: #{tpu_custom_call.1} parent=11 // pred_check
        %p121 = pneg %p77
      $region18: #{tpu_custom_call.1} parent=11 // pred_check_branch
        %123 = sbr.rel (%p121) target = $region20
      $region19: #{tpu_custom_call.1} parent=11 // pred_region
        _
      $region20: #{tpu_custom_call.1} parent=11 // pred_fallthru
        _
    $region12: #{tpu_custom_call.1} parent=5 // pred_fallthru
      _
    %p124 = scmp.lt.s32.totalorder %s9, 2
    // Predicated region
    $region21: #{tpu_custom_call.1} parent=5 // pred_check
      %p125 = pneg %p124
    $region22: #{tpu_custom_call.1} parent=5 // pred_check_branch
      %127 = sbr.rel (%p125) target = $region24
    $region23: #{tpu_custom_call.1} parent=5 // pred_region
      // Predicated region
      $region25: #{tpu_custom_call.1} parent=23 // pred_check
        %p128 = pneg %p29
      $region26: #{tpu_custom_call.1} parent=23 // pred_check_branch
        %130 = sbr.rel (%p128) target = $region28
      $region27: #{tpu_custom_call.1} parent=23 // pred_region
        %p131 = scmp.lt.s32.totalorder %s9, 1
        %s132 = scalar_select %p131, %s9, 1
        %s133 = smul.addr %s132, 32
        %s134 = smul.addr %s133, 8
        %s135 = scalar_lea.vmem %s0, %s134
      $region28: #{tpu_custom_call.1} parent=23 // pred_fallthru
        _
    $region24: #{tpu_custom_call.1} parent=5 // pred_fallthru
      _
    %p136 = scmp.le.s32.totalorder 1, %s9
    %p137 = scmp.lt.s32.totalorder %s9, 3
    %p138 = pnand %p136, %p137
    %p139 = pneg %p138
    // Predicated region
    $region29: #{tpu_custom_call.1} parent=5 // pred_check
      _
    $region30: #{tpu_custom_call.1} parent=5 // pred_check_branch
      %141 = sbr.rel (%p138) target = $region32
    $region31: #{tpu_custom_call.1} parent=5 // pred_region
      %s142 = ssub.s32 %s9, 1
      %p143 = scmp.lt.s32.totalorder %s14, 1
      %s144 = scalar_select %p143, %s14, 1
      %s145 = smul.addr %s144, 32
      %s146 = smul.addr %s145, 8
      %s147 = scalar_lea.vmem %s0, %s146
      %p148 = pneg %p35
      %p149 = pneg %p32
      %p150 = pneg %p56
      %p151 = pneg %p53
      %p152 = pneg %p77
      %p153 = pneg %p74
      %p154 = pneg %p103
      %p155 = pneg %p100
      %p156 = scmp.lt.s32.totalorder %s14, 1
      %s157 = scalar_select %p156, %s14, 1
      %s158 = smul.addr %s157, 32
      %s159 = smul.addr %s158, 8
      %s160 = scalar_lea.vmem %s3, %s159
      %p161 = scmp.lt.s32.totalorder %s14, 1
      %s162 = scalar_select %p161, %s14, 1
      %s163 = smul.addr %s162, 32
      %s164 = smul.addr %s163, 8
      %s165 = scalar_lea.vmem %s0, %s164
      %p166 = scmp.lt.s32.totalorder %s14, 1
      %s167 = scalar_select %p166, %s14, 1
      %s168 = smul.addr %s167, 32
      %s169 = smul.addr %s168, 8
      %s170 = scalar_lea.vmem %s3, %s169
      %vm171 = vcmask 31744
      %172 = vst.msk [vmem:[#allocation2] sm:$0xff] %vm171, 0.0
      %173 = vst.msk [vmem:[#allocation2 + $0x8] sm:$0xff] %vm171, 0.0
      %vm174 = vcmask 25600
      %175 = vst.msk [vmem:[#allocation2 + $0x10] sm:$0x3] %vm174, 0.0
      %176 = vst.msk [vmem:[#allocation2 + $0x18] sm:$0xff] %vm171, 0.0
      %177 = vst.msk [vmem:[#allocation2 + $0x20] sm:$0xff] %vm171, 0.0
      %178 = vst.msk [vmem:[#allocation2 + $0x28] sm:$0x3] %vm174, 0.0
      %179 = vst.msk [vmem:[#allocation2 + $0x30] sm:$0xff] %vm171, 0.0
      %180 = vst.msk [vmem:[#allocation2 + $0x38] sm:$0xff] %vm171, 0.0
      %181 = vst.msk [vmem:[#allocation2 + $0x40] sm:$0x3] %vm174, 0.0
      %182 = vst.msk [vmem:[#allocation2 + $0x48] sm:$0xff] %vm171, 0.0
      %183 = vst.msk [vmem:[#allocation2 + $0x50] sm:$0xff] %vm171, 0.0
      %184 = vst.msk [vmem:[#allocation2 + $0x58] sm:$0x3] %vm174, 0.0
      %185 = vst.msk [vmem:[#allocation2 + $0x60] sm:$0xff] %vm171, 0.0
      %186 = vst.msk [vmem:[#allocation2 + $0x68] sm:$0xff] %vm171, 0.0
      %187 = vst.msk [vmem:[#allocation2 + $0x70] sm:$0x3] %vm174, 0.0
      %188 = vst.msk [vmem:[#allocation2 + $0x78] sm:$0xff] %vm171, 0.0
      %189 = vst.msk [vmem:[#allocation2 + $0x80] sm:$0xff] %vm171, 0.0
      %190 = vst.msk [vmem:[#allocation2 + $0x88] sm:$0x3] %vm174, 0.0
      %191 = vst.msk [vmem:[#allocation2 + $0x90] sm:$0xff] %vm171, 0.0
      %192 = vst.msk [vmem:[#allocation2 + $0x98] sm:$0xff] %vm171, 0.0
      %193 = vst.msk [vmem:[#allocation2 + $0xa0] sm:$0x3] %vm174, 0.0
      %194 = vst.msk [vmem:[#allocation2 + $0xa8] sm:$0xff] %vm171, 0.0
      %195 = vst.msk [vmem:[#allocation2 + $0xb0] sm:$0xff] %vm171, 0.0
      %196 = vst.msk [vmem:[#allocation2 + $0xb8] sm:$0x3] %vm174, 0.0
      %197 = vst.msk [vmem:[#allocation2 + $0xc0] sm:$0xff] %vm171, 0.0
      %198 = vst.msk [vmem:[#allocation2 + $0xc8] sm:$0xff] %vm171, 0.0
      %199 = vst.msk [vmem:[#allocation2 + $0xd0] sm:$0x3] %vm174, 0.0
      %200 = vst.msk [vmem:[#allocation2 + $0xd8] sm:$0xff] %vm171, 0.0
      %201 = vst.msk [vmem:[#allocation2 + $0xe0] sm:$0xff] %vm171, 0.0
      %202 = vst.msk [vmem:[#allocation2 + $0xe8] sm:$0x3] %vm174, 0.0
      %203 = vst.msk [vmem:[#allocation2 + $0xf0] sm:$0xff] %vm171, 0.0
      %204 = vst.msk [vmem:[#allocation2 + $0xf8] sm:$0xff] %vm171, 0.0
      %205 = vst.msk [vmem:[#allocation2 + $0x100] sm:$0x3] %vm174, 0.0
      %206 = vst.msk [vmem:[#allocation2 + $0x108] sm:$0xff] %vm171, 0.0
      %207 = vst.msk [vmem:[#allocation2 + $0x110] sm:$0xff] %vm171, 0.0
      %208 = vst.msk [vmem:[#allocation2 + $0x118] sm:$0x3] %vm174, 0.0
      %209 = vst.msk [vmem:[#allocation2 + $0x120] sm:$0xff] %vm171, 0.0
      %210 = vst.msk [vmem:[#allocation2 + $0x128] sm:$0xff] %vm171, 0.0
      %211 = vst.msk [vmem:[#allocation2 + $0x130] sm:$0x3] %vm174, 0.0
      %212 = vst.msk [vmem:[#allocation2 + $0x138] sm:$0xff] %vm171, 0.0
      %213 = vst.msk [vmem:[#allocation2 + $0x140] sm:$0xff] %vm171, 0.0
      %214 = vst.msk [vmem:[#allocation2 + $0x148] sm:$0x3] %vm174, 0.0
      %215 = vst.msk [vmem:[#allocation2 + $0x150] sm:$0xff] %vm171, 0.0
      %216 = vst.msk [vmem:[#allocation2 + $0x158] sm:$0xff] %vm171, 0.0
      %217 = vst.msk [vmem:[#allocation2 + $0x160] sm:$0x3] %vm174, 0.0
      %218 = vst.msk [vmem:[#allocation2 + $0x168] sm:$0xff] %vm171, 0.0
      %219 = vst.msk [vmem:[#allocation2 + $0x170] sm:$0xff] %vm171, 0.0
      %220 = vst.msk [vmem:[#allocation2 + $0x178] sm:$0x3] %vm174, 0.0
      %221 = vst.msk [vmem:[#allocation2 + $0x180] sm:$0xff] %vm171, 0.0
      %222 = vst.msk [vmem:[#allocation2 + $0x188] sm:$0xff] %vm171, 0.0
      %223 = vst.msk [vmem:[#allocation2 + $0x190] sm:$0x3] %vm174, 0.0
      %224 = vst.msk [vmem:[#allocation2 + $0x198] sm:$0xff] %vm171, 0.0
      %225 = vst.msk [vmem:[#allocation2 + $0x1a0] sm:$0xff] %vm171, 0.0
      %226 = vst.msk [vmem:[#allocation2 + $0x1a8] sm:$0x3] %vm174, 0.0
      %v227 = vld [vmem:[%s165] sm:$0xff]
      %v228 = vld [vmem:[%s165 + $0x8] sm:$0xff]
      %v229 = vld [vmem:[%s165 + $0x10] sm:$0xff]
      %v230 = vld [vmem:[%s165 + $0x18] sm:$0xff]
      %v231 = vld [vmem:[%s165 + $0x20] sm:$0xff]
      %v232 = vld [vmem:[%s165 + $0x28] sm:$0xff]
      %v233 = vld [vmem:[%s165 + $0x30] sm:$0xff]
      %v234 = vld [vmem:[%s165 + $0x38] sm:$0xff]
      %v235 = vld [vmem:[%s165 + $0x40] sm:$0xff]
      %v236 = vld [vmem:[%s165 + $0x48] sm:$0xff]
      %v237 = vld [vmem:[%s165 + $0x50] sm:$0xff]
      %v238 = vld [vmem:[%s165 + $0x58] sm:$0xff]
      %v239 = vld [vmem:[%s165 + $0x60] sm:$0xff]
      %v240 = vld [vmem:[%s165 + $0x68] sm:$0xff]
      %v241 = vld [vmem:[%s165 + $0x70] sm:$0xff]
      %v242 = vld [vmem:[%s165 + $0x78] sm:$0xff]
      %v243 = vld [vmem:[%s165 + $0x80] sm:$0xff]
      %v244 = vld [vmem:[%s165 + $0x88] sm:$0xff]
      %v245 = vld [vmem:[%s165 + $0x90] sm:$0xff]
      %v246 = vld [vmem:[%s165 + $0x98] sm:$0xff]
      %v247 = vld [vmem:[%s165 + $0xa0] sm:$0xff]
      %v248 = vld [vmem:[%s165 + $0xa8] sm:$0xff]
      %v249 = vld [vmem:[%s165 + $0xb0] sm:$0xff]
      %v250 = vld [vmem:[%s165 + $0xb8] sm:$0xff]
      %v251 = vld [vmem:[%s165 + $0xc0] sm:$0xff]
      %v252 = vld [vmem:[%s165 + $0xc8] sm:$0xff]
      %v253 = vld [vmem:[%s165 + $0xd0] sm:$0xff]
      %v254 = vld [vmem:[%s165 + $0xd8] sm:$0xff]
      %v255 = vld [vmem:[%s165 + $0xe0] sm:$0xff]
      %v256 = vld [vmem:[%s165 + $0xe8] sm:$0xff]
      %v257 = vld [vmem:[%s165 + $0xf0] sm:$0xff]
      %v258 = vld [vmem:[%s165 + $0xf8] sm:$0xff]
      %s259 = scalar_lea.vmem [#allocation2], 24
      %260 = vst.msk [vmem:[%s259 + $0x1] sm:$0xff] %vm171, %v227
      %261 = vst.msk [vmem:[%s259 + $0x9] sm:$0xff] %vm171, %v228
      %262 = vst.msk [vmem:[%s259 + $0x19] sm:$0xff] %vm171, %v229
      %263 = vst.msk [vmem:[%s259 + $0x21] sm:$0xff] %vm171, %v230
      %264 = vst.msk [vmem:[%s259 + $0x31] sm:$0xff] %vm171, %v231
      %265 = vst.msk [vmem:[%s259 + $0x39] sm:$0xff] %vm171, %v232
      %266 = vst.msk [vmem:[%s259 + $0x49] sm:$0xff] %vm171, %v233
      %267 = vst.msk [vmem:[%s259 + $0x51] sm:$0xff] %vm171, %v234
      %268 = vst.msk [vmem:[%s259 + $0x61] sm:$0xff] %vm171, %v235
      %269 = vst.msk [vmem:[%s259 + $0x69] sm:$0xff] %vm171, %v236
      %270 = vst.msk [vmem:[%s259 + $0x79] sm:$0xff] %vm171, %v237
      %271 = vst.msk [vmem:[%s259 + $0x81] sm:$0xff] %vm171, %v238
      %272 = vst.msk [vmem:[%s259 + $0x91] sm:$0xff] %vm171, %v239
      %273 = vst.msk [vmem:[%s259 + $0x99] sm:$0xff] %vm171, %v240
      %274 = vst.msk [vmem:[%s259 + $0xa9] sm:$0xff] %vm171, %v241
      %275 = vst.msk [vmem:[%s259 + $0xb1] sm:$0xff] %vm171, %v242
      %276 = vst.msk [vmem:[%s259 + $0xc1] sm:$0xff] %vm171, %v243
      %277 = vst.msk [vmem:[%s259 + $0xc9] sm:$0xff] %vm171, %v244
      %278 = vst.msk [vmem:[%s259 + $0xd9] sm:$0xff] %vm171, %v245
      %279 = vst.msk [vmem:[%s259 + $0xe1] sm:$0xff] %vm171, %v246
      %280 = vst.msk [vmem:[%s259 + $0xf1] sm:$0xff] %vm171, %v247
      %281 = vst.msk [vmem:[%s259 + $0xf9] sm:$0xff] %vm171, %v248
      %282 = vst.msk [vmem:[%s259 + $0x109] sm:$0xff] %vm171, %v249
      %283 = vst.msk [vmem:[%s259 + $0x111] sm:$0xff] %vm171, %v250
      %284 = vst.msk [vmem:[%s259 + $0x121] sm:$0xff] %vm171, %v251
      %285 = vst.msk [vmem:[%s259 + $0x129] sm:$0xff] %vm171, %v252
      %286 = vst.msk [vmem:[%s259 + $0x139] sm:$0xff] %vm171, %v253
      %287 = vst.msk [vmem:[%s259 + $0x141] sm:$0xff] %vm171, %v254
      %288 = vst.msk [vmem:[%s259 + $0x151] sm:$0xff] %vm171, %v255
      %289 = vst.msk [vmem:[%s259 + $0x159] sm:$0xff] %vm171, %v256
      %290 = vst.msk [vmem:[%s259 + $0x169] sm:$0xff] %vm171, %v257
      %291 = vst.msk [vmem:[%s259 + $0x171] sm:$0xff] %vm171, %v258
      %v292 = vld [vmem:[#allocation2] sm:$0xff]
      %v293 = vld [vmem:[#allocation2 + $0x8] sm:$0xff]
      %v294 = vld [vmem:[#allocation2 + $0x18] sm:$0xff]
      %v295 = vld [vmem:[#allocation2 + $0x20] sm:$0xff]
      %v296 = vld [vmem:[#allocation2 + $0x30] sm:$0xff]
      %v297 = vld [vmem:[#allocation2 + $0x38] sm:$0xff]
      %v298 = vld [vmem:[#allocation2 + $0x48] sm:$0xff]
      %v299 = vld [vmem:[#allocation2 + $0x50] sm:$0xff]
      %v300 = vld [vmem:[#allocation2 + $0x60] sm:$0xff]
      %v301 = vld [vmem:[#allocation2 + $0x68] sm:$0xff]
      %v302 = vld [vmem:[#allocation2 + $0x78] sm:$0xff]
      %v303 = vld [vmem:[#allocation2 + $0x80] sm:$0xff]
      %v304 = vld [vmem:[#allocation2 + $0x90] sm:$0xff]
      %v305 = vld [vmem:[#allocation2 + $0x98] sm:$0xff]
      %v306 = vld [vmem:[#allocation2 + $0xa8] sm:$0xff]
      %v307 = vld [vmem:[#allocation2 + $0xb0] sm:$0xff]
      %v308 = vld [vmem:[#allocation2 + $0xc0] sm:$0xff]
      %v309 = vld [vmem:[#allocation2 + $0xc8] sm:$0xff]
      %v310 = vld [vmem:[#allocation2 + $0xd8] sm:$0xff]
      %v311 = vld [vmem:[#allocation2 + $0xe0] sm:$0xff]
      %v312 = vld [vmem:[#allocation2 + $0xf0] sm:$0xff]
      %v313 = vld [vmem:[#allocation2 + $0xf8] sm:$0xff]
      %v314 = vld [vmem:[#allocation2 + $0x108] sm:$0xff]
      %v315 = vld [vmem:[#allocation2 + $0x110] sm:$0xff]
      %v316 = vld [vmem:[#allocation2 + $0x120] sm:$0xff]
      %v317 = vld [vmem:[#allocation2 + $0x128] sm:$0xff]
      %v318 = vld [vmem:[#allocation2 + $0x138] sm:$0xff]
      %v319 = vld [vmem:[#allocation2 + $0x140] sm:$0xff]
      %v320 = vld [vmem:[#allocation2 + $0x150] sm:$0xff]
      %v321 = vld [vmem:[#allocation2 + $0x158] sm:$0xff]
      %v322 = vld [vmem:[#allocation2 + $0x168] sm:$0xff]
      %v323 = vld [vmem:[#allocation2 + $0x170] sm:$0xff]
      %v324 = vld [vmem:[%s1] sm:$0xf]
      %v325 = vld [vmem:[#allocation2 + $0x1] sm:$0xff]
      %v326 = vld [vmem:[#allocation2 + $0x9] sm:$0xff]
      %v327 = vld [vmem:[#allocation2 + $0x19] sm:$0xff]
      %v328 = vld [vmem:[#allocation2 + $0x21] sm:$0xff]
      %v329 = vld [vmem:[#allocation2 + $0x31] sm:$0xff]
      %v330 = vld [vmem:[#allocation2 + $0x39] sm:$0xff]
      %v331 = vld [vmem:[#allocation2 + $0x49] sm:$0xff]
      %v332 = vld [vmem:[#allocation2 + $0x51] sm:$0xff]
      %v333 = vld [vmem:[#allocation2 + $0x61] sm:$0xff]
      %v334 = vld [vmem:[#allocation2 + $0x69] sm:$0xff]
      %v335 = vld [vmem:[#allocation2 + $0x79] sm:$0xff]
      %v336 = vld [vmem:[#allocation2 + $0x81] sm:$0xff]
      %v337 = vld [vmem:[#allocation2 + $0x91] sm:$0xff]
      %v338 = vld [vmem:[#allocation2 + $0x99] sm:$0xff]
      %v339 = vld [vmem:[#allocation2 + $0xa9] sm:$0xff]
      %v340 = vld [vmem:[#allocation2 + $0xb1] sm:$0xff]
      %v341 = vld [vmem:[#allocation2 + $0xc1] sm:$0xff]
      %v342 = vld [vmem:[#allocation2 + $0xc9] sm:$0xff]
      %v343 = vld [vmem:[#allocation2 + $0xd9] sm:$0xff]
      %v344 = vld [vmem:[#allocation2 + $0xe1] sm:$0xff]
      %v345 = vld [vmem:[#allocation2 + $0xf1] sm:$0xff]
      %v346 = vld [vmem:[#allocation2 + $0xf9] sm:$0xff]
      %v347 = vld [vmem:[#allocation2 + $0x109] sm:$0xff]
      %v348 = vld [vmem:[#allocation2 + $0x111] sm:$0xff]
      %v349 = vld [vmem:[#allocation2 + $0x121] sm:$0xff]
      %v350 = vld [vmem:[#allocation2 + $0x129] sm:$0xff]
      %v351 = vld [vmem:[#allocation2 + $0x139] sm:$0xff]
      %v352 = vld [vmem:[#allocation2 + $0x141] sm:$0xff]
      %v353 = vld [vmem:[#allocation2 + $0x151] sm:$0xff]
      %v354 = vld [vmem:[#allocation2 + $0x159] sm:$0xff]
      %v355 = vld [vmem:[#allocation2 + $0x169] sm:$0xff]
      %v356 = vld [vmem:[#allocation2 + $0x171] sm:$0xff]
      %s357 = scalar_lea.vmem %s1, 4
      %v358 = vld [vmem:[%s357] sm:$0xf]
      %v360 = vsel %vm171, %v325, 0
      %v363 = vsel %vm171, %v326, 0
      %v366 = vsel %vm171, %v327, 0
      %v369 = vsel %vm171, %v328, 0
      %v372 = vsel %vm171, %v329, 0
      %v375 = vsel %vm171, %v330, 0
      %v378 = vsel %vm171, %v331, 0
      %v381 = vsel %vm171, %v332, 0
      %v384 = vsel %vm171, %v333, 0
      %v387 = vsel %vm171, %v334, 0
      %v390 = vsel %vm171, %v335, 0
      %v393 = vsel %vm171, %v336, 0
      %v396 = vsel %vm171, %v337, 0
      %v399 = vsel %vm171, %v338, 0
      %v402 = vsel %vm171, %v339, 0
      %v405 = vsel %vm171, %v340, 0
      %v408 = vsel %vm171, %v341, 0
      %v411 = vsel %vm171, %v342, 0
      %v414 = vsel %vm171, %v343, 0
      %v417 = vsel %vm171, %v344, 0
      %v420 = vsel %vm171, %v345, 0
      %v423 = vsel %vm171, %v346, 0
      %v426 = vsel %vm171, %v347, 0
      %v429 = vsel %vm171, %v348, 0
      %v432 = vsel %vm171, %v349, 0
      %v435 = vsel %vm171, %v350, 0
      %v438 = vsel %vm171, %v351, 0
      %v441 = vsel %vm171, %v352, 0
      %v444 = vsel %vm171, %v353, 0
      %v447 = vsel %vm171, %v354, 0
      %v450 = vsel %vm171, %v355, 0
      %v453 = vsel %vm171, %v356, 0
      %vm455 = vcmask 1043456
      %v457 = vsel %vm455, %v358, 0
      %459 = vmatprep.subr.mxu0 0.0
      %460 = vmatpush1.msra.mxu0 %v457
      %461 = vmatprep.subr.mxu0 0.0
      %462 = vmatpush1.msra.mxu0 0.0
      %463 = vmatprep.subr.mxu0 0.0
      %464 = vmatpush1.msra.mxu0 0.0
      %465 = vmatprep.subr.mxu0 0.0
      %466 = vmatpush1.msra.mxu0 0.0
      %467 = vmatprep.subr.mxu0 0.0
      %468 = vmatpush1.msra.mxu0 0.0
      %469 = vmatprep.subr.mxu0 0.0
      %470 = vmatpush1.msra.mxu0 0.0
      %471 = vmatprep.subr.mxu0 0.0
      %472 = vmatpush1.msra.mxu0 0.0
      %473 = vmatprep.subr.mxu0 0.0
      %474 = vmatpush1.msra.mxu0 0.0
      %475 = vmatprep.subr.mxu0 0.0
      %476 = vmatpush1.msra.mxu0 0.0
      %477 = vmatprep.subr.mxu0 0.0
      %478 = vmatpush1.msra.mxu0 0.0
      %479 = vmatprep.subr.mxu0 0.0
      %480 = vmatpush1.msra.mxu0 0.0
      %481 = vmatprep.subr.mxu0 0.0
      %482 = vmatpush1.msra.mxu0 0.0
      %483 = vmatprep.subr.mxu0 0.0
      %484 = vmatpush1.msra.mxu0 0.0
      %485 = vmatprep.subr.mxu0 0.0
      %486 = vmatpush1.msra.mxu0 0.0
      %487 = vmatprep.subr.mxu0 0.0
      %488 = vmatpush1.msra.mxu0 0.0
      %489 = vmatprep.subr.mxu0 0.0
      %490 = vmatpush1.msra.mxu0 0.0
      %491 = vmatprep.subr.mxu0 0.0
      %492 = vmatpush1.msra.mxu0 0.0
      %493 = vmatprep.subr.mxu0 0.0
      %494 = vmatpush1.msra.mxu0 0.0
      %495 = vmatprep.subr.mxu0 0.0
      %496 = vmatpush1.msra.mxu0 0.0
      %497 = vmatprep.subr.mxu0 0.0
      %498 = vmatpush1.msra.mxu0 0.0
      %499 = vmatprep.subr.mxu0 0.0
      %500 = vmatpush1.msra.mxu0 0.0
      %501 = vmatprep.subr.mxu0 0.0
      %502 = vmatpush1.msra.mxu0 0.0
      %503 = vmatprep.subr.mxu0 0.0
      %504 = vmatpush1.msra.mxu0 0.0
      %505 = vmatprep.subr.mxu0 0.0
      %506 = vmatpush1.msra.mxu0 0.0
      %507 = vmatprep.subr.mxu0 0.0
      %508 = vmatpush1.msra.mxu0 0.0
      %509 = vmatprep.subr.mxu0 0.0
      %510 = vmatpush1.msra.mxu0 0.0
      %511 = vmatprep.subr.mxu0 0.0
      %512 = vmatpush1.msra.mxu0 0.0
      %513 = vmatprep.subr.mxu0 0.0
      %514 = vmatpush1.msra.mxu0 0.0
      %515 = vmatprep.subr.mxu0 0.0
      %516 = vmatpush1.msra.mxu0 0.0
      %517 = vmatprep.subr.mxu0 0.0
      %518 = vmatpush1.msra.mxu0 0.0
      %519 = vmatprep.subr.mxu0 0.0
      %520 = vmatpush1.msra.mxu0 0.0
      %521 = vmatprep.subr.mxu0 0.0
      %522 = vmatpush1.msra.mxu0 0.0
      %523 = vmatprep.mubr.f32.mxu0 0.0
      %524 = vmatmul.mubr.f32.gmra.mrb[0].mxu0 %v360
      %v525 = vpop.f32.mrb[0].mxu0
      %v526 = vadd.f32 0.0, %v525
      %v527 = vpop.f32.mrb[0].mxu0
      %528 = vmatprep.mubr.f32.mxu0 0.0
      %529 = vmatmul.mubr.f32.gmra.mrb[0].mxu0 %v363
      %v530 = vpop.f32.mrb[0].mxu0
      %v531 = vadd.f32 0.0, %v530
      %v532 = vpop.f32.mrb[0].mxu0
      %533 = vmatprep.mubr.f32.mxu0 0.0
      %534 = vmatmul.mubr.f32.gmra.mrb[0].mxu0 %v366
      %v535 = vpop.f32.mrb[0].mxu0
      %v536 = vadd.f32 0.0, %v535
      %v537 = vpop.f32.mrb[0].mxu0
      %538 = vmatprep.mubr.f32.mxu0 0.0
      %539 = vmatmul.mubr.f32.gmra.mrb[0].mxu0 %v369
      %v540 = vpop.f32.mrb[0].mxu0
      %v541 = vadd.f32 0.0, %v540
      %v542 = vpop.f32.mrb[0].mxu0
      %543 = vmatprep.mubr.f32.mxu0 0.0
      %544 = vmatmul.mubr.f32.gmra.mrb[0].mxu0 %v372
      %v545 = vpop.f32.mrb[0].mxu0
      %v546 = vadd.f32 0.0, %v545
      %v547 = vpop.f32.mrb[0].mxu0
      %548 = vmatprep.mubr.f32.mxu0 0.0
      %549 = vmatmul.mubr.f32.gmra.mrb[0].mxu0 %v375
      %v550 = vpop.f32.mrb[0].mxu0
      %v551 = vadd.f32 0.0, %v550
      %v552 = vpop.f32.mrb[0].mxu0
      %553 = vmatprep.mubr.f32.mxu0 0.0
      %554 = vmatmul.mubr.f32.gmra.mrb[0].mxu0 %v378
      %v555 = vpop.f32.mrb[0].mxu0
      %v556 = vadd.f32 0.0, %v555
      %v557 = vpop.f32.mrb[0].mxu0
      %558 = vmatprep.mubr.f32.mxu0 0.0
      %559 = vmatmul.mubr.f32.gmra.mrb[0].mxu0 %v381
      %v560 = vpop.f32.mrb[0].mxu0
      %v561 = vadd.f32 0.0, %v560
      %v562 = vpop.f32.mrb[0].mxu0
      %563 = vmatprep.mubr.f32.mxu0 0.0
      %564 = vmatmul.mubr.f32.gmra.mrb[0].mxu0 %v384
      %v565 = vpop.f32.mrb[0].mxu0
      %v566 = vadd.f32 0.0, %v565
      %v567 = vpop.f32.mrb[0].mxu0
      %568 = vmatprep.mubr.f32.mxu0 0.0
      %569 = vmatmul.mubr.f32.gmra.mrb[0].mxu0 %v387
      %v570 = vpop.f32.mrb[0].mxu0
      %v571 = vadd.f32 0.0, %v570
      %v572 = vpop.f32.mrb[0].mxu0
      %573 = vmatprep.mubr.f32.mxu0 0.0
      %574 = vmatmul.mubr.f32.gmra.mrb[0].mxu0 %v390
      %v575 = vpop.f32.mrb[0].mxu0
      %v576 = vadd.f32 0.0, %v575
      %v577 = vpop.f32.mrb[0].mxu0
      %578 = vmatprep.mubr.f32.mxu0 0.0
      %579 = vmatmul.mubr.f32.gmra.mrb[0].mxu0 %v393
      %v580 = vpop.f32.mrb[0].mxu0
      %v581 = vadd.f32 0.0, %v580
      %v582 = vpop.f32.mrb[0].mxu0
      %583 = vmatprep.mubr.f32.mxu0 0.0
      %584 = vmatmul.mubr.f32.gmra.mrb[0].mxu0 %v396
      %v585 = vpop.f32.mrb[0].mxu0
      %v586 = vadd.f32 0.0, %v585
      %v587 = vpop.f32.mrb[0].mxu0
      %588 = vmatprep.mubr.f32.mxu0 0.0
      %589 = vmatmul.mubr.f32.gmra.mrb[0].mxu0 %v399
      %v590 = vpop.f32.mrb[0].mxu0
      %v591 = vadd.f32 0.0, %v590
      %v592 = vpop.f32.mrb[0].mxu0
      %593 = vmatprep.mubr.f32.mxu0 0.0
      %594 = vmatmul.mubr.f32.gmra.mrb[0].mxu0 %v402
      %v595 = vpop.f32.mrb[0].mxu0
      %v596 = vadd.f32 0.0, %v595
      %v597 = vpop.f32.mrb[0].mxu0
      %598 = vmatprep.mubr.f32.mxu0 0.0
      %599 = vmatmul.mubr.f32.gmra.mrb[0].mxu0 %v405
      %v600 = vpop.f32.mrb[0].mxu0
      %v601 = vadd.f32 0.0, %v600
      %v602 = vpop.f32.mrb[0].mxu0
      %603 = vmatprep.mubr.f32.mxu0 0.0
      %604 = vmatmul.mubr.f32.gmra.mrb[0].mxu0 %v408
      %v605 = vpop.f32.mrb[0].mxu0
      %v606 = vadd.f32 0.0, %v605
      %v607 = vpop.f32.mrb[0].mxu0
      %608 = vmatprep.mubr.f32.mxu0 0.0
      %609 = vmatmul.mubr.f32.gmra.mrb[0].mxu0 %v411
      %v610 = vpop.f32.mrb[0].mxu0
      %v611 = vadd.f32 0.0, %v610
      %v612 = vpop.f32.mrb[0].mxu0
      %613 = vmatprep.mubr.f32.mxu0 0.0
      %614 = vmatmul.mubr.f32.gmra.mrb[0].mxu0 %v414
      %v615 = vpop.f32.mrb[0].mxu0
      %v616 = vadd.f32 0.0, %v615
      %v617 = vpop.f32.mrb[0].mxu0
      %618 = vmatprep.mubr.f32.mxu0 0.0
      %619 = vmatmul.mubr.f32.gmra.mrb[0].mxu0 %v417
      %v620 = vpop.f32.mrb[0].mxu0
      %v621 = vadd.f32 0.0, %v620
      %v622 = vpop.f32.mrb[0].mxu0
      %623 = vmatprep.mubr.f32.mxu0 0.0
      %624 = vmatmul.mubr.f32.gmra.mrb[0].mxu0 %v420
      %v625 = vpop.f32.mrb[0].mxu0
      %v626 = vadd.f32 0.0, %v625
      %v627 = vpop.f32.mrb[0].mxu0
      %628 = vmatprep.mubr.f32.mxu0 0.0
      %629 = vmatmul.mubr.f32.gmra.mrb[0].mxu0 %v423
      %v630 = vpop.f32.mrb[0].mxu0
      %v631 = vadd.f32 0.0, %v630
      %v632 = vpop.f32.mrb[0].mxu0
      %633 = vmatprep.mubr.f32.mxu0 0.0
      %634 = vmatmul.mubr.f32.gmra.mrb[0].mxu0 %v426
      %v635 = vpop.f32.mrb[0].mxu0
      %v636 = vadd.f32 0.0, %v635
      %v637 = vpop.f32.mrb[0].mxu0
      %638 = vmatprep.mubr.f32.mxu0 0.0
      %639 = vmatmul.mubr.f32.gmra.mrb[0].mxu0 %v429
      %v640 = vpop.f32.mrb[0].mxu0
      %v641 = vadd.f32 0.0, %v640
      %v642 = vpop.f32.mrb[0].mxu0
      %643 = vmatprep.mubr.f32.mxu0 0.0
      %644 = vmatmul.mubr.f32.gmra.mrb[0].mxu0 %v432
      %v645 = vpop.f32.mrb[0].mxu0
      %v646 = vadd.f32 0.0, %v645
      %v647 = vpop.f32.mrb[0].mxu0
      %648 = vmatprep.mubr.f32.mxu0 0.0
      %649 = vmatmul.mubr.f32.gmra.mrb[0].mxu0 %v435
      %v650 = vpop.f32.mrb[0].mxu0
      %v651 = vadd.f32 0.0, %v650
      %v652 = vpop.f32.mrb[0].mxu0
      %653 = vmatprep.mubr.f32.mxu0 0.0
      %654 = vmatmul.mubr.f32.gmra.mrb[0].mxu0 %v438
      %v655 = vpop.f32.mrb[0].mxu0
      %v656 = vadd.f32 0.0, %v655
      %v657 = vpop.f32.mrb[0].mxu0
      %658 = vmatprep.mubr.f32.mxu0 0.0
      %659 = vmatmul.mubr.f32.gmra.mrb[0].mxu0 %v441
      %v660 = vpop.f32.mrb[0].mxu0
      %v661 = vadd.f32 0.0, %v660
      %v662 = vpop.f32.mrb[0].mxu0
      %663 = vmatprep.mubr.f32.mxu0 0.0
      %664 = vmatmul.mubr.f32.gmra.mrb[0].mxu0 %v444
      %v665 = vpop.f32.mrb[0].mxu0
      %v666 = vadd.f32 0.0, %v665
      %v667 = vpop.f32.mrb[0].mxu0
      %668 = vmatprep.mubr.f32.mxu0 0.0
      %669 = vmatmul.mubr.f32.gmra.mrb[0].mxu0 %v447
      %v670 = vpop.f32.mrb[0].mxu0
      %v671 = vadd.f32 0.0, %v670
      %v672 = vpop.f32.mrb[0].mxu0
      %673 = vmatprep.mubr.f32.mxu0 0.0
      %674 = vmatmul.mubr.f32.gmra.mrb[0].mxu0 %v450
      %v675 = vpop.f32.mrb[0].mxu0
      %v676 = vadd.f32 0.0, %v675
      %v677 = vpop.f32.mrb[0].mxu0
      %678 = vmatprep.mubr.f32.mxu0 0.0
      %679 = vmatmul.mubr.f32.gmra.mrb[0].mxu0 %v453
      %v680 = vpop.f32.mrb[0].mxu0
      %v681 = vadd.f32 0.0, %v680
      %v682 = vpop.f32.mrb[0].mxu0
      %683 = vdwg.mxu0
      %v685 = vsel %vm171, %v292, 0
      %v688 = vsel %vm171, %v293, 0
      %v691 = vsel %vm171, %v294, 0
      %v694 = vsel %vm171, %v295, 0
      %v697 = vsel %vm171, %v296, 0
      %v700 = vsel %vm171, %v297, 0
      %v703 = vsel %vm171, %v298, 0
      %v706 = vsel %vm171, %v299, 0
      %v709 = vsel %vm171, %v300, 0
      %v712 = vsel %vm171, %v301, 0
      %v715 = vsel %vm171, %v302, 0
      %v718 = vsel %vm171, %v303, 0
      %v721 = vsel %vm171, %v304, 0
      %v724 = vsel %vm171, %v305, 0
      %v727 = vsel %vm171, %v306, 0
      %v730 = vsel %vm171, %v307, 0
      %v733 = vsel %vm171, %v308, 0
      %v736 = vsel %vm171, %v309, 0
      %v739 = vsel %vm171, %v310, 0
      %v742 = vsel %vm171, %v311, 0
      %v745 = vsel %vm171, %v312, 0
      %v748 = vsel %vm171, %v313, 0
      %v751 = vsel %vm171, %v314, 0
      %v754 = vsel %vm171, %v315, 0
      %v757 = vsel %vm171, %v316, 0
      %v760 = vsel %vm171, %v317, 0
      %v763 = vsel %vm171, %v318, 0
      %v766 = vsel %vm171, %v319, 0
      %v769 = vsel %vm171, %v320, 0
      %v772 = vsel %vm171, %v321, 0
      %v775 = vsel %vm171, %v322, 0
      %v778 = vsel %vm171, %v323, 0
      %v781 = vsel %vm455, %v324, 0
      %783 = vmatprep.subr.mxu0 0.0
      %784 = vmatpush1.msra.mxu0 %v781
      %785 = vmatprep.subr.mxu0 0.0
      %786 = vmatpush1.msra.mxu0 0.0
      %787 = vmatprep.subr.mxu0 0.0
      %788 = vmatpush1.msra.mxu0 0.0
      %789 = vmatprep.subr.mxu0 0.0
      %790 = vmatpush1.msra.mxu0 0.0
      %791 = vmatprep.subr.mxu0 0.0
      %792 = vmatpush1.msra.mxu0 0.0
      %793 = vmatprep.subr.mxu0 0.0
      %794 = vmatpush1.msra.mxu0 0.0
      %795 = vmatprep.subr.mxu0 0.0
      %796 = vmatpush1.msra.mxu0 0.0
      %797 = vmatprep.subr.mxu0 0.0
      %798 = vmatpush1.msra.mxu0 0.0
      %799 = vmatprep.subr.mxu0 0.0
      %800 = vmatpush1.msra.mxu0 0.0
      %801 = vmatprep.subr.mxu0 0.0
      %802 = vmatpush1.msra.mxu0 0.0
      %803 = vmatprep.subr.mxu0 0.0
      %804 = vmatpush1.msra.mxu0 0.0
      %805 = vmatprep.subr.mxu0 0.0
      %806 = vmatpush1.msra.mxu0 0.0
      %807 = vmatprep.subr.mxu0 0.0
      %808 = vmatpush1.msra.mxu0 0.0
      %809 = vmatprep.subr.mxu0 0.0
      %810 = vmatpush1.msra.mxu0 0.0
      %811 = vmatprep.subr.mxu0 0.0
      %812 = vmatpush1.msra.mxu0 0.0
      %813 = vmatprep.subr.mxu0 0.0
      %814 = vmatpush1.msra.mxu0 0.0
      %815 = vmatprep.subr.mxu0 0.0
      %816 = vmatpush1.msra.mxu0 0.0
      %817 = vmatprep.subr.mxu0 0.0
      %818 = vmatpush1.msra.mxu0 0.0
      %819 = vmatprep.subr.mxu0 0.0
      %820 = vmatpush1.msra.mxu0 0.0
      %821 = vmatprep.subr.mxu0 0.0
      %822 = vmatpush1.msra.mxu0 0.0
      %823 = vmatprep.subr.mxu0 0.0
      %824 = vmatpush1.msra.mxu0 0.0
      %825 = vmatprep.subr.mxu0 0.0
      %826 = vmatpush1.msra.mxu0 0.0
      %827 = vmatprep.subr.mxu0 0.0
      %828 = vmatpush1.msra.mxu0 0.0
      %829 = vmatprep.subr.mxu0 0.0
      %830 = vmatpush1.msra.mxu0 0.0
      %831 = vmatprep.subr.mxu0 0.0
      %832 = vmatpush1.msra.mxu0 0.0
      %833 = vmatprep.subr.mxu0 0.0
      %834 = vmatpush1.msra.mxu0 0.0
      %835 = vmatprep.subr.mxu0 0.0
      %836 = vmatpush1.msra.mxu0 0.0
      %837 = vmatprep.subr.mxu0 0.0
      %838 = vmatpush1.msra.mxu0 0.0
      %839 = vmatprep.subr.mxu0 0.0
      %840 = vmatpush1.msra.mxu0 0.0
      %841 = vmatprep.subr.mxu0 0.0
      %842 = vmatpush1.msra.mxu0 0.0
      %843 = vmatprep.subr.mxu0 0.0
      %844 = vmatpush1.msra.mxu0 0.0
      %845 = vmatprep.subr.mxu0 0.0
      %846 = vmatpush1.msra.mxu0 0.0
      %847 = vmatprep.mubr.f32.mxu0 0.0
      %848 = vmatmul.mubr.f32.gmra.mrb[0].mxu0 %v685
      %v849 = vpop.f32.mrb[0].mxu0
      %v850 = vadd.f32 %v526, %v849
      %v851 = vpop.f32.mrb[0].mxu0
      %852 = vmatprep.mubr.f32.mxu0 0.0
      %853 = vmatmul.mubr.f32.gmra.mrb[0].mxu0 %v688
      %v854 = vpop.f32.mrb[0].mxu0
      %v855 = vadd.f32 %v531, %v854
      %v856 = vpop.f32.mrb[0].mxu0
      %857 = vmatprep.mubr.f32.mxu0 0.0
      %858 = vmatmul.mubr.f32.gmra.mrb[0].mxu0 %v691
      %v859 = vpop.f32.mrb[0].mxu0
      %v860 = vadd.f32 %v536, %v859
      %v861 = vpop.f32.mrb[0].mxu0
      %862 = vmatprep.mubr.f32.mxu0 0.0
      %863 = vmatmul.mubr.f32.gmra.mrb[0].mxu0 %v694
      %v864 = vpop.f32.mrb[0].mxu0
      %v865 = vadd.f32 %v541, %v864
      %v866 = vpop.f32.mrb[0].mxu0
      %867 = vmatprep.mubr.f32.mxu0 0.0
      %868 = vmatmul.mubr.f32.gmra.mrb[0].mxu0 %v697
      %v869 = vpop.f32.mrb[0].mxu0
      %v870 = vadd.f32 %v546, %v869
      %v871 = vpop.f32.mrb[0].mxu0
      %872 = vmatprep.mubr.f32.mxu0 0.0
      %873 = vmatmul.mubr.f32.gmra.mrb[0].mxu0 %v700
      %v874 = vpop.f32.mrb[0].mxu0
      %v875 = vadd.f32 %v551, %v874
      %v876 = vpop.f32.mrb[0].mxu0
      %877 = vmatprep.mubr.f32.mxu0 0.0
      %878 = vmatmul.mubr.f32.gmra.mrb[0].mxu0 %v703
      %v879 = vpop.f32.mrb[0].mxu0
      %v880 = vadd.f32 %v556, %v879
      %v881 = vpop.f32.mrb[0].mxu0
      %882 = vmatprep.mubr.f32.mxu0 0.0
      %883 = vmatmul.mubr.f32.gmra.mrb[0].mxu0 %v706
      %v884 = vpop.f32.mrb[0].mxu0
      %v885 = vadd.f32 %v561, %v884
      %v886 = vpop.f32.mrb[0].mxu0
      %887 = vmatprep.mubr.f32.mxu0 0.0
      %888 = vmatmul.mubr.f32.gmra.mrb[0].mxu0 %v709
      %v889 = vpop.f32.mrb[0].mxu0
      %v890 = vadd.f32 %v566, %v889
      %v891 = vpop.f32.mrb[0].mxu0
      %892 = vmatprep.mubr.f32.mxu0 0.0
      %893 = vmatmul.mubr.f32.gmra.mrb[0].mxu0 %v712
      %v894 = vpop.f32.mrb[0].mxu0
      %v895 = vadd.f32 %v571, %v894
      %v896 = vpop.f32.mrb[0].mxu0
      %897 = vmatprep.mubr.f32.mxu0 0.0
      %898 = vmatmul.mubr.f32.gmra.mrb[0].mxu0 %v715
      %v899 = vpop.f32.mrb[0].mxu0
      %v900 = vadd.f32 %v576, %v899
      %v901 = vpop.f32.mrb[0].mxu0
      %902 = vmatprep.mubr.f32.mxu0 0.0
      %903 = vmatmul.mubr.f32.gmra.mrb[0].mxu0 %v718
      %v904 = vpop.f32.mrb[0].mxu0
      %v905 = vadd.f32 %v581, %v904
      %v906 = vpop.f32.mrb[0].mxu0
      %907 = vmatprep.mubr.f32.mxu0 0.0
      %908 = vmatmul.mubr.f32.gmra.mrb[0].mxu0 %v721
      %v909 = vpop.f32.mrb[0].mxu0
      %v910 = vadd.f32 %v586, %v909
      %v911 = vpop.f32.mrb[0].mxu0
      %912 = vmatprep.mubr.f32.mxu0 0.0
      %913 = vmatmul.mubr.f32.gmra.mrb[0].mxu0 %v724
      %v914 = vpop.f32.mrb[0].mxu0
      %v915 = vadd.f32 %v591, %v914
      %v916 = vpop.f32.mrb[0].mxu0
      %917 = vmatprep.mubr.f32.mxu0 0.0
      %918 = vmatmul.mubr.f32.gmra.mrb[0].mxu0 %v727
      %v919 = vpop.f32.mrb[0].mxu0
      %v920 = vadd.f32 %v596, %v919
      %v921 = vpop.f32.mrb[0].mxu0
      %922 = vmatprep.mubr.f32.mxu0 0.0
      %923 = vmatmul.mubr.f32.gmra.mrb[0].mxu0 %v730
      %v924 = vpop.f32.mrb[0].mxu0
      %v925 = vadd.f32 %v601, %v924
      %v926 = vpop.f32.mrb[0].mxu0
      %927 = vmatprep.mubr.f32.mxu0 0.0
      %928 = vmatmul.mubr.f32.gmra.mrb[0].mxu0 %v733
      %v929 = vpop.f32.mrb[0].mxu0
      %v930 = vadd.f32 %v606, %v929
      %v931 = vpop.f32.mrb[0].mxu0
      %932 = vmatprep.mubr.f32.mxu0 0.0
      %933 = vmatmul.mubr.f32.gmra.mrb[0].mxu0 %v736
      %v934 = vpop.f32.mrb[0].mxu0
      %v935 = vadd.f32 %v611, %v934
      %v936 = vpop.f32.mrb[0].mxu0
      %937 = vmatprep.mubr.f32.mxu0 0.0
      %938 = vmatmul.mubr.f32.gmra.mrb[0].mxu0 %v739
      %v939 = vpop.f32.mrb[0].mxu0
      %v940 = vadd.f32 %v616, %v939
      %v941 = vpop.f32.mrb[0].mxu0
      %942 = vmatprep.mubr.f32.mxu0 0.0
      %943 = vmatmul.mubr.f32.gmra.mrb[0].mxu0 %v742
      %v944 = vpop.f32.mrb[0].mxu0
      %v945 = vadd.f32 %v621, %v944
      %v946 = vpop.f32.mrb[0].mxu0
      %947 = vmatprep.mubr.f32.mxu0 0.0
      %948 = vmatmul.mubr.f32.gmra.mrb[0].mxu0 %v745
      %v949 = vpop.f32.mrb[0].mxu0
      %v950 = vadd.f32 %v626, %v949
      %v951 = vpop.f32.mrb[0].mxu0
      %952 = vmatprep.mubr.f32.mxu0 0.0
      %953 = vmatmul.mubr.f32.gmra.mrb[0].mxu0 %v748
      %v954 = vpop.f32.mrb[0].mxu0
      %v955 = vadd.f32 %v631, %v954
      %v956 = vpop.f32.mrb[0].mxu0
      %957 = vmatprep.mubr.f32.mxu0 0.0
      %958 = vmatmul.mubr.f32.gmra.mrb[0].mxu0 %v751
      %v959 = vpop.f32.mrb[0].mxu0
      %v960 = vadd.f32 %v636, %v959
      %v961 = vpop.f32.mrb[0].mxu0
      %962 = vmatprep.mubr.f32.mxu0 0.0
      %963 = vmatmul.mubr.f32.gmra.mrb[0].mxu0 %v754
      %v964 = vpop.f32.mrb[0].mxu0
      %v965 = vadd.f32 %v641, %v964
      %v966 = vpop.f32.mrb[0].mxu0
      %967 = vmatprep.mubr.f32.mxu0 0.0
      %968 = vmatmul.mubr.f32.gmra.mrb[0].mxu0 %v757
      %v969 = vpop.f32.mrb[0].mxu0
      %v970 = vadd.f32 %v646, %v969
      %v971 = vpop.f32.mrb[0].mxu0
      %972 = vmatprep.mubr.f32.mxu0 0.0
      %973 = vmatmul.mubr.f32.gmra.mrb[0].mxu0 %v760
      %v974 = vpop.f32.mrb[0].mxu0
      %v975 = vadd.f32 %v651, %v974
      %v976 = vpop.f32.mrb[0].mxu0
      %977 = vmatprep.mubr.f32.mxu0 0.0
      %978 = vmatmul.mubr.f32.gmra.mrb[0].mxu0 %v763
      %v979 = vpop.f32.mrb[0].mxu0
      %v980 = vadd.f32 %v656, %v979
      %v981 = vpop.f32.mrb[0].mxu0
      %982 = vmatprep.mubr.f32.mxu0 0.0
      %983 = vmatmul.mubr.f32.gmra.mrb[0].mxu0 %v766
      %v984 = vpop.f32.mrb[0].mxu0
      %v985 = vadd.f32 %v661, %v984
      %v986 = vpop.f32.mrb[0].mxu0
      %987 = vmatprep.mubr.f32.mxu0 0.0
      %988 = vmatmul.mubr.f32.gmra.mrb[0].mxu0 %v769
      %v989 = vpop.f32.mrb[0].mxu0
      %v990 = vadd.f32 %v666, %v989
      %v991 = vpop.f32.mrb[0].mxu0
      %992 = vmatprep.mubr.f32.mxu0 0.0
      %993 = vmatmul.mubr.f32.gmra.mrb[0].mxu0 %v772
      %v994 = vpop.f32.mrb[0].mxu0
      %v995 = vadd.f32 %v671, %v994
      %v996 = vpop.f32.mrb[0].mxu0
      %997 = vmatprep.mubr.f32.mxu0 0.0
      %998 = vmatmul.mubr.f32.gmra.mrb[0].mxu0 %v775
      %v999 = vpop.f32.mrb[0].mxu0
      %v1000 = vadd.f32 %v676, %v999
      %v1001 = vpop.f32.mrb[0].mxu0
      %1002 = vmatprep.mubr.f32.mxu0 0.0
      %1003 = vmatmul.mubr.f32.gmra.mrb[0].mxu0 %v778
      %v1004 = vpop.f32.mrb[0].mxu0
      %v1005 = vadd.f32 %v681, %v1004
      %v1006 = vpop.f32.mrb[0].mxu0
      %1007 = vdwg.mxu0
      %v1008 = vld [vmem:[#allocation2 + $0x2] sm:$0xff]
      %v1009 = vld [vmem:[#allocation2 + $0xa] sm:$0xff]
      %v1010 = vld [vmem:[#allocation2 + $0x1a] sm:$0xff]
      %v1011 = vld [vmem:[#allocation2 + $0x22] sm:$0xff]
      %v1012 = vld [vmem:[#allocation2 + $0x32] sm:$0xff]
      %v1013 = vld [vmem:[#allocation2 + $0x3a] sm:$0xff]
      %v1014 = vld [vmem:[#allocation2 + $0x4a] sm:$0xff]
      %v1015 = vld [vmem:[#allocation2 + $0x52] sm:$0xff]
      %v1016 = vld [vmem:[#allocation2 + $0x62] sm:$0xff]
      %v1017 = vld [vmem:[#allocation2 + $0x6a] sm:$0xff]
      %v1018 = vld [vmem:[#allocation2 + $0x7a] sm:$0xff]
      %v1019 = vld [vmem:[#allocation2 + $0x82] sm:$0xff]
      %v1020 = vld [vmem:[#allocation2 + $0x92] sm:$0xff]
      %v1021 = vld [vmem:[#allocation2 + $0x9a] sm:$0xff]
      %v1022 = vld [vmem:[#allocation2 + $0xaa] sm:$0xff]
      %v1023 = vld [vmem:[#allocation2 + $0xb2] sm:$0xff]
      %v1024 = vld [vmem:[#allocation2 + $0xc2] sm:$0xff]
      %v1025 = vld [vmem:[#allocation2 + $0xca] sm:$0xff]
      %v1026 = vld [vmem:[#allocation2 + $0xda] sm:$0xff]
      %v1027 = vld [vmem:[#allocation2 + $0xe2] sm:$0xff]
      %v1028 = vld [vmem:[#allocation2 + $0xf2] sm:$0xff]
      %v1029 = vld [vmem:[#allocation2 + $0xfa] sm:$0xff]
      %v1030 = vld [vmem:[#allocation2 + $0x10a] sm:$0xff]
      %v1031 = vld [vmem:[#allocation2 + $0x112] sm:$0xff]
      %v1032 = vld [vmem:[#allocation2 + $0x122] sm:$0xff]
      %v1033 = vld [vmem:[#allocation2 + $0x12a] sm:$0xff]
      %v1034 = vld [vmem:[#allocation2 + $0x13a] sm:$0xff]
      %v1035 = vld [vmem:[#allocation2 + $0x142] sm:$0xff]
      %v1036 = vld [vmem:[#allocation2 + $0x152] sm:$0xff]
      %v1037 = vld [vmem:[#allocation2 + $0x15a] sm:$0xff]
      %v1038 = vld [vmem:[#allocation2 + $0x16a] sm:$0xff]
      %v1039 = vld [vmem:[#allocation2 + $0x172] sm:$0xff]
      %s1040 = scalar_lea.vmem %s1, 8
      %v1041 = vld [vmem:[%s1040] sm:$0xf]
      %v1043 = vsel %vm171, %v1008, 0
      %v1046 = vsel %vm171, %v1009, 0
      %v1049 = vsel %vm171, %v1010, 0
      %v1052 = vsel %vm171, %v1011, 0
      %v1055 = vsel %vm171, %v1012, 0
      %v1058 = vsel %vm171, %v1013, 0
      %v1061 = vsel %vm171, %v1014, 0
      %v1064 = vsel %vm171, %v1015, 0
      %v1067 = vsel %vm171, %v1016, 0
      %v1070 = vsel %vm171, %v1017, 0
      %v1073 = vsel %vm171, %v1018, 0
      %v1076 = vsel %vm171, %v1019, 0
      %v1079 = vsel %vm171, %v1020, 0
      %v1082 = vsel %vm171, %v1021, 0
      %v1085 = vsel %vm171, %v1022, 0
      %v1088 = vsel %vm171, %v1023, 0
      %v1091 = vsel %vm171, %v1024, 0
      %v1094 = vsel %vm171, %v1025, 0
      %v1097 = vsel %vm171, %v1026, 0
      %v1100 = vsel %vm171, %v1027, 0
      %v1103 = vsel %vm171, %v1028, 0
      %v1106 = vsel %vm171, %v1029, 0
      %v1109 = vsel %vm171, %v1030, 0
      %v1112 = vsel %vm171, %v1031, 0
      %v1115 = vsel %vm171, %v1032, 0
      %v1118 = vsel %vm171, %v1033, 0
      %v1121 = vsel %vm171, %v1034, 0
      %v1124 = vsel %vm171, %v1035, 0
      %v1127 = vsel %vm171, %v1036, 0
      %v1130 = vsel %vm171, %v1037, 0
      %v1133 = vsel %vm171, %v1038, 0
      %v1136 = vsel %vm171, %v1039, 0
      %v1139 = vsel %vm455, %v1041, 0
      %1141 = vmatprep.subr.mxu0 0.0
      %1142 = vmatpush1.msra.mxu0 %v1139
      %1143 = vmatprep.subr.mxu0 0.0
      %1144 = vmatpush1.msra.mxu0 0.0
      %1145 = vmatprep.subr.mxu0 0.0
      %1146 = vmatpush1.msra.mxu0 0.0
      %1147 = vmatprep.subr.mxu0 0.0
      %1148 = vmatpush1.msra.mxu0 0.0
      %1149 = vmatprep.subr.mxu0 0.0
      %1150 = vmatpush1.msra.mxu0 0.0
      %1151 = vmatprep.subr.mxu0 0.0
      %1152 = vmatpush1.msra.mxu0 0.0
      %1153 = vmatprep.subr.mxu0 0.0
      %1154 = vmatpush1.msra.mxu0 0.0
      %1155 = vmatprep.subr.mxu0 0.0
      %1156 = vmatpush1.msra.mxu0 0.0
      %1157 = vmatprep.subr.mxu0 0.0
      %1158 = vmatpush1.msra.mxu0 0.0
      %1159 = vmatprep.subr.mxu0 0.0
      %1160 = vmatpush1.msra.mxu0 0.0
      %1161 = vmatprep.subr.mxu0 0.0
      %1162 = vmatpush1.msra.mxu0 0.0
      %1163 = vmatprep.subr.mxu0 0.0
      %1164 = vmatpush1.msra.mxu0 0.0
      %1165 = vmatprep.subr.mxu0 0.0
      %1166 = vmatpush1.msra.mxu0 0.0
      %1167 = vmatprep.subr.mxu0 0.0
      %1168 = vmatpush1.msra.mxu0 0.0
      %1169 = vmatprep.subr.mxu0 0.0
      %1170 = vmatpush1.msra.mxu0 0.0
      %1171 = vmatprep.subr.mxu0 0.0
      %1172 = vmatpush1.msra.mxu0 0.0
      %1173 = vmatprep.subr.mxu0 0.0
      %1174 = vmatpush1.msra.mxu0 0.0
      %1175 = vmatprep.subr.mxu0 0.0
      %1176 = vmatpush1.msra.mxu0 0.0
      %1177 = vmatprep.subr.mxu0 0.0
      %1178 = vmatpush1.msra.mxu0 0.0
      %1179 = vmatprep.subr.mxu0 0.0
      %1180 = vmatpush1.msra.mxu0 0.0
      %1181 = vmatprep.subr.mxu0 0.0
      %1182 = vmatpush1.msra.mxu0 0.0
      %1183 = vmatprep.subr.mxu0 0.0
      %1184 = vmatpush1.msra.mxu0 0.0
      %1185 = vmatprep.subr.mxu0 0.0
      %1186 = vmatpush1.msra.mxu0 0.0
      %1187 = vmatprep.subr.mxu0 0.0
      %1188 = vmatpush1.msra.mxu0 0.0
      %1189 = vmatprep.subr.mxu0 0.0
      %1190 = vmatpush1.msra.mxu0 0.0
      %1191 = vmatprep.subr.mxu0 0.0
      %1192 = vmatpush1.msra.mxu0 0.0
      %1193 = vmatprep.subr.mxu0 0.0
      %1194 = vmatpush1.msra.mxu0 0.0
      %1195 = vmatprep.subr.mxu0 0.0
      %1196 = vmatpush1.msra.mxu0 0.0
      %1197 = vmatprep.subr.mxu0 0.0
      %1198 = vmatpush1.msra.mxu0 0.0
      %1199 = vmatprep.subr.mxu0 0.0
      %1200 = vmatpush1.msra.mxu0 0.0
      %1201 = vmatprep.subr.mxu0 0.0
      %1202 = vmatpush1.msra.mxu0 0.0
      %1203 = vmatprep.subr.mxu0 0.0
      %1204 = vmatpush1.msra.mxu0 0.0
      %1205 = vmatprep.mubr.f32.mxu0 0.0
      %1206 = vmatmul.mubr.f32.gmra.mrb[0].mxu0 %v1043
      %v1207 = vpop.f32.mrb[0].mxu0
      %v1208 = vadd.f32 0.0, %v1207
      %v1209 = vpop.f32.mrb[0].mxu0
      %1210 = vmatprep.mubr.f32.mxu0 0.0
      %1211 = vmatmul.mubr.f32.gmra.mrb[0].mxu0 %v1046
      %v1212 = vpop.f32.mrb[0].mxu0
      %v1213 = vadd.f32 0.0, %v1212
      %v1214 = vpop.f32.mrb[0].mxu0
      %1215 = vmatprep.mubr.f32.mxu0 0.0
      %1216 = vmatmul.mubr.f32.gmra.mrb[0].mxu0 %v1049
      %v1217 = vpop.f32.mrb[0].mxu0
      %v1218 = vadd.f32 0.0, %v1217
      %v1219 = vpop.f32.mrb[0].mxu0
      %1220 = vmatprep.mubr.f32.mxu0 0.0
      %1221 = vmatmul.mubr.f32.gmra.mrb[0].mxu0 %v1052
      %v1222 = vpop.f32.mrb[0].mxu0
      %v1223 = vadd.f32 0.0, %v1222
      %v1224 = vpop.f32.mrb[0].mxu0
      %1225 = vmatprep.mubr.f32.mxu0 0.0
      %1226 = vmatmul.mubr.f32.gmra.mrb[0].mxu0 %v1055
      %v1227 = vpop.f32.mrb[0].mxu0
      %v1228 = vadd.f32 0.0, %v1227
      %v1229 = vpop.f32.mrb[0].mxu0
      %1230 = vmatprep.mubr.f32.mxu0 0.0
      %1231 = vmatmul.mubr.f32.gmra.mrb[0].mxu0 %v1058
      %v1232 = vpop.f32.mrb[0].mxu0
      %v1233 = vadd.f32 0.0, %v1232
      %v1234 = vpop.f32.mrb[0].mxu0
      %1235 = vmatprep.mubr.f32.mxu0 0.0
      %1236 = vmatmul.mubr.f32.gmra.mrb[0].mxu0 %v1061
      %v1237 = vpop.f32.mrb[0].mxu0
      %v1238 = vadd.f32 0.0, %v1237
      %v1239 = vpop.f32.mrb[0].mxu0
      %1240 = vmatprep.mubr.f32.mxu0 0.0
      %1241 = vmatmul.mubr.f32.gmra.mrb[0].mxu0 %v1064
      %v1242 = vpop.f32.mrb[0].mxu0
      %v1243 = vadd.f32 0.0, %v1242
      %v1244 = vpop.f32.mrb[0].mxu0
      %1245 = vmatprep.mubr.f32.mxu0 0.0
      %1246 = vmatmul.mubr.f32.gmra.mrb[0].mxu0 %v1067
      %v1247 = vpop.f32.mrb[0].mxu0
      %v1248 = vadd.f32 0.0, %v1247
      %v1249 = vpop.f32.mrb[0].mxu0
      %1250 = vmatprep.mubr.f32.mxu0 0.0
      %1251 = vmatmul.mubr.f32.gmra.mrb[0].mxu0 %v1070
      %v1252 = vpop.f32.mrb[0].mxu0
      %v1253 = vadd.f32 0.0, %v1252
      %v1254 = vpop.f32.mrb[0].mxu0
      %1255 = vmatprep.mubr.f32.mxu0 0.0
      %1256 = vmatmul.mubr.f32.gmra.mrb[0].mxu0 %v1073
      %v1257 = vpop.f32.mrb[0].mxu0
      %v1258 = vadd.f32 0.0, %v1257
      %v1259 = vpop.f32.mrb[0].mxu0
      %1260 = vmatprep.mubr.f32.mxu0 0.0
      %1261 = vmatmul.mubr.f32.gmra.mrb[0].mxu0 %v1076
      %v1262 = vpop.f32.mrb[0].mxu0
      %v1263 = vadd.f32 0.0, %v1262
      %v1264 = vpop.f32.mrb[0].mxu0
      %1265 = vmatprep.mubr.f32.mxu0 0.0
      %1266 = vmatmul.mubr.f32.gmra.mrb[0].mxu0 %v1079
      %v1267 = vpop.f32.mrb[0].mxu0
      %v1268 = vadd.f32 0.0, %v1267
      %v1269 = vpop.f32.mrb[0].mxu0
      %1270 = vmatprep.mubr.f32.mxu0 0.0
      %1271 = vmatmul.mubr.f32.gmra.mrb[0].mxu0 %v1082
      %v1272 = vpop.f32.mrb[0].mxu0
      %v1273 = vadd.f32 0.0, %v1272
      %v1274 = vpop.f32.mrb[0].mxu0
      %1275 = vmatprep.mubr.f32.mxu0 0.0
      %1276 = vmatmul.mubr.f32.gmra.mrb[0].mxu0 %v1085
      %v1277 = vpop.f32.mrb[0].mxu0
      %v1278 = vadd.f32 0.0, %v1277
      %v1279 = vpop.f32.mrb[0].mxu0
      %1280 = vmatprep.mubr.f32.mxu0 0.0
      %1281 = vmatmul.mubr.f32.gmra.mrb[0].mxu0 %v1088
      %v1282 = vpop.f32.mrb[0].mxu0
      %v1283 = vadd.f32 0.0, %v1282
      %v1284 = vpop.f32.mrb[0].mxu0
      %1285 = vmatprep.mubr.f32.mxu0 0.0
      %1286 = vmatmul.mubr.f32.gmra.mrb[0].mxu0 %v1091
      %v1287 = vpop.f32.mrb[0].mxu0
      %v1288 = vadd.f32 0.0, %v1287
      %v1289 = vpop.f32.mrb[0].mxu0
      %1290 = vmatprep.mubr.f32.mxu0 0.0
      %1291 = vmatmul.mubr.f32.gmra.mrb[0].mxu0 %v1094
      %v1292 = vpop.f32.mrb[0].mxu0
      %v1293 = vadd.f32 0.0, %v1292
      %v1294 = vpop.f32.mrb[0].mxu0
      %1295 = vmatprep.mubr.f32.mxu0 0.0
      %1296 = vmatmul.mubr.f32.gmra.mrb[0].mxu0 %v1097
      %v1297 = vpop.f32.mrb[0].mxu0
      %v1298 = vadd.f32 0.0, %v1297
      %v1299 = vpop.f32.mrb[0].mxu0
      %1300 = vmatprep.mubr.f32.mxu0 0.0
      %1301 = vmatmul.mubr.f32.gmra.mrb[0].mxu0 %v1100
      %v1302 = vpop.f32.mrb[0].mxu0
      %v1303 = vadd.f32 0.0, %v1302
      %v1304 = vpop.f32.mrb[0].mxu0
      %1305 = vmatprep.mubr.f32.mxu0 0.0
      %1306 = vmatmul.mubr.f32.gmra.mrb[0].mxu0 %v1103
      %v1307 = vpop.f32.mrb[0].mxu0
      %v1308 = vadd.f32 0.0, %v1307
      %v1309 = vpop.f32.mrb[0].mxu0
      %1310 = vmatprep.mubr.f32.mxu0 0.0
      %1311 = vmatmul.mubr.f32.gmra.mrb[0].mxu0 %v1106
      %v1312 = vpop.f32.mrb[0].mxu0
      %v1313 = vadd.f32 0.0, %v1312
      %v1314 = vpop.f32.mrb[0].mxu0
      %1315 = vmatprep.mubr.f32.mxu0 0.0
      %1316 = vmatmul.mubr.f32.gmra.mrb[0].mxu0 %v1109
      %v1317 = vpop.f32.mrb[0].mxu0
      %v1318 = vadd.f32 0.0, %v1317
      %v1319 = vpop.f32.mrb[0].mxu0
      %1320 = vmatprep.mubr.f32.mxu0 0.0
      %1321 = vmatmul.mubr.f32.gmra.mrb[0].mxu0 %v1112
      %v1322 = vpop.f32.mrb[0].mxu0
      %v1323 = vadd.f32 0.0, %v1322
      %v1324 = vpop.f32.mrb[0].mxu0
      %1325 = vmatprep.mubr.f32.mxu0 0.0
      %1326 = vmatmul.mubr.f32.gmra.mrb[0].mxu0 %v1115
      %v1327 = vpop.f32.mrb[0].mxu0
      %v1328 = vadd.f32 0.0, %v1327
      %v1329 = vpop.f32.mrb[0].mxu0
      %1330 = vmatprep.mubr.f32.mxu0 0.0
      %1331 = vmatmul.mubr.f32.gmra.mrb[0].mxu0 %v1118
      %v1332 = vpop.f32.mrb[0].mxu0
      %v1333 = vadd.f32 0.0, %v1332
      %v1334 = vpop.f32.mrb[0].mxu0
      %1335 = vmatprep.mubr.f32.mxu0 0.0
      %1336 = vmatmul.mubr.f32.gmra.mrb[0].mxu0 %v1121
      %v1337 = vpop.f32.mrb[0].mxu0
      %v1338 = vadd.f32 0.0, %v1337
      %v1339 = vpop.f32.mrb[0].mxu0
      %1340 = vmatprep.mubr.f32.mxu0 0.0
      %1341 = vmatmul.mubr.f32.gmra.mrb[0].mxu0 %v1124
      %v1342 = vpop.f32.mrb[0].mxu0
      %v1343 = vadd.f32 0.0, %v1342
      %v1344 = vpop.f32.mrb[0].mxu0
      %1345 = vmatprep.mubr.f32.mxu0 0.0
      %1346 = vmatmul.mubr.f32.gmra.mrb[0].mxu0 %v1127
      %v1347 = vpop.f32.mrb[0].mxu0
      %v1348 = vadd.f32 0.0, %v1347
      %v1349 = vpop.f32.mrb[0].mxu0
      %1350 = vmatprep.mubr.f32.mxu0 0.0
      %1351 = vmatmul.mubr.f32.gmra.mrb[0].mxu0 %v1130
      %v1352 = vpop.f32.mrb[0].mxu0
      %v1353 = vadd.f32 0.0, %v1352
      %v1354 = vpop.f32.mrb[0].mxu0
      %1355 = vmatprep.mubr.f32.mxu0 0.0
      %1356 = vmatmul.mubr.f32.gmra.mrb[0].mxu0 %v1133
      %v1357 = vpop.f32.mrb[0].mxu0
      %v1358 = vadd.f32 0.0, %v1357
      %v1359 = vpop.f32.mrb[0].mxu0
      %1360 = vmatprep.mubr.f32.mxu0 0.0
      %1361 = vmatmul.mubr.f32.gmra.mrb[0].mxu0 %v1136
      %v1362 = vpop.f32.mrb[0].mxu0
      %v1363 = vadd.f32 0.0, %v1362
      %v1364 = vpop.f32.mrb[0].mxu0
      %1365 = vdwg.mxu0
      %v1366 = vadd.f32 %v850, %v1208
      %v1367 = vadd.f32 %v855, %v1213
      %v1368 = vadd.f32 %v860, %v1218
      %v1369 = vadd.f32 %v865, %v1223
      %v1370 = vadd.f32 %v870, %v1228
      %v1371 = vadd.f32 %v875, %v1233
      %v1372 = vadd.f32 %v880, %v1238
      %v1373 = vadd.f32 %v885, %v1243
      %v1374 = vadd.f32 %v890, %v1248
      %v1375 = vadd.f32 %v895, %v1253
      %v1376 = vadd.f32 %v900, %v1258
      %v1377 = vadd.f32 %v905, %v1263
      %v1378 = vadd.f32 %v910, %v1268
      %v1379 = vadd.f32 %v915, %v1273
      %v1380 = vadd.f32 %v920, %v1278
      %v1381 = vadd.f32 %v925, %v1283
      %v1382 = vadd.f32 %v930, %v1288
      %v1383 = vadd.f32 %v935, %v1293
      %v1384 = vadd.f32 %v940, %v1298
      %v1385 = vadd.f32 %v945, %v1303
      %v1386 = vadd.f32 %v950, %v1308
      %v1387 = vadd.f32 %v955, %v1313
      %v1388 = vadd.f32 %v960, %v1318
      %v1389 = vadd.f32 %v965, %v1323
      %v1390 = vadd.f32 %v970, %v1328
      %v1391 = vadd.f32 %v975, %v1333
      %v1392 = vadd.f32 %v980, %v1338
      %v1393 = vadd.f32 %v985, %v1343
      %v1394 = vadd.f32 %v990, %v1348
      %v1395 = vadd.f32 %v995, %v1353
      %v1396 = vadd.f32 %v1000, %v1358
      %v1397 = vadd.f32 %v1005, %v1363
      %v1398 = vld [vmem:[%s259] sm:$0xff]
      %v1399 = vld [vmem:[%s259 + $0x8] sm:$0xff]
      %v1400 = vld [vmem:[%s259 + $0x18] sm:$0xff]
      %v1401 = vld [vmem:[%s259 + $0x20] sm:$0xff]
      %v1402 = vld [vmem:[%s259 + $0x30] sm:$0xff]
      %v1403 = vld [vmem:[%s259 + $0x38] sm:$0xff]
      %v1404 = vld [vmem:[%s259 + $0x48] sm:$0xff]
      %v1405 = vld [vmem:[%s259 + $0x50] sm:$0xff]
      %v1406 = vld [vmem:[%s259 + $0x60] sm:$0xff]
      %v1407 = vld [vmem:[%s259 + $0x68] sm:$0xff]
      %v1408 = vld [vmem:[%s259 + $0x78] sm:$0xff]
      %v1409 = vld [vmem:[%s259 + $0x80] sm:$0xff]
      %v1410 = vld [vmem:[%s259 + $0x90] sm:$0xff]
      %v1411 = vld [vmem:[%s259 + $0x98] sm:$0xff]
      %v1412 = vld [vmem:[%s259 + $0xa8] sm:$0xff]
      %v1413 = vld [vmem:[%s259 + $0xb0] sm:$0xff]
      %v1414 = vld [vmem:[%s259 + $0xc0] sm:$0xff]
      %v1415 = vld [vmem:[%s259 + $0xc8] sm:$0xff]
      %v1416 = vld [vmem:[%s259 + $0xd8] sm:$0xff]
      %v1417 = vld [vmem:[%s259 + $0xe0] sm:$0xff]
      %v1418 = vld [vmem:[%s259 + $0xf0] sm:$0xff]
      %v1419 = vld [vmem:[%s259 + $0xf8] sm:$0xff]
      %v1420 = vld [vmem:[%s259 + $0x108] sm:$0xff]
      %v1421 = vld [vmem:[%s259 + $0x110] sm:$0xff]
      %v1422 = vld [vmem:[%s259 + $0x120] sm:$0xff]
      %v1423 = vld [vmem:[%s259 + $0x128] sm:$0xff]
      %v1424 = vld [vmem:[%s259 + $0x138] sm:$0xff]
      %v1425 = vld [vmem:[%s259 + $0x140] sm:$0xff]
      %v1426 = vld [vmem:[%s259 + $0x150] sm:$0xff]
      %v1427 = vld [vmem:[%s259 + $0x158] sm:$0xff]
      %v1428 = vld [vmem:[%s259 + $0x168] sm:$0xff]
      %v1429 = vld [vmem:[%s259 + $0x170] sm:$0xff]
      %s1430 = scalar_lea.vmem %s1, 12
      %v1431 = vld [vmem:[%s1430] sm:$0xf]
      %v1433 = vsel %vm171, %v1398, 0
      %v1436 = vsel %vm171, %v1399, 0
      %v1439 = vsel %vm171, %v1400, 0
      %v1442 = vsel %vm171, %v1401, 0
      %v1445 = vsel %vm171, %v1402, 0
      %v1448 = vsel %vm171, %v1403, 0
      %v1451 = vsel %vm171, %v1404, 0
      %v1454 = vsel %vm171, %v1405, 0
      %v1457 = vsel %vm171, %v1406, 0
      %v1460 = vsel %vm171, %v1407, 0
      %v1463 = vsel %vm171, %v1408, 0
      %v1466 = vsel %vm171, %v1409, 0
      %v1469 = vsel %vm171, %v1410, 0
      %v1472 = vsel %vm171, %v1411, 0
      %v1475 = vsel %vm171, %v1412, 0
      %v1478 = vsel %vm171, %v1413, 0
      %v1481 = vsel %vm171, %v1414, 0
      %v1484 = vsel %vm171, %v1415, 0
      %v1487 = vsel %vm171, %v1416, 0
      %v1490 = vsel %vm171, %v1417, 0
      %v1493 = vsel %vm171, %v1418, 0
      %v1496 = vsel %vm171, %v1419, 0
      %v1499 = vsel %vm171, %v1420, 0
      %v1502 = vsel %vm171, %v1421, 0
      %v1505 = vsel %vm171, %v1422, 0
      %v1508 = vsel %vm171, %v1423, 0
      %v1511 = vsel %vm171, %v1424, 0
      %v1514 = vsel %vm171, %v1425, 0
      %v1517 = vsel %vm171, %v1426, 0
      %v1520 = vsel %vm171, %v1427, 0
      %v1523 = vsel %vm171, %v1428, 0
      %v1526 = vsel %vm171, %v1429, 0
      %v1529 = vsel %vm455, %v1431, 0
      %1531 = vmatprep.subr.mxu0 0.0
      %1532 = vmatpush1.msra.mxu0 %v1529
      %1533 = vmatprep.subr.mxu0 0.0
      %1534 = vmatpush1.msra.mxu0 0.0
      %1535 = vmatprep.subr.mxu0 0.0
      %1536 = vmatpush1.msra.mxu0 0.0
      %1537 = vmatprep.subr.mxu0 0.0
      %1538 = vmatpush1.msra.mxu0 0.0
      %1539 = vmatprep.subr.mxu0 0.0
      %1540 = vmatpush1.msra.mxu0 0.0
      %1541 = vmatprep.subr.mxu0 0.0
      %1542 = vmatpush1.msra.mxu0 0.0
      %1543 = vmatprep.subr.mxu0 0.0
      %1544 = vmatpush1.msra.mxu0 0.0
      %1545 = vmatprep.subr.mxu0 0.0
      %1546 = vmatpush1.msra.mxu0 0.0
      %1547 = vmatprep.subr.mxu0 0.0
      %1548 = vmatpush1.msra.mxu0 0.0
      %1549 = vmatprep.subr.mxu0 0.0
      %1550 = vmatpush1.msra.mxu0 0.0
      %1551 = vmatprep.subr.mxu0 0.0
      %1552 = vmatpush1.msra.mxu0 0.0
      %1553 = vmatprep.subr.mxu0 0.0
      %1554 = vmatpush1.msra.mxu0 0.0
      %1555 = vmatprep.subr.mxu0 0.0
      %1556 = vmatpush1.msra.mxu0 0.0
      %1557 = vmatprep.subr.mxu0 0.0
      %1558 = vmatpush1.msra.mxu0 0.0
      %1559 = vmatprep.subr.mxu0 0.0
      %1560 = vmatpush1.msra.mxu0 0.0
      %1561 = vmatprep.subr.mxu0 0.0
      %1562 = vmatpush1.msra.mxu0 0.0
      %1563 = vmatprep.subr.mxu0 0.0
      %1564 = vmatpush1.msra.mxu0 0.0
      %1565 = vmatprep.subr.mxu0 0.0
      %1566 = vmatpush1.msra.mxu0 0.0
      %1567 = vmatprep.subr.mxu0 0.0
      %1568 = vmatpush1.msra.mxu0 0.0
      %1569 = vmatprep.subr.mxu0 0.0
      %1570 = vmatpush1.msra.mxu0 0.0
      %1571 = vmatprep.subr.mxu0 0.0
      %1572 = vmatpush1.msra.mxu0 0.0
      %1573 = vmatprep.subr.mxu0 0.0
      %1574 = vmatpush1.msra.mxu0 0.0
      %1575 = vmatprep.subr.mxu0 0.0
      %1576 = vmatpush1.msra.mxu0 0.0
      %1577 = vmatprep.subr.mxu0 0.0
      %1578 = vmatpush1.msra.mxu0 0.0
      %1579 = vmatprep.subr.mxu0 0.0
      %1580 = vmatpush1.msra.mxu0 0.0
      %1581 = vmatprep.subr.mxu0 0.0
      %1582 = vmatpush1.msra.mxu0 0.0
      %1583 = vmatprep.subr.mxu0 0.0
      %1584 = vmatpush1.msra.mxu0 0.0
      %1585 = vmatprep.subr.mxu0 0.0
      %1586 = vmatpush1.msra.mxu0 0.0
      %1587 = vmatprep.subr.mxu0 0.0
      %1588 = vmatpush1.msra.mxu0 0.0
      %1589 = vmatprep.subr.mxu0 0.0
      %1590 = vmatpush1.msra.mxu0 0.0
      %1591 = vmatprep.subr.mxu0 0.0
      %1592 = vmatpush1.msra.mxu0 0.0
      %1593 = vmatprep.subr.mxu0 0.0
      %1594 = vmatpush1.msra.mxu0 0.0
      %1595 = vmatprep.mubr.f32.mxu0 0.0
      %1596 = vmatmul.mubr.f32.gmra.mrb[0].mxu0 %v1433
      %v1597 = vpop.f32.mrb[0].mxu0
      %v1598 = vadd.f32 0.0, %v1597
      %v1599 = vpop.f32.mrb[0].mxu0
      %1600 = vmatprep.mubr.f32.mxu0 0.0
      %1601 = vmatmul.mubr.f32.gmra.mrb[0].mxu0 %v1436
      %v1602 = vpop.f32.mrb[0].mxu0
      %v1603 = vadd.f32 0.0, %v1602
      %v1604 = vpop.f32.mrb[0].mxu0
      %1605 = vmatprep.mubr.f32.mxu0 0.0
      %1606 = vmatmul.mubr.f32.gmra.mrb[0].mxu0 %v1439
      %v1607 = vpop.f32.mrb[0].mxu0
      %v1608 = vadd.f32 0.0, %v1607
      %v1609 = vpop.f32.mrb[0].mxu0
      %1610 = vmatprep.mubr.f32.mxu0 0.0
      %1611 = vmatmul.mubr.f32.gmra.mrb[0].mxu0 %v1442
      %v1612 = vpop.f32.mrb[0].mxu0
      %v1613 = vadd.f32 0.0, %v1612
      %v1614 = vpop.f32.mrb[0].mxu0
      %1615 = vmatprep.mubr.f32.mxu0 0.0
      %1616 = vmatmul.mubr.f32.gmra.mrb[0].mxu0 %v1445
      %v1617 = vpop.f32.mrb[0].mxu0
      %v1618 = vadd.f32 0.0, %v1617
      %v1619 = vpop.f32.mrb[0].mxu0
      %1620 = vmatprep.mubr.f32.mxu0 0.0
      %1621 = vmatmul.mubr.f32.gmra.mrb[0].mxu0 %v1448
      %v1622 = vpop.f32.mrb[0].mxu0
      %v1623 = vadd.f32 0.0, %v1622
      %v1624 = vpop.f32.mrb[0].mxu0
      %1625 = vmatprep.mubr.f32.mxu0 0.0
      %1626 = vmatmul.mubr.f32.gmra.mrb[0].mxu0 %v1451
      %v1627 = vpop.f32.mrb[0].mxu0
      %v1628 = vadd.f32 0.0, %v1627
      %v1629 = vpop.f32.mrb[0].mxu0
      %1630 = vmatprep.mubr.f32.mxu0 0.0
      %1631 = vmatmul.mubr.f32.gmra.mrb[0].mxu0 %v1454
      %v1632 = vpop.f32.mrb[0].mxu0
      %v1633 = vadd.f32 0.0, %v1632
      %v1634 = vpop.f32.mrb[0].mxu0
      %1635 = vmatprep.mubr.f32.mxu0 0.0
      %1636 = vmatmul.mubr.f32.gmra.mrb[0].mxu0 %v1457
      %v1637 = vpop.f32.mrb[0].mxu0
      %v1638 = vadd.f32 0.0, %v1637
      %v1639 = vpop.f32.mrb[0].mxu0
      %1640 = vmatprep.mubr.f32.mxu0 0.0
      %1641 = vmatmul.mubr.f32.gmra.mrb[0].mxu0 %v1460
      %v1642 = vpop.f32.mrb[0].mxu0
      %v1643 = vadd.f32 0.0, %v1642
      %v1644 = vpop.f32.mrb[0].mxu0
      %1645 = vmatprep.mubr.f32.mxu0 0.0
      %1646 = vmatmul.mubr.f32.gmra.mrb[0].mxu0 %v1463
      %v1647 = vpop.f32.mrb[0].mxu0
      %v1648 = vadd.f32 0.0, %v1647
      %v1649 = vpop.f32.mrb[0].mxu0
      %1650 = vmatprep.mubr.f32.mxu0 0.0
      %1651 = vmatmul.mubr.f32.gmra.mrb[0].mxu0 %v1466
      %v1652 = vpop.f32.mrb[0].mxu0
      %v1653 = vadd.f32 0.0, %v1652
      %v1654 = vpop.f32.mrb[0].mxu0
      %1655 = vmatprep.mubr.f32.mxu0 0.0
      %1656 = vmatmul.mubr.f32.gmra.mrb[0].mxu0 %v1469
      %v1657 = vpop.f32.mrb[0].mxu0
      %v1658 = vadd.f32 0.0, %v1657
      %v1659 = vpop.f32.mrb[0].mxu0
      %1660 = vmatprep.mubr.f32.mxu0 0.0
      %1661 = vmatmul.mubr.f32.gmra.mrb[0].mxu0 %v1472
      %v1662 = vpop.f32.mrb[0].mxu0
      %v1663 = vadd.f32 0.0, %v1662
      %v1664 = vpop.f32.mrb[0].mxu0
      %1665 = vmatprep.mubr.f32.mxu0 0.0
      %1666 = vmatmul.mubr.f32.gmra.mrb[0].mxu0 %v1475
      %v1667 = vpop.f32.mrb[0].mxu0
      %v1668 = vadd.f32 0.0, %v1667
      %v1669 = vpop.f32.mrb[0].mxu0
      %1670 = vmatprep.mubr.f32.mxu0 0.0
      %1671 = vmatmul.mubr.f32.gmra.mrb[0].mxu0 %v1478
      %v1672 = vpop.f32.mrb[0].mxu0
      %v1673 = vadd.f32 0.0, %v1672
      %v1674 = vpop.f32.mrb[0].mxu0
      %1675 = vmatprep.mubr.f32.mxu0 0.0
      %1676 = vmatmul.mubr.f32.gmra.mrb[0].mxu0 %v1481
      %v1677 = vpop.f32.mrb[0].mxu0
      %v1678 = vadd.f32 0.0, %v1677
      %v1679 = vpop.f32.mrb[0].mxu0
      %1680 = vmatprep.mubr.f32.mxu0 0.0
      %1681 = vmatmul.mubr.f32.gmra.mrb[0].mxu0 %v1484
      %v1682 = vpop.f32.mrb[0].mxu0
      %v1683 = vadd.f32 0.0, %v1682
      %v1684 = vpop.f32.mrb[0].mxu0
      %1685 = vmatprep.mubr.f32.mxu0 0.0
      %1686 = vmatmul.mubr.f32.gmra.mrb[0].mxu0 %v1487
      %v1687 = vpop.f32.mrb[0].mxu0
      %v1688 = vadd.f32 0.0, %v1687
      %v1689 = vpop.f32.mrb[0].mxu0
      %1690 = vmatprep.mubr.f32.mxu0 0.0
      %1691 = vmatmul.mubr.f32.gmra.mrb[0].mxu0 %v1490
      %v1692 = vpop.f32.mrb[0].mxu0
      %v1693 = vadd.f32 0.0, %v1692
      %v1694 = vpop.f32.mrb[0].mxu0
      %1695 = vmatprep.mubr.f32.mxu0 0.0
      %1696 = vmatmul.mubr.f32.gmra.mrb[0].mxu0 %v1493
      %v1697 = vpop.f32.mrb[0].mxu0
      %v1698 = vadd.f32 0.0, %v1697
      %v1699 = vpop.f32.mrb[0].mxu0
      %1700 = vmatprep.mubr.f32.mxu0 0.0
      %1701 = vmatmul.mubr.f32.gmra.mrb[0].mxu0 %v1496
      %v1702 = vpop.f32.mrb[0].mxu0
      %v1703 = vadd.f32 0.0, %v1702
      %v1704 = vpop.f32.mrb[0].mxu0
      %1705 = vmatprep.mubr.f32.mxu0 0.0
      %1706 = vmatmul.mubr.f32.gmra.mrb[0].mxu0 %v1499
      %v1707 = vpop.f32.mrb[0].mxu0
      %v1708 = vadd.f32 0.0, %v1707
      %v1709 = vpop.f32.mrb[0].mxu0
      %1710 = vmatprep.mubr.f32.mxu0 0.0
      %1711 = vmatmul.mubr.f32.gmra.mrb[0].mxu0 %v1502
      %v1712 = vpop.f32.mrb[0].mxu0
      %v1713 = vadd.f32 0.0, %v1712
      %v1714 = vpop.f32.mrb[0].mxu0
      %1715 = vmatprep.mubr.f32.mxu0 0.0
      %1716 = vmatmul.mubr.f32.gmra.mrb[0].mxu0 %v1505
      %v1717 = vpop.f32.mrb[0].mxu0
      %v1718 = vadd.f32 0.0, %v1717
      %v1719 = vpop.f32.mrb[0].mxu0
      %1720 = vmatprep.mubr.f32.mxu0 0.0
      %1721 = vmatmul.mubr.f32.gmra.mrb[0].mxu0 %v1508
      %v1722 = vpop.f32.mrb[0].mxu0
      %v1723 = vadd.f32 0.0, %v1722
      %v1724 = vpop.f32.mrb[0].mxu0
      %1725 = vmatprep.mubr.f32.mxu0 0.0
      %1726 = vmatmul.mubr.f32.gmra.mrb[0].mxu0 %v1511
      %v1727 = vpop.f32.mrb[0].mxu0
      %v1728 = vadd.f32 0.0, %v1727
      %v1729 = vpop.f32.mrb[0].mxu0
      %1730 = vmatprep.mubr.f32.mxu0 0.0
      %1731 = vmatmul.mubr.f32.gmra.mrb[0].mxu0 %v1514
      %v1732 = vpop.f32.mrb[0].mxu0
      %v1733 = vadd.f32 0.0, %v1732
      %v1734 = vpop.f32.mrb[0].mxu0
      %1735 = vmatprep.mubr.f32.mxu0 0.0
      %1736 = vmatmul.mubr.f32.gmra.mrb[0].mxu0 %v1517
      %v1737 = vpop.f32.mrb[0].mxu0
      %v1738 = vadd.f32 0.0, %v1737
      %v1739 = vpop.f32.mrb[0].mxu0
      %1740 = vmatprep.mubr.f32.mxu0 0.0
      %1741 = vmatmul.mubr.f32.gmra.mrb[0].mxu0 %v1520
      %v1742 = vpop.f32.mrb[0].mxu0
      %v1743 = vadd.f32 0.0, %v1742
      %v1744 = vpop.f32.mrb[0].mxu0
      %1745 = vmatprep.mubr.f32.mxu0 0.0
      %1746 = vmatmul.mubr.f32.gmra.mrb[0].mxu0 %v1523
      %v1747 = vpop.f32.mrb[0].mxu0
      %v1748 = vadd.f32 0.0, %v1747
      %v1749 = vpop.f32.mrb[0].mxu0
      %1750 = vmatprep.mubr.f32.mxu0 0.0
      %1751 = vmatmul.mubr.f32.gmra.mrb[0].mxu0 %v1526
      %v1752 = vpop.f32.mrb[0].mxu0
      %v1753 = vadd.f32 0.0, %v1752
      %v1754 = vpop.f32.mrb[0].mxu0
      %1755 = vdwg.mxu0
      %v1756 = vadd.f32 %v1366, %v1598
      %v1757 = vadd.f32 %v1367, %v1603
      %v1758 = vadd.f32 %v1368, %v1608
      %v1759 = vadd.f32 %v1369, %v1613
      %v1760 = vadd.f32 %v1370, %v1618
      %v1761 = vadd.f32 %v1371, %v1623
      %v1762 = vadd.f32 %v1372, %v1628
      %v1763 = vadd.f32 %v1373, %v1633
      %v1764 = vadd.f32 %v1374, %v1638
      %v1765 = vadd.f32 %v1375, %v1643
      %v1766 = vadd.f32 %v1376, %v1648
      %v1767 = vadd.f32 %v1377, %v1653
      %v1768 = vadd.f32 %v1378, %v1658
      %v1769 = vadd.f32 %v1379, %v1663
      %v1770 = vadd.f32 %v1380, %v1668
      %v1771 = vadd.f32 %v1381, %v1673
      %v1772 = vadd.f32 %v1382, %v1678
      %v1773 = vadd.f32 %v1383, %v1683
      %v1774 = vadd.f32 %v1384, %v1688
      %v1775 = vadd.f32 %v1385, %v1693
      %v1776 = vadd.f32 %v1386, %v1698
      %v1777 = vadd.f32 %v1387, %v1703
      %v1778 = vadd.f32 %v1388, %v1708
      %v1779 = vadd.f32 %v1389, %v1713
      %v1780 = vadd.f32 %v1390, %v1718
      %v1781 = vadd.f32 %v1391, %v1723
      %v1782 = vadd.f32 %v1392, %v1728
      %v1783 = vadd.f32 %v1393, %v1733
      %v1784 = vadd.f32 %v1394, %v1738
      %v1785 = vadd.f32 %v1395, %v1743
      %v1786 = vadd.f32 %v1396, %v1748
      %v1787 = vadd.f32 %v1397, %v1753
      %v1788 = vld [vmem:[%s259 + $0x1] sm:$0xff]
      %v1789 = vld [vmem:[%s259 + $0x9] sm:$0xff]
      %v1790 = vld [vmem:[%s259 + $0x19] sm:$0xff]
      %v1791 = vld [vmem:[%s259 + $0x21] sm:$0xff]
      %v1792 = vld [vmem:[%s259 + $0x31] sm:$0xff]
      %v1793 = vld [vmem:[%s259 + $0x39] sm:$0xff]
      %v1794 = vld [vmem:[%s259 + $0x49] sm:$0xff]
      %v1795 = vld [vmem:[%s259 + $0x51] sm:$0xff]
      %v1796 = vld [vmem:[%s259 + $0x61] sm:$0xff]
      %v1797 = vld [vmem:[%s259 + $0x69] sm:$0xff]
      %v1798 = vld [vmem:[%s259 + $0x79] sm:$0xff]
      %v1799 = vld [vmem:[%s259 + $0x81] sm:$0xff]
      %v1800 = vld [vmem:[%s259 + $0x91] sm:$0xff]
      %v1801 = vld [vmem:[%s259 + $0x99] sm:$0xff]
      %v1802 = vld [vmem:[%s259 + $0xa9] sm:$0xff]
      %v1803 = vld [vmem:[%s259 + $0xb1] sm:$0xff]
      %v1804 = vld [vmem:[%s259 + $0xc1] sm:$0xff]
      %v1805 = vld [vmem:[%s259 + $0xc9] sm:$0xff]
      %v1806 = vld [vmem:[%s259 + $0xd9] sm:$0xff]
      %v1807 = vld [vmem:[%s259 + $0xe1] sm:$0xff]
      %v1808 = vld [vmem:[%s259 + $0xf1] sm:$0xff]
      %v1809 = vld [vmem:[%s259 + $0xf9] sm:$0xff]
      %v1810 = vld [vmem:[%s259 + $0x109] sm:$0xff]
      %v1811 = vld [vmem:[%s259 + $0x111] sm:$0xff]
      %v1812 = vld [vmem:[%s259 + $0x121] sm:$0xff]
      %v1813 = vld [vmem:[%s259 + $0x129] sm:$0xff]
      %v1814 = vld [vmem:[%s259 + $0x139] sm:$0xff]
      %v1815 = vld [vmem:[%s259 + $0x141] sm:$0xff]
      %v1816 = vld [vmem:[%s259 + $0x151] sm:$0xff]
      %v1817 = vld [vmem:[%s259 + $0x159] sm:$0xff]
      %v1818 = vld [vmem:[%s259 + $0x169] sm:$0xff]
      %v1819 = vld [vmem:[%s259 + $0x171] sm:$0xff]
      %s1820 = scalar_lea.vmem %s1, 16
      %v1821 = vld [vmem:[%s1820] sm:$0xf]
      %v1823 = vsel %vm171, %v1788, 0
      %v1826 = vsel %vm171, %v1789, 0
      %v1829 = vsel %vm171, %v1790, 0
      %v1832 = vsel %vm171, %v1791, 0
      %v1835 = vsel %vm171, %v1792, 0
      %v1838 = vsel %vm171, %v1793, 0
      %v1841 = vsel %vm171, %v1794, 0
      %v1844 = vsel %vm171, %v1795, 0
      %v1847 = vsel %vm171, %v1796, 0
      %v1850 = vsel %vm171, %v1797, 0
      %v1853 = vsel %vm171, %v1798, 0
      %v1856 = vsel %vm171, %v1799, 0
      %v1859 = vsel %vm171, %v1800, 0
      %v1862 = vsel %vm171, %v1801, 0
      %v1865 = vsel %vm171, %v1802, 0
      %v1868 = vsel %vm171, %v1803, 0
      %v1871 = vsel %vm171, %v1804, 0
      %v1874 = vsel %vm171, %v1805, 0
      %v1877 = vsel %vm171, %v1806, 0
      %v1880 = vsel %vm171, %v1807, 0
      %v1883 = vsel %vm171, %v1808, 0
      %v1886 = vsel %vm171, %v1809, 0
      %v1889 = vsel %vm171, %v1810, 0
      %v1892 = vsel %vm171, %v1811, 0
      %v1895 = vsel %vm171, %v1812, 0
      %v1898 = vsel %vm171, %v1813, 0
      %v1901 = vsel %vm171, %v1814, 0
      %v1904 = vsel %vm171, %v1815, 0
      %v1907 = vsel %vm171, %v1816, 0
      %v1910 = vsel %vm171, %v1817, 0
      %v1913 = vsel %vm171, %v1818, 0
      %v1916 = vsel %vm171, %v1819, 0
      %v1919 = vsel %vm455, %v1821, 0
      %1921 = vmatprep.subr.mxu0 0.0
      %1922 = vmatpush1.msra.mxu0 %v1919
      %1923 = vmatprep.subr.mxu0 0.0
      %1924 = vmatpush1.msra.mxu0 0.0
      %1925 = vmatprep.subr.mxu0 0.0
      %1926 = vmatpush1.msra.mxu0 0.0
      %1927 = vmatprep.subr.mxu0 0.0
      %1928 = vmatpush1.msra.mxu0 0.0
      %1929 = vmatprep.subr.mxu0 0.0
      %1930 = vmatpush1.msra.mxu0 0.0
      %1931 = vmatprep.subr.mxu0 0.0
      %1932 = vmatpush1.msra.mxu0 0.0
      %1933 = vmatprep.subr.mxu0 0.0
      %1934 = vmatpush1.msra.mxu0 0.0
      %1935 = vmatprep.subr.mxu0 0.0
      %1936 = vmatpush1.msra.mxu0 0.0
      %1937 = vmatprep.subr.mxu0 0.0
      %1938 = vmatpush1.msra.mxu0 0.0
      %1939 = vmatprep.subr.mxu0 0.0
      %1940 = vmatpush1.msra.mxu0 0.0
      %1941 = vmatprep.subr.mxu0 0.0
      %1942 = vmatpush1.msra.mxu0 0.0
      %1943 = vmatprep.subr.mxu0 0.0
      %1944 = vmatpush1.msra.mxu0 0.0
      %1945 = vmatprep.subr.mxu0 0.0
      %1946 = vmatpush1.msra.mxu0 0.0
      %1947 = vmatprep.subr.mxu0 0.0
      %1948 = vmatpush1.msra.mxu0 0.0
      %1949 = vmatprep.subr.mxu0 0.0
      %1950 = vmatpush1.msra.mxu0 0.0
      %1951 = vmatprep.subr.mxu0 0.0
      %1952 = vmatpush1.msra.mxu0 0.0
      %1953 = vmatprep.subr.mxu0 0.0
      %1954 = vmatpush1.msra.mxu0 0.0
      %1955 = vmatprep.subr.mxu0 0.0
      %1956 = vmatpush1.msra.mxu0 0.0
      %1957 = vmatprep.subr.mxu0 0.0
      %1958 = vmatpush1.msra.mxu0 0.0
      %1959 = vmatprep.subr.mxu0 0.0
      %1960 = vmatpush1.msra.mxu0 0.0
      %1961 = vmatprep.subr.mxu0 0.0
      %1962 = vmatpush1.msra.mxu0 0.0
      %1963 = vmatprep.subr.mxu0 0.0
      %1964 = vmatpush1.msra.mxu0 0.0
      %1965 = vmatprep.subr.mxu0 0.0
      %1966 = vmatpush1.msra.mxu0 0.0
      %1967 = vmatprep.subr.mxu0 0.0
      %1968 = vmatpush1.msra.mxu0 0.0
      %1969 = vmatprep.subr.mxu0 0.0
      %1970 = vmatpush1.msra.mxu0 0.0
      %1971 = vmatprep.subr.mxu0 0.0
      %1972 = vmatpush1.msra.mxu0 0.0
      %1973 = vmatprep.subr.mxu0 0.0
      %1974 = vmatpush1.msra.mxu0 0.0
      %1975 = vmatprep.subr.mxu0 0.0
      %1976 = vmatpush1.msra.mxu0 0.0
      %1977 = vmatprep.subr.mxu0 0.0
      %1978 = vmatpush1.msra.mxu0 0.0
      %1979 = vmatprep.subr.mxu0 0.0
      %1980 = vmatpush1.msra.mxu0 0.0
      %1981 = vmatprep.subr.mxu0 0.0
      %1982 = vmatpush1.msra.mxu0 0.0
      %1983 = vmatprep.subr.mxu0 0.0
      %1984 = vmatpush1.msra.mxu0 0.0
      %1985 = vmatprep.mubr.f32.mxu0 0.0
      %1986 = vmatmul.mubr.f32.gmra.mrb[0].mxu0 %v1823
      %v1987 = vpop.f32.mrb[0].mxu0
      %v1988 = vadd.f32 0.0, %v1987
      %v1989 = vpop.f32.mrb[0].mxu0
      %1990 = vmatprep.mubr.f32.mxu0 0.0
      %1991 = vmatmul.mubr.f32.gmra.mrb[0].mxu0 %v1826
      %v1992 = vpop.f32.mrb[0].mxu0
      %v1993 = vadd.f32 0.0, %v1992
      %v1994 = vpop.f32.mrb[0].mxu0
      %1995 = vmatprep.mubr.f32.mxu0 0.0
      %1996 = vmatmul.mubr.f32.gmra.mrb[0].mxu0 %v1829
      %v1997 = vpop.f32.mrb[0].mxu0
      %v1998 = vadd.f32 0.0, %v1997
      %v1999 = vpop.f32.mrb[0].mxu0
      %2000 = vmatprep.mubr.f32.mxu0 0.0
      %2001 = vmatmul.mubr.f32.gmra.mrb[0].mxu0 %v1832
      %v2002 = vpop.f32.mrb[0].mxu0
      %v2003 = vadd.f32 0.0, %v2002
      %v2004 = vpop.f32.mrb[0].mxu0
      %2005 = vmatprep.mubr.f32.mxu0 0.0
      %2006 = vmatmul.mubr.f32.gmra.mrb[0].mxu0 %v1835
      %v2007 = vpop.f32.mrb[0].mxu0
      %v2008 = vadd.f32 0.0, %v2007
      %v2009 = vpop.f32.mrb[0].mxu0
      %2010 = vmatprep.mubr.f32.mxu0 0.0
      %2011 = vmatmul.mubr.f32.gmra.mrb[0].mxu0 %v1838
      %v2012 = vpop.f32.mrb[0].mxu0
      %v2013 = vadd.f32 0.0, %v2012
      %v2014 = vpop.f32.mrb[0].mxu0
      %2015 = vmatprep.mubr.f32.mxu0 0.0
      %2016 = vmatmul.mubr.f32.gmra.mrb[0].mxu0 %v1841
      %v2017 = vpop.f32.mrb[0].mxu0
      %v2018 = vadd.f32 0.0, %v2017
      %v2019 = vpop.f32.mrb[0].mxu0
      %2020 = vmatprep.mubr.f32.mxu0 0.0
      %2021 = vmatmul.mubr.f32.gmra.mrb[0].mxu0 %v1844
      %v2022 = vpop.f32.mrb[0].mxu0
      %v2023 = vadd.f32 0.0, %v2022
      %v2024 = vpop.f32.mrb[0].mxu0
      %2025 = vmatprep.mubr.f32.mxu0 0.0
      %2026 = vmatmul.mubr.f32.gmra.mrb[0].mxu0 %v1847
      %v2027 = vpop.f32.mrb[0].mxu0
      %v2028 = vadd.f32 0.0, %v2027
      %v2029 = vpop.f32.mrb[0].mxu0
      %2030 = vmatprep.mubr.f32.mxu0 0.0
      %2031 = vmatmul.mubr.f32.gmra.mrb[0].mxu0 %v1850
      %v2032 = vpop.f32.mrb[0].mxu0
      %v2033 = vadd.f32 0.0, %v2032
      %v2034 = vpop.f32.mrb[0].mxu0
      %2035 = vmatprep.mubr.f32.mxu0 0.0
      %2036 = vmatmul.mubr.f32.gmra.mrb[0].mxu0 %v1853
      %v2037 = vpop.f32.mrb[0].mxu0
      %v2038 = vadd.f32 0.0, %v2037
      %v2039 = vpop.f32.mrb[0].mxu0
      %2040 = vmatprep.mubr.f32.mxu0 0.0
      %2041 = vmatmul.mubr.f32.gmra.mrb[0].mxu0 %v1856
      %v2042 = vpop.f32.mrb[0].mxu0
      %v2043 = vadd.f32 0.0, %v2042
      %v2044 = vpop.f32.mrb[0].mxu0
      %2045 = vmatprep.mubr.f32.mxu0 0.0
      %2046 = vmatmul.mubr.f32.gmra.mrb[0].mxu0 %v1859
      %v2047 = vpop.f32.mrb[0].mxu0
      %v2048 = vadd.f32 0.0, %v2047
      %v2049 = vpop.f32.mrb[0].mxu0
      %2050 = vmatprep.mubr.f32.mxu0 0.0
      %2051 = vmatmul.mubr.f32.gmra.mrb[0].mxu0 %v1862
      %v2052 = vpop.f32.mrb[0].mxu0
      %v2053 = vadd.f32 0.0, %v2052
      %v2054 = vpop.f32.mrb[0].mxu0
      %2055 = vmatprep.mubr.f32.mxu0 0.0
      %2056 = vmatmul.mubr.f32.gmra.mrb[0].mxu0 %v1865
      %v2057 = vpop.f32.mrb[0].mxu0
      %v2058 = vadd.f32 0.0, %v2057
      %v2059 = vpop.f32.mrb[0].mxu0
      %2060 = vmatprep.mubr.f32.mxu0 0.0
      %2061 = vmatmul.mubr.f32.gmra.mrb[0].mxu0 %v1868
      %v2062 = vpop.f32.mrb[0].mxu0
      %v2063 = vadd.f32 0.0, %v2062
      %v2064 = vpop.f32.mrb[0].mxu0
      %2065 = vmatprep.mubr.f32.mxu0 0.0
      %2066 = vmatmul.mubr.f32.gmra.mrb[0].mxu0 %v1871
      %v2067 = vpop.f32.mrb[0].mxu0
      %v2068 = vadd.f32 0.0, %v2067
      %v2069 = vpop.f32.mrb[0].mxu0
      %2070 = vmatprep.mubr.f32.mxu0 0.0
      %2071 = vmatmul.mubr.f32.gmra.mrb[0].mxu0 %v1874
      %v2072 = vpop.f32.mrb[0].mxu0
      %v2073 = vadd.f32 0.0, %v2072
      %v2074 = vpop.f32.mrb[0].mxu0
      %2075 = vmatprep.mubr.f32.mxu0 0.0
      %2076 = vmatmul.mubr.f32.gmra.mrb[0].mxu0 %v1877
      %v2077 = vpop.f32.mrb[0].mxu0
      %v2078 = vadd.f32 0.0, %v2077
      %v2079 = vpop.f32.mrb[0].mxu0
      %2080 = vmatprep.mubr.f32.mxu0 0.0
      %2081 = vmatmul.mubr.f32.gmra.mrb[0].mxu0 %v1880
      %v2082 = vpop.f32.mrb[0].mxu0
      %v2083 = vadd.f32 0.0, %v2082
      %v2084 = vpop.f32.mrb[0].mxu0
      %2085 = vmatprep.mubr.f32.mxu0 0.0
      %2086 = vmatmul.mubr.f32.gmra.mrb[0].mxu0 %v1883
      %v2087 = vpop.f32.mrb[0].mxu0
      %v2088 = vadd.f32 0.0, %v2087
      %v2089 = vpop.f32.mrb[0].mxu0
      %2090 = vmatprep.mubr.f32.mxu0 0.0
      %2091 = vmatmul.mubr.f32.gmra.mrb[0].mxu0 %v1886
      %v2092 = vpop.f32.mrb[0].mxu0
      %v2093 = vadd.f32 0.0, %v2092
      %v2094 = vpop.f32.mrb[0].mxu0
      %2095 = vmatprep.mubr.f32.mxu0 0.0
      %2096 = vmatmul.mubr.f32.gmra.mrb[0].mxu0 %v1889
      %v2097 = vpop.f32.mrb[0].mxu0
      %v2098 = vadd.f32 0.0, %v2097
      %v2099 = vpop.f32.mrb[0].mxu0
      %2100 = vmatprep.mubr.f32.mxu0 0.0
      %2101 = vmatmul.mubr.f32.gmra.mrb[0].mxu0 %v1892
      %v2102 = vpop.f32.mrb[0].mxu0
      %v2103 = vadd.f32 0.0, %v2102
      %v2104 = vpop.f32.mrb[0].mxu0
      %2105 = vmatprep.mubr.f32.mxu0 0.0
      %2106 = vmatmul.mubr.f32.gmra.mrb[0].mxu0 %v1895
      %v2107 = vpop.f32.mrb[0].mxu0
      %v2108 = vadd.f32 0.0, %v2107
      %v2109 = vpop.f32.mrb[0].mxu0
      %2110 = vmatprep.mubr.f32.mxu0 0.0
      %2111 = vmatmul.mubr.f32.gmra.mrb[0].mxu0 %v1898
      %v2112 = vpop.f32.mrb[0].mxu0
      %v2113 = vadd.f32 0.0, %v2112
      %v2114 = vpop.f32.mrb[0].mxu0
      %2115 = vmatprep.mubr.f32.mxu0 0.0
      %2116 = vmatmul.mubr.f32.gmra.mrb[0].mxu0 %v1901
      %v2117 = vpop.f32.mrb[0].mxu0
      %v2118 = vadd.f32 0.0, %v2117
      %v2119 = vpop.f32.mrb[0].mxu0
      %2120 = vmatprep.mubr.f32.mxu0 0.0
      %2121 = vmatmul.mubr.f32.gmra.mrb[0].mxu0 %v1904
      %v2122 = vpop.f32.mrb[0].mxu0
      %v2123 = vadd.f32 0.0, %v2122
      %v2124 = vpop.f32.mrb[0].mxu0
      %2125 = vmatprep.mubr.f32.mxu0 0.0
      %2126 = vmatmul.mubr.f32.gmra.mrb[0].mxu0 %v1907
      %v2127 = vpop.f32.mrb[0].mxu0
      %v2128 = vadd.f32 0.0, %v2127
      %v2129 = vpop.f32.mrb[0].mxu0
      %2130 = vmatprep.mubr.f32.mxu0 0.0
      %2131 = vmatmul.mubr.f32.gmra.mrb[0].mxu0 %v1910
      %v2132 = vpop.f32.mrb[0].mxu0
      %v2133 = vadd.f32 0.0, %v2132
      %v2134 = vpop.f32.mrb[0].mxu0
      %2135 = vmatprep.mubr.f32.mxu0 0.0
      %2136 = vmatmul.mubr.f32.gmra.mrb[0].mxu0 %v1913
      %v2137 = vpop.f32.mrb[0].mxu0
      %v2138 = vadd.f32 0.0, %v2137
      %v2139 = vpop.f32.mrb[0].mxu0
      %2140 = vmatprep.mubr.f32.mxu0 0.0
      %2141 = vmatmul.mubr.f32.gmra.mrb[0].mxu0 %v1916
      %v2142 = vpop.f32.mrb[0].mxu0
      %v2143 = vadd.f32 0.0, %v2142
      %v2144 = vpop.f32.mrb[0].mxu0
      %2145 = vdwg.mxu0
      %v2146 = vadd.f32 %v1756, %v1988
      %v2147 = vadd.f32 %v1757, %v1993
      %v2148 = vadd.f32 %v1758, %v1998
      %v2149 = vadd.f32 %v1759, %v2003
      %v2150 = vadd.f32 %v1760, %v2008
      %v2151 = vadd.f32 %v1761, %v2013
      %v2152 = vadd.f32 %v1762, %v2018
      %v2153 = vadd.f32 %v1763, %v2023
      %v2154 = vadd.f32 %v1764, %v2028
      %v2155 = vadd.f32 %v1765, %v2033
      %v2156 = vadd.f32 %v1766, %v2038
      %v2157 = vadd.f32 %v1767, %v2043
      %v2158 = vadd.f32 %v1768, %v2048
      %v2159 = vadd.f32 %v1769, %v2053
      %v2160 = vadd.f32 %v1770, %v2058
      %v2161 = vadd.f32 %v1771, %v2063
      %v2162 = vadd.f32 %v1772, %v2068
      %v2163 = vadd.f32 %v1773, %v2073
      %v2164 = vadd.f32 %v1774, %v2078
      %v2165 = vadd.f32 %v1775, %v2083
      %v2166 = vadd.f32 %v1776, %v2088
      %v2167 = vadd.f32 %v1777, %v2093
      %v2168 = vadd.f32 %v1778, %v2098
      %v2169 = vadd.f32 %v1779, %v2103
      %v2170 = vadd.f32 %v1780, %v2108
      %v2171 = vadd.f32 %v1781, %v2113
      %v2172 = vadd.f32 %v1782, %v2118
      %v2173 = vadd.f32 %v1783, %v2123
      %v2174 = vadd.f32 %v1784, %v2128
      %v2175 = vadd.f32 %v1785, %v2133
      %v2176 = vadd.f32 %v1786, %v2138
      %v2177 = vadd.f32 %v1787, %v2143
      %v2178 = vld [vmem:[%s259 + $0x2] sm:$0xff]
      %v2179 = vld [vmem:[%s259 + $0xa] sm:$0xff]
      %v2180 = vld [vmem:[%s259 + $0x1a] sm:$0xff]
      %v2181 = vld [vmem:[%s259 + $0x22] sm:$0xff]
      %v2182 = vld [vmem:[%s259 + $0x32] sm:$0xff]
      %v2183 = vld [vmem:[%s259 + $0x3a] sm:$0xff]
      %v2184 = vld [vmem:[%s259 + $0x4a] sm:$0xff]
      %v2185 = vld [vmem:[%s259 + $0x52] sm:$0xff]
      %v2186 = vld [vmem:[%s259 + $0x62] sm:$0xff]
      %v2187 = vld [vmem:[%s259 + $0x6a] sm:$0xff]
      %v2188 = vld [vmem:[%s259 + $0x7a] sm:$0xff]
      %v2189 = vld [vmem:[%s259 + $0x82] sm:$0xff]
      %v2190 = vld [vmem:[%s259 + $0x92] sm:$0xff]
      %v2191 = vld [vmem:[%s259 + $0x9a] sm:$0xff]
      %v2192 = vld [vmem:[%s259 + $0xaa] sm:$0xff]
      %v2193 = vld [vmem:[%s259 + $0xb2] sm:$0xff]
      %v2194 = vld [vmem:[%s259 + $0xc2] sm:$0xff]
      %v2195 = vld [vmem:[%s259 + $0xca] sm:$0xff]
      %v2196 = vld [vmem:[%s259 + $0xda] sm:$0xff]
      %v2197 = vld [vmem:[%s259 + $0xe2] sm:$0xff]
      %v2198 = vld [vmem:[%s259 + $0xf2] sm:$0xff]
      %v2199 = vld [vmem:[%s259 + $0xfa] sm:$0xff]
      %v2200 = vld [vmem:[%s259 + $0x10a] sm:$0xff]
      %v2201 = vld [vmem:[%s259 + $0x112] sm:$0xff]
      %v2202 = vld [vmem:[%s259 + $0x122] sm:$0xff]
      %v2203 = vld [vmem:[%s259 + $0x12a] sm:$0xff]
      %v2204 = vld [vmem:[%s259 + $0x13a] sm:$0xff]
      %v2205 = vld [vmem:[%s259 + $0x142] sm:$0xff]
      %v2206 = vld [vmem:[%s259 + $0x152] sm:$0xff]
      %v2207 = vld [vmem:[%s259 + $0x15a] sm:$0xff]
      %v2208 = vld [vmem:[%s259 + $0x16a] sm:$0xff]
      %v2209 = vld [vmem:[%s259 + $0x172] sm:$0xff]
      %s2210 = scalar_lea.vmem %s1, 20
      %v2211 = vld [vmem:[%s2210] sm:$0xf]
      %v2213 = vsel %vm171, %v2178, 0
      %v2216 = vsel %vm171, %v2179, 0
      %v2219 = vsel %vm171, %v2180, 0
      %v2222 = vsel %vm171, %v2181, 0
      %v2225 = vsel %vm171, %v2182, 0
      %v2228 = vsel %vm171, %v2183, 0
      %v2231 = vsel %vm171, %v2184, 0
      %v2234 = vsel %vm171, %v2185, 0
      %v2237 = vsel %vm171, %v2186, 0
      %v2240 = vsel %vm171, %v2187, 0
      %v2243 = vsel %vm171, %v2188, 0
      %v2246 = vsel %vm171, %v2189, 0
      %v2249 = vsel %vm171, %v2190, 0
      %v2252 = vsel %vm171, %v2191, 0
      %v2255 = vsel %vm171, %v2192, 0
      %v2258 = vsel %vm171, %v2193, 0
      %v2261 = vsel %vm171, %v2194, 0
      %v2264 = vsel %vm171, %v2195, 0
      %v2267 = vsel %vm171, %v2196, 0
      %v2270 = vsel %vm171, %v2197, 0
      %v2273 = vsel %vm171, %v2198, 0
      %v2276 = vsel %vm171, %v2199, 0
      %v2279 = vsel %vm171, %v2200, 0
      %v2282 = vsel %vm171, %v2201, 0
      %v2285 = vsel %vm171, %v2202, 0
      %v2288 = vsel %vm171, %v2203, 0
      %v2291 = vsel %vm171, %v2204, 0
      %v2294 = vsel %vm171, %v2205, 0
      %v2297 = vsel %vm171, %v2206, 0
      %v2300 = vsel %vm171, %v2207, 0
      %v2303 = vsel %vm171, %v2208, 0
      %v2306 = vsel %vm171, %v2209, 0
      %v2309 = vsel %vm455, %v2211, 0
      %2311 = vmatprep.subr.mxu0 0.0
      %2312 = vmatpush1.msra.mxu0 %v2309
      %2313 = vmatprep.subr.mxu0 0.0
      %2314 = vmatpush1.msra.mxu0 0.0
      %2315 = vmatprep.subr.mxu0 0.0
      %2316 = vmatpush1.msra.mxu0 0.0
      %2317 = vmatprep.subr.mxu0 0.0
      %2318 = vmatpush1.msra.mxu0 0.0
      %2319 = vmatprep.subr.mxu0 0.0
      %2320 = vmatpush1.msra.mxu0 0.0
      %2321 = vmatprep.subr.mxu0 0.0
      %2322 = vmatpush1.msra.mxu0 0.0
      %2323 = vmatprep.subr.mxu0 0.0
      %2324 = vmatpush1.msra.mxu0 0.0
      %2325 = vmatprep.subr.mxu0 0.0
      %2326 = vmatpush1.msra.mxu0 0.0
      %2327 = vmatprep.subr.mxu0 0.0
      %2328 = vmatpush1.msra.mxu0 0.0
      %2329 = vmatprep.subr.mxu0 0.0
      %2330 = vmatpush1.msra.mxu0 0.0
      %2331 = vmatprep.subr.mxu0 0.0
      %2332 = vmatpush1.msra.mxu0 0.0
      %2333 = vmatprep.subr.mxu0 0.0
      %2334 = vmatpush1.msra.mxu0 0.0
      %2335 = vmatprep.subr.mxu0 0.0
      %2336 = vmatpush1.msra.mxu0 0.0
      %2337 = vmatprep.subr.mxu0 0.0
      %2338 = vmatpush1.msra.mxu0 0.0
      %2339 = vmatprep.subr.mxu0 0.0
      %2340 = vmatpush1.msra.mxu0 0.0
      %2341 = vmatprep.subr.mxu0 0.0
      %2342 = vmatpush1.msra.mxu0 0.0
      %2343 = vmatprep.subr.mxu0 0.0
      %2344 = vmatpush1.msra.mxu0 0.0
      %2345 = vmatprep.subr.mxu0 0.0
      %2346 = vmatpush1.msra.mxu0 0.0
      %2347 = vmatprep.subr.mxu0 0.0
      %2348 = vmatpush1.msra.mxu0 0.0
      %2349 = vmatprep.subr.mxu0 0.0
      %2350 = vmatpush1.msra.mxu0 0.0
      %2351 = vmatprep.subr.mxu0 0.0
      %2352 = vmatpush1.msra.mxu0 0.0
      %2353 = vmatprep.subr.mxu0 0.0
      %2354 = vmatpush1.msra.mxu0 0.0
      %2355 = vmatprep.subr.mxu0 0.0
      %2356 = vmatpush1.msra.mxu0 0.0
      %2357 = vmatprep.subr.mxu0 0.0
      %2358 = vmatpush1.msra.mxu0 0.0
      %2359 = vmatprep.subr.mxu0 0.0
      %2360 = vmatpush1.msra.mxu0 0.0
      %2361 = vmatprep.subr.mxu0 0.0
      %2362 = vmatpush1.msra.mxu0 0.0
      %2363 = vmatprep.subr.mxu0 0.0
      %2364 = vmatpush1.msra.mxu0 0.0
      %2365 = vmatprep.subr.mxu0 0.0
      %2366 = vmatpush1.msra.mxu0 0.0
      %2367 = vmatprep.subr.mxu0 0.0
      %2368 = vmatpush1.msra.mxu0 0.0
      %2369 = vmatprep.subr.mxu0 0.0
      %2370 = vmatpush1.msra.mxu0 0.0
      %2371 = vmatprep.subr.mxu0 0.0
      %2372 = vmatpush1.msra.mxu0 0.0
      %2373 = vmatprep.subr.mxu0 0.0
      %2374 = vmatpush1.msra.mxu0 0.0
      %2375 = vmatprep.mubr.f32.mxu0 0.0
      %2376 = vmatmul.mubr.f32.gmra.mrb[0].mxu0 %v2213
      %v2377 = vpop.f32.mrb[0].mxu0
      %v2378 = vadd.f32 0.0, %v2377
      %v2379 = vpop.f32.mrb[0].mxu0
      %2380 = vmatprep.mubr.f32.mxu0 0.0
      %2381 = vmatmul.mubr.f32.gmra.mrb[0].mxu0 %v2216
      %v2382 = vpop.f32.mrb[0].mxu0
      %v2383 = vadd.f32 0.0, %v2382
      %v2384 = vpop.f32.mrb[0].mxu0
      %2385 = vmatprep.mubr.f32.mxu0 0.0
      %2386 = vmatmul.mubr.f32.gmra.mrb[0].mxu0 %v2219
      %v2387 = vpop.f32.mrb[0].mxu0
      %v2388 = vadd.f32 0.0, %v2387
      %v2389 = vpop.f32.mrb[0].mxu0
      %2390 = vmatprep.mubr.f32.mxu0 0.0
      %2391 = vmatmul.mubr.f32.gmra.mrb[0].mxu0 %v2222
      %v2392 = vpop.f32.mrb[0].mxu0
      %v2393 = vadd.f32 0.0, %v2392
      %v2394 = vpop.f32.mrb[0].mxu0
      %2395 = vmatprep.mubr.f32.mxu0 0.0
      %2396 = vmatmul.mubr.f32.gmra.mrb[0].mxu0 %v2225
      %v2397 = vpop.f32.mrb[0].mxu0
      %v2398 = vadd.f32 0.0, %v2397
      %v2399 = vpop.f32.mrb[0].mxu0
      %2400 = vmatprep.mubr.f32.mxu0 0.0
      %2401 = vmatmul.mubr.f32.gmra.mrb[0].mxu0 %v2228
      %v2402 = vpop.f32.mrb[0].mxu0
      %v2403 = vadd.f32 0.0, %v2402
      %v2404 = vpop.f32.mrb[0].mxu0
      %2405 = vmatprep.mubr.f32.mxu0 0.0
      %2406 = vmatmul.mubr.f32.gmra.mrb[0].mxu0 %v2231
      %v2407 = vpop.f32.mrb[0].mxu0
      %v2408 = vadd.f32 0.0, %v2407
      %v2409 = vpop.f32.mrb[0].mxu0
      %2410 = vmatprep.mubr.f32.mxu0 0.0
      %2411 = vmatmul.mubr.f32.gmra.mrb[0].mxu0 %v2234
      %v2412 = vpop.f32.mrb[0].mxu0
      %v2413 = vadd.f32 0.0, %v2412
      %v2414 = vpop.f32.mrb[0].mxu0
      %2415 = vmatprep.mubr.f32.mxu0 0.0
      %2416 = vmatmul.mubr.f32.gmra.mrb[0].mxu0 %v2237
      %v2417 = vpop.f32.mrb[0].mxu0
      %v2418 = vadd.f32 0.0, %v2417
      %v2419 = vpop.f32.mrb[0].mxu0
      %2420 = vmatprep.mubr.f32.mxu0 0.0
      %2421 = vmatmul.mubr.f32.gmra.mrb[0].mxu0 %v2240
      %v2422 = vpop.f32.mrb[0].mxu0
      %v2423 = vadd.f32 0.0, %v2422
      %v2424 = vpop.f32.mrb[0].mxu0
      %2425 = vmatprep.mubr.f32.mxu0 0.0
      %2426 = vmatmul.mubr.f32.gmra.mrb[0].mxu0 %v2243
      %v2427 = vpop.f32.mrb[0].mxu0
      %v2428 = vadd.f32 0.0, %v2427
      %v2429 = vpop.f32.mrb[0].mxu0
      %2430 = vmatprep.mubr.f32.mxu0 0.0
      %2431 = vmatmul.mubr.f32.gmra.mrb[0].mxu0 %v2246
      %v2432 = vpop.f32.mrb[0].mxu0
      %v2433 = vadd.f32 0.0, %v2432
      %v2434 = vpop.f32.mrb[0].mxu0
      %2435 = vmatprep.mubr.f32.mxu0 0.0
      %2436 = vmatmul.mubr.f32.gmra.mrb[0].mxu0 %v2249
      %v2437 = vpop.f32.mrb[0].mxu0
      %v2438 = vadd.f32 0.0, %v2437
      %v2439 = vpop.f32.mrb[0].mxu0
      %2440 = vmatprep.mubr.f32.mxu0 0.0
      %2441 = vmatmul.mubr.f32.gmra.mrb[0].mxu0 %v2252
      %v2442 = vpop.f32.mrb[0].mxu0
      %v2443 = vadd.f32 0.0, %v2442
      %v2444 = vpop.f32.mrb[0].mxu0
      %2445 = vmatprep.mubr.f32.mxu0 0.0
      %2446 = vmatmul.mubr.f32.gmra.mrb[0].mxu0 %v2255
      %v2447 = vpop.f32.mrb[0].mxu0
      %v2448 = vadd.f32 0.0, %v2447
      %v2449 = vpop.f32.mrb[0].mxu0
      %2450 = vmatprep.mubr.f32.mxu0 0.0
      %2451 = vmatmul.mubr.f32.gmra.mrb[0].mxu0 %v2258
      %v2452 = vpop.f32.mrb[0].mxu0
      %v2453 = vadd.f32 0.0, %v2452
      %v2454 = vpop.f32.mrb[0].mxu0
      %2455 = vmatprep.mubr.f32.mxu0 0.0
      %2456 = vmatmul.mubr.f32.gmra.mrb[0].mxu0 %v2261
      %v2457 = vpop.f32.mrb[0].mxu0
      %v2458 = vadd.f32 0.0, %v2457
      %v2459 = vpop.f32.mrb[0].mxu0
      %2460 = vmatprep.mubr.f32.mxu0 0.0
      %2461 = vmatmul.mubr.f32.gmra.mrb[0].mxu0 %v2264
      %v2462 = vpop.f32.mrb[0].mxu0
      %v2463 = vadd.f32 0.0, %v2462
      %v2464 = vpop.f32.mrb[0].mxu0
      %2465 = vmatprep.mubr.f32.mxu0 0.0
      %2466 = vmatmul.mubr.f32.gmra.mrb[0].mxu0 %v2267
      %v2467 = vpop.f32.mrb[0].mxu0
      %v2468 = vadd.f32 0.0, %v2467
      %v2469 = vpop.f32.mrb[0].mxu0
      %2470 = vmatprep.mubr.f32.mxu0 0.0
      %2471 = vmatmul.mubr.f32.gmra.mrb[0].mxu0 %v2270
      %v2472 = vpop.f32.mrb[0].mxu0
      %v2473 = vadd.f32 0.0, %v2472
      %v2474 = vpop.f32.mrb[0].mxu0
      %2475 = vmatprep.mubr.f32.mxu0 0.0
      %2476 = vmatmul.mubr.f32.gmra.mrb[0].mxu0 %v2273
      %v2477 = vpop.f32.mrb[0].mxu0
      %v2478 = vadd.f32 0.0, %v2477
      %v2479 = vpop.f32.mrb[0].mxu0
      %2480 = vmatprep.mubr.f32.mxu0 0.0
      %2481 = vmatmul.mubr.f32.gmra.mrb[0].mxu0 %v2276
      %v2482 = vpop.f32.mrb[0].mxu0
      %v2483 = vadd.f32 0.0, %v2482
      %v2484 = vpop.f32.mrb[0].mxu0
      %2485 = vmatprep.mubr.f32.mxu0 0.0
      %2486 = vmatmul.mubr.f32.gmra.mrb[0].mxu0 %v2279
      %v2487 = vpop.f32.mrb[0].mxu0
      %v2488 = vadd.f32 0.0, %v2487
      %v2489 = vpop.f32.mrb[0].mxu0
      %2490 = vmatprep.mubr.f32.mxu0 0.0
      %2491 = vmatmul.mubr.f32.gmra.mrb[0].mxu0 %v2282
      %v2492 = vpop.f32.mrb[0].mxu0
      %v2493 = vadd.f32 0.0, %v2492
      %v2494 = vpop.f32.mrb[0].mxu0
      %2495 = vmatprep.mubr.f32.mxu0 0.0
      %2496 = vmatmul.mubr.f32.gmra.mrb[0].mxu0 %v2285
      %v2497 = vpop.f32.mrb[0].mxu0
      %v2498 = vadd.f32 0.0, %v2497
      %v2499 = vpop.f32.mrb[0].mxu0
      %2500 = vmatprep.mubr.f32.mxu0 0.0
      %2501 = vmatmul.mubr.f32.gmra.mrb[0].mxu0 %v2288
      %v2502 = vpop.f32.mrb[0].mxu0
      %v2503 = vadd.f32 0.0, %v2502
      %v2504 = vpop.f32.mrb[0].mxu0
      %2505 = vmatprep.mubr.f32.mxu0 0.0
      %2506 = vmatmul.mubr.f32.gmra.mrb[0].mxu0 %v2291
      %v2507 = vpop.f32.mrb[0].mxu0
      %v2508 = vadd.f32 0.0, %v2507
      %v2509 = vpop.f32.mrb[0].mxu0
      %2510 = vmatprep.mubr.f32.mxu0 0.0
      %2511 = vmatmul.mubr.f32.gmra.mrb[0].mxu0 %v2294
      %v2512 = vpop.f32.mrb[0].mxu0
      %v2513 = vadd.f32 0.0, %v2512
      %v2514 = vpop.f32.mrb[0].mxu0
      %2515 = vmatprep.mubr.f32.mxu0 0.0
      %2516 = vmatmul.mubr.f32.gmra.mrb[0].mxu0 %v2297
      %v2517 = vpop.f32.mrb[0].mxu0
      %v2518 = vadd.f32 0.0, %v2517
      %v2519 = vpop.f32.mrb[0].mxu0
      %2520 = vmatprep.mubr.f32.mxu0 0.0
      %2521 = vmatmul.mubr.f32.gmra.mrb[0].mxu0 %v2300
      %v2522 = vpop.f32.mrb[0].mxu0
      %v2523 = vadd.f32 0.0, %v2522
      %v2524 = vpop.f32.mrb[0].mxu0
      %2525 = vmatprep.mubr.f32.mxu0 0.0
      %2526 = vmatmul.mubr.f32.gmra.mrb[0].mxu0 %v2303
      %v2527 = vpop.f32.mrb[0].mxu0
      %v2528 = vadd.f32 0.0, %v2527
      %v2529 = vpop.f32.mrb[0].mxu0
      %2530 = vmatprep.mubr.f32.mxu0 0.0
      %2531 = vmatmul.mubr.f32.gmra.mrb[0].mxu0 %v2306
      %v2532 = vpop.f32.mrb[0].mxu0
      %v2533 = vadd.f32 0.0, %v2532
      %v2534 = vpop.f32.mrb[0].mxu0
      %2535 = vdwg.mxu0
      %v2536 = vadd.f32 %v2146, %v2378
      %v2537 = vadd.f32 %v2147, %v2383
      %v2538 = vadd.f32 %v2148, %v2388
      %v2539 = vadd.f32 %v2149, %v2393
      %v2540 = vadd.f32 %v2150, %v2398
      %v2541 = vadd.f32 %v2151, %v2403
      %v2542 = vadd.f32 %v2152, %v2408
      %v2543 = vadd.f32 %v2153, %v2413
      %v2544 = vadd.f32 %v2154, %v2418
      %v2545 = vadd.f32 %v2155, %v2423
      %v2546 = vadd.f32 %v2156, %v2428
      %v2547 = vadd.f32 %v2157, %v2433
      %v2548 = vadd.f32 %v2158, %v2438
      %v2549 = vadd.f32 %v2159, %v2443
      %v2550 = vadd.f32 %v2160, %v2448
      %v2551 = vadd.f32 %v2161, %v2453
      %v2552 = vadd.f32 %v2162, %v2458
      %v2553 = vadd.f32 %v2163, %v2463
      %v2554 = vadd.f32 %v2164, %v2468
      %v2555 = vadd.f32 %v2165, %v2473
      %v2556 = vadd.f32 %v2166, %v2478
      %v2557 = vadd.f32 %v2167, %v2483
      %v2558 = vadd.f32 %v2168, %v2488
      %v2559 = vadd.f32 %v2169, %v2493
      %v2560 = vadd.f32 %v2170, %v2498
      %v2561 = vadd.f32 %v2171, %v2503
      %v2562 = vadd.f32 %v2172, %v2508
      %v2563 = vadd.f32 %v2173, %v2513
      %v2564 = vadd.f32 %v2174, %v2518
      %v2565 = vadd.f32 %v2175, %v2523
      %v2566 = vadd.f32 %v2176, %v2528
      %v2567 = vadd.f32 %v2177, %v2533
      %s2568 = scalar_lea.vmem [#allocation2], 48
      %v2569 = vld [vmem:[%s2568] sm:$0xff]
      %v2570 = vld [vmem:[%s2568 + $0x8] sm:$0xff]
      %v2571 = vld [vmem:[%s2568 + $0x18] sm:$0xff]
      %v2572 = vld [vmem:[%s2568 + $0x20] sm:$0xff]
      %v2573 = vld [vmem:[%s2568 + $0x30] sm:$0xff]
      %v2574 = vld [vmem:[%s2568 + $0x38] sm:$0xff]
      %v2575 = vld [vmem:[%s2568 + $0x48] sm:$0xff]
      %v2576 = vld [vmem:[%s2568 + $0x50] sm:$0xff]
      %v2577 = vld [vmem:[%s2568 + $0x60] sm:$0xff]
      %v2578 = vld [vmem:[%s2568 + $0x68] sm:$0xff]
      %v2579 = vld [vmem:[%s2568 + $0x78] sm:$0xff]
      %v2580 = vld [vmem:[%s2568 + $0x80] sm:$0xff]
      %v2581 = vld [vmem:[%s2568 + $0x90] sm:$0xff]
      %v2582 = vld [vmem:[%s2568 + $0x98] sm:$0xff]
      %v2583 = vld [vmem:[%s2568 + $0xa8] sm:$0xff]
      %v2584 = vld [vmem:[%s2568 + $0xb0] sm:$0xff]
      %v2585 = vld [vmem:[%s2568 + $0xc0] sm:$0xff]
      %v2586 = vld [vmem:[%s2568 + $0xc8] sm:$0xff]
      %v2587 = vld [vmem:[%s2568 + $0xd8] sm:$0xff]
      %v2588 = vld [vmem:[%s2568 + $0xe0] sm:$0xff]
      %v2589 = vld [vmem:[%s2568 + $0xf0] sm:$0xff]
      %v2590 = vld [vmem:[%s2568 + $0xf8] sm:$0xff]
      %v2591 = vld [vmem:[%s2568 + $0x108] sm:$0xff]
      %v2592 = vld [vmem:[%s2568 + $0x110] sm:$0xff]
      %v2593 = vld [vmem:[%s2568 + $0x120] sm:$0xff]
      %v2594 = vld [vmem:[%s2568 + $0x128] sm:$0xff]
      %v2595 = vld [vmem:[%s2568 + $0x138] sm:$0xff]
      %v2596 = vld [vmem:[%s2568 + $0x140] sm:$0xff]
      %v2597 = vld [vmem:[%s2568 + $0x150] sm:$0xff]
      %v2598 = vld [vmem:[%s2568 + $0x158] sm:$0xff]
      %v2599 = vld [vmem:[%s2568 + $0x168] sm:$0xff]
      %v2600 = vld [vmem:[%s2568 + $0x170] sm:$0xff]
      %s2601 = scalar_lea.vmem %s1, 24
      %v2602 = vld [vmem:[%s2601] sm:$0xf]
      %v2604 = vsel %vm171, %v2569, 0
      %v2607 = vsel %vm171, %v2570, 0
      %v2610 = vsel %vm171, %v2571, 0
      %v2613 = vsel %vm171, %v2572, 0
      %v2616 = vsel %vm171, %v2573, 0
      %v2619 = vsel %vm171, %v2574, 0
      %v2622 = vsel %vm171, %v2575, 0
      %v2625 = vsel %vm171, %v2576, 0
      %v2628 = vsel %vm171, %v2577, 0
      %v2631 = vsel %vm171, %v2578, 0
      %v2634 = vsel %vm171, %v2579, 0
      %v2637 = vsel %vm171, %v2580, 0
      %v2640 = vsel %vm171, %v2581, 0
      %v2643 = vsel %vm171, %v2582, 0
      %v2646 = vsel %vm171, %v2583, 0
      %v2649 = vsel %vm171, %v2584, 0
      %v2652 = vsel %vm171, %v2585, 0
      %v2655 = vsel %vm171, %v2586, 0
      %v2658 = vsel %vm171, %v2587, 0
      %v2661 = vsel %vm171, %v2588, 0
      %v2664 = vsel %vm171, %v2589, 0
      %v2667 = vsel %vm171, %v2590, 0
      %v2670 = vsel %vm171, %v2591, 0
      %v2673 = vsel %vm171, %v2592, 0
      %v2676 = vsel %vm171, %v2593, 0
      %v2679 = vsel %vm171, %v2594, 0
      %v2682 = vsel %vm171, %v2595, 0
      %v2685 = vsel %vm171, %v2596, 0
      %v2688 = vsel %vm171, %v2597, 0
      %v2691 = vsel %vm171, %v2598, 0
      %v2694 = vsel %vm171, %v2599, 0
      %v2697 = vsel %vm171, %v2600, 0
      %v2700 = vsel %vm455, %v2602, 0
      %2702 = vmatprep.subr.mxu0 0.0
      %2703 = vmatpush1.msra.mxu0 %v2700
      %2704 = vmatprep.subr.mxu0 0.0
      %2705 = vmatpush1.msra.mxu0 0.0
      %2706 = vmatprep.subr.mxu0 0.0
      %2707 = vmatpush1.msra.mxu0 0.0
      %2708 = vmatprep.subr.mxu0 0.0
      %2709 = vmatpush1.msra.mxu0 0.0
      %2710 = vmatprep.subr.mxu0 0.0
      %2711 = vmatpush1.msra.mxu0 0.0
      %2712 = vmatprep.subr.mxu0 0.0
      %2713 = vmatpush1.msra.mxu0 0.0
      %2714 = vmatprep.subr.mxu0 0.0
      %2715 = vmatpush1.msra.mxu0 0.0
      %2716 = vmatprep.subr.mxu0 0.0
      %2717 = vmatpush1.msra.mxu0 0.0
      %2718 = vmatprep.subr.mxu0 0.0
      %2719 = vmatpush1.msra.mxu0 0.0
      %2720 = vmatprep.subr.mxu0 0.0
      %2721 = vmatpush1.msra.mxu0 0.0
      %2722 = vmatprep.subr.mxu0 0.0
      %2723 = vmatpush1.msra.mxu0 0.0
      %2724 = vmatprep.subr.mxu0 0.0
      %2725 = vmatpush1.msra.mxu0 0.0
      %2726 = vmatprep.subr.mxu0 0.0
      %2727 = vmatpush1.msra.mxu0 0.0
      %2728 = vmatprep.subr.mxu0 0.0
      %2729 = vmatpush1.msra.mxu0 0.0
      %2730 = vmatprep.subr.mxu0 0.0
      %2731 = vmatpush1.msra.mxu0 0.0
      %2732 = vmatprep.subr.mxu0 0.0
      %2733 = vmatpush1.msra.mxu0 0.0
      %2734 = vmatprep.subr.mxu0 0.0
      %2735 = vmatpush1.msra.mxu0 0.0
      %2736 = vmatprep.subr.mxu0 0.0
      %2737 = vmatpush1.msra.mxu0 0.0
      %2738 = vmatprep.subr.mxu0 0.0
      %2739 = vmatpush1.msra.mxu0 0.0
      %2740 = vmatprep.subr.mxu0 0.0
      %2741 = vmatpush1.msra.mxu0 0.0
      %2742 = vmatprep.subr.mxu0 0.0
      %2743 = vmatpush1.msra.mxu0 0.0
      %2744 = vmatprep.subr.mxu0 0.0
      %2745 = vmatpush1.msra.mxu0 0.0
      %2746 = vmatprep.subr.mxu0 0.0
      %2747 = vmatpush1.msra.mxu0 0.0
      %2748 = vmatprep.subr.mxu0 0.0
      %2749 = vmatpush1.msra.mxu0 0.0
      %2750 = vmatprep.subr.mxu0 0.0
      %2751 = vmatpush1.msra.mxu0 0.0
      %2752 = vmatprep.subr.mxu0 0.0
      %2753 = vmatpush1.msra.mxu0 0.0
      %2754 = vmatprep.subr.mxu0 0.0
      %2755 = vmatpush1.msra.mxu0 0.0
      %2756 = vmatprep.subr.mxu0 0.0
      %2757 = vmatpush1.msra.mxu0 0.0
      %2758 = vmatprep.subr.mxu0 0.0
      %2759 = vmatpush1.msra.mxu0 0.0
      %2760 = vmatprep.subr.mxu0 0.0
      %2761 = vmatpush1.msra.mxu0 0.0
      %2762 = vmatprep.subr.mxu0 0.0
      %2763 = vmatpush1.msra.mxu0 0.0
      %2764 = vmatprep.subr.mxu0 0.0
      %2765 = vmatpush1.msra.mxu0 0.0
      %2766 = vmatprep.mubr.f32.mxu0 0.0
      %2767 = vmatmul.mubr.f32.gmra.mrb[0].mxu0 %v2604
      %v2768 = vpop.f32.mrb[0].mxu0
      %v2769 = vadd.f32 0.0, %v2768
      %v2770 = vpop.f32.mrb[0].mxu0
      %2771 = vmatprep.mubr.f32.mxu0 0.0
      %2772 = vmatmul.mubr.f32.gmra.mrb[0].mxu0 %v2607
      %v2773 = vpop.f32.mrb[0].mxu0
      %v2774 = vadd.f32 0.0, %v2773
      %v2775 = vpop.f32.mrb[0].mxu0
      %2776 = vmatprep.mubr.f32.mxu0 0.0
      %2777 = vmatmul.mubr.f32.gmra.mrb[0].mxu0 %v2610
      %v2778 = vpop.f32.mrb[0].mxu0
      %v2779 = vadd.f32 0.0, %v2778
      %v2780 = vpop.f32.mrb[0].mxu0
      %2781 = vmatprep.mubr.f32.mxu0 0.0
      %2782 = vmatmul.mubr.f32.gmra.mrb[0].mxu0 %v2613
      %v2783 = vpop.f32.mrb[0].mxu0
      %v2784 = vadd.f32 0.0, %v2783
      %v2785 = vpop.f32.mrb[0].mxu0
      %2786 = vmatprep.mubr.f32.mxu0 0.0
      %2787 = vmatmul.mubr.f32.gmra.mrb[0].mxu0 %v2616
      %v2788 = vpop.f32.mrb[0].mxu0
      %v2789 = vadd.f32 0.0, %v2788
      %v2790 = vpop.f32.mrb[0].mxu0
      %2791 = vmatprep.mubr.f32.mxu0 0.0
      %2792 = vmatmul.mubr.f32.gmra.mrb[0].mxu0 %v2619
      %v2793 = vpop.f32.mrb[0].mxu0
      %v2794 = vadd.f32 0.0, %v2793
      %v2795 = vpop.f32.mrb[0].mxu0
      %2796 = vmatprep.mubr.f32.mxu0 0.0
      %2797 = vmatmul.mubr.f32.gmra.mrb[0].mxu0 %v2622
      %v2798 = vpop.f32.mrb[0].mxu0
      %v2799 = vadd.f32 0.0, %v2798
      %v2800 = vpop.f32.mrb[0].mxu0
      %2801 = vmatprep.mubr.f32.mxu0 0.0
      %2802 = vmatmul.mubr.f32.gmra.mrb[0].mxu0 %v2625
      %v2803 = vpop.f32.mrb[0].mxu0
      %v2804 = vadd.f32 0.0, %v2803
      %v2805 = vpop.f32.mrb[0].mxu0
      %2806 = vmatprep.mubr.f32.mxu0 0.0
      %2807 = vmatmul.mubr.f32.gmra.mrb[0].mxu0 %v2628
      %v2808 = vpop.f32.mrb[0].mxu0
      %v2809 = vadd.f32 0.0, %v2808
      %v2810 = vpop.f32.mrb[0].mxu0
      %2811 = vmatprep.mubr.f32.mxu0 0.0
      %2812 = vmatmul.mubr.f32.gmra.mrb[0].mxu0 %v2631
      %v2813 = vpop.f32.mrb[0].mxu0
      %v2814 = vadd.f32 0.0, %v2813
      %v2815 = vpop.f32.mrb[0].mxu0
      %2816 = vmatprep.mubr.f32.mxu0 0.0
      %2817 = vmatmul.mubr.f32.gmra.mrb[0].mxu0 %v2634
      %v2818 = vpop.f32.mrb[0].mxu0
      %v2819 = vadd.f32 0.0, %v2818
      %v2820 = vpop.f32.mrb[0].mxu0
      %2821 = vmatprep.mubr.f32.mxu0 0.0
      %2822 = vmatmul.mubr.f32.gmra.mrb[0].mxu0 %v2637
      %v2823 = vpop.f32.mrb[0].mxu0
      %v2824 = vadd.f32 0.0, %v2823
      %v2825 = vpop.f32.mrb[0].mxu0
      %2826 = vmatprep.mubr.f32.mxu0 0.0
      %2827 = vmatmul.mubr.f32.gmra.mrb[0].mxu0 %v2640
      %v2828 = vpop.f32.mrb[0].mxu0
      %v2829 = vadd.f32 0.0, %v2828
      %v2830 = vpop.f32.mrb[0].mxu0
      %2831 = vmatprep.mubr.f32.mxu0 0.0
      %2832 = vmatmul.mubr.f32.gmra.mrb[0].mxu0 %v2643
      %v2833 = vpop.f32.mrb[0].mxu0
      %v2834 = vadd.f32 0.0, %v2833
      %v2835 = vpop.f32.mrb[0].mxu0
      %2836 = vmatprep.mubr.f32.mxu0 0.0
      %2837 = vmatmul.mubr.f32.gmra.mrb[0].mxu0 %v2646
      %v2838 = vpop.f32.mrb[0].mxu0
      %v2839 = vadd.f32 0.0, %v2838
      %v2840 = vpop.f32.mrb[0].mxu0
      %2841 = vmatprep.mubr.f32.mxu0 0.0
      %2842 = vmatmul.mubr.f32.gmra.mrb[0].mxu0 %v2649
      %v2843 = vpop.f32.mrb[0].mxu0
      %v2844 = vadd.f32 0.0, %v2843
      %v2845 = vpop.f32.mrb[0].mxu0
      %2846 = vmatprep.mubr.f32.mxu0 0.0
      %2847 = vmatmul.mubr.f32.gmra.mrb[0].mxu0 %v2652
      %v2848 = vpop.f32.mrb[0].mxu0
      %v2849 = vadd.f32 0.0, %v2848
      %v2850 = vpop.f32.mrb[0].mxu0
      %2851 = vmatprep.mubr.f32.mxu0 0.0
      %2852 = vmatmul.mubr.f32.gmra.mrb[0].mxu0 %v2655
      %v2853 = vpop.f32.mrb[0].mxu0
      %v2854 = vadd.f32 0.0, %v2853
      %v2855 = vpop.f32.mrb[0].mxu0
      %2856 = vmatprep.mubr.f32.mxu0 0.0
      %2857 = vmatmul.mubr.f32.gmra.mrb[0].mxu0 %v2658
      %v2858 = vpop.f32.mrb[0].mxu0
      %v2859 = vadd.f32 0.0, %v2858
      %v2860 = vpop.f32.mrb[0].mxu0
      %2861 = vmatprep.mubr.f32.mxu0 0.0
      %2862 = vmatmul.mubr.f32.gmra.mrb[0].mxu0 %v2661
      %v2863 = vpop.f32.mrb[0].mxu0
      %v2864 = vadd.f32 0.0, %v2863
      %v2865 = vpop.f32.mrb[0].mxu0
      %2866 = vmatprep.mubr.f32.mxu0 0.0
      %2867 = vmatmul.mubr.f32.gmra.mrb[0].mxu0 %v2664
      %v2868 = vpop.f32.mrb[0].mxu0
      %v2869 = vadd.f32 0.0, %v2868
      %v2870 = vpop.f32.mrb[0].mxu0
      %2871 = vmatprep.mubr.f32.mxu0 0.0
      %2872 = vmatmul.mubr.f32.gmra.mrb[0].mxu0 %v2667
      %v2873 = vpop.f32.mrb[0].mxu0
      %v2874 = vadd.f32 0.0, %v2873
      %v2875 = vpop.f32.mrb[0].mxu0
      %2876 = vmatprep.mubr.f32.mxu0 0.0
      %2877 = vmatmul.mubr.f32.gmra.mrb[0].mxu0 %v2670
      %v2878 = vpop.f32.mrb[0].mxu0
      %v2879 = vadd.f32 0.0, %v2878
      %v2880 = vpop.f32.mrb[0].mxu0
      %2881 = vmatprep.mubr.f32.mxu0 0.0
      %2882 = vmatmul.mubr.f32.gmra.mrb[0].mxu0 %v2673
      %v2883 = vpop.f32.mrb[0].mxu0
      %v2884 = vadd.f32 0.0, %v2883
      %v2885 = vpop.f32.mrb[0].mxu0
      %2886 = vmatprep.mubr.f32.mxu0 0.0
      %2887 = vmatmul.mubr.f32.gmra.mrb[0].mxu0 %v2676
      %v2888 = vpop.f32.mrb[0].mxu0
      %v2889 = vadd.f32 0.0, %v2888
      %v2890 = vpop.f32.mrb[0].mxu0
      %2891 = vmatprep.mubr.f32.mxu0 0.0
      %2892 = vmatmul.mubr.f32.gmra.mrb[0].mxu0 %v2679
      %v2893 = vpop.f32.mrb[0].mxu0
      %v2894 = vadd.f32 0.0, %v2893
      %v2895 = vpop.f32.mrb[0].mxu0
      %2896 = vmatprep.mubr.f32.mxu0 0.0
      %2897 = vmatmul.mubr.f32.gmra.mrb[0].mxu0 %v2682
      %v2898 = vpop.f32.mrb[0].mxu0
      %v2899 = vadd.f32 0.0, %v2898
      %v2900 = vpop.f32.mrb[0].mxu0
      %2901 = vmatprep.mubr.f32.mxu0 0.0
      %2902 = vmatmul.mubr.f32.gmra.mrb[0].mxu0 %v2685
      %v2903 = vpop.f32.mrb[0].mxu0
      %v2904 = vadd.f32 0.0, %v2903
      %v2905 = vpop.f32.mrb[0].mxu0
      %2906 = vmatprep.mubr.f32.mxu0 0.0
      %2907 = vmatmul.mubr.f32.gmra.mrb[0].mxu0 %v2688
      %v2908 = vpop.f32.mrb[0].mxu0
      %v2909 = vadd.f32 0.0, %v2908
      %v2910 = vpop.f32.mrb[0].mxu0
      %2911 = vmatprep.mubr.f32.mxu0 0.0
      %2912 = vmatmul.mubr.f32.gmra.mrb[0].mxu0 %v2691
      %v2913 = vpop.f32.mrb[0].mxu0
      %v2914 = vadd.f32 0.0, %v2913
      %v2915 = vpop.f32.mrb[0].mxu0
      %2916 = vmatprep.mubr.f32.mxu0 0.0
      %2917 = vmatmul.mubr.f32.gmra.mrb[0].mxu0 %v2694
      %v2918 = vpop.f32.mrb[0].mxu0
      %v2919 = vadd.f32 0.0, %v2918
      %v2920 = vpop.f32.mrb[0].mxu0
      %2921 = vmatprep.mubr.f32.mxu0 0.0
      %2922 = vmatmul.mubr.f32.gmra.mrb[0].mxu0 %v2697
      %v2923 = vpop.f32.mrb[0].mxu0
      %v2924 = vadd.f32 0.0, %v2923
      %v2925 = vpop.f32.mrb[0].mxu0
      %2926 = vdwg.mxu0
      %v2927 = vadd.f32 %v2536, %v2769
      %v2928 = vadd.f32 %v2537, %v2774
      %v2929 = vadd.f32 %v2538, %v2779
      %v2930 = vadd.f32 %v2539, %v2784
      %v2931 = vadd.f32 %v2540, %v2789
      %v2932 = vadd.f32 %v2541, %v2794
      %v2933 = vadd.f32 %v2542, %v2799
      %v2934 = vadd.f32 %v2543, %v2804
      %v2935 = vadd.f32 %v2544, %v2809
      %v2936 = vadd.f32 %v2545, %v2814
      %v2937 = vadd.f32 %v2546, %v2819
      %v2938 = vadd.f32 %v2547, %v2824
      %v2939 = vadd.f32 %v2548, %v2829
      %v2940 = vadd.f32 %v2549, %v2834
      %v2941 = vadd.f32 %v2550, %v2839
      %v2942 = vadd.f32 %v2551, %v2844
      %v2943 = vadd.f32 %v2552, %v2849
      %v2944 = vadd.f32 %v2553, %v2854
      %v2945 = vadd.f32 %v2554, %v2859
      %v2946 = vadd.f32 %v2555, %v2864
      %v2947 = vadd.f32 %v2556, %v2869
      %v2948 = vadd.f32 %v2557, %v2874
      %v2949 = vadd.f32 %v2558, %v2879
      %v2950 = vadd.f32 %v2559, %v2884
      %v2951 = vadd.f32 %v2560, %v2889
      %v2952 = vadd.f32 %v2561, %v2894
      %v2953 = vadd.f32 %v2562, %v2899
      %v2954 = vadd.f32 %v2563, %v2904
      %v2955 = vadd.f32 %v2564, %v2909
      %v2956 = vadd.f32 %v2565, %v2914
      %v2957 = vadd.f32 %v2566, %v2919
      %v2958 = vadd.f32 %v2567, %v2924
      %v2959 = vld [vmem:[%s2568 + $0x1] sm:$0xff]
      %v2960 = vld [vmem:[%s2568 + $0x9] sm:$0xff]
      %v2961 = vld [vmem:[%s2568 + $0x19] sm:$0xff]
      %v2962 = vld [vmem:[%s2568 + $0x21] sm:$0xff]
      %v2963 = vld [vmem:[%s2568 + $0x31] sm:$0xff]
      %v2964 = vld [vmem:[%s2568 + $0x39] sm:$0xff]
      %v2965 = vld [vmem:[%s2568 + $0x49] sm:$0xff]
      %v2966 = vld [vmem:[%s2568 + $0x51] sm:$0xff]
      %v2967 = vld [vmem:[%s2568 + $0x61] sm:$0xff]
      %v2968 = vld [vmem:[%s2568 + $0x69] sm:$0xff]
      %v2969 = vld [vmem:[%s2568 + $0x79] sm:$0xff]
      %v2970 = vld [vmem:[%s2568 + $0x81] sm:$0xff]
      %v2971 = vld [vmem:[%s2568 + $0x91] sm:$0xff]
      %v2972 = vld [vmem:[%s2568 + $0x99] sm:$0xff]
      %v2973 = vld [vmem:[%s2568 + $0xa9] sm:$0xff]
      %v2974 = vld [vmem:[%s2568 + $0xb1] sm:$0xff]
      %v2975 = vld [vmem:[%s2568 + $0xc1] sm:$0xff]
      %v2976 = vld [vmem:[%s2568 + $0xc9] sm:$0xff]
      %v2977 = vld [vmem:[%s2568 + $0xd9] sm:$0xff]
      %v2978 = vld [vmem:[%s2568 + $0xe1] sm:$0xff]
      %v2979 = vld [vmem:[%s2568 + $0xf1] sm:$0xff]
      %v2980 = vld [vmem:[%s2568 + $0xf9] sm:$0xff]
      %v2981 = vld [vmem:[%s2568 + $0x109] sm:$0xff]
      %v2982 = vld [vmem:[%s2568 + $0x111] sm:$0xff]
      %v2983 = vld [vmem:[%s2568 + $0x121] sm:$0xff]
      %v2984 = vld [vmem:[%s2568 + $0x129] sm:$0xff]
      %v2985 = vld [vmem:[%s2568 + $0x139] sm:$0xff]
      %v2986 = vld [vmem:[%s2568 + $0x141] sm:$0xff]
      %v2987 = vld [vmem:[%s2568 + $0x151] sm:$0xff]
      %v2988 = vld [vmem:[%s2568 + $0x159] sm:$0xff]
      %v2989 = vld [vmem:[%s2568 + $0x169] sm:$0xff]
      %v2990 = vld [vmem:[%s2568 + $0x171] sm:$0xff]
      %s2991 = scalar_lea.vmem %s1, 28
      %v2992 = vld [vmem:[%s2991] sm:$0xf]
      %v2994 = vsel %vm171, %v2959, 0
      %v2997 = vsel %vm171, %v2960, 0
      %v3000 = vsel %vm171, %v2961, 0
      %v3003 = vsel %vm171, %v2962, 0
      %v3006 = vsel %vm171, %v2963, 0
      %v3009 = vsel %vm171, %v2964, 0
      %v3012 = vsel %vm171, %v2965, 0
      %v3015 = vsel %vm171, %v2966, 0
      %v3018 = vsel %vm171, %v2967, 0
      %v3021 = vsel %vm171, %v2968, 0
      %v3024 = vsel %vm171, %v2969, 0
      %v3027 = vsel %vm171, %v2970, 0
      %v3030 = vsel %vm171, %v2971, 0
      %v3033 = vsel %vm171, %v2972, 0
      %v3036 = vsel %vm171, %v2973, 0
      %v3039 = vsel %vm171, %v2974, 0
      %v3042 = vsel %vm171, %v2975, 0
      %v3045 = vsel %vm171, %v2976, 0
      %v3048 = vsel %vm171, %v2977, 0
      %v3051 = vsel %vm171, %v2978, 0
      %v3054 = vsel %vm171, %v2979, 0
      %v3057 = vsel %vm171, %v2980, 0
      %v3060 = vsel %vm171, %v2981, 0
      %v3063 = vsel %vm171, %v2982, 0
      %v3066 = vsel %vm171, %v2983, 0
      %v3069 = vsel %vm171, %v2984, 0
      %v3072 = vsel %vm171, %v2985, 0
      %v3075 = vsel %vm171, %v2986, 0
      %v3078 = vsel %vm171, %v2987, 0
      %v3081 = vsel %vm171, %v2988, 0
      %v3084 = vsel %vm171, %v2989, 0
      %v3087 = vsel %vm171, %v2990, 0
      %v3090 = vsel %vm455, %v2992, 0
      %3092 = vmatprep.subr.mxu0 0.0
      %3093 = vmatpush1.msra.mxu0 %v3090
      %3094 = vmatprep.subr.mxu0 0.0
      %3095 = vmatpush1.msra.mxu0 0.0
      %3096 = vmatprep.subr.mxu0 0.0
      %3097 = vmatpush1.msra.mxu0 0.0
      %3098 = vmatprep.subr.mxu0 0.0
      %3099 = vmatpush1.msra.mxu0 0.0
      %3100 = vmatprep.subr.mxu0 0.0
      %3101 = vmatpush1.msra.mxu0 0.0
      %3102 = vmatprep.subr.mxu0 0.0
      %3103 = vmatpush1.msra.mxu0 0.0
      %3104 = vmatprep.subr.mxu0 0.0
      %3105 = vmatpush1.msra.mxu0 0.0
      %3106 = vmatprep.subr.mxu0 0.0
      %3107 = vmatpush1.msra.mxu0 0.0
      %3108 = vmatprep.subr.mxu0 0.0
      %3109 = vmatpush1.msra.mxu0 0.0
      %3110 = vmatprep.subr.mxu0 0.0
      %3111 = vmatpush1.msra.mxu0 0.0
      %3112 = vmatprep.subr.mxu0 0.0
      %3113 = vmatpush1.msra.mxu0 0.0
      %3114 = vmatprep.subr.mxu0 0.0
      %3115 = vmatpush1.msra.mxu0 0.0
      %3116 = vmatprep.subr.mxu0 0.0
      %3117 = vmatpush1.msra.mxu0 0.0
      %3118 = vmatprep.subr.mxu0 0.0
      %3119 = vmatpush1.msra.mxu0 0.0
      %3120 = vmatprep.subr.mxu0 0.0
      %3121 = vmatpush1.msra.mxu0 0.0
      %3122 = vmatprep.subr.mxu0 0.0
      %3123 = vmatpush1.msra.mxu0 0.0
      %3124 = vmatprep.subr.mxu0 0.0
      %3125 = vmatpush1.msra.mxu0 0.0
      %3126 = vmatprep.subr.mxu0 0.0
      %3127 = vmatpush1.msra.mxu0 0.0
      %3128 = vmatprep.subr.mxu0 0.0
      %3129 = vmatpush1.msra.mxu0 0.0
      %3130 = vmatprep.subr.mxu0 0.0
      %3131 = vmatpush1.msra.mxu0 0.0
      %3132 = vmatprep.subr.mxu0 0.0
      %3133 = vmatpush1.msra.mxu0 0.0
      %3134 = vmatprep.subr.mxu0 0.0
      %3135 = vmatpush1.msra.mxu0 0.0
      %3136 = vmatprep.subr.mxu0 0.0
      %3137 = vmatpush1.msra.mxu0 0.0
      %3138 = vmatprep.subr.mxu0 0.0
      %3139 = vmatpush1.msra.mxu0 0.0
      %3140 = vmatprep.subr.mxu0 0.0
      %3141 = vmatpush1.msra.mxu0 0.0
      %3142 = vmatprep.subr.mxu0 0.0
      %3143 = vmatpush1.msra.mxu0 0.0
      %3144 = vmatprep.subr.mxu0 0.0
      %3145 = vmatpush1.msra.mxu0 0.0
      %3146 = vmatprep.subr.mxu0 0.0
      %3147 = vmatpush1.msra.mxu0 0.0
      %3148 = vmatprep.subr.mxu0 0.0
      %3149 = vmatpush1.msra.mxu0 0.0
      %3150 = vmatprep.subr.mxu0 0.0
      %3151 = vmatpush1.msra.mxu0 0.0
      %3152 = vmatprep.subr.mxu0 0.0
      %3153 = vmatpush1.msra.mxu0 0.0
      %3154 = vmatprep.subr.mxu0 0.0
      %3155 = vmatpush1.msra.mxu0 0.0
      %3156 = vmatprep.mubr.f32.mxu0 0.0
      %3157 = vmatmul.mubr.f32.gmra.mrb[0].mxu0 %v2994
      %v3158 = vpop.f32.mrb[0].mxu0
      %v3159 = vadd.f32 0.0, %v3158
      %v3160 = vpop.f32.mrb[0].mxu0
      %3161 = vmatprep.mubr.f32.mxu0 0.0
      %3162 = vmatmul.mubr.f32.gmra.mrb[0].mxu0 %v2997
      %v3163 = vpop.f32.mrb[0].mxu0
      %v3164 = vadd.f32 0.0, %v3163
      %v3165 = vpop.f32.mrb[0].mxu0
      %3166 = vmatprep.mubr.f32.mxu0 0.0
      %3167 = vmatmul.mubr.f32.gmra.mrb[0].mxu0 %v3000
      %v3168 = vpop.f32.mrb[0].mxu0
      %v3169 = vadd.f32 0.0, %v3168
      %v3170 = vpop.f32.mrb[0].mxu0
      %3171 = vmatprep.mubr.f32.mxu0 0.0
      %3172 = vmatmul.mubr.f32.gmra.mrb[0].mxu0 %v3003
      %v3173 = vpop.f32.mrb[0].mxu0
      %v3174 = vadd.f32 0.0, %v3173
      %v3175 = vpop.f32.mrb[0].mxu0
      %3176 = vmatprep.mubr.f32.mxu0 0.0
      %3177 = vmatmul.mubr.f32.gmra.mrb[0].mxu0 %v3006
      %v3178 = vpop.f32.mrb[0].mxu0
      %v3179 = vadd.f32 0.0, %v3178
      %v3180 = vpop.f32.mrb[0].mxu0
      %3181 = vmatprep.mubr.f32.mxu0 0.0
      %3182 = vmatmul.mubr.f32.gmra.mrb[0].mxu0 %v3009
      %v3183 = vpop.f32.mrb[0].mxu0
      %v3184 = vadd.f32 0.0, %v3183
      %v3185 = vpop.f32.mrb[0].mxu0
      %3186 = vmatprep.mubr.f32.mxu0 0.0
      %3187 = vmatmul.mubr.f32.gmra.mrb[0].mxu0 %v3012
      %v3188 = vpop.f32.mrb[0].mxu0
      %v3189 = vadd.f32 0.0, %v3188
      %v3190 = vpop.f32.mrb[0].mxu0
      %3191 = vmatprep.mubr.f32.mxu0 0.0
      %3192 = vmatmul.mubr.f32.gmra.mrb[0].mxu0 %v3015
      %v3193 = vpop.f32.mrb[0].mxu0
      %v3194 = vadd.f32 0.0, %v3193
      %v3195 = vpop.f32.mrb[0].mxu0
      %3196 = vmatprep.mubr.f32.mxu0 0.0
      %3197 = vmatmul.mubr.f32.gmra.mrb[0].mxu0 %v3018
      %v3198 = vpop.f32.mrb[0].mxu0
      %v3199 = vadd.f32 0.0, %v3198
      %v3200 = vpop.f32.mrb[0].mxu0
      %3201 = vmatprep.mubr.f32.mxu0 0.0
      %3202 = vmatmul.mubr.f32.gmra.mrb[0].mxu0 %v3021
      %v3203 = vpop.f32.mrb[0].mxu0
      %v3204 = vadd.f32 0.0, %v3203
      %v3205 = vpop.f32.mrb[0].mxu0
      %3206 = vmatprep.mubr.f32.mxu0 0.0
      %3207 = vmatmul.mubr.f32.gmra.mrb[0].mxu0 %v3024
      %v3208 = vpop.f32.mrb[0].mxu0
      %v3209 = vadd.f32 0.0, %v3208
      %v3210 = vpop.f32.mrb[0].mxu0
      %3211 = vmatprep.mubr.f32.mxu0 0.0
      %3212 = vmatmul.mubr.f32.gmra.mrb[0].mxu0 %v3027
      %v3213 = vpop.f32.mrb[0].mxu0
      %v3214 = vadd.f32 0.0, %v3213
      %v3215 = vpop.f32.mrb[0].mxu0
      %3216 = vmatprep.mubr.f32.mxu0 0.0
      %3217 = vmatmul.mubr.f32.gmra.mrb[0].mxu0 %v3030
      %v3218 = vpop.f32.mrb[0].mxu0
      %v3219 = vadd.f32 0.0, %v3218
      %v3220 = vpop.f32.mrb[0].mxu0
      %3221 = vmatprep.mubr.f32.mxu0 0.0
      %3222 = vmatmul.mubr.f32.gmra.mrb[0].mxu0 %v3033
      %v3223 = vpop.f32.mrb[0].mxu0
      %v3224 = vadd.f32 0.0, %v3223
      %v3225 = vpop.f32.mrb[0].mxu0
      %3226 = vmatprep.mubr.f32.mxu0 0.0
      %3227 = vmatmul.mubr.f32.gmra.mrb[0].mxu0 %v3036
      %v3228 = vpop.f32.mrb[0].mxu0
      %v3229 = vadd.f32 0.0, %v3228
      %v3230 = vpop.f32.mrb[0].mxu0
      %3231 = vmatprep.mubr.f32.mxu0 0.0
      %3232 = vmatmul.mubr.f32.gmra.mrb[0].mxu0 %v3039
      %v3233 = vpop.f32.mrb[0].mxu0
      %v3234 = vadd.f32 0.0, %v3233
      %v3235 = vpop.f32.mrb[0].mxu0
      %3236 = vmatprep.mubr.f32.mxu0 0.0
      %3237 = vmatmul.mubr.f32.gmra.mrb[0].mxu0 %v3042
      %v3238 = vpop.f32.mrb[0].mxu0
      %v3239 = vadd.f32 0.0, %v3238
      %v3240 = vpop.f32.mrb[0].mxu0
      %3241 = vmatprep.mubr.f32.mxu0 0.0
      %3242 = vmatmul.mubr.f32.gmra.mrb[0].mxu0 %v3045
      %v3243 = vpop.f32.mrb[0].mxu0
      %v3244 = vadd.f32 0.0, %v3243
      %v3245 = vpop.f32.mrb[0].mxu0
      %3246 = vmatprep.mubr.f32.mxu0 0.0
      %3247 = vmatmul.mubr.f32.gmra.mrb[0].mxu0 %v3048
      %v3248 = vpop.f32.mrb[0].mxu0
      %v3249 = vadd.f32 0.0, %v3248
      %v3250 = vpop.f32.mrb[0].mxu0
      %3251 = vmatprep.mubr.f32.mxu0 0.0
      %3252 = vmatmul.mubr.f32.gmra.mrb[0].mxu0 %v3051
      %v3253 = vpop.f32.mrb[0].mxu0
      %v3254 = vadd.f32 0.0, %v3253
      %v3255 = vpop.f32.mrb[0].mxu0
      %3256 = vmatprep.mubr.f32.mxu0 0.0
      %3257 = vmatmul.mubr.f32.gmra.mrb[0].mxu0 %v3054
      %v3258 = vpop.f32.mrb[0].mxu0
      %v3259 = vadd.f32 0.0, %v3258
      %v3260 = vpop.f32.mrb[0].mxu0
      %3261 = vmatprep.mubr.f32.mxu0 0.0
      %3262 = vmatmul.mubr.f32.gmra.mrb[0].mxu0 %v3057
      %v3263 = vpop.f32.mrb[0].mxu0
      %v3264 = vadd.f32 0.0, %v3263
      %v3265 = vpop.f32.mrb[0].mxu0
      %3266 = vmatprep.mubr.f32.mxu0 0.0
      %3267 = vmatmul.mubr.f32.gmra.mrb[0].mxu0 %v3060
      %v3268 = vpop.f32.mrb[0].mxu0
      %v3269 = vadd.f32 0.0, %v3268
      %v3270 = vpop.f32.mrb[0].mxu0
      %3271 = vmatprep.mubr.f32.mxu0 0.0
      %3272 = vmatmul.mubr.f32.gmra.mrb[0].mxu0 %v3063
      %v3273 = vpop.f32.mrb[0].mxu0
      %v3274 = vadd.f32 0.0, %v3273
      %v3275 = vpop.f32.mrb[0].mxu0
      %3276 = vmatprep.mubr.f32.mxu0 0.0
      %3277 = vmatmul.mubr.f32.gmra.mrb[0].mxu0 %v3066
      %v3278 = vpop.f32.mrb[0].mxu0
      %v3279 = vadd.f32 0.0, %v3278
      %v3280 = vpop.f32.mrb[0].mxu0
      %3281 = vmatprep.mubr.f32.mxu0 0.0
      %3282 = vmatmul.mubr.f32.gmra.mrb[0].mxu0 %v3069
      %v3283 = vpop.f32.mrb[0].mxu0
      %v3284 = vadd.f32 0.0, %v3283
      %v3285 = vpop.f32.mrb[0].mxu0
      %3286 = vmatprep.mubr.f32.mxu0 0.0
      %3287 = vmatmul.mubr.f32.gmra.mrb[0].mxu0 %v3072
      %v3288 = vpop.f32.mrb[0].mxu0
      %v3289 = vadd.f32 0.0, %v3288
      %v3290 = vpop.f32.mrb[0].mxu0
      %3291 = vmatprep.mubr.f32.mxu0 0.0
      %3292 = vmatmul.mubr.f32.gmra.mrb[0].mxu0 %v3075
      %v3293 = vpop.f32.mrb[0].mxu0
      %v3294 = vadd.f32 0.0, %v3293
      %v3295 = vpop.f32.mrb[0].mxu0
      %3296 = vmatprep.mubr.f32.mxu0 0.0
      %3297 = vmatmul.mubr.f32.gmra.mrb[0].mxu0 %v3078
      %v3298 = vpop.f32.mrb[0].mxu0
      %v3299 = vadd.f32 0.0, %v3298
      %v3300 = vpop.f32.mrb[0].mxu0
      %3301 = vmatprep.mubr.f32.mxu0 0.0
      %3302 = vmatmul.mubr.f32.gmra.mrb[0].mxu0 %v3081
      %v3303 = vpop.f32.mrb[0].mxu0
      %v3304 = vadd.f32 0.0, %v3303
      %v3305 = vpop.f32.mrb[0].mxu0
      %3306 = vmatprep.mubr.f32.mxu0 0.0
      %3307 = vmatmul.mubr.f32.gmra.mrb[0].mxu0 %v3084
      %v3308 = vpop.f32.mrb[0].mxu0
      %v3309 = vadd.f32 0.0, %v3308
      %v3310 = vpop.f32.mrb[0].mxu0
      %3311 = vmatprep.mubr.f32.mxu0 0.0
      %3312 = vmatmul.mubr.f32.gmra.mrb[0].mxu0 %v3087
      %v3313 = vpop.f32.mrb[0].mxu0
      %v3314 = vadd.f32 0.0, %v3313
      %v3315 = vpop.f32.mrb[0].mxu0
      %3316 = vdwg.mxu0
      %v3317 = vadd.f32 %v2927, %v3159
      %v3318 = vadd.f32 %v2928, %v3164
      %v3319 = vadd.f32 %v2929, %v3169
      %v3320 = vadd.f32 %v2930, %v3174
      %v3321 = vadd.f32 %v2931, %v3179
      %v3322 = vadd.f32 %v2932, %v3184
      %v3323 = vadd.f32 %v2933, %v3189
      %v3324 = vadd.f32 %v2934, %v3194
      %v3325 = vadd.f32 %v2935, %v3199
      %v3326 = vadd.f32 %v2936, %v3204
      %v3327 = vadd.f32 %v2937, %v3209
      %v3328 = vadd.f32 %v2938, %v3214
      %v3329 = vadd.f32 %v2939, %v3219
      %v3330 = vadd.f32 %v2940, %v3224
      %v3331 = vadd.f32 %v2941, %v3229
      %v3332 = vadd.f32 %v2942, %v3234
      %v3333 = vadd.f32 %v2943, %v3239
      %v3334 = vadd.f32 %v2944, %v3244
      %v3335 = vadd.f32 %v2945, %v3249
      %v3336 = vadd.f32 %v2946, %v3254
      %v3337 = vadd.f32 %v2947, %v3259
      %v3338 = vadd.f32 %v2948, %v3264
      %v3339 = vadd.f32 %v2949, %v3269
      %v3340 = vadd.f32 %v2950, %v3274
      %v3341 = vadd.f32 %v2951, %v3279
      %v3342 = vadd.f32 %v2952, %v3284
      %v3343 = vadd.f32 %v2953, %v3289
      %v3344 = vadd.f32 %v2954, %v3294
      %v3345 = vadd.f32 %v2955, %v3299
      %v3346 = vadd.f32 %v2956, %v3304
      %v3347 = vadd.f32 %v2957, %v3309
      %v3348 = vadd.f32 %v2958, %v3314
      %v3349 = vld [vmem:[%s2568 + $0x2] sm:$0xff]
      %v3350 = vld [vmem:[%s2568 + $0xa] sm:$0xff]
      %v3351 = vld [vmem:[%s2568 + $0x1a] sm:$0xff]
      %v3352 = vld [vmem:[%s2568 + $0x22] sm:$0xff]
      %v3353 = vld [vmem:[%s2568 + $0x32] sm:$0xff]
      %v3354 = vld [vmem:[%s2568 + $0x3a] sm:$0xff]
      %v3355 = vld [vmem:[%s2568 + $0x4a] sm:$0xff]
      %v3356 = vld [vmem:[%s2568 + $0x52] sm:$0xff]
      %v3357 = vld [vmem:[%s2568 + $0x62] sm:$0xff]
      %v3358 = vld [vmem:[%s2568 + $0x6a] sm:$0xff]
      %v3359 = vld [vmem:[%s2568 + $0x7a] sm:$0xff]
      %v3360 = vld [vmem:[%s2568 + $0x82] sm:$0xff]
      %v3361 = vld [vmem:[%s2568 + $0x92] sm:$0xff]
      %v3362 = vld [vmem:[%s2568 + $0x9a] sm:$0xff]
      %v3363 = vld [vmem:[%s2568 + $0xaa] sm:$0xff]
      %v3364 = vld [vmem:[%s2568 + $0xb2] sm:$0xff]
      %v3365 = vld [vmem:[%s2568 + $0xc2] sm:$0xff]
      %v3366 = vld [vmem:[%s2568 + $0xca] sm:$0xff]
      %v3367 = vld [vmem:[%s2568 + $0xda] sm:$0xff]
      %v3368 = vld [vmem:[%s2568 + $0xe2] sm:$0xff]
      %v3369 = vld [vmem:[%s2568 + $0xf2] sm:$0xff]
      %v3370 = vld [vmem:[%s2568 + $0xfa] sm:$0xff]
      %v3371 = vld [vmem:[%s2568 + $0x10a] sm:$0xff]
      %v3372 = vld [vmem:[%s2568 + $0x112] sm:$0xff]
      %v3373 = vld [vmem:[%s2568 + $0x122] sm:$0xff]
      %v3374 = vld [vmem:[%s2568 + $0x12a] sm:$0xff]
      %v3375 = vld [vmem:[%s2568 + $0x13a] sm:$0xff]
      %v3376 = vld [vmem:[%s2568 + $0x142] sm:$0xff]
      %v3377 = vld [vmem:[%s2568 + $0x152] sm:$0xff]
      %v3378 = vld [vmem:[%s2568 + $0x15a] sm:$0xff]
      %v3379 = vld [vmem:[%s2568 + $0x16a] sm:$0xff]
      %v3380 = vld [vmem:[%s2568 + $0x172] sm:$0xff]
      %s3381 = scalar_lea.vmem %s1, 32
      %v3382 = vld [vmem:[%s3381] sm:$0xf]
      %v3384 = vsel %vm171, %v3349, 0
      %v3387 = vsel %vm171, %v3350, 0
      %v3390 = vsel %vm171, %v3351, 0
      %v3393 = vsel %vm171, %v3352, 0
      %v3396 = vsel %vm171, %v3353, 0
      %v3399 = vsel %vm171, %v3354, 0
      %v3402 = vsel %vm171, %v3355, 0
      %v3405 = vsel %vm171, %v3356, 0
      %v3408 = vsel %vm171, %v3357, 0
      %v3411 = vsel %vm171, %v3358, 0
      %v3414 = vsel %vm171, %v3359, 0
      %v3417 = vsel %vm171, %v3360, 0
      %v3420 = vsel %vm171, %v3361, 0
      %v3423 = vsel %vm171, %v3362, 0
      %v3426 = vsel %vm171, %v3363, 0
      %v3429 = vsel %vm171, %v3364, 0
      %v3432 = vsel %vm171, %v3365, 0
      %v3435 = vsel %vm171, %v3366, 0
      %v3438 = vsel %vm171, %v3367, 0
      %v3441 = vsel %vm171, %v3368, 0
      %v3444 = vsel %vm171, %v3369, 0
      %v3447 = vsel %vm171, %v3370, 0
      %v3450 = vsel %vm171, %v3371, 0
      %v3453 = vsel %vm171, %v3372, 0
      %v3456 = vsel %vm171, %v3373, 0
      %v3459 = vsel %vm171, %v3374, 0
      %v3462 = vsel %vm171, %v3375, 0
      %v3465 = vsel %vm171, %v3376, 0
      %v3468 = vsel %vm171, %v3377, 0
      %v3471 = vsel %vm171, %v3378, 0
      %v3474 = vsel %vm171, %v3379, 0
      %v3477 = vsel %vm171, %v3380, 0
      %v3480 = vsel %vm455, %v3382, 0
      %3482 = vmatprep.subr.mxu0 0.0
      %3483 = vmatpush1.msra.mxu0 %v3480
      %3484 = vmatprep.subr.mxu0 0.0
      %3485 = vmatpush1.msra.mxu0 0.0
      %3486 = vmatprep.subr.mxu0 0.0
      %3487 = vmatpush1.msra.mxu0 0.0
      %3488 = vmatprep.subr.mxu0 0.0
      %3489 = vmatpush1.msra.mxu0 0.0
      %3490 = vmatprep.subr.mxu0 0.0
      %3491 = vmatpush1.msra.mxu0 0.0
      %3492 = vmatprep.subr.mxu0 0.0
      %3493 = vmatpush1.msra.mxu0 0.0
      %3494 = vmatprep.subr.mxu0 0.0
      %3495 = vmatpush1.msra.mxu0 0.0
      %3496 = vmatprep.subr.mxu0 0.0
      %3497 = vmatpush1.msra.mxu0 0.0
      %3498 = vmatprep.subr.mxu0 0.0
      %3499 = vmatpush1.msra.mxu0 0.0
      %3500 = vmatprep.subr.mxu0 0.0
      %3501 = vmatpush1.msra.mxu0 0.0
      %3502 = vmatprep.subr.mxu0 0.0
      %3503 = vmatpush1.msra.mxu0 0.0
      %3504 = vmatprep.subr.mxu0 0.0
      %3505 = vmatpush1.msra.mxu0 0.0
      %3506 = vmatprep.subr.mxu0 0.0
      %3507 = vmatpush1.msra.mxu0 0.0
      %3508 = vmatprep.subr.mxu0 0.0
      %3509 = vmatpush1.msra.mxu0 0.0
      %3510 = vmatprep.subr.mxu0 0.0
      %3511 = vmatpush1.msra.mxu0 0.0
      %3512 = vmatprep.subr.mxu0 0.0
      %3513 = vmatpush1.msra.mxu0 0.0
      %3514 = vmatprep.subr.mxu0 0.0
      %3515 = vmatpush1.msra.mxu0 0.0
      %3516 = vmatprep.subr.mxu0 0.0
      %3517 = vmatpush1.msra.mxu0 0.0
      %3518 = vmatprep.subr.mxu0 0.0
      %3519 = vmatpush1.msra.mxu0 0.0
      %3520 = vmatprep.subr.mxu0 0.0
      %3521 = vmatpush1.msra.mxu0 0.0
      %3522 = vmatprep.subr.mxu0 0.0
      %3523 = vmatpush1.msra.mxu0 0.0
      %3524 = vmatprep.subr.mxu0 0.0
      %3525 = vmatpush1.msra.mxu0 0.0
      %3526 = vmatprep.subr.mxu0 0.0
      %3527 = vmatpush1.msra.mxu0 0.0
      %3528 = vmatprep.subr.mxu0 0.0
      %3529 = vmatpush1.msra.mxu0 0.0
      %3530 = vmatprep.subr.mxu0 0.0
      %3531 = vmatpush1.msra.mxu0 0.0
      %3532 = vmatprep.subr.mxu0 0.0
      %3533 = vmatpush1.msra.mxu0 0.0
      %3534 = vmatprep.subr.mxu0 0.0
      %3535 = vmatpush1.msra.mxu0 0.0
      %3536 = vmatprep.subr.mxu0 0.0
      %3537 = vmatpush1.msra.mxu0 0.0
      %3538 = vmatprep.subr.mxu0 0.0
      %3539 = vmatpush1.msra.mxu0 0.0
      %3540 = vmatprep.subr.mxu0 0.0
      %3541 = vmatpush1.msra.mxu0 0.0
      %3542 = vmatprep.subr.mxu0 0.0
      %3543 = vmatpush1.msra.mxu0 0.0
      %3544 = vmatprep.subr.mxu0 0.0
      %3545 = vmatpush1.msra.mxu0 0.0
      %3546 = vmatprep.mubr.f32.mxu0 0.0
      %3547 = vmatmul.mubr.f32.gmra.mrb[0].mxu0 %v3384
      %v3548 = vpop.f32.mrb[0].mxu0
      %v3549 = vadd.f32 0.0, %v3548
      %v3550 = vpop.f32.mrb[0].mxu0
      %3551 = vmatprep.mubr.f32.mxu0 0.0
      %3552 = vmatmul.mubr.f32.gmra.mrb[0].mxu0 %v3387
      %v3553 = vpop.f32.mrb[0].mxu0
      %v3554 = vadd.f32 0.0, %v3553
      %v3555 = vpop.f32.mrb[0].mxu0
      %3556 = vmatprep.mubr.f32.mxu0 0.0
      %3557 = vmatmul.mubr.f32.gmra.mrb[0].mxu0 %v3390
      %v3558 = vpop.f32.mrb[0].mxu0
      %v3559 = vadd.f32 0.0, %v3558
      %v3560 = vpop.f32.mrb[0].mxu0
      %3561 = vmatprep.mubr.f32.mxu0 0.0
      %3562 = vmatmul.mubr.f32.gmra.mrb[0].mxu0 %v3393
      %v3563 = vpop.f32.mrb[0].mxu0
      %v3564 = vadd.f32 0.0, %v3563
      %v3565 = vpop.f32.mrb[0].mxu0
      %3566 = vmatprep.mubr.f32.mxu0 0.0
      %3567 = vmatmul.mubr.f32.gmra.mrb[0].mxu0 %v3396
      %v3568 = vpop.f32.mrb[0].mxu0
      %v3569 = vadd.f32 0.0, %v3568
      %v3570 = vpop.f32.mrb[0].mxu0
      %3571 = vmatprep.mubr.f32.mxu0 0.0
      %3572 = vmatmul.mubr.f32.gmra.mrb[0].mxu0 %v3399
      %v3573 = vpop.f32.mrb[0].mxu0
      %v3574 = vadd.f32 0.0, %v3573
      %v3575 = vpop.f32.mrb[0].mxu0
      %3576 = vmatprep.mubr.f32.mxu0 0.0
      %3577 = vmatmul.mubr.f32.gmra.mrb[0].mxu0 %v3402
      %v3578 = vpop.f32.mrb[0].mxu0
      %v3579 = vadd.f32 0.0, %v3578
      %v3580 = vpop.f32.mrb[0].mxu0
      %3581 = vmatprep.mubr.f32.mxu0 0.0
      %3582 = vmatmul.mubr.f32.gmra.mrb[0].mxu0 %v3405
      %v3583 = vpop.f32.mrb[0].mxu0
      %v3584 = vadd.f32 0.0, %v3583
      %v3585 = vpop.f32.mrb[0].mxu0
      %3586 = vmatprep.mubr.f32.mxu0 0.0
      %3587 = vmatmul.mubr.f32.gmra.mrb[0].mxu0 %v3408
      %v3588 = vpop.f32.mrb[0].mxu0
      %v3589 = vadd.f32 0.0, %v3588
      %v3590 = vpop.f32.mrb[0].mxu0
      %3591 = vmatprep.mubr.f32.mxu0 0.0
      %3592 = vmatmul.mubr.f32.gmra.mrb[0].mxu0 %v3411
      %v3593 = vpop.f32.mrb[0].mxu0
      %v3594 = vadd.f32 0.0, %v3593
      %v3595 = vpop.f32.mrb[0].mxu0
      %3596 = vmatprep.mubr.f32.mxu0 0.0
      %3597 = vmatmul.mubr.f32.gmra.mrb[0].mxu0 %v3414
      %v3598 = vpop.f32.mrb[0].mxu0
      %v3599 = vadd.f32 0.0, %v3598
      %v3600 = vpop.f32.mrb[0].mxu0
      %3601 = vmatprep.mubr.f32.mxu0 0.0
      %3602 = vmatmul.mubr.f32.gmra.mrb[0].mxu0 %v3417
      %v3603 = vpop.f32.mrb[0].mxu0
      %v3604 = vadd.f32 0.0, %v3603
      %v3605 = vpop.f32.mrb[0].mxu0
      %3606 = vmatprep.mubr.f32.mxu0 0.0
      %3607 = vmatmul.mubr.f32.gmra.mrb[0].mxu0 %v3420
      %v3608 = vpop.f32.mrb[0].mxu0
      %v3609 = vadd.f32 0.0, %v3608
      %v3610 = vpop.f32.mrb[0].mxu0
      %3611 = vmatprep.mubr.f32.mxu0 0.0
      %3612 = vmatmul.mubr.f32.gmra.mrb[0].mxu0 %v3423
      %v3613 = vpop.f32.mrb[0].mxu0
      %v3614 = vadd.f32 0.0, %v3613
      %v3615 = vpop.f32.mrb[0].mxu0
      %3616 = vmatprep.mubr.f32.mxu0 0.0
      %3617 = vmatmul.mubr.f32.gmra.mrb[0].mxu0 %v3426
      %v3618 = vpop.f32.mrb[0].mxu0
      %v3619 = vadd.f32 0.0, %v3618
      %v3620 = vpop.f32.mrb[0].mxu0
      %3621 = vmatprep.mubr.f32.mxu0 0.0
      %3622 = vmatmul.mubr.f32.gmra.mrb[0].mxu0 %v3429
      %v3623 = vpop.f32.mrb[0].mxu0
      %v3624 = vadd.f32 0.0, %v3623
      %v3625 = vpop.f32.mrb[0].mxu0
      %3626 = vmatprep.mubr.f32.mxu0 0.0
      %3627 = vmatmul.mubr.f32.gmra.mrb[0].mxu0 %v3432
      %v3628 = vpop.f32.mrb[0].mxu0
      %v3629 = vadd.f32 0.0, %v3628
      %v3630 = vpop.f32.mrb[0].mxu0
      %3631 = vmatprep.mubr.f32.mxu0 0.0
      %3632 = vmatmul.mubr.f32.gmra.mrb[0].mxu0 %v3435
      %v3633 = vpop.f32.mrb[0].mxu0
      %v3634 = vadd.f32 0.0, %v3633
      %v3635 = vpop.f32.mrb[0].mxu0
      %3636 = vmatprep.mubr.f32.mxu0 0.0
      %3637 = vmatmul.mubr.f32.gmra.mrb[0].mxu0 %v3438
      %v3638 = vpop.f32.mrb[0].mxu0
      %v3639 = vadd.f32 0.0, %v3638
      %v3640 = vpop.f32.mrb[0].mxu0
      %3641 = vmatprep.mubr.f32.mxu0 0.0
      %3642 = vmatmul.mubr.f32.gmra.mrb[0].mxu0 %v3441
      %v3643 = vpop.f32.mrb[0].mxu0
      %v3644 = vadd.f32 0.0, %v3643
      %v3645 = vpop.f32.mrb[0].mxu0
      %3646 = vmatprep.mubr.f32.mxu0 0.0
      %3647 = vmatmul.mubr.f32.gmra.mrb[0].mxu0 %v3444
      %v3648 = vpop.f32.mrb[0].mxu0
      %v3649 = vadd.f32 0.0, %v3648
      %v3650 = vpop.f32.mrb[0].mxu0
      %3651 = vmatprep.mubr.f32.mxu0 0.0
      %3652 = vmatmul.mubr.f32.gmra.mrb[0].mxu0 %v3447
      %v3653 = vpop.f32.mrb[0].mxu0
      %v3654 = vadd.f32 0.0, %v3653
      %v3655 = vpop.f32.mrb[0].mxu0
      %3656 = vmatprep.mubr.f32.mxu0 0.0
      %3657 = vmatmul.mubr.f32.gmra.mrb[0].mxu0 %v3450
      %v3658 = vpop.f32.mrb[0].mxu0
      %v3659 = vadd.f32 0.0, %v3658
      %v3660 = vpop.f32.mrb[0].mxu0
      %3661 = vmatprep.mubr.f32.mxu0 0.0
      %3662 = vmatmul.mubr.f32.gmra.mrb[0].mxu0 %v3453
      %v3663 = vpop.f32.mrb[0].mxu0
      %v3664 = vadd.f32 0.0, %v3663
      %v3665 = vpop.f32.mrb[0].mxu0
      %3666 = vmatprep.mubr.f32.mxu0 0.0
      %3667 = vmatmul.mubr.f32.gmra.mrb[0].mxu0 %v3456
      %v3668 = vpop.f32.mrb[0].mxu0
      %v3669 = vadd.f32 0.0, %v3668
      %v3670 = vpop.f32.mrb[0].mxu0
      %3671 = vmatprep.mubr.f32.mxu0 0.0
      %3672 = vmatmul.mubr.f32.gmra.mrb[0].mxu0 %v3459
      %v3673 = vpop.f32.mrb[0].mxu0
      %v3674 = vadd.f32 0.0, %v3673
      %v3675 = vpop.f32.mrb[0].mxu0
      %3676 = vmatprep.mubr.f32.mxu0 0.0
      %3677 = vmatmul.mubr.f32.gmra.mrb[0].mxu0 %v3462
      %v3678 = vpop.f32.mrb[0].mxu0
      %v3679 = vadd.f32 0.0, %v3678
      %v3680 = vpop.f32.mrb[0].mxu0
      %3681 = vmatprep.mubr.f32.mxu0 0.0
      %3682 = vmatmul.mubr.f32.gmra.mrb[0].mxu0 %v3465
      %v3683 = vpop.f32.mrb[0].mxu0
      %v3684 = vadd.f32 0.0, %v3683
      %v3685 = vpop.f32.mrb[0].mxu0
      %3686 = vmatprep.mubr.f32.mxu0 0.0
      %3687 = vmatmul.mubr.f32.gmra.mrb[0].mxu0 %v3468
      %v3688 = vpop.f32.mrb[0].mxu0
      %v3689 = vadd.f32 0.0, %v3688
      %v3690 = vpop.f32.mrb[0].mxu0
      %3691 = vmatprep.mubr.f32.mxu0 0.0
      %3692 = vmatmul.mubr.f32.gmra.mrb[0].mxu0 %v3471
      %v3693 = vpop.f32.mrb[0].mxu0
      %v3694 = vadd.f32 0.0, %v3693
      %v3695 = vpop.f32.mrb[0].mxu0
      %3696 = vmatprep.mubr.f32.mxu0 0.0
      %3697 = vmatmul.mubr.f32.gmra.mrb[0].mxu0 %v3474
      %v3698 = vpop.f32.mrb[0].mxu0
      %v3699 = vadd.f32 0.0, %v3698
      %v3700 = vpop.f32.mrb[0].mxu0
      %3701 = vmatprep.mubr.f32.mxu0 0.0
      %3702 = vmatmul.mubr.f32.gmra.mrb[0].mxu0 %v3477
      %v3703 = vpop.f32.mrb[0].mxu0
      %v3704 = vadd.f32 0.0, %v3703
      %v3705 = vpop.f32.mrb[0].mxu0
      %3706 = vdwg.mxu0
      %v3707 = vadd.f32 %v3317, %v3549
      %v3708 = vadd.f32 %v3318, %v3554
      %v3709 = vadd.f32 %v3319, %v3559
      %v3710 = vadd.f32 %v3320, %v3564
      %v3711 = vadd.f32 %v3321, %v3569
      %v3712 = vadd.f32 %v3322, %v3574
      %v3713 = vadd.f32 %v3323, %v3579
      %v3714 = vadd.f32 %v3324, %v3584
      %v3715 = vadd.f32 %v3325, %v3589
      %v3716 = vadd.f32 %v3326, %v3594
      %v3717 = vadd.f32 %v3327, %v3599
      %v3718 = vadd.f32 %v3328, %v3604
      %v3719 = vadd.f32 %v3329, %v3609
      %v3720 = vadd.f32 %v3330, %v3614
      %v3721 = vadd.f32 %v3331, %v3619
      %v3722 = vadd.f32 %v3332, %v3624
      %v3723 = vadd.f32 %v3333, %v3629
      %v3724 = vadd.f32 %v3334, %v3634
      %v3725 = vadd.f32 %v3335, %v3639
      %v3726 = vadd.f32 %v3336, %v3644
      %v3727 = vadd.f32 %v3337, %v3649
      %v3728 = vadd.f32 %v3338, %v3654
      %v3729 = vadd.f32 %v3339, %v3659
      %v3730 = vadd.f32 %v3340, %v3664
      %v3731 = vadd.f32 %v3341, %v3669
      %v3732 = vadd.f32 %v3342, %v3674
      %v3733 = vadd.f32 %v3343, %v3679
      %v3734 = vadd.f32 %v3344, %v3684
      %v3735 = vadd.f32 %v3345, %v3689
      %v3736 = vadd.f32 %v3346, %v3694
      %v3737 = vadd.f32 %v3347, %v3699
      %v3738 = vadd.f32 %v3348, %v3704
      %vm3739 = vcmask 64512
      %v3740 = vsel %vm3739, %v3707, 0.0
      %v3741 = vsel %vm3739, %v3708, 0.0
      %v3742 = vadd.f32 %v3740, %v3741
      %v3743 = vsel %vm3739, %v3709, 0.0
      %v3744 = vadd.f32 %v3742, %v3743
      %v3745 = vsel %vm3739, %v3710, 0.0
      %v3746 = vadd.f32 %v3744, %v3745
      %v3747 = vsel %vm3739, %v3711, 0.0
      %v3748 = vadd.f32 %v3746, %v3747
      %v3749 = vsel %vm3739, %v3712, 0.0
      %v3750 = vadd.f32 %v3748, %v3749
      %v3751 = vsel %vm3739, %v3713, 0.0
      %v3752 = vadd.f32 %v3750, %v3751
      %v3753 = vsel %vm3739, %v3714, 0.0
      %v3754 = vadd.f32 %v3752, %v3753
      %v3755 = vsel %vm3739, %v3715, 0.0
      %v3756 = vadd.f32 %v3754, %v3755
      %v3757 = vsel %vm3739, %v3716, 0.0
      %v3758 = vadd.f32 %v3756, %v3757
      %v3759 = vsel %vm3739, %v3717, 0.0
      %v3760 = vadd.f32 %v3758, %v3759
      %v3761 = vsel %vm3739, %v3718, 0.0
      %v3762 = vadd.f32 %v3760, %v3761
      %v3763 = vsel %vm3739, %v3719, 0.0
      %v3764 = vadd.f32 %v3762, %v3763
      %v3765 = vsel %vm3739, %v3720, 0.0
      %v3766 = vadd.f32 %v3764, %v3765
      %v3767 = vsel %vm3739, %v3721, 0.0
      %v3768 = vadd.f32 %v3766, %v3767
      %v3769 = vsel %vm3739, %v3722, 0.0
      %v3770 = vadd.f32 %v3768, %v3769
      %v3771 = vsel %vm3739, %v3723, 0.0
      %v3772 = vadd.f32 %v3770, %v3771
      %v3773 = vsel %vm3739, %v3724, 0.0
      %v3774 = vadd.f32 %v3772, %v3773
      %v3775 = vsel %vm3739, %v3725, 0.0
      %v3776 = vadd.f32 %v3774, %v3775
      %v3777 = vsel %vm3739, %v3726, 0.0
      %v3778 = vadd.f32 %v3776, %v3777
      %v3779 = vsel %vm3739, %v3727, 0.0
      %v3780 = vadd.f32 %v3778, %v3779
      %v3781 = vsel %vm3739, %v3728, 0.0
      %v3782 = vadd.f32 %v3780, %v3781
      %v3783 = vsel %vm3739, %v3729, 0.0
      %v3784 = vadd.f32 %v3782, %v3783
      %v3785 = vsel %vm3739, %v3730, 0.0
      %v3786 = vadd.f32 %v3784, %v3785
      %v3787 = vsel %vm3739, %v3731, 0.0
      %v3788 = vadd.f32 %v3786, %v3787
      %v3789 = vsel %vm3739, %v3732, 0.0
      %v3790 = vadd.f32 %v3788, %v3789
      %v3791 = vsel %vm3739, %v3733, 0.0
      %v3792 = vadd.f32 %v3790, %v3791
      %v3793 = vsel %vm3739, %v3734, 0.0
      %v3794 = vadd.f32 %v3792, %v3793
      %v3795 = vsel %vm3739, %v3735, 0.0
      %v3796 = vadd.f32 %v3794, %v3795
      %v3797 = vsel %vm3739, %v3736, 0.0
      %v3798 = vadd.f32 %v3796, %v3797
      %v3799 = vsel %vm3739, %v3737, 0.0
      %v3800 = vadd.f32 %v3798, %v3799
      %v3801 = vsel %vm3739, %v3738, 0.0
      %v3802 = vadd.f32 %v3800, %v3801
      %v3803 = vrot.slane %v3802, 4
      %v3804 = vadd.f32 %v3802, %v3803
      %v3805 = vrot.slane %v3804, 2
      %v3806 = vadd.f32 %v3804, %v3805
      %v3807 = vrot.slane %v3806, 1
      %v3808 = vadd.f32 %v3806, %v3807
      %v3809 = vrcp.pop 256.0
      %v3810 = vmul.f32 %v3808, %v3809
      %v3811 = vsub.f32 %v3707, %v3810
      %v3812 = vsub.f32 %v3708, %v3810
      %v3813 = vsub.f32 %v3709, %v3810
      %v3814 = vsub.f32 %v3710, %v3810
      %v3815 = vsub.f32 %v3711, %v3810
      %v3816 = vsub.f32 %v3712, %v3810
      %v3817 = vsub.f32 %v3713, %v3810
      %v3818 = vsub.f32 %v3714, %v3810
      %v3819 = vsub.f32 %v3715, %v3810
      %v3820 = vsub.f32 %v3716, %v3810
      %v3821 = vsub.f32 %v3717, %v3810
      %v3822 = vsub.f32 %v3718, %v3810
      %v3823 = vsub.f32 %v3719, %v3810
      %v3824 = vsub.f32 %v3720, %v3810
      %v3825 = vsub.f32 %v3721, %v3810
      %v3826 = vsub.f32 %v3722, %v3810
      %v3827 = vsub.f32 %v3723, %v3810
      %v3828 = vsub.f32 %v3724, %v3810
      %v3829 = vsub.f32 %v3725, %v3810
      %v3830 = vsub.f32 %v3726, %v3810
      %v3831 = vsub.f32 %v3727, %v3810
      %v3832 = vsub.f32 %v3728, %v3810
      %v3833 = vsub.f32 %v3729, %v3810
      %v3834 = vsub.f32 %v3730, %v3810
      %v3835 = vsub.f32 %v3731, %v3810
      %v3836 = vsub.f32 %v3732, %v3810
      %v3837 = vsub.f32 %v3733, %v3810
      %v3838 = vsub.f32 %v3734, %v3810
      %v3839 = vsub.f32 %v3735, %v3810
      %v3840 = vsub.f32 %v3736, %v3810
      %v3841 = vsub.f32 %v3737, %v3810
      %v3842 = vsub.f32 %v3738, %v3810
      %v3843 = vmul.f32 %v3811, %v3811
      %v3844 = vmul.f32 %v3812, %v3812
      %v3845 = vmul.f32 %v3813, %v3813
      %v3846 = vmul.f32 %v3814, %v3814
      %v3847 = vmul.f32 %v3815, %v3815
      %v3848 = vmul.f32 %v3816, %v3816
      %v3849 = vmul.f32 %v3817, %v3817
      %v3850 = vmul.f32 %v3818, %v3818
      %v3851 = vmul.f32 %v3819, %v3819
      %v3852 = vmul.f32 %v3820, %v3820
      %v3853 = vmul.f32 %v3821, %v3821
      %v3854 = vmul.f32 %v3822, %v3822
      %v3855 = vmul.f32 %v3823, %v3823
      %v3856 = vmul.f32 %v3824, %v3824
      %v3857 = vmul.f32 %v3825, %v3825
      %v3858 = vmul.f32 %v3826, %v3826
      %v3859 = vmul.f32 %v3827, %v3827
      %v3860 = vmul.f32 %v3828, %v3828
      %v3861 = vmul.f32 %v3829, %v3829
      %v3862 = vmul.f32 %v3830, %v3830
      %v3863 = vmul.f32 %v3831, %v3831
      %v3864 = vmul.f32 %v3832, %v3832
      %v3865 = vmul.f32 %v3833, %v3833
      %v3866 = vmul.f32 %v3834, %v3834
      %v3867 = vmul.f32 %v3835, %v3835
      %v3868 = vmul.f32 %v3836, %v3836
      %v3869 = vmul.f32 %v3837, %v3837
      %v3870 = vmul.f32 %v3838, %v3838
      %v3871 = vmul.f32 %v3839, %v3839
      %v3872 = vmul.f32 %v3840, %v3840
      %v3873 = vmul.f32 %v3841, %v3841
      %v3874 = vmul.f32 %v3842, %v3842
      %v3875 = vsel %vm3739, %v3843, 0.0
      %v3876 = vsel %vm3739, %v3844, 0.0
      %v3877 = vadd.f32 %v3875, %v3876
      %v3878 = vsel %vm3739, %v3845, 0.0
      %v3879 = vadd.f32 %v3877, %v3878
      %v3880 = vsel %vm3739, %v3846, 0.0
      %v3881 = vadd.f32 %v3879, %v3880
      %v3882 = vsel %vm3739, %v3847, 0.0
      %v3883 = vadd.f32 %v3881, %v3882
      %v3884 = vsel %vm3739, %v3848, 0.0
      %v3885 = vadd.f32 %v3883, %v3884
      %v3886 = vsel %vm3739, %v3849, 0.0
      %v3887 = vadd.f32 %v3885, %v3886
      %v3888 = vsel %vm3739, %v3850, 0.0
      %v3889 = vadd.f32 %v3887, %v3888
      %v3890 = vsel %vm3739, %v3851, 0.0
      %v3891 = vadd.f32 %v3889, %v3890
      %v3892 = vsel %vm3739, %v3852, 0.0
      %v3893 = vadd.f32 %v3891, %v3892
      %v3894 = vsel %vm3739, %v3853, 0.0
      %v3895 = vadd.f32 %v3893, %v3894
      %v3896 = vsel %vm3739, %v3854, 0.0
      %v3897 = vadd.f32 %v3895, %v3896
      %v3898 = vsel %vm3739, %v3855, 0.0
      %v3899 = vadd.f32 %v3897, %v3898
      %v3900 = vsel %vm3739, %v3856, 0.0
      %v3901 = vadd.f32 %v3899, %v3900
      %v3902 = vsel %vm3739, %v3857, 0.0
      %v3903 = vadd.f32 %v3901, %v3902
      %v3904 = vsel %vm3739, %v3858, 0.0
      %v3905 = vadd.f32 %v3903, %v3904
      %v3906 = vsel %vm3739, %v3859, 0.0
      %v3907 = vadd.f32 %v3905, %v3906
      %v3908 = vsel %vm3739, %v3860, 0.0
      %v3909 = vadd.f32 %v3907, %v3908
      %v3910 = vsel %vm3739, %v3861, 0.0
      %v3911 = vadd.f32 %v3909, %v3910
      %v3912 = vsel %vm3739, %v3862, 0.0
      %v3913 = vadd.f32 %v3911, %v3912
      %v3914 = vsel %vm3739, %v3863, 0.0
      %v3915 = vadd.f32 %v3913, %v3914
      %v3916 = vsel %vm3739, %v3864, 0.0
      %v3917 = vadd.f32 %v3915, %v3916
      %v3918 = vsel %vm3739, %v3865, 0.0
      %v3919 = vadd.f32 %v3917, %v3918
      %v3920 = vsel %vm3739, %v3866, 0.0
      %v3921 = vadd.f32 %v3919, %v3920
      %v3922 = vsel %vm3739, %v3867, 0.0
      %v3923 = vadd.f32 %v3921, %v3922
      %v3924 = vsel %vm3739, %v3868, 0.0
      %v3925 = vadd.f32 %v3923, %v3924
      %v3926 = vsel %vm3739, %v3869, 0.0
      %v3927 = vadd.f32 %v3925, %v3926
      %v3928 = vsel %vm3739, %v3870, 0.0
      %v3929 = vadd.f32 %v3927, %v3928
      %v3930 = vsel %vm3739, %v3871, 0.0
      %v3931 = vadd.f32 %v3929, %v3930
      %v3932 = vsel %vm3739, %v3872, 0.0
      %v3933 = vadd.f32 %v3931, %v3932
      %v3934 = vsel %vm3739, %v3873, 0.0
      %v3935 = vadd.f32 %v3933, %v3934
      %v3936 = vsel %vm3739, %v3874, 0.0
      %v3937 = vadd.f32 %v3935, %v3936
      %v3938 = vrot.slane %v3937, 4
      %v3939 = vadd.f32 %v3937, %v3938
      %v3940 = vrot.slane %v3939, 2
      %v3941 = vadd.f32 %v3939, %v3940
      %v3942 = vrot.slane %v3941, 1
      %v3943 = vadd.f32 %v3941, %v3942
      %v3944 = vmul.f32 %v3943, %v3809
      %v3945 = vadd.f32 %v3944, 1e-05
      %v3946 = vrsqrt.pop %v3945
      %v3947 = vmul.f32 %v3811, %v3946
      %v3948 = vmul.f32 %v3812, %v3946
      %v3949 = vmul.f32 %v3813, %v3946
      %v3950 = vmul.f32 %v3814, %v3946
      %v3951 = vmul.f32 %v3815, %v3946
      %v3952 = vmul.f32 %v3816, %v3946
      %v3953 = vmul.f32 %v3817, %v3946
      %v3954 = vmul.f32 %v3818, %v3946
      %v3955 = vmul.f32 %v3819, %v3946
      %v3956 = vmul.f32 %v3820, %v3946
      %v3957 = vmul.f32 %v3821, %v3946
      %v3958 = vmul.f32 %v3822, %v3946
      %v3959 = vmul.f32 %v3823, %v3946
      %v3960 = vmul.f32 %v3824, %v3946
      %v3961 = vmul.f32 %v3825, %v3946
      %v3962 = vmul.f32 %v3826, %v3946
      %v3963 = vmul.f32 %v3827, %v3946
      %v3964 = vmul.f32 %v3828, %v3946
      %v3965 = vmul.f32 %v3829, %v3946
      %v3966 = vmul.f32 %v3830, %v3946
      %v3967 = vmul.f32 %v3831, %v3946
      %v3968 = vmul.f32 %v3832, %v3946
      %v3969 = vmul.f32 %v3833, %v3946
      %v3970 = vmul.f32 %v3834, %v3946
      %v3971 = vmul.f32 %v3835, %v3946
      %v3972 = vmul.f32 %v3836, %v3946
      %v3973 = vmul.f32 %v3837, %v3946
      %v3974 = vmul.f32 %v3838, %v3946
      %v3975 = vmul.f32 %v3839, %v3946
      %v3976 = vmul.f32 %v3840, %v3946
      %v3977 = vmul.f32 %v3841, %v3946
      %v3978 = vmul.f32 %v3842, %v3946
      %v3979 = vmax.f32 %v3947, 0.0
      %v3980 = vmax.f32 %v3948, 0.0
      %v3981 = vmax.f32 %v3949, 0.0
      %v3982 = vmax.f32 %v3950, 0.0
      %v3983 = vmax.f32 %v3951, 0.0
      %v3984 = vmax.f32 %v3952, 0.0
      %v3985 = vmax.f32 %v3953, 0.0
      %v3986 = vmax.f32 %v3954, 0.0
      %v3987 = vmax.f32 %v3955, 0.0
      %v3988 = vmax.f32 %v3956, 0.0
      %v3989 = vmax.f32 %v3957, 0.0
      %v3990 = vmax.f32 %v3958, 0.0
      %v3991 = vmax.f32 %v3959, 0.0
      %v3992 = vmax.f32 %v3960, 0.0
      %v3993 = vmax.f32 %v3961, 0.0
      %v3994 = vmax.f32 %v3962, 0.0
      %v3995 = vmax.f32 %v3963, 0.0
      %v3996 = vmax.f32 %v3964, 0.0
      %v3997 = vmax.f32 %v3965, 0.0
      %v3998 = vmax.f32 %v3966, 0.0
      %v3999 = vmax.f32 %v3967, 0.0
      %v4000 = vmax.f32 %v3968, 0.0
      %v4001 = vmax.f32 %v3969, 0.0
      %v4002 = vmax.f32 %v3970, 0.0
      %v4003 = vmax.f32 %v3971, 0.0
      %v4004 = vmax.f32 %v3972, 0.0
      %v4005 = vmax.f32 %v3973, 0.0
      %v4006 = vmax.f32 %v3974, 0.0
      %v4007 = vmax.f32 %v3975, 0.0
      %v4008 = vmax.f32 %v3976, 0.0
      %v4009 = vmax.f32 %v3977, 0.0
      %v4010 = vmax.f32 %v3978, 0.0
      %4011 = vst.msk [vmem:[#allocation3] sm:$0xff] %vm3739, 0.0
      %4012 = vst.msk [vmem:[#allocation3 + $0x8] sm:$0xff] %vm3739, 0.0
      %vm4013 = vcmask 58368
      %4014 = vst.msk [vmem:[#allocation3 + $0x10] sm:$0x3] %vm4013, 0.0
      %4015 = vst.msk [vmem:[#allocation3 + $0x18] sm:$0xff] %vm3739, 0.0
      %4016 = vst.msk [vmem:[#allocation3 + $0x20] sm:$0xff] %vm3739, 0.0
      %4017 = vst.msk [vmem:[#allocation3 + $0x28] sm:$0x3] %vm4013, 0.0
      %4018 = vst.msk [vmem:[#allocation3 + $0x30] sm:$0xff] %vm3739, 0.0
      %4019 = vst.msk [vmem:[#allocation3 + $0x38] sm:$0xff] %vm3739, 0.0
      %4020 = vst.msk [vmem:[#allocation3 + $0x40] sm:$0x3] %vm4013, 0.0
      %4021 = vst.msk [vmem:[#allocation3 + $0x48] sm:$0xff] %vm3739, 0.0
      %4022 = vst.msk [vmem:[#allocation3 + $0x50] sm:$0xff] %vm3739, 0.0
      %4023 = vst.msk [vmem:[#allocation3 + $0x58] sm:$0x3] %vm4013, 0.0
      %4024 = vst.msk [vmem:[#allocation3 + $0x60] sm:$0xff] %vm3739, 0.0
      %4025 = vst.msk [vmem:[#allocation3 + $0x68] sm:$0xff] %vm3739, 0.0
      %4026 = vst.msk [vmem:[#allocation3 + $0x70] sm:$0x3] %vm4013, 0.0
      %4027 = vst.msk [vmem:[#allocation3 + $0x78] sm:$0xff] %vm3739, 0.0
      %4028 = vst.msk [vmem:[#allocation3 + $0x80] sm:$0xff] %vm3739, 0.0
      %4029 = vst.msk [vmem:[#allocation3 + $0x88] sm:$0x3] %vm4013, 0.0
      %4030 = vst.msk [vmem:[#allocation3 + $0x90] sm:$0xff] %vm3739, 0.0
      %4031 = vst.msk [vmem:[#allocation3 + $0x98] sm:$0xff] %vm3739, 0.0
      %4032 = vst.msk [vmem:[#allocation3 + $0xa0] sm:$0x3] %vm4013, 0.0
      %4033 = vst.msk [vmem:[#allocation3 + $0xa8] sm:$0xff] %vm3739, 0.0
      %4034 = vst.msk [vmem:[#allocation3 + $0xb0] sm:$0xff] %vm3739, 0.0
      %4035 = vst.msk [vmem:[#allocation3 + $0xb8] sm:$0x3] %vm4013, 0.0
      %4036 = vst.msk [vmem:[#allocation3 + $0xc0] sm:$0xff] %vm3739, 0.0
      %4037 = vst.msk [vmem:[#allocation3 + $0xc8] sm:$0xff] %vm3739, 0.0
      %4038 = vst.msk [vmem:[#allocation3 + $0xd0] sm:$0x3] %vm4013, 0.0
      %4039 = vst.msk [vmem:[#allocation3 + $0xd8] sm:$0xff] %vm3739, 0.0
      %4040 = vst.msk [vmem:[#allocation3 + $0xe0] sm:$0xff] %vm3739, 0.0
      %4041 = vst.msk [vmem:[#allocation3 + $0xe8] sm:$0x3] %vm4013, 0.0
      %4042 = vst.msk [vmem:[#allocation3 + $0xf0] sm:$0xff] %vm3739, 0.0
      %4043 = vst.msk [vmem:[#allocation3 + $0xf8] sm:$0xff] %vm3739, 0.0
      %4044 = vst.msk [vmem:[#allocation3 + $0x100] sm:$0x3] %vm4013, 0.0
      %4045 = vst.msk [vmem:[#allocation3 + $0x108] sm:$0xff] %vm3739, 0.0
      %4046 = vst.msk [vmem:[#allocation3 + $0x110] sm:$0xff] %vm3739, 0.0
      %4047 = vst.msk [vmem:[#allocation3 + $0x118] sm:$0x3] %vm4013, 0.0
      %4048 = vst.msk [vmem:[#allocation3 + $0x120] sm:$0xff] %vm3739, 0.0
      %4049 = vst.msk [vmem:[#allocation3 + $0x128] sm:$0xff] %vm3739, 0.0
      %4050 = vst.msk [vmem:[#allocation3 + $0x130] sm:$0x3] %vm4013, 0.0
      %4051 = vst.msk [vmem:[#allocation3 + $0x138] sm:$0xff] %vm3739, 0.0
      %4052 = vst.msk [vmem:[#allocation3 + $0x140] sm:$0xff] %vm3739, 0.0
      %4053 = vst.msk [vmem:[#allocation3 + $0x148] sm:$0x3] %vm4013, 0.0
      %4054 = vst.msk [vmem:[#allocation3 + $0x150] sm:$0xff] %vm3739, 0.0
      %4055 = vst.msk [vmem:[#allocation3 + $0x158] sm:$0xff] %vm3739, 0.0
      %4056 = vst.msk [vmem:[#allocation3 + $0x160] sm:$0x3] %vm4013, 0.0
      %4057 = vst.msk [vmem:[#allocation3 + $0x168] sm:$0xff] %vm3739, 0.0
      %4058 = vst.msk [vmem:[#allocation3 + $0x170] sm:$0xff] %vm3739, 0.0
      %4059 = vst.msk [vmem:[#allocation3 + $0x178] sm:$0x3] %vm4013, 0.0
      %4060 = vst.msk [vmem:[#allocation3 + $0x180] sm:$0xff] %vm3739, 0.0
      %4061 = vst.msk [vmem:[#allocation3 + $0x188] sm:$0xff] %vm3739, 0.0
      %4062 = vst.msk [vmem:[#allocation3 + $0x190] sm:$0x3] %vm4013, 0.0
      %4063 = vst.msk [vmem:[#allocation3 + $0x198] sm:$0xff] %vm3739, 0.0
      %4064 = vst.msk [vmem:[#allocation3 + $0x1a0] sm:$0xff] %vm3739, 0.0
      %4065 = vst.msk [vmem:[#allocation3 + $0x1a8] sm:$0x3] %vm4013, 0.0
      %s4066 = scalar_lea.vmem [#allocation3], 24
      %4067 = vst.msk [vmem:[%s4066 + $0x1] sm:$0xff] %vm3739, %v3979
      %4068 = vst.msk [vmem:[%s4066 + $0x9] sm:$0xff] %vm3739, %v3980
      %4069 = vst.msk [vmem:[%s4066 + $0x19] sm:$0xff] %vm3739, %v3981
      %4070 = vst.msk [vmem:[%s4066 + $0x21] sm:$0xff] %vm3739, %v3982
      %4071 = vst.msk [vmem:[%s4066 + $0x31] sm:$0xff] %vm3739, %v3983
      %4072 = vst.msk [vmem:[%s4066 + $0x39] sm:$0xff] %vm3739, %v3984
      %4073 = vst.msk [vmem:[%s4066 + $0x49] sm:$0xff] %vm3739, %v3985
      %4074 = vst.msk [vmem:[%s4066 + $0x51] sm:$0xff] %vm3739, %v3986
      %4075 = vst.msk [vmem:[%s4066 + $0x61] sm:$0xff] %vm3739, %v3987
      %4076 = vst.msk [vmem:[%s4066 + $0x69] sm:$0xff] %vm3739, %v3988
      %4077 = vst.msk [vmem:[%s4066 + $0x79] sm:$0xff] %vm3739, %v3989
      %4078 = vst.msk [vmem:[%s4066 + $0x81] sm:$0xff] %vm3739, %v3990
      %4079 = vst.msk [vmem:[%s4066 + $0x91] sm:$0xff] %vm3739, %v3991
      %4080 = vst.msk [vmem:[%s4066 + $0x99] sm:$0xff] %vm3739, %v3992
      %4081 = vst.msk [vmem:[%s4066 + $0xa9] sm:$0xff] %vm3739, %v3993
      %4082 = vst.msk [vmem:[%s4066 + $0xb1] sm:$0xff] %vm3739, %v3994
      %4083 = vst.msk [vmem:[%s4066 + $0xc1] sm:$0xff] %vm3739, %v3995
      %4084 = vst.msk [vmem:[%s4066 + $0xc9] sm:$0xff] %vm3739, %v3996
      %4085 = vst.msk [vmem:[%s4066 + $0xd9] sm:$0xff] %vm3739, %v3997
      %4086 = vst.msk [vmem:[%s4066 + $0xe1] sm:$0xff] %vm3739, %v3998
      %4087 = vst.msk [vmem:[%s4066 + $0xf1] sm:$0xff] %vm3739, %v3999
      %4088 = vst.msk [vmem:[%s4066 + $0xf9] sm:$0xff] %vm3739, %v4000
      %4089 = vst.msk [vmem:[%s4066 + $0x109] sm:$0xff] %vm3739, %v4001
      %4090 = vst.msk [vmem:[%s4066 + $0x111] sm:$0xff] %vm3739, %v4002
      %4091 = vst.msk [vmem:[%s4066 + $0x121] sm:$0xff] %vm3739, %v4003
      %4092 = vst.msk [vmem:[%s4066 + $0x129] sm:$0xff] %vm3739, %v4004
      %4093 = vst.msk [vmem:[%s4066 + $0x139] sm:$0xff] %vm3739, %v4005
      %4094 = vst.msk [vmem:[%s4066 + $0x141] sm:$0xff] %vm3739, %v4006
      %4095 = vst.msk [vmem:[%s4066 + $0x151] sm:$0xff] %vm3739, %v4007
      %4096 = vst.msk [vmem:[%s4066 + $0x159] sm:$0xff] %vm3739, %v4008
      %4097 = vst.msk [vmem:[%s4066 + $0x169] sm:$0xff] %vm3739, %v4009
      %4098 = vst.msk [vmem:[%s4066 + $0x171] sm:$0xff] %vm3739, %v4010
      %v4099 = vld [vmem:[#allocation3] sm:$0xff]
      %v4100 = vld [vmem:[#allocation3 + $0x8] sm:$0xff]
      %v4101 = vld [vmem:[#allocation3 + $0x18] sm:$0xff]
      %v4102 = vld [vmem:[#allocation3 + $0x20] sm:$0xff]
      %v4103 = vld [vmem:[#allocation3 + $0x30] sm:$0xff]
      %v4104 = vld [vmem:[#allocation3 + $0x38] sm:$0xff]
      %v4105 = vld [vmem:[#allocation3 + $0x48] sm:$0xff]
      %v4106 = vld [vmem:[#allocation3 + $0x50] sm:$0xff]
      %v4107 = vld [vmem:[#allocation3 + $0x60] sm:$0xff]
      %v4108 = vld [vmem:[#allocation3 + $0x68] sm:$0xff]
      %v4109 = vld [vmem:[#allocation3 + $0x78] sm:$0xff]
      %v4110 = vld [vmem:[#allocation3 + $0x80] sm:$0xff]
      %v4111 = vld [vmem:[#allocation3 + $0x90] sm:$0xff]
      %v4112 = vld [vmem:[#allocation3 + $0x98] sm:$0xff]
      %v4113 = vld [vmem:[#allocation3 + $0xa8] sm:$0xff]
      %v4114 = vld [vmem:[#allocation3 + $0xb0] sm:$0xff]
      %v4115 = vld [vmem:[#allocation3 + $0xc0] sm:$0xff]
      %v4116 = vld [vmem:[#allocation3 + $0xc8] sm:$0xff]
      %v4117 = vld [vmem:[#allocation3 + $0xd8] sm:$0xff]
      %v4118 = vld [vmem:[#allocation3 + $0xe0] sm:$0xff]
      %v4119 = vld [vmem:[#allocation3 + $0xf0] sm:$0xff]
      %v4120 = vld [vmem:[#allocation3 + $0xf8] sm:$0xff]
      %v4121 = vld [vmem:[#allocation3 + $0x108] sm:$0xff]
      %v4122 = vld [vmem:[#allocation3 + $0x110] sm:$0xff]
      %v4123 = vld [vmem:[#allocation3 + $0x120] sm:$0xff]
      %v4124 = vld [vmem:[#allocation3 + $0x128] sm:$0xff]
      %v4125 = vld [vmem:[#allocation3 + $0x138] sm:$0xff]
      %v4126 = vld [vmem:[#allocation3 + $0x140] sm:$0xff]
      %v4127 = vld [vmem:[#allocation3 + $0x150] sm:$0xff]
      %v4128 = vld [vmem:[#allocation3 + $0x158] sm:$0xff]
      %v4129 = vld [vmem:[#allocation3 + $0x168] sm:$0xff]
      %v4130 = vld [vmem:[#allocation3 + $0x170] sm:$0xff]
      %v4131 = vld [vmem:[%s2] sm:$0xff]
      %v4132 = vld [vmem:[#allocation3 + $0x1] sm:$0xff]
      %v4133 = vld [vmem:[#allocation3 + $0x9] sm:$0xff]
      %v4134 = vld [vmem:[#allocation3 + $0x19] sm:$0xff]
      %v4135 = vld [vmem:[#allocation3 + $0x21] sm:$0xff]
      %v4136 = vld [vmem:[#allocation3 + $0x31] sm:$0xff]
      %v4137 = vld [vmem:[#allocation3 + $0x39] sm:$0xff]
      %v4138 = vld [vmem:[#allocation3 + $0x49] sm:$0xff]
      %v4139 = vld [vmem:[#allocation3 + $0x51] sm:$0xff]
      %v4140 = vld [vmem:[#allocation3 + $0x61] sm:$0xff]
      %v4141 = vld [vmem:[#allocation3 + $0x69] sm:$0xff]
      %v4142 = vld [vmem:[#allocation3 + $0x79] sm:$0xff]
      %v4143 = vld [vmem:[#allocation3 + $0x81] sm:$0xff]
      %v4144 = vld [vmem:[#allocation3 + $0x91] sm:$0xff]
      %v4145 = vld [vmem:[#allocation3 + $0x99] sm:$0xff]
      %v4146 = vld [vmem:[#allocation3 + $0xa9] sm:$0xff]
      %v4147 = vld [vmem:[#allocation3 + $0xb1] sm:$0xff]
      %v4148 = vld [vmem:[#allocation3 + $0xc1] sm:$0xff]
      %v4149 = vld [vmem:[#allocation3 + $0xc9] sm:$0xff]
      %v4150 = vld [vmem:[#allocation3 + $0xd9] sm:$0xff]
      %v4151 = vld [vmem:[#allocation3 + $0xe1] sm:$0xff]
      %v4152 = vld [vmem:[#allocation3 + $0xf1] sm:$0xff]
      %v4153 = vld [vmem:[#allocation3 + $0xf9] sm:$0xff]
      %v4154 = vld [vmem:[#allocation3 + $0x109] sm:$0xff]
      %v4155 = vld [vmem:[#allocation3 + $0x111] sm:$0xff]
      %v4156 = vld [vmem:[#allocation3 + $0x121] sm:$0xff]
      %v4157 = vld [vmem:[#allocation3 + $0x129] sm:$0xff]
      %v4158 = vld [vmem:[#allocation3 + $0x139] sm:$0xff]
      %v4159 = vld [vmem:[#allocation3 + $0x141] sm:$0xff]
      %v4160 = vld [vmem:[#allocation3 + $0x151] sm:$0xff]
      %v4161 = vld [vmem:[#allocation3 + $0x159] sm:$0xff]
      %v4162 = vld [vmem:[#allocation3 + $0x169] sm:$0xff]
      %v4163 = vld [vmem:[#allocation3 + $0x171] sm:$0xff]
      %s4164 = scalar_lea.vmem %s2, 8
      %v4165 = vld [vmem:[%s4164] sm:$0xff]
      %v4167 = vsel %vm3739, %v4132, 0
      %v4170 = vsel %vm3739, %v4133, 0
      %v4173 = vsel %vm3739, %v4134, 0
      %v4176 = vsel %vm3739, %v4135, 0
      %v4179 = vsel %vm3739, %v4136, 0
      %v4182 = vsel %vm3739, %v4137, 0
      %v4185 = vsel %vm3739, %v4138, 0
      %v4188 = vsel %vm3739, %v4139, 0
      %v4191 = vsel %vm3739, %v4140, 0
      %v4194 = vsel %vm3739, %v4141, 0
      %v4197 = vsel %vm3739, %v4142, 0
      %v4200 = vsel %vm3739, %v4143, 0
      %v4203 = vsel %vm3739, %v4144, 0
      %v4206 = vsel %vm3739, %v4145, 0
      %v4209 = vsel %vm3739, %v4146, 0
      %v4212 = vsel %vm3739, %v4147, 0
      %v4215 = vsel %vm3739, %v4148, 0
      %v4218 = vsel %vm3739, %v4149, 0
      %v4221 = vsel %vm3739, %v4150, 0
      %v4224 = vsel %vm3739, %v4151, 0
      %v4227 = vsel %vm3739, %v4152, 0
      %v4230 = vsel %vm3739, %v4153, 0
      %v4233 = vsel %vm3739, %v4154, 0
      %v4236 = vsel %vm3739, %v4155, 0
      %v4239 = vsel %vm3739, %v4156, 0
      %v4242 = vsel %vm3739, %v4157, 0
      %v4245 = vsel %vm3739, %v4158, 0
      %v4248 = vsel %vm3739, %v4159, 0
      %v4251 = vsel %vm3739, %v4160, 0
      %v4254 = vsel %vm3739, %v4161, 0
      %v4257 = vsel %vm3739, %v4162, 0
      %v4260 = vsel %vm3739, %v4163, 0
      %4262 = vmatprep.subr.mxu0 0.0
      %4263 = vmatpush1.msra.mxu0 %v4165
      %4264 = vmatprep.subr.mxu0 0.0
      %4265 = vmatpush1.msra.mxu0 0.0
      %4266 = vmatprep.subr.mxu0 0.0
      %4267 = vmatpush1.msra.mxu0 0.0
      %4268 = vmatprep.subr.mxu0 0.0
      %4269 = vmatpush1.msra.mxu0 0.0
      %4270 = vmatprep.subr.mxu0 0.0
      %4271 = vmatpush1.msra.mxu0 0.0
      %4272 = vmatprep.subr.mxu0 0.0
      %4273 = vmatpush1.msra.mxu0 0.0
      %4274 = vmatprep.subr.mxu0 0.0
      %4275 = vmatpush1.msra.mxu0 0.0
      %4276 = vmatprep.subr.mxu0 0.0
      %4277 = vmatpush1.msra.mxu0 0.0
      %4278 = vmatprep.subr.mxu0 0.0
      %4279 = vmatpush1.msra.mxu0 0.0
      %4280 = vmatprep.subr.mxu0 0.0
      %4281 = vmatpush1.msra.mxu0 0.0
      %4282 = vmatprep.subr.mxu0 0.0
      %4283 = vmatpush1.msra.mxu0 0.0
      %4284 = vmatprep.subr.mxu0 0.0
      %4285 = vmatpush1.msra.mxu0 0.0
      %4286 = vmatprep.subr.mxu0 0.0
      %4287 = vmatpush1.msra.mxu0 0.0
      %4288 = vmatprep.subr.mxu0 0.0
      %4289 = vmatpush1.msra.mxu0 0.0
      %4290 = vmatprep.subr.mxu0 0.0
      %4291 = vmatpush1.msra.mxu0 0.0
      %4292 = vmatprep.subr.mxu0 0.0
      %4293 = vmatpush1.msra.mxu0 0.0
      %4294 = vmatprep.subr.mxu0 0.0
      %4295 = vmatpush1.msra.mxu0 0.0
      %4296 = vmatprep.subr.mxu0 0.0
      %4297 = vmatpush1.msra.mxu0 0.0
      %4298 = vmatprep.subr.mxu0 0.0
      %4299 = vmatpush1.msra.mxu0 0.0
      %4300 = vmatprep.subr.mxu0 0.0
      %4301 = vmatpush1.msra.mxu0 0.0
      %4302 = vmatprep.subr.mxu0 0.0
      %4303 = vmatpush1.msra.mxu0 0.0
      %4304 = vmatprep.subr.mxu0 0.0
      %4305 = vmatpush1.msra.mxu0 0.0
      %4306 = vmatprep.subr.mxu0 0.0
      %4307 = vmatpush1.msra.mxu0 0.0
      %4308 = vmatprep.subr.mxu0 0.0
      %4309 = vmatpush1.msra.mxu0 0.0
      %4310 = vmatprep.subr.mxu0 0.0
      %4311 = vmatpush1.msra.mxu0 0.0
      %4312 = vmatprep.subr.mxu0 0.0
      %4313 = vmatpush1.msra.mxu0 0.0
      %4314 = vmatprep.subr.mxu0 0.0
      %4315 = vmatpush1.msra.mxu0 0.0
      %4316 = vmatprep.subr.mxu0 0.0
      %4317 = vmatpush1.msra.mxu0 0.0
      %4318 = vmatprep.subr.mxu0 0.0
      %4319 = vmatpush1.msra.mxu0 0.0
      %4320 = vmatprep.subr.mxu0 0.0
      %4321 = vmatpush1.msra.mxu0 0.0
      %4322 = vmatprep.subr.mxu0 0.0
      %4323 = vmatpush1.msra.mxu0 0.0
      %4324 = vmatprep.subr.mxu0 0.0
      %4325 = vmatpush1.msra.mxu0 0.0
      %4326 = vmatprep.mubr.f32.mxu0 0.0
      %4327 = vmatmul.mubr.f32.gmra.mrb[0].mxu0 %v4167
      %v4328 = vpop.f32.mrb[0].mxu0
      %v4329 = vadd.f32 0.0, %v4328
      %v4330 = vpop.f32.mrb[0].mxu0
      %4331 = vmatprep.mubr.f32.mxu0 0.0
      %4332 = vmatmul.mubr.f32.gmra.mrb[0].mxu0 %v4170
      %v4333 = vpop.f32.mrb[0].mxu0
      %v4334 = vadd.f32 0.0, %v4333
      %v4335 = vpop.f32.mrb[0].mxu0
      %4336 = vmatprep.mubr.f32.mxu0 0.0
      %4337 = vmatmul.mubr.f32.gmra.mrb[0].mxu0 %v4173
      %v4338 = vpop.f32.mrb[0].mxu0
      %v4339 = vadd.f32 0.0, %v4338
      %v4340 = vpop.f32.mrb[0].mxu0
      %4341 = vmatprep.mubr.f32.mxu0 0.0
      %4342 = vmatmul.mubr.f32.gmra.mrb[0].mxu0 %v4176
      %v4343 = vpop.f32.mrb[0].mxu0
      %v4344 = vadd.f32 0.0, %v4343
      %v4345 = vpop.f32.mrb[0].mxu0
      %4346 = vmatprep.mubr.f32.mxu0 0.0
      %4347 = vmatmul.mubr.f32.gmra.mrb[0].mxu0 %v4179
      %v4348 = vpop.f32.mrb[0].mxu0
      %v4349 = vadd.f32 0.0, %v4348
      %v4350 = vpop.f32.mrb[0].mxu0
      %4351 = vmatprep.mubr.f32.mxu0 0.0
      %4352 = vmatmul.mubr.f32.gmra.mrb[0].mxu0 %v4182
      %v4353 = vpop.f32.mrb[0].mxu0
      %v4354 = vadd.f32 0.0, %v4353
      %v4355 = vpop.f32.mrb[0].mxu0
      %4356 = vmatprep.mubr.f32.mxu0 0.0
      %4357 = vmatmul.mubr.f32.gmra.mrb[0].mxu0 %v4185
      %v4358 = vpop.f32.mrb[0].mxu0
      %v4359 = vadd.f32 0.0, %v4358
      %v4360 = vpop.f32.mrb[0].mxu0
      %4361 = vmatprep.mubr.f32.mxu0 0.0
      %4362 = vmatmul.mubr.f32.gmra.mrb[0].mxu0 %v4188
      %v4363 = vpop.f32.mrb[0].mxu0
      %v4364 = vadd.f32 0.0, %v4363
      %v4365 = vpop.f32.mrb[0].mxu0
      %4366 = vmatprep.mubr.f32.mxu0 0.0
      %4367 = vmatmul.mubr.f32.gmra.mrb[0].mxu0 %v4191
      %v4368 = vpop.f32.mrb[0].mxu0
      %v4369 = vadd.f32 0.0, %v4368
      %v4370 = vpop.f32.mrb[0].mxu0
      %4371 = vmatprep.mubr.f32.mxu0 0.0
      %4372 = vmatmul.mubr.f32.gmra.mrb[0].mxu0 %v4194
      %v4373 = vpop.f32.mrb[0].mxu0
      %v4374 = vadd.f32 0.0, %v4373
      %v4375 = vpop.f32.mrb[0].mxu0
      %4376 = vmatprep.mubr.f32.mxu0 0.0
      %4377 = vmatmul.mubr.f32.gmra.mrb[0].mxu0 %v4197
      %v4378 = vpop.f32.mrb[0].mxu0
      %v4379 = vadd.f32 0.0, %v4378
      %v4380 = vpop.f32.mrb[0].mxu0
      %4381 = vmatprep.mubr.f32.mxu0 0.0
      %4382 = vmatmul.mubr.f32.gmra.mrb[0].mxu0 %v4200
      %v4383 = vpop.f32.mrb[0].mxu0
      %v4384 = vadd.f32 0.0, %v4383
      %v4385 = vpop.f32.mrb[0].mxu0
      %4386 = vmatprep.mubr.f32.mxu0 0.0
      %4387 = vmatmul.mubr.f32.gmra.mrb[0].mxu0 %v4203
      %v4388 = vpop.f32.mrb[0].mxu0
      %v4389 = vadd.f32 0.0, %v4388
      %v4390 = vpop.f32.mrb[0].mxu0
      %4391 = vmatprep.mubr.f32.mxu0 0.0
      %4392 = vmatmul.mubr.f32.gmra.mrb[0].mxu0 %v4206
      %v4393 = vpop.f32.mrb[0].mxu0
      %v4394 = vadd.f32 0.0, %v4393
      %v4395 = vpop.f32.mrb[0].mxu0
      %4396 = vmatprep.mubr.f32.mxu0 0.0
      %4397 = vmatmul.mubr.f32.gmra.mrb[0].mxu0 %v4209
      %v4398 = vpop.f32.mrb[0].mxu0
      %v4399 = vadd.f32 0.0, %v4398
      %v4400 = vpop.f32.mrb[0].mxu0
      %4401 = vmatprep.mubr.f32.mxu0 0.0
      %4402 = vmatmul.mubr.f32.gmra.mrb[0].mxu0 %v4212
      %v4403 = vpop.f32.mrb[0].mxu0
      %v4404 = vadd.f32 0.0, %v4403
      %v4405 = vpop.f32.mrb[0].mxu0
      %4406 = vmatprep.mubr.f32.mxu0 0.0
      %4407 = vmatmul.mubr.f32.gmra.mrb[0].mxu0 %v4215
      %v4408 = vpop.f32.mrb[0].mxu0
      %v4409 = vadd.f32 0.0, %v4408
      %v4410 = vpop.f32.mrb[0].mxu0
      %4411 = vmatprep.mubr.f32.mxu0 0.0
      %4412 = vmatmul.mubr.f32.gmra.mrb[0].mxu0 %v4218
      %v4413 = vpop.f32.mrb[0].mxu0
      %v4414 = vadd.f32 0.0, %v4413
      %v4415 = vpop.f32.mrb[0].mxu0
      %4416 = vmatprep.mubr.f32.mxu0 0.0
      %4417 = vmatmul.mubr.f32.gmra.mrb[0].mxu0 %v4221
      %v4418 = vpop.f32.mrb[0].mxu0
      %v4419 = vadd.f32 0.0, %v4418
      %v4420 = vpop.f32.mrb[0].mxu0
      %4421 = vmatprep.mubr.f32.mxu0 0.0
      %4422 = vmatmul.mubr.f32.gmra.mrb[0].mxu0 %v4224
      %v4423 = vpop.f32.mrb[0].mxu0
      %v4424 = vadd.f32 0.0, %v4423
      %v4425 = vpop.f32.mrb[0].mxu0
      %4426 = vmatprep.mubr.f32.mxu0 0.0
      %4427 = vmatmul.mubr.f32.gmra.mrb[0].mxu0 %v4227
      %v4428 = vpop.f32.mrb[0].mxu0
      %v4429 = vadd.f32 0.0, %v4428
      %v4430 = vpop.f32.mrb[0].mxu0
      %4431 = vmatprep.mubr.f32.mxu0 0.0
      %4432 = vmatmul.mubr.f32.gmra.mrb[0].mxu0 %v4230
      %v4433 = vpop.f32.mrb[0].mxu0
      %v4434 = vadd.f32 0.0, %v4433
      %v4435 = vpop.f32.mrb[0].mxu0
      %4436 = vmatprep.mubr.f32.mxu0 0.0
      %4437 = vmatmul.mubr.f32.gmra.mrb[0].mxu0 %v4233
      %v4438 = vpop.f32.mrb[0].mxu0
      %v4439 = vadd.f32 0.0, %v4438
      %v4440 = vpop.f32.mrb[0].mxu0
      %4441 = vmatprep.mubr.f32.mxu0 0.0
      %4442 = vmatmul.mubr.f32.gmra.mrb[0].mxu0 %v4236
      %v4443 = vpop.f32.mrb[0].mxu0
      %v4444 = vadd.f32 0.0, %v4443
      %v4445 = vpop.f32.mrb[0].mxu0
      %4446 = vmatprep.mubr.f32.mxu0 0.0
      %4447 = vmatmul.mubr.f32.gmra.mrb[0].mxu0 %v4239
      %v4448 = vpop.f32.mrb[0].mxu0
      %v4449 = vadd.f32 0.0, %v4448
      %v4450 = vpop.f32.mrb[0].mxu0
      %4451 = vmatprep.mubr.f32.mxu0 0.0
      %4452 = vmatmul.mubr.f32.gmra.mrb[0].mxu0 %v4242
      %v4453 = vpop.f32.mrb[0].mxu0
      %v4454 = vadd.f32 0.0, %v4453
      %v4455 = vpop.f32.mrb[0].mxu0
      %4456 = vmatprep.mubr.f32.mxu0 0.0
      %4457 = vmatmul.mubr.f32.gmra.mrb[0].mxu0 %v4245
      %v4458 = vpop.f32.mrb[0].mxu0
      %v4459 = vadd.f32 0.0, %v4458
      %v4460 = vpop.f32.mrb[0].mxu0
      %4461 = vmatprep.mubr.f32.mxu0 0.0
      %4462 = vmatmul.mubr.f32.gmra.mrb[0].mxu0 %v4248
      %v4463 = vpop.f32.mrb[0].mxu0
      %v4464 = vadd.f32 0.0, %v4463
      %v4465 = vpop.f32.mrb[0].mxu0
      %4466 = vmatprep.mubr.f32.mxu0 0.0
      %4467 = vmatmul.mubr.f32.gmra.mrb[0].mxu0 %v4251
      %v4468 = vpop.f32.mrb[0].mxu0
      %v4469 = vadd.f32 0.0, %v4468
      %v4470 = vpop.f32.mrb[0].mxu0
      %4471 = vmatprep.mubr.f32.mxu0 0.0
      %4472 = vmatmul.mubr.f32.gmra.mrb[0].mxu0 %v4254
      %v4473 = vpop.f32.mrb[0].mxu0
      %v4474 = vadd.f32 0.0, %v4473
      %v4475 = vpop.f32.mrb[0].mxu0
      %4476 = vmatprep.mubr.f32.mxu0 0.0
      %4477 = vmatmul.mubr.f32.gmra.mrb[0].mxu0 %v4257
      %v4478 = vpop.f32.mrb[0].mxu0
      %v4479 = vadd.f32 0.0, %v4478
      %v4480 = vpop.f32.mrb[0].mxu0
      %4481 = vmatprep.mubr.f32.mxu0 0.0
      %4482 = vmatmul.mubr.f32.gmra.mrb[0].mxu0 %v4260
      %v4483 = vpop.f32.mrb[0].mxu0
      %v4484 = vadd.f32 0.0, %v4483
      %v4485 = vpop.f32.mrb[0].mxu0
      %4486 = vdwg.mxu0
      %v4488 = vsel %vm3739, %v4099, 0
      %v4491 = vsel %vm3739, %v4100, 0
      %v4494 = vsel %vm3739, %v4101, 0
      %v4497 = vsel %vm3739, %v4102, 0
      %v4500 = vsel %vm3739, %v4103, 0
      %v4503 = vsel %vm3739, %v4104, 0
      %v4506 = vsel %vm3739, %v4105, 0
      %v4509 = vsel %vm3739, %v4106, 0
      %v4512 = vsel %vm3739, %v4107, 0
      %v4515 = vsel %vm3739, %v4108, 0
      %v4518 = vsel %vm3739, %v4109, 0
      %v4521 = vsel %vm3739, %v4110, 0
      %v4524 = vsel %vm3739, %v4111, 0
      %v4527 = vsel %vm3739, %v4112, 0
      %v4530 = vsel %vm3739, %v4113, 0
      %v4533 = vsel %vm3739, %v4114, 0
      %v4536 = vsel %vm3739, %v4115, 0
      %v4539 = vsel %vm3739, %v4116, 0
      %v4542 = vsel %vm3739, %v4117, 0
      %v4545 = vsel %vm3739, %v4118, 0
      %v4548 = vsel %vm3739, %v4119, 0
      %v4551 = vsel %vm3739, %v4120, 0
      %v4554 = vsel %vm3739, %v4121, 0
      %v4557 = vsel %vm3739, %v4122, 0
      %v4560 = vsel %vm3739, %v4123, 0
      %v4563 = vsel %vm3739, %v4124, 0
      %v4566 = vsel %vm3739, %v4125, 0
      %v4569 = vsel %vm3739, %v4126, 0
      %v4572 = vsel %vm3739, %v4127, 0
      %v4575 = vsel %vm3739, %v4128, 0
      %v4578 = vsel %vm3739, %v4129, 0
      %v4581 = vsel %vm3739, %v4130, 0
      %4583 = vmatprep.subr.mxu0 0.0
      %4584 = vmatpush1.msra.mxu0 %v4131
      %4585 = vmatprep.subr.mxu0 0.0
      %4586 = vmatpush1.msra.mxu0 0.0
      %4587 = vmatprep.subr.mxu0 0.0
      %4588 = vmatpush1.msra.mxu0 0.0
      %4589 = vmatprep.subr.mxu0 0.0
      %4590 = vmatpush1.msra.mxu0 0.0
      %4591 = vmatprep.subr.mxu0 0.0
      %4592 = vmatpush1.msra.mxu0 0.0
      %4593 = vmatprep.subr.mxu0 0.0
      %4594 = vmatpush1.msra.mxu0 0.0
      %4595 = vmatprep.subr.mxu0 0.0
      %4596 = vmatpush1.msra.mxu0 0.0
      %4597 = vmatprep.subr.mxu0 0.0
      %4598 = vmatpush1.msra.mxu0 0.0
      %4599 = vmatprep.subr.mxu0 0.0
      %4600 = vmatpush1.msra.mxu0 0.0
      %4601 = vmatprep.subr.mxu0 0.0
      %4602 = vmatpush1.msra.mxu0 0.0
      %4603 = vmatprep.subr.mxu0 0.0
      %4604 = vmatpush1.msra.mxu0 0.0
      %4605 = vmatprep.subr.mxu0 0.0
      %4606 = vmatpush1.msra.mxu0 0.0
      %4607 = vmatprep.subr.mxu0 0.0
      %4608 = vmatpush1.msra.mxu0 0.0
      %4609 = vmatprep.subr.mxu0 0.0
      %4610 = vmatpush1.msra.mxu0 0.0
      %4611 = vmatprep.subr.mxu0 0.0
      %4612 = vmatpush1.msra.mxu0 0.0
      %4613 = vmatprep.subr.mxu0 0.0
      %4614 = vmatpush1.msra.mxu0 0.0
      %4615 = vmatprep.subr.mxu0 0.0
      %4616 = vmatpush1.msra.mxu0 0.0
      %4617 = vmatprep.subr.mxu0 0.0
      %4618 = vmatpush1.msra.mxu0 0.0
      %4619 = vmatprep.subr.mxu0 0.0
      %4620 = vmatpush1.msra.mxu0 0.0
      %4621 = vmatprep.subr.mxu0 0.0
      %4622 = vmatpush1.msra.mxu0 0.0
      %4623 = vmatprep.subr.mxu0 0.0
      %4624 = vmatpush1.msra.mxu0 0.0
      %4625 = vmatprep.subr.mxu0 0.0
      %4626 = vmatpush1.msra.mxu0 0.0
      %4627 = vmatprep.subr.mxu0 0.0
      %4628 = vmatpush1.msra.mxu0 0.0
      %4629 = vmatprep.subr.mxu0 0.0
      %4630 = vmatpush1.msra.mxu0 0.0
      %4631 = vmatprep.subr.mxu0 0.0
      %4632 = vmatpush1.msra.mxu0 0.0
      %4633 = vmatprep.subr.mxu0 0.0
      %4634 = vmatpush1.msra.mxu0 0.0
      %4635 = vmatprep.subr.mxu0 0.0
      %4636 = vmatpush1.msra.mxu0 0.0
      %4637 = vmatprep.subr.mxu0 0.0
      %4638 = vmatpush1.msra.mxu0 0.0
      %4639 = vmatprep.subr.mxu0 0.0
      %4640 = vmatpush1.msra.mxu0 0.0
      %4641 = vmatprep.subr.mxu0 0.0
      %4642 = vmatpush1.msra.mxu0 0.0
      %4643 = vmatprep.subr.mxu0 0.0
      %4644 = vmatpush1.msra.mxu0 0.0
      %4645 = vmatprep.subr.mxu0 0.0
      %4646 = vmatpush1.msra.mxu0 0.0
      %4647 = vmatprep.mubr.f32.mxu0 0.0
      %4648 = vmatmul.mubr.f32.gmra.mrb[0].mxu0 %v4488
      %v4649 = vpop.f32.mrb[0].mxu0
      %v4650 = vadd.f32 %v4329, %v4649
      %v4651 = vpop.f32.mrb[0].mxu0
      %4652 = vmatprep.mubr.f32.mxu0 0.0
      %4653 = vmatmul.mubr.f32.gmra.mrb[0].mxu0 %v4491
      %v4654 = vpop.f32.mrb[0].mxu0
      %v4655 = vadd.f32 %v4334, %v4654
      %v4656 = vpop.f32.mrb[0].mxu0
      %4657 = vmatprep.mubr.f32.mxu0 0.0
      %4658 = vmatmul.mubr.f32.gmra.mrb[0].mxu0 %v4494
      %v4659 = vpop.f32.mrb[0].mxu0
      %v4660 = vadd.f32 %v4339, %v4659
      %v4661 = vpop.f32.mrb[0].mxu0
      %4662 = vmatprep.mubr.f32.mxu0 0.0
      %4663 = vmatmul.mubr.f32.gmra.mrb[0].mxu0 %v4497
      %v4664 = vpop.f32.mrb[0].mxu0
      %v4665 = vadd.f32 %v4344, %v4664
      %v4666 = vpop.f32.mrb[0].mxu0
      %4667 = vmatprep.mubr.f32.mxu0 0.0
      %4668 = vmatmul.mubr.f32.gmra.mrb[0].mxu0 %v4500
      %v4669 = vpop.f32.mrb[0].mxu0
      %v4670 = vadd.f32 %v4349, %v4669
      %v4671 = vpop.f32.mrb[0].mxu0
      %4672 = vmatprep.mubr.f32.mxu0 0.0
      %4673 = vmatmul.mubr.f32.gmra.mrb[0].mxu0 %v4503
      %v4674 = vpop.f32.mrb[0].mxu0
      %v4675 = vadd.f32 %v4354, %v4674
      %v4676 = vpop.f32.mrb[0].mxu0
      %4677 = vmatprep.mubr.f32.mxu0 0.0
      %4678 = vmatmul.mubr.f32.gmra.mrb[0].mxu0 %v4506
      %v4679 = vpop.f32.mrb[0].mxu0
      %v4680 = vadd.f32 %v4359, %v4679
      %v4681 = vpop.f32.mrb[0].mxu0
      %4682 = vmatprep.mubr.f32.mxu0 0.0
      %4683 = vmatmul.mubr.f32.gmra.mrb[0].mxu0 %v4509
      %v4684 = vpop.f32.mrb[0].mxu0
      %v4685 = vadd.f32 %v4364, %v4684
      %v4686 = vpop.f32.mrb[0].mxu0
      %4687 = vmatprep.mubr.f32.mxu0 0.0
      %4688 = vmatmul.mubr.f32.gmra.mrb[0].mxu0 %v4512
      %v4689 = vpop.f32.mrb[0].mxu0
      %v4690 = vadd.f32 %v4369, %v4689
      %v4691 = vpop.f32.mrb[0].mxu0
      %4692 = vmatprep.mubr.f32.mxu0 0.0
      %4693 = vmatmul.mubr.f32.gmra.mrb[0].mxu0 %v4515
      %v4694 = vpop.f32.mrb[0].mxu0
      %v4695 = vadd.f32 %v4374, %v4694
      %v4696 = vpop.f32.mrb[0].mxu0
      %4697 = vmatprep.mubr.f32.mxu0 0.0
      %4698 = vmatmul.mubr.f32.gmra.mrb[0].mxu0 %v4518
      %v4699 = vpop.f32.mrb[0].mxu0
      %v4700 = vadd.f32 %v4379, %v4699
      %v4701 = vpop.f32.mrb[0].mxu0
      %4702 = vmatprep.mubr.f32.mxu0 0.0
      %4703 = vmatmul.mubr.f32.gmra.mrb[0].mxu0 %v4521
      %v4704 = vpop.f32.mrb[0].mxu0
      %v4705 = vadd.f32 %v4384, %v4704
      %v4706 = vpop.f32.mrb[0].mxu0
      %4707 = vmatprep.mubr.f32.mxu0 0.0
      %4708 = vmatmul.mubr.f32.gmra.mrb[0].mxu0 %v4524
      %v4709 = vpop.f32.mrb[0].mxu0
      %v4710 = vadd.f32 %v4389, %v4709
      %v4711 = vpop.f32.mrb[0].mxu0
      %4712 = vmatprep.mubr.f32.mxu0 0.0
      %4713 = vmatmul.mubr.f32.gmra.mrb[0].mxu0 %v4527
      %v4714 = vpop.f32.mrb[0].mxu0
      %v4715 = vadd.f32 %v4394, %v4714
      %v4716 = vpop.f32.mrb[0].mxu0
      %4717 = vmatprep.mubr.f32.mxu0 0.0
      %4718 = vmatmul.mubr.f32.gmra.mrb[0].mxu0 %v4530
      %v4719 = vpop.f32.mrb[0].mxu0
      %v4720 = vadd.f32 %v4399, %v4719
      %v4721 = vpop.f32.mrb[0].mxu0
      %4722 = vmatprep.mubr.f32.mxu0 0.0
      %4723 = vmatmul.mubr.f32.gmra.mrb[0].mxu0 %v4533
      %v4724 = vpop.f32.mrb[0].mxu0
      %v4725 = vadd.f32 %v4404, %v4724
      %v4726 = vpop.f32.mrb[0].mxu0
      %4727 = vmatprep.mubr.f32.mxu0 0.0
      %4728 = vmatmul.mubr.f32.gmra.mrb[0].mxu0 %v4536
      %v4729 = vpop.f32.mrb[0].mxu0
      %v4730 = vadd.f32 %v4409, %v4729
      %v4731 = vpop.f32.mrb[0].mxu0
      %4732 = vmatprep.mubr.f32.mxu0 0.0
      %4733 = vmatmul.mubr.f32.gmra.mrb[0].mxu0 %v4539
      %v4734 = vpop.f32.mrb[0].mxu0
      %v4735 = vadd.f32 %v4414, %v4734
      %v4736 = vpop.f32.mrb[0].mxu0
      %4737 = vmatprep.mubr.f32.mxu0 0.0
      %4738 = vmatmul.mubr.f32.gmra.mrb[0].mxu0 %v4542
      %v4739 = vpop.f32.mrb[0].mxu0
      %v4740 = vadd.f32 %v4419, %v4739
      %v4741 = vpop.f32.mrb[0].mxu0
      %4742 = vmatprep.mubr.f32.mxu0 0.0
      %4743 = vmatmul.mubr.f32.gmra.mrb[0].mxu0 %v4545
      %v4744 = vpop.f32.mrb[0].mxu0
      %v4745 = vadd.f32 %v4424, %v4744
      %v4746 = vpop.f32.mrb[0].mxu0
      %4747 = vmatprep.mubr.f32.mxu0 0.0
      %4748 = vmatmul.mubr.f32.gmra.mrb[0].mxu0 %v4548
      %v4749 = vpop.f32.mrb[0].mxu0
      %v4750 = vadd.f32 %v4429, %v4749
      %v4751 = vpop.f32.mrb[0].mxu0
      %4752 = vmatprep.mubr.f32.mxu0 0.0
      %4753 = vmatmul.mubr.f32.gmra.mrb[0].mxu0 %v4551
      %v4754 = vpop.f32.mrb[0].mxu0
      %v4755 = vadd.f32 %v4434, %v4754
      %v4756 = vpop.f32.mrb[0].mxu0
      %4757 = vmatprep.mubr.f32.mxu0 0.0
      %4758 = vmatmul.mubr.f32.gmra.mrb[0].mxu0 %v4554
      %v4759 = vpop.f32.mrb[0].mxu0
      %v4760 = vadd.f32 %v4439, %v4759
      %v4761 = vpop.f32.mrb[0].mxu0
      %4762 = vmatprep.mubr.f32.mxu0 0.0
      %4763 = vmatmul.mubr.f32.gmra.mrb[0].mxu0 %v4557
      %v4764 = vpop.f32.mrb[0].mxu0
      %v4765 = vadd.f32 %v4444, %v4764
      %v4766 = vpop.f32.mrb[0].mxu0
      %4767 = vmatprep.mubr.f32.mxu0 0.0
      %4768 = vmatmul.mubr.f32.gmra.mrb[0].mxu0 %v4560
      %v4769 = vpop.f32.mrb[0].mxu0
      %v4770 = vadd.f32 %v4449, %v4769
      %v4771 = vpop.f32.mrb[0].mxu0
      %4772 = vmatprep.mubr.f32.mxu0 0.0
      %4773 = vmatmul.mubr.f32.gmra.mrb[0].mxu0 %v4563
      %v4774 = vpop.f32.mrb[0].mxu0
      %v4775 = vadd.f32 %v4454, %v4774
      %v4776 = vpop.f32.mrb[0].mxu0
      %4777 = vmatprep.mubr.f32.mxu0 0.0
      %4778 = vmatmul.mubr.f32.gmra.mrb[0].mxu0 %v4566
      %v4779 = vpop.f32.mrb[0].mxu0
      %v4780 = vadd.f32 %v4459, %v4779
      %v4781 = vpop.f32.mrb[0].mxu0
      %4782 = vmatprep.mubr.f32.mxu0 0.0
      %4783 = vmatmul.mubr.f32.gmra.mrb[0].mxu0 %v4569
      %v4784 = vpop.f32.mrb[0].mxu0
      %v4785 = vadd.f32 %v4464, %v4784
      %v4786 = vpop.f32.mrb[0].mxu0
      %4787 = vmatprep.mubr.f32.mxu0 0.0
      %4788 = vmatmul.mubr.f32.gmra.mrb[0].mxu0 %v4572
      %v4789 = vpop.f32.mrb[0].mxu0
      %v4790 = vadd.f32 %v4469, %v4789
      %v4791 = vpop.f32.mrb[0].mxu0
      %4792 = vmatprep.mubr.f32.mxu0 0.0
      %4793 = vmatmul.mubr.f32.gmra.mrb[0].mxu0 %v4575
      %v4794 = vpop.f32.mrb[0].mxu0
      %v4795 = vadd.f32 %v4474, %v4794
      %v4796 = vpop.f32.mrb[0].mxu0
      %4797 = vmatprep.mubr.f32.mxu0 0.0
      %4798 = vmatmul.mubr.f32.gmra.mrb[0].mxu0 %v4578
      %v4799 = vpop.f32.mrb[0].mxu0
      %v4800 = vadd.f32 %v4479, %v4799
      %v4801 = vpop.f32.mrb[0].mxu0
      %4802 = vmatprep.mubr.f32.mxu0 0.0
      %4803 = vmatmul.mubr.f32.gmra.mrb[0].mxu0 %v4581
      %v4804 = vpop.f32.mrb[0].mxu0
      %v4805 = vadd.f32 %v4484, %v4804
      %v4806 = vpop.f32.mrb[0].mxu0
      %4807 = vdwg.mxu0
      %v4808 = vld [vmem:[#allocation3 + $0x2] sm:$0xff]
      %v4809 = vld [vmem:[#allocation3 + $0xa] sm:$0xff]
      %v4810 = vld [vmem:[#allocation3 + $0x1a] sm:$0xff]
      %v4811 = vld [vmem:[#allocation3 + $0x22] sm:$0xff]
      %v4812 = vld [vmem:[#allocation3 + $0x32] sm:$0xff]
      %v4813 = vld [vmem:[#allocation3 + $0x3a] sm:$0xff]
      %v4814 = vld [vmem:[#allocation3 + $0x4a] sm:$0xff]
      %v4815 = vld [vmem:[#allocation3 + $0x52] sm:$0xff]
      %v4816 = vld [vmem:[#allocation3 + $0x62] sm:$0xff]
      %v4817 = vld [vmem:[#allocation3 + $0x6a] sm:$0xff]
      %v4818 = vld [vmem:[#allocation3 + $0x7a] sm:$0xff]
      %v4819 = vld [vmem:[#allocation3 + $0x82] sm:$0xff]
      %v4820 = vld [vmem:[#allocation3 + $0x92] sm:$0xff]
      %v4821 = vld [vmem:[#allocation3 + $0x9a] sm:$0xff]
      %v4822 = vld [vmem:[#allocation3 + $0xaa] sm:$0xff]
      %v4823 = vld [vmem:[#allocation3 + $0xb2] sm:$0xff]
      %v4824 = vld [vmem:[#allocation3 + $0xc2] sm:$0xff]
      %v4825 = vld [vmem:[#allocation3 + $0xca] sm:$0xff]
      %v4826 = vld [vmem:[#allocation3 + $0xda] sm:$0xff]
      %v4827 = vld [vmem:[#allocation3 + $0xe2] sm:$0xff]
      %v4828 = vld [vmem:[#allocation3 + $0xf2] sm:$0xff]
      %v4829 = vld [vmem:[#allocation3 + $0xfa] sm:$0xff]
      %v4830 = vld [vmem:[#allocation3 + $0x10a] sm:$0xff]
      %v4831 = vld [vmem:[#allocation3 + $0x112] sm:$0xff]
      %v4832 = vld [vmem:[#allocation3 + $0x122] sm:$0xff]
      %v4833 = vld [vmem:[#allocation3 + $0x12a] sm:$0xff]
      %v4834 = vld [vmem:[#allocation3 + $0x13a] sm:$0xff]
      %v4835 = vld [vmem:[#allocation3 + $0x142] sm:$0xff]
      %v4836 = vld [vmem:[#allocation3 + $0x152] sm:$0xff]
      %v4837 = vld [vmem:[#allocation3 + $0x15a] sm:$0xff]
      %v4838 = vld [vmem:[#allocation3 + $0x16a] sm:$0xff]
      %v4839 = vld [vmem:[#allocation3 + $0x172] sm:$0xff]
      %s4840 = scalar_lea.vmem %s2, 16
      %v4841 = vld [vmem:[%s4840] sm:$0xff]
      %v4843 = vsel %vm3739, %v4808, 0
      %v4846 = vsel %vm3739, %v4809, 0
      %v4849 = vsel %vm3739, %v4810, 0
      %v4852 = vsel %vm3739, %v4811, 0
      %v4855 = vsel %vm3739, %v4812, 0
      %v4858 = vsel %vm3739, %v4813, 0
      %v4861 = vsel %vm3739, %v4814, 0
      %v4864 = vsel %vm3739, %v4815, 0
      %v4867 = vsel %vm3739, %v4816, 0
      %v4870 = vsel %vm3739, %v4817, 0
      %v4873 = vsel %vm3739, %v4818, 0
      %v4876 = vsel %vm3739, %v4819, 0
      %v4879 = vsel %vm3739, %v4820, 0
      %v4882 = vsel %vm3739, %v4821, 0
      %v4885 = vsel %vm3739, %v4822, 0
      %v4888 = vsel %vm3739, %v4823, 0
      %v4891 = vsel %vm3739, %v4824, 0
      %v4894 = vsel %vm3739, %v4825, 0
      %v4897 = vsel %vm3739, %v4826, 0
      %v4900 = vsel %vm3739, %v4827, 0
      %v4903 = vsel %vm3739, %v4828, 0
      %v4906 = vsel %vm3739, %v4829, 0
      %v4909 = vsel %vm3739, %v4830, 0
      %v4912 = vsel %vm3739, %v4831, 0
      %v4915 = vsel %vm3739, %v4832, 0
      %v4918 = vsel %vm3739, %v4833, 0
      %v4921 = vsel %vm3739, %v4834, 0
      %v4924 = vsel %vm3739, %v4835, 0
      %v4927 = vsel %vm3739, %v4836, 0
      %v4930 = vsel %vm3739, %v4837, 0
      %v4933 = vsel %vm3739, %v4838, 0
      %v4936 = vsel %vm3739, %v4839, 0
      %4938 = vmatprep.subr.mxu0 0.0
      %4939 = vmatpush1.msra.mxu0 %v4841
      %4940 = vmatprep.subr.mxu0 0.0
      %4941 = vmatpush1.msra.mxu0 0.0
      %4942 = vmatprep.subr.mxu0 0.0
      %4943 = vmatpush1.msra.mxu0 0.0
      %4944 = vmatprep.subr.mxu0 0.0
      %4945 = vmatpush1.msra.mxu0 0.0
      %4946 = vmatprep.subr.mxu0 0.0
      %4947 = vmatpush1.msra.mxu0 0.0
      %4948 = vmatprep.subr.mxu0 0.0
      %4949 = vmatpush1.msra.mxu0 0.0
      %4950 = vmatprep.subr.mxu0 0.0
      %4951 = vmatpush1.msra.mxu0 0.0
      %4952 = vmatprep.subr.mxu0 0.0
      %4953 = vmatpush1.msra.mxu0 0.0
      %4954 = vmatprep.subr.mxu0 0.0
      %4955 = vmatpush1.msra.mxu0 0.0
      %4956 = vmatprep.subr.mxu0 0.0
      %4957 = vmatpush1.msra.mxu0 0.0
      %4958 = vmatprep.subr.mxu0 0.0
      %4959 = vmatpush1.msra.mxu0 0.0
      %4960 = vmatprep.subr.mxu0 0.0
      %4961 = vmatpush1.msra.mxu0 0.0
      %4962 = vmatprep.subr.mxu0 0.0
      %4963 = vmatpush1.msra.mxu0 0.0
      %4964 = vmatprep.subr.mxu0 0.0
      %4965 = vmatpush1.msra.mxu0 0.0
      %4966 = vmatprep.subr.mxu0 0.0
      %4967 = vmatpush1.msra.mxu0 0.0
      %4968 = vmatprep.subr.mxu0 0.0
      %4969 = vmatpush1.msra.mxu0 0.0
      %4970 = vmatprep.subr.mxu0 0.0
      %4971 = vmatpush1.msra.mxu0 0.0
      %4972 = vmatprep.subr.mxu0 0.0
      %4973 = vmatpush1.msra.mxu0 0.0
      %4974 = vmatprep.subr.mxu0 0.0
      %4975 = vmatpush1.msra.mxu0 0.0
      %4976 = vmatprep.subr.mxu0 0.0
      %4977 = vmatpush1.msra.mxu0 0.0
      %4978 = vmatprep.subr.mxu0 0.0
      %4979 = vmatpush1.msra.mxu0 0.0
      %4980 = vmatprep.subr.mxu0 0.0
      %4981 = vmatpush1.msra.mxu0 0.0
      %4982 = vmatprep.subr.mxu0 0.0
      %4983 = vmatpush1.msra.mxu0 0.0
      %4984 = vmatprep.subr.mxu0 0.0
      %4985 = vmatpush1.msra.mxu0 0.0
      %4986 = vmatprep.subr.mxu0 0.0
      %4987 = vmatpush1.msra.mxu0 0.0
      %4988 = vmatprep.subr.mxu0 0.0
      %4989 = vmatpush1.msra.mxu0 0.0
      %4990 = vmatprep.subr.mxu0 0.0
      %4991 = vmatpush1.msra.mxu0 0.0
      %4992 = vmatprep.subr.mxu0 0.0
      %4993 = vmatpush1.msra.mxu0 0.0
      %4994 = vmatprep.subr.mxu0 0.0
      %4995 = vmatpush1.msra.mxu0 0.0
      %4996 = vmatprep.subr.mxu0 0.0
      %4997 = vmatpush1.msra.mxu0 0.0
      %4998 = vmatprep.subr.mxu0 0.0
      %4999 = vmatpush1.msra.mxu0 0.0
      %5000 = vmatprep.subr.mxu0 0.0
      %5001 = vmatpush1.msra.mxu0 0.0
      %5002 = vmatprep.mubr.f32.mxu0 0.0
      %5003 = vmatmul.mubr.f32.gmra.mrb[0].mxu0 %v4843
      %v5004 = vpop.f32.mrb[0].mxu0
      %v5005 = vadd.f32 0.0, %v5004
      %v5006 = vpop.f32.mrb[0].mxu0
      %5007 = vmatprep.mubr.f32.mxu0 0.0
      %5008 = vmatmul.mubr.f32.gmra.mrb[0].mxu0 %v4846
      %v5009 = vpop.f32.mrb[0].mxu0
      %v5010 = vadd.f32 0.0, %v5009
      %v5011 = vpop.f32.mrb[0].mxu0
      %5012 = vmatprep.mubr.f32.mxu0 0.0
      %5013 = vmatmul.mubr.f32.gmra.mrb[0].mxu0 %v4849
      %v5014 = vpop.f32.mrb[0].mxu0
      %v5015 = vadd.f32 0.0, %v5014
      %v5016 = vpop.f32.mrb[0].mxu0
      %5017 = vmatprep.mubr.f32.mxu0 0.0
      %5018 = vmatmul.mubr.f32.gmra.mrb[0].mxu0 %v4852
      %v5019 = vpop.f32.mrb[0].mxu0
      %v5020 = vadd.f32 0.0, %v5019
      %v5021 = vpop.f32.mrb[0].mxu0
      %5022 = vmatprep.mubr.f32.mxu0 0.0
      %5023 = vmatmul.mubr.f32.gmra.mrb[0].mxu0 %v4855
      %v5024 = vpop.f32.mrb[0].mxu0
      %v5025 = vadd.f32 0.0, %v5024
      %v5026 = vpop.f32.mrb[0].mxu0
      %5027 = vmatprep.mubr.f32.mxu0 0.0
      %5028 = vmatmul.mubr.f32.gmra.mrb[0].mxu0 %v4858
      %v5029 = vpop.f32.mrb[0].mxu0
      %v5030 = vadd.f32 0.0, %v5029
      %v5031 = vpop.f32.mrb[0].mxu0
      %5032 = vmatprep.mubr.f32.mxu0 0.0
      %5033 = vmatmul.mubr.f32.gmra.mrb[0].mxu0 %v4861
      %v5034 = vpop.f32.mrb[0].mxu0
      %v5035 = vadd.f32 0.0, %v5034
      %v5036 = vpop.f32.mrb[0].mxu0
      %5037 = vmatprep.mubr.f32.mxu0 0.0
      %5038 = vmatmul.mubr.f32.gmra.mrb[0].mxu0 %v4864
      %v5039 = vpop.f32.mrb[0].mxu0
      %v5040 = vadd.f32 0.0, %v5039
      %v5041 = vpop.f32.mrb[0].mxu0
      %5042 = vmatprep.mubr.f32.mxu0 0.0
      %5043 = vmatmul.mubr.f32.gmra.mrb[0].mxu0 %v4867
      %v5044 = vpop.f32.mrb[0].mxu0
      %v5045 = vadd.f32 0.0, %v5044
      %v5046 = vpop.f32.mrb[0].mxu0
      %5047 = vmatprep.mubr.f32.mxu0 0.0
      %5048 = vmatmul.mubr.f32.gmra.mrb[0].mxu0 %v4870
      %v5049 = vpop.f32.mrb[0].mxu0
      %v5050 = vadd.f32 0.0, %v5049
      %v5051 = vpop.f32.mrb[0].mxu0
      %5052 = vmatprep.mubr.f32.mxu0 0.0
      %5053 = vmatmul.mubr.f32.gmra.mrb[0].mxu0 %v4873
      %v5054 = vpop.f32.mrb[0].mxu0
      %v5055 = vadd.f32 0.0, %v5054
      %v5056 = vpop.f32.mrb[0].mxu0
      %5057 = vmatprep.mubr.f32.mxu0 0.0
      %5058 = vmatmul.mubr.f32.gmra.mrb[0].mxu0 %v4876
      %v5059 = vpop.f32.mrb[0].mxu0
      %v5060 = vadd.f32 0.0, %v5059
      %v5061 = vpop.f32.mrb[0].mxu0
      %5062 = vmatprep.mubr.f32.mxu0 0.0
      %5063 = vmatmul.mubr.f32.gmra.mrb[0].mxu0 %v4879
      %v5064 = vpop.f32.mrb[0].mxu0
      %v5065 = vadd.f32 0.0, %v5064
      %v5066 = vpop.f32.mrb[0].mxu0
      %5067 = vmatprep.mubr.f32.mxu0 0.0
      %5068 = vmatmul.mubr.f32.gmra.mrb[0].mxu0 %v4882
      %v5069 = vpop.f32.mrb[0].mxu0
      %v5070 = vadd.f32 0.0, %v5069
      %v5071 = vpop.f32.mrb[0].mxu0
      %5072 = vmatprep.mubr.f32.mxu0 0.0
      %5073 = vmatmul.mubr.f32.gmra.mrb[0].mxu0 %v4885
      %v5074 = vpop.f32.mrb[0].mxu0
      %v5075 = vadd.f32 0.0, %v5074
      %v5076 = vpop.f32.mrb[0].mxu0
      %5077 = vmatprep.mubr.f32.mxu0 0.0
      %5078 = vmatmul.mubr.f32.gmra.mrb[0].mxu0 %v4888
      %v5079 = vpop.f32.mrb[0].mxu0
      %v5080 = vadd.f32 0.0, %v5079
      %v5081 = vpop.f32.mrb[0].mxu0
      %5082 = vmatprep.mubr.f32.mxu0 0.0
      %5083 = vmatmul.mubr.f32.gmra.mrb[0].mxu0 %v4891
      %v5084 = vpop.f32.mrb[0].mxu0
      %v5085 = vadd.f32 0.0, %v5084
      %v5086 = vpop.f32.mrb[0].mxu0
      %5087 = vmatprep.mubr.f32.mxu0 0.0
      %5088 = vmatmul.mubr.f32.gmra.mrb[0].mxu0 %v4894
      %v5089 = vpop.f32.mrb[0].mxu0
      %v5090 = vadd.f32 0.0, %v5089
      %v5091 = vpop.f32.mrb[0].mxu0
      %5092 = vmatprep.mubr.f32.mxu0 0.0
      %5093 = vmatmul.mubr.f32.gmra.mrb[0].mxu0 %v4897
      %v5094 = vpop.f32.mrb[0].mxu0
      %v5095 = vadd.f32 0.0, %v5094
      %v5096 = vpop.f32.mrb[0].mxu0
      %5097 = vmatprep.mubr.f32.mxu0 0.0
      %5098 = vmatmul.mubr.f32.gmra.mrb[0].mxu0 %v4900
      %v5099 = vpop.f32.mrb[0].mxu0
      %v5100 = vadd.f32 0.0, %v5099
      %v5101 = vpop.f32.mrb[0].mxu0
      %5102 = vmatprep.mubr.f32.mxu0 0.0
      %5103 = vmatmul.mubr.f32.gmra.mrb[0].mxu0 %v4903
      %v5104 = vpop.f32.mrb[0].mxu0
      %v5105 = vadd.f32 0.0, %v5104
      %v5106 = vpop.f32.mrb[0].mxu0
      %5107 = vmatprep.mubr.f32.mxu0 0.0
      %5108 = vmatmul.mubr.f32.gmra.mrb[0].mxu0 %v4906
      %v5109 = vpop.f32.mrb[0].mxu0
      %v5110 = vadd.f32 0.0, %v5109
      %v5111 = vpop.f32.mrb[0].mxu0
      %5112 = vmatprep.mubr.f32.mxu0 0.0
      %5113 = vmatmul.mubr.f32.gmra.mrb[0].mxu0 %v4909
      %v5114 = vpop.f32.mrb[0].mxu0
      %v5115 = vadd.f32 0.0, %v5114
      %v5116 = vpop.f32.mrb[0].mxu0
      %5117 = vmatprep.mubr.f32.mxu0 0.0
      %5118 = vmatmul.mubr.f32.gmra.mrb[0].mxu0 %v4912
      %v5119 = vpop.f32.mrb[0].mxu0
      %v5120 = vadd.f32 0.0, %v5119
      %v5121 = vpop.f32.mrb[0].mxu0
      %5122 = vmatprep.mubr.f32.mxu0 0.0
      %5123 = vmatmul.mubr.f32.gmra.mrb[0].mxu0 %v4915
      %v5124 = vpop.f32.mrb[0].mxu0
      %v5125 = vadd.f32 0.0, %v5124
      %v5126 = vpop.f32.mrb[0].mxu0
      %5127 = vmatprep.mubr.f32.mxu0 0.0
      %5128 = vmatmul.mubr.f32.gmra.mrb[0].mxu0 %v4918
      %v5129 = vpop.f32.mrb[0].mxu0
      %v5130 = vadd.f32 0.0, %v5129
      %v5131 = vpop.f32.mrb[0].mxu0
      %5132 = vmatprep.mubr.f32.mxu0 0.0
      %5133 = vmatmul.mubr.f32.gmra.mrb[0].mxu0 %v4921
      %v5134 = vpop.f32.mrb[0].mxu0
      %v5135 = vadd.f32 0.0, %v5134
      %v5136 = vpop.f32.mrb[0].mxu0
      %5137 = vmatprep.mubr.f32.mxu0 0.0
      %5138 = vmatmul.mubr.f32.gmra.mrb[0].mxu0 %v4924
      %v5139 = vpop.f32.mrb[0].mxu0
      %v5140 = vadd.f32 0.0, %v5139
      %v5141 = vpop.f32.mrb[0].mxu0
      %5142 = vmatprep.mubr.f32.mxu0 0.0
      %5143 = vmatmul.mubr.f32.gmra.mrb[0].mxu0 %v4927
      %v5144 = vpop.f32.mrb[0].mxu0
      %v5145 = vadd.f32 0.0, %v5144
      %v5146 = vpop.f32.mrb[0].mxu0
      %5147 = vmatprep.mubr.f32.mxu0 0.0
      %5148 = vmatmul.mubr.f32.gmra.mrb[0].mxu0 %v4930
      %v5149 = vpop.f32.mrb[0].mxu0
      %v5150 = vadd.f32 0.0, %v5149
      %v5151 = vpop.f32.mrb[0].mxu0
      %5152 = vmatprep.mubr.f32.mxu0 0.0
      %5153 = vmatmul.mubr.f32.gmra.mrb[0].mxu0 %v4933
      %v5154 = vpop.f32.mrb[0].mxu0
      %v5155 = vadd.f32 0.0, %v5154
      %v5156 = vpop.f32.mrb[0].mxu0
      %5157 = vmatprep.mubr.f32.mxu0 0.0
      %5158 = vmatmul.mubr.f32.gmra.mrb[0].mxu0 %v4936
      %v5159 = vpop.f32.mrb[0].mxu0
      %v5160 = vadd.f32 0.0, %v5159
      %v5161 = vpop.f32.mrb[0].mxu0
      %5162 = vdwg.mxu0
      %v5163 = vadd.f32 %v4650, %v5005
      %v5164 = vadd.f32 %v4655, %v5010
      %v5165 = vadd.f32 %v4660, %v5015
      %v5166 = vadd.f32 %v4665, %v5020
      %v5167 = vadd.f32 %v4670, %v5025
      %v5168 = vadd.f32 %v4675, %v5030
      %v5169 = vadd.f32 %v4680, %v5035
      %v5170 = vadd.f32 %v4685, %v5040
      %v5171 = vadd.f32 %v4690, %v5045
      %v5172 = vadd.f32 %v4695, %v5050
      %v5173 = vadd.f32 %v4700, %v5055
      %v5174 = vadd.f32 %v4705, %v5060
      %v5175 = vadd.f32 %v4710, %v5065
      %v5176 = vadd.f32 %v4715, %v5070
      %v5177 = vadd.f32 %v4720, %v5075
      %v5178 = vadd.f32 %v4725, %v5080
      %v5179 = vadd.f32 %v4730, %v5085
      %v5180 = vadd.f32 %v4735, %v5090
      %v5181 = vadd.f32 %v4740, %v5095
      %v5182 = vadd.f32 %v4745, %v5100
      %v5183 = vadd.f32 %v4750, %v5105
      %v5184 = vadd.f32 %v4755, %v5110
      %v5185 = vadd.f32 %v4760, %v5115
      %v5186 = vadd.f32 %v4765, %v5120
      %v5187 = vadd.f32 %v4770, %v5125
      %v5188 = vadd.f32 %v4775, %v5130
      %v5189 = vadd.f32 %v4780, %v5135
      %v5190 = vadd.f32 %v4785, %v5140
      %v5191 = vadd.f32 %v4790, %v5145
      %v5192 = vadd.f32 %v4795, %v5150
      %v5193 = vadd.f32 %v4800, %v5155
      %v5194 = vadd.f32 %v4805, %v5160
      %v5195 = vld [vmem:[%s4066] sm:$0xff]
      %v5196 = vld [vmem:[%s4066 + $0x8] sm:$0xff]
      %v5197 = vld [vmem:[%s4066 + $0x18] sm:$0xff]
      %v5198 = vld [vmem:[%s4066 + $0x20] sm:$0xff]
      %v5199 = vld [vmem:[%s4066 + $0x30] sm:$0xff]
      %v5200 = vld [vmem:[%s4066 + $0x38] sm:$0xff]
      %v5201 = vld [vmem:[%s4066 + $0x48] sm:$0xff]
      %v5202 = vld [vmem:[%s4066 + $0x50] sm:$0xff]
      %v5203 = vld [vmem:[%s4066 + $0x60] sm:$0xff]
      %v5204 = vld [vmem:[%s4066 + $0x68] sm:$0xff]
      %v5205 = vld [vmem:[%s4066 + $0x78] sm:$0xff]
      %v5206 = vld [vmem:[%s4066 + $0x80] sm:$0xff]
      %v5207 = vld [vmem:[%s4066 + $0x90] sm:$0xff]
      %v5208 = vld [vmem:[%s4066 + $0x98] sm:$0xff]
      %v5209 = vld [vmem:[%s4066 + $0xa8] sm:$0xff]
      %v5210 = vld [vmem:[%s4066 + $0xb0] sm:$0xff]
      %v5211 = vld [vmem:[%s4066 + $0xc0] sm:$0xff]
      %v5212 = vld [vmem:[%s4066 + $0xc8] sm:$0xff]
      %v5213 = vld [vmem:[%s4066 + $0xd8] sm:$0xff]
      %v5214 = vld [vmem:[%s4066 + $0xe0] sm:$0xff]
      %v5215 = vld [vmem:[%s4066 + $0xf0] sm:$0xff]
      %v5216 = vld [vmem:[%s4066 + $0xf8] sm:$0xff]
      %v5217 = vld [vmem:[%s4066 + $0x108] sm:$0xff]
      %v5218 = vld [vmem:[%s4066 + $0x110] sm:$0xff]
      %v5219 = vld [vmem:[%s4066 + $0x120] sm:$0xff]
      %v5220 = vld [vmem:[%s4066 + $0x128] sm:$0xff]
      %v5221 = vld [vmem:[%s4066 + $0x138] sm:$0xff]
      %v5222 = vld [vmem:[%s4066 + $0x140] sm:$0xff]
      %v5223 = vld [vmem:[%s4066 + $0x150] sm:$0xff]
      %v5224 = vld [vmem:[%s4066 + $0x158] sm:$0xff]
      %v5225 = vld [vmem:[%s4066 + $0x168] sm:$0xff]
      %v5226 = vld [vmem:[%s4066 + $0x170] sm:$0xff]
      %s5227 = scalar_lea.vmem %s2, 24
      %v5228 = vld [vmem:[%s5227] sm:$0xff]
      %v5230 = vsel %vm3739, %v5195, 0
      %v5233 = vsel %vm3739, %v5196, 0
      %v5236 = vsel %vm3739, %v5197, 0
      %v5239 = vsel %vm3739, %v5198, 0
      %v5242 = vsel %vm3739, %v5199, 0
      %v5245 = vsel %vm3739, %v5200, 0
      %v5248 = vsel %vm3739, %v5201, 0
      %v5251 = vsel %vm3739, %v5202, 0
      %v5254 = vsel %vm3739, %v5203, 0
      %v5257 = vsel %vm3739, %v5204, 0
      %v5260 = vsel %vm3739, %v5205, 0
      %v5263 = vsel %vm3739, %v5206, 0
      %v5266 = vsel %vm3739, %v5207, 0
      %v5269 = vsel %vm3739, %v5208, 0
      %v5272 = vsel %vm3739, %v5209, 0
      %v5275 = vsel %vm3739, %v5210, 0
      %v5278 = vsel %vm3739, %v5211, 0
      %v5281 = vsel %vm3739, %v5212, 0
      %v5284 = vsel %vm3739, %v5213, 0
      %v5287 = vsel %vm3739, %v5214, 0
      %v5290 = vsel %vm3739, %v5215, 0
      %v5293 = vsel %vm3739, %v5216, 0
      %v5296 = vsel %vm3739, %v5217, 0
      %v5299 = vsel %vm3739, %v5218, 0
      %v5302 = vsel %vm3739, %v5219, 0
      %v5305 = vsel %vm3739, %v5220, 0
      %v5308 = vsel %vm3739, %v5221, 0
      %v5311 = vsel %vm3739, %v5222, 0
      %v5314 = vsel %vm3739, %v5223, 0
      %v5317 = vsel %vm3739, %v5224, 0
      %v5320 = vsel %vm3739, %v5225, 0
      %v5323 = vsel %vm3739, %v5226, 0
      %5325 = vmatprep.subr.mxu0 0.0
      %5326 = vmatpush1.msra.mxu0 %v5228
      %5327 = vmatprep.subr.mxu0 0.0
      %5328 = vmatpush1.msra.mxu0 0.0
      %5329 = vmatprep.subr.mxu0 0.0
      %5330 = vmatpush1.msra.mxu0 0.0
      %5331 = vmatprep.subr.mxu0 0.0
      %5332 = vmatpush1.msra.mxu0 0.0
      %5333 = vmatprep.subr.mxu0 0.0
      %5334 = vmatpush1.msra.mxu0 0.0
      %5335 = vmatprep.subr.mxu0 0.0
      %5336 = vmatpush1.msra.mxu0 0.0
      %5337 = vmatprep.subr.mxu0 0.0
      %5338 = vmatpush1.msra.mxu0 0.0
      %5339 = vmatprep.subr.mxu0 0.0
      %5340 = vmatpush1.msra.mxu0 0.0
      %5341 = vmatprep.subr.mxu0 0.0
      %5342 = vmatpush1.msra.mxu0 0.0
      %5343 = vmatprep.subr.mxu0 0.0
      %5344 = vmatpush1.msra.mxu0 0.0
      %5345 = vmatprep.subr.mxu0 0.0
      %5346 = vmatpush1.msra.mxu0 0.0
      %5347 = vmatprep.subr.mxu0 0.0
      %5348 = vmatpush1.msra.mxu0 0.0
      %5349 = vmatprep.subr.mxu0 0.0
      %5350 = vmatpush1.msra.mxu0 0.0
      %5351 = vmatprep.subr.mxu0 0.0
      %5352 = vmatpush1.msra.mxu0 0.0
      %5353 = vmatprep.subr.mxu0 0.0
      %5354 = vmatpush1.msra.mxu0 0.0
      %5355 = vmatprep.subr.mxu0 0.0
      %5356 = vmatpush1.msra.mxu0 0.0
      %5357 = vmatprep.subr.mxu0 0.0
      %5358 = vmatpush1.msra.mxu0 0.0
      %5359 = vmatprep.subr.mxu0 0.0
      %5360 = vmatpush1.msra.mxu0 0.0
      %5361 = vmatprep.subr.mxu0 0.0
      %5362 = vmatpush1.msra.mxu0 0.0
      %5363 = vmatprep.subr.mxu0 0.0
      %5364 = vmatpush1.msra.mxu0 0.0
      %5365 = vmatprep.subr.mxu0 0.0
      %5366 = vmatpush1.msra.mxu0 0.0
      %5367 = vmatprep.subr.mxu0 0.0
      %5368 = vmatpush1.msra.mxu0 0.0
      %5369 = vmatprep.subr.mxu0 0.0
      %5370 = vmatpush1.msra.mxu0 0.0
      %5371 = vmatprep.subr.mxu0 0.0
      %5372 = vmatpush1.msra.mxu0 0.0
      %5373 = vmatprep.subr.mxu0 0.0
      %5374 = vmatpush1.msra.mxu0 0.0
      %5375 = vmatprep.subr.mxu0 0.0
      %5376 = vmatpush1.msra.mxu0 0.0
      %5377 = vmatprep.subr.mxu0 0.0
      %5378 = vmatpush1.msra.mxu0 0.0
      %5379 = vmatprep.subr.mxu0 0.0
      %5380 = vmatpush1.msra.mxu0 0.0
      %5381 = vmatprep.subr.mxu0 0.0
      %5382 = vmatpush1.msra.mxu0 0.0
      %5383 = vmatprep.subr.mxu0 0.0
      %5384 = vmatpush1.msra.mxu0 0.0
      %5385 = vmatprep.subr.mxu0 0.0
      %5386 = vmatpush1.msra.mxu0 0.0
      %5387 = vmatprep.subr.mxu0 0.0
      %5388 = vmatpush1.msra.mxu0 0.0
      %5389 = vmatprep.mubr.f32.mxu0 0.0
      %5390 = vmatmul.mubr.f32.gmra.mrb[0].mxu0 %v5230
      %v5391 = vpop.f32.mrb[0].mxu0
      %v5392 = vadd.f32 0.0, %v5391
      %v5393 = vpop.f32.mrb[0].mxu0
      %5394 = vmatprep.mubr.f32.mxu0 0.0
      %5395 = vmatmul.mubr.f32.gmra.mrb[0].mxu0 %v5233
      %v5396 = vpop.f32.mrb[0].mxu0
      %v5397 = vadd.f32 0.0, %v5396
      %v5398 = vpop.f32.mrb[0].mxu0
      %5399 = vmatprep.mubr.f32.mxu0 0.0
      %5400 = vmatmul.mubr.f32.gmra.mrb[0].mxu0 %v5236
      %v5401 = vpop.f32.mrb[0].mxu0
      %v5402 = vadd.f32 0.0, %v5401
      %v5403 = vpop.f32.mrb[0].mxu0
      %5404 = vmatprep.mubr.f32.mxu0 0.0
      %5405 = vmatmul.mubr.f32.gmra.mrb[0].mxu0 %v5239
      %v5406 = vpop.f32.mrb[0].mxu0
      %v5407 = vadd.f32 0.0, %v5406
      %v5408 = vpop.f32.mrb[0].mxu0
      %5409 = vmatprep.mubr.f32.mxu0 0.0
      %5410 = vmatmul.mubr.f32.gmra.mrb[0].mxu0 %v5242
      %v5411 = vpop.f32.mrb[0].mxu0
      %v5412 = vadd.f32 0.0, %v5411
      %v5413 = vpop.f32.mrb[0].mxu0
      %5414 = vmatprep.mubr.f32.mxu0 0.0
      %5415 = vmatmul.mubr.f32.gmra.mrb[0].mxu0 %v5245
      %v5416 = vpop.f32.mrb[0].mxu0
      %v5417 = vadd.f32 0.0, %v5416
      %v5418 = vpop.f32.mrb[0].mxu0
      %5419 = vmatprep.mubr.f32.mxu0 0.0
      %5420 = vmatmul.mubr.f32.gmra.mrb[0].mxu0 %v5248
      %v5421 = vpop.f32.mrb[0].mxu0
      %v5422 = vadd.f32 0.0, %v5421
      %v5423 = vpop.f32.mrb[0].mxu0
      %5424 = vmatprep.mubr.f32.mxu0 0.0
      %5425 = vmatmul.mubr.f32.gmra.mrb[0].mxu0 %v5251
      %v5426 = vpop.f32.mrb[0].mxu0
      %v5427 = vadd.f32 0.0, %v5426
      %v5428 = vpop.f32.mrb[0].mxu0
      %5429 = vmatprep.mubr.f32.mxu0 0.0
      %5430 = vmatmul.mubr.f32.gmra.mrb[0].mxu0 %v5254
      %v5431 = vpop.f32.mrb[0].mxu0
      %v5432 = vadd.f32 0.0, %v5431
      %v5433 = vpop.f32.mrb[0].mxu0
      %5434 = vmatprep.mubr.f32.mxu0 0.0
      %5435 = vmatmul.mubr.f32.gmra.mrb[0].mxu0 %v5257
      %v5436 = vpop.f32.mrb[0].mxu0
      %v5437 = vadd.f32 0.0, %v5436
      %v5438 = vpop.f32.mrb[0].mxu0
      %5439 = vmatprep.mubr.f32.mxu0 0.0
      %5440 = vmatmul.mubr.f32.gmra.mrb[0].mxu0 %v5260
      %v5441 = vpop.f32.mrb[0].mxu0
      %v5442 = vadd.f32 0.0, %v5441
      %v5443 = vpop.f32.mrb[0].mxu0
      %5444 = vmatprep.mubr.f32.mxu0 0.0
      %5445 = vmatmul.mubr.f32.gmra.mrb[0].mxu0 %v5263
      %v5446 = vpop.f32.mrb[0].mxu0
      %v5447 = vadd.f32 0.0, %v5446
      %v5448 = vpop.f32.mrb[0].mxu0
      %5449 = vmatprep.mubr.f32.mxu0 0.0
      %5450 = vmatmul.mubr.f32.gmra.mrb[0].mxu0 %v5266
      %v5451 = vpop.f32.mrb[0].mxu0
      %v5452 = vadd.f32 0.0, %v5451
      %v5453 = vpop.f32.mrb[0].mxu0
      %5454 = vmatprep.mubr.f32.mxu0 0.0
      %5455 = vmatmul.mubr.f32.gmra.mrb[0].mxu0 %v5269
      %v5456 = vpop.f32.mrb[0].mxu0
      %v5457 = vadd.f32 0.0, %v5456
      %v5458 = vpop.f32.mrb[0].mxu0
      %5459 = vmatprep.mubr.f32.mxu0 0.0
      %5460 = vmatmul.mubr.f32.gmra.mrb[0].mxu0 %v5272
      %v5461 = vpop.f32.mrb[0].mxu0
      %v5462 = vadd.f32 0.0, %v5461
      %v5463 = vpop.f32.mrb[0].mxu0
      %5464 = vmatprep.mubr.f32.mxu0 0.0
      %5465 = vmatmul.mubr.f32.gmra.mrb[0].mxu0 %v5275
      %v5466 = vpop.f32.mrb[0].mxu0
      %v5467 = vadd.f32 0.0, %v5466
      %v5468 = vpop.f32.mrb[0].mxu0
      %5469 = vmatprep.mubr.f32.mxu0 0.0
      %5470 = vmatmul.mubr.f32.gmra.mrb[0].mxu0 %v5278
      %v5471 = vpop.f32.mrb[0].mxu0
      %v5472 = vadd.f32 0.0, %v5471
      %v5473 = vpop.f32.mrb[0].mxu0
      %5474 = vmatprep.mubr.f32.mxu0 0.0
      %5475 = vmatmul.mubr.f32.gmra.mrb[0].mxu0 %v5281
      %v5476 = vpop.f32.mrb[0].mxu0
      %v5477 = vadd.f32 0.0, %v5476
      %v5478 = vpop.f32.mrb[0].mxu0
      %5479 = vmatprep.mubr.f32.mxu0 0.0
      %5480 = vmatmul.mubr.f32.gmra.mrb[0].mxu0 %v5284
      %v5481 = vpop.f32.mrb[0].mxu0
      %v5482 = vadd.f32 0.0, %v5481
      %v5483 = vpop.f32.mrb[0].mxu0
      %5484 = vmatprep.mubr.f32.mxu0 0.0
      %5485 = vmatmul.mubr.f32.gmra.mrb[0].mxu0 %v5287
      %v5486 = vpop.f32.mrb[0].mxu0
      %v5487 = vadd.f32 0.0, %v5486
      %v5488 = vpop.f32.mrb[0].mxu0
      %5489 = vmatprep.mubr.f32.mxu0 0.0
      %5490 = vmatmul.mubr.f32.gmra.mrb[0].mxu0 %v5290
      %v5491 = vpop.f32.mrb[0].mxu0
      %v5492 = vadd.f32 0.0, %v5491
      %v5493 = vpop.f32.mrb[0].mxu0
      %5494 = vmatprep.mubr.f32.mxu0 0.0
      %5495 = vmatmul.mubr.f32.gmra.mrb[0].mxu0 %v5293
      %v5496 = vpop.f32.mrb[0].mxu0
      %v5497 = vadd.f32 0.0, %v5496
      %v5498 = vpop.f32.mrb[0].mxu0
      %5499 = vmatprep.mubr.f32.mxu0 0.0
      %5500 = vmatmul.mubr.f32.gmra.mrb[0].mxu0 %v5296
      %v5501 = vpop.f32.mrb[0].mxu0
      %v5502 = vadd.f32 0.0, %v5501
      %v5503 = vpop.f32.mrb[0].mxu0
      %5504 = vmatprep.mubr.f32.mxu0 0.0
      %5505 = vmatmul.mubr.f32.gmra.mrb[0].mxu0 %v5299
      %v5506 = vpop.f32.mrb[0].mxu0
      %v5507 = vadd.f32 0.0, %v5506
      %v5508 = vpop.f32.mrb[0].mxu0
      %5509 = vmatprep.mubr.f32.mxu0 0.0
      %5510 = vmatmul.mubr.f32.gmra.mrb[0].mxu0 %v5302
      %v5511 = vpop.f32.mrb[0].mxu0
      %v5512 = vadd.f32 0.0, %v5511
      %v5513 = vpop.f32.mrb[0].mxu0
      %5514 = vmatprep.mubr.f32.mxu0 0.0
      %5515 = vmatmul.mubr.f32.gmra.mrb[0].mxu0 %v5305
      %v5516 = vpop.f32.mrb[0].mxu0
      %v5517 = vadd.f32 0.0, %v5516
      %v5518 = vpop.f32.mrb[0].mxu0
      %5519 = vmatprep.mubr.f32.mxu0 0.0
      %5520 = vmatmul.mubr.f32.gmra.mrb[0].mxu0 %v5308
      %v5521 = vpop.f32.mrb[0].mxu0
      %v5522 = vadd.f32 0.0, %v5521
      %v5523 = vpop.f32.mrb[0].mxu0
      %5524 = vmatprep.mubr.f32.mxu0 0.0
      %5525 = vmatmul.mubr.f32.gmra.mrb[0].mxu0 %v5311
      %v5526 = vpop.f32.mrb[0].mxu0
      %v5527 = vadd.f32 0.0, %v5526
      %v5528 = vpop.f32.mrb[0].mxu0
      %5529 = vmatprep.mubr.f32.mxu0 0.0
      %5530 = vmatmul.mubr.f32.gmra.mrb[0].mxu0 %v5314
      %v5531 = vpop.f32.mrb[0].mxu0
      %v5532 = vadd.f32 0.0, %v5531
      %v5533 = vpop.f32.mrb[0].mxu0
      %5534 = vmatprep.mubr.f32.mxu0 0.0
      %5535 = vmatmul.mubr.f32.gmra.mrb[0].mxu0 %v5317
      %v5536 = vpop.f32.mrb[0].mxu0
      %v5537 = vadd.f32 0.0, %v5536
      %v5538 = vpop.f32.mrb[0].mxu0
      %5539 = vmatprep.mubr.f32.mxu0 0.0
      %5540 = vmatmul.mubr.f32.gmra.mrb[0].mxu0 %v5320
      %v5541 = vpop.f32.mrb[0].mxu0
      %v5542 = vadd.f32 0.0, %v5541
      %v5543 = vpop.f32.mrb[0].mxu0
      %5544 = vmatprep.mubr.f32.mxu0 0.0
      %5545 = vmatmul.mubr.f32.gmra.mrb[0].mxu0 %v5323
      %v5546 = vpop.f32.mrb[0].mxu0
      %v5547 = vadd.f32 0.0, %v5546
      %v5548 = vpop.f32.mrb[0].mxu0
      %5549 = vdwg.mxu0
      %v5550 = vadd.f32 %v5163, %v5392
      %v5551 = vadd.f32 %v5164, %v5397
      %v5552 = vadd.f32 %v5165, %v5402
      %v5553 = vadd.f32 %v5166, %v5407
      %v5554 = vadd.f32 %v5167, %v5412
      %v5555 = vadd.f32 %v5168, %v5417
      %v5556 = vadd.f32 %v5169, %v5422
      %v5557 = vadd.f32 %v5170, %v5427
      %v5558 = vadd.f32 %v5171, %v5432
      %v5559 = vadd.f32 %v5172, %v5437
      %v5560 = vadd.f32 %v5173, %v5442
      %v5561 = vadd.f32 %v5174, %v5447
      %v5562 = vadd.f32 %v5175, %v5452
      %v5563 = vadd.f32 %v5176, %v5457
      %v5564 = vadd.f32 %v5177, %v5462
      %v5565 = vadd.f32 %v5178, %v5467
      %v5566 = vadd.f32 %v5179, %v5472
      %v5567 = vadd.f32 %v5180, %v5477
      %v5568 = vadd.f32 %v5181, %v5482
      %v5569 = vadd.f32 %v5182, %v5487
      %v5570 = vadd.f32 %v5183, %v5492
      %v5571 = vadd.f32 %v5184, %v5497
      %v5572 = vadd.f32 %v5185, %v5502
      %v5573 = vadd.f32 %v5186, %v5507
      %v5574 = vadd.f32 %v5187, %v5512
      %v5575 = vadd.f32 %v5188, %v5517
      %v5576 = vadd.f32 %v5189, %v5522
      %v5577 = vadd.f32 %v5190, %v5527
      %v5578 = vadd.f32 %v5191, %v5532
      %v5579 = vadd.f32 %v5192, %v5537
      %v5580 = vadd.f32 %v5193, %v5542
      %v5581 = vadd.f32 %v5194, %v5547
      %v5582 = vld [vmem:[%s4066 + $0x1] sm:$0xff]
      %v5583 = vld [vmem:[%s4066 + $0x9] sm:$0xff]
      %v5584 = vld [vmem:[%s4066 + $0x19] sm:$0xff]
      %v5585 = vld [vmem:[%s4066 + $0x21] sm:$0xff]
      %v5586 = vld [vmem:[%s4066 + $0x31] sm:$0xff]
      %v5587 = vld [vmem:[%s4066 + $0x39] sm:$0xff]
      %v5588 = vld [vmem:[%s4066 + $0x49] sm:$0xff]
      %v5589 = vld [vmem:[%s4066 + $0x51] sm:$0xff]
      %v5590 = vld [vmem:[%s4066 + $0x61] sm:$0xff]
      %v5591 = vld [vmem:[%s4066 + $0x69] sm:$0xff]
      %v5592 = vld [vmem:[%s4066 + $0x79] sm:$0xff]
      %v5593 = vld [vmem:[%s4066 + $0x81] sm:$0xff]
      %v5594 = vld [vmem:[%s4066 + $0x91] sm:$0xff]
      %v5595 = vld [vmem:[%s4066 + $0x99] sm:$0xff]
      %v5596 = vld [vmem:[%s4066 + $0xa9] sm:$0xff]
      %v5597 = vld [vmem:[%s4066 + $0xb1] sm:$0xff]
      %v5598 = vld [vmem:[%s4066 + $0xc1] sm:$0xff]
      %v5599 = vld [vmem:[%s4066 + $0xc9] sm:$0xff]
      %v5600 = vld [vmem:[%s4066 + $0xd9] sm:$0xff]
      %v5601 = vld [vmem:[%s4066 + $0xe1] sm:$0xff]
      %v5602 = vld [vmem:[%s4066 + $0xf1] sm:$0xff]
      %v5603 = vld [vmem:[%s4066 + $0xf9] sm:$0xff]
      %v5604 = vld [vmem:[%s4066 + $0x109] sm:$0xff]
      %v5605 = vld [vmem:[%s4066 + $0x111] sm:$0xff]
      %v5606 = vld [vmem:[%s4066 + $0x121] sm:$0xff]
      %v5607 = vld [vmem:[%s4066 + $0x129] sm:$0xff]
      %v5608 = vld [vmem:[%s4066 + $0x139] sm:$0xff]
      %v5609 = vld [vmem:[%s4066 + $0x141] sm:$0xff]
      %v5610 = vld [vmem:[%s4066 + $0x151] sm:$0xff]
      %v5611 = vld [vmem:[%s4066 + $0x159] sm:$0xff]
      %v5612 = vld [vmem:[%s4066 + $0x169] sm:$0xff]
      %v5613 = vld [vmem:[%s4066 + $0x171] sm:$0xff]
      %s5614 = scalar_lea.vmem %s2, 32
      %v5615 = vld [vmem:[%s5614] sm:$0xff]
      %v5617 = vsel %vm3739, %v5582, 0
      %v5620 = vsel %vm3739, %v5583, 0
      %v5623 = vsel %vm3739, %v5584, 0
      %v5626 = vsel %vm3739, %v5585, 0
      %v5629 = vsel %vm3739, %v5586, 0
      %v5632 = vsel %vm3739, %v5587, 0
      %v5635 = vsel %vm3739, %v5588, 0
      %v5638 = vsel %vm3739, %v5589, 0
      %v5641 = vsel %vm3739, %v5590, 0
      %v5644 = vsel %vm3739, %v5591, 0
      %v5647 = vsel %vm3739, %v5592, 0
      %v5650 = vsel %vm3739, %v5593, 0
      %v5653 = vsel %vm3739, %v5594, 0
      %v5656 = vsel %vm3739, %v5595, 0
      %v5659 = vsel %vm3739, %v5596, 0
      %v5662 = vsel %vm3739, %v5597, 0
      %v5665 = vsel %vm3739, %v5598, 0
      %v5668 = vsel %vm3739, %v5599, 0
      %v5671 = vsel %vm3739, %v5600, 0
      %v5674 = vsel %vm3739, %v5601, 0
      %v5677 = vsel %vm3739, %v5602, 0
      %v5680 = vsel %vm3739, %v5603, 0
      %v5683 = vsel %vm3739, %v5604, 0
      %v5686 = vsel %vm3739, %v5605, 0
      %v5689 = vsel %vm3739, %v5606, 0
      %v5692 = vsel %vm3739, %v5607, 0
      %v5695 = vsel %vm3739, %v5608, 0
      %v5698 = vsel %vm3739, %v5609, 0
      %v5701 = vsel %vm3739, %v5610, 0
      %v5704 = vsel %vm3739, %v5611, 0
      %v5707 = vsel %vm3739, %v5612, 0
      %v5710 = vsel %vm3739, %v5613, 0
      %5712 = vmatprep.subr.mxu0 0.0
      %5713 = vmatpush1.msra.mxu0 %v5615
      %5714 = vmatprep.subr.mxu0 0.0
      %5715 = vmatpush1.msra.mxu0 0.0
      %5716 = vmatprep.subr.mxu0 0.0
      %5717 = vmatpush1.msra.mxu0 0.0
      %5718 = vmatprep.subr.mxu0 0.0
      %5719 = vmatpush1.msra.mxu0 0.0
      %5720 = vmatprep.subr.mxu0 0.0
      %5721 = vmatpush1.msra.mxu0 0.0
      %5722 = vmatprep.subr.mxu0 0.0
      %5723 = vmatpush1.msra.mxu0 0.0
      %5724 = vmatprep.subr.mxu0 0.0
      %5725 = vmatpush1.msra.mxu0 0.0
      %5726 = vmatprep.subr.mxu0 0.0
      %5727 = vmatpush1.msra.mxu0 0.0
      %5728 = vmatprep.subr.mxu0 0.0
      %5729 = vmatpush1.msra.mxu0 0.0
      %5730 = vmatprep.subr.mxu0 0.0
      %5731 = vmatpush1.msra.mxu0 0.0
      %5732 = vmatprep.subr.mxu0 0.0
      %5733 = vmatpush1.msra.mxu0 0.0
      %5734 = vmatprep.subr.mxu0 0.0
      %5735 = vmatpush1.msra.mxu0 0.0
      %5736 = vmatprep.subr.mxu0 0.0
      %5737 = vmatpush1.msra.mxu0 0.0
      %5738 = vmatprep.subr.mxu0 0.0
      %5739 = vmatpush1.msra.mxu0 0.0
      %5740 = vmatprep.subr.mxu0 0.0
      %5741 = vmatpush1.msra.mxu0 0.0
      %5742 = vmatprep.subr.mxu0 0.0
      %5743 = vmatpush1.msra.mxu0 0.0
      %5744 = vmatprep.subr.mxu0 0.0
      %5745 = vmatpush1.msra.mxu0 0.0
      %5746 = vmatprep.subr.mxu0 0.0
      %5747 = vmatpush1.msra.mxu0 0.0
      %5748 = vmatprep.subr.mxu0 0.0
      %5749 = vmatpush1.msra.mxu0 0.0
      %5750 = vmatprep.subr.mxu0 0.0
      %5751 = vmatpush1.msra.mxu0 0.0
      %5752 = vmatprep.subr.mxu0 0.0
      %5753 = vmatpush1.msra.mxu0 0.0
      %5754 = vmatprep.subr.mxu0 0.0
      %5755 = vmatpush1.msra.mxu0 0.0
      %5756 = vmatprep.subr.mxu0 0.0
      %5757 = vmatpush1.msra.mxu0 0.0
      %5758 = vmatprep.subr.mxu0 0.0
      %5759 = vmatpush1.msra.mxu0 0.0
      %5760 = vmatprep.subr.mxu0 0.0
      %5761 = vmatpush1.msra.mxu0 0.0
      %5762 = vmatprep.subr.mxu0 0.0
      %5763 = vmatpush1.msra.mxu0 0.0
      %5764 = vmatprep.subr.mxu0 0.0
      %5765 = vmatpush1.msra.mxu0 0.0
      %5766 = vmatprep.subr.mxu0 0.0
      %5767 = vmatpush1.msra.mxu0 0.0
      %5768 = vmatprep.subr.mxu0 0.0
      %5769 = vmatpush1.msra.mxu0 0.0
      %5770 = vmatprep.subr.mxu0 0.0
      %5771 = vmatpush1.msra.mxu0 0.0
      %5772 = vmatprep.subr.mxu0 0.0
      %5773 = vmatpush1.msra.mxu0 0.0
      %5774 = vmatprep.subr.mxu0 0.0
      %5775 = vmatpush1.msra.mxu0 0.0
      %5776 = vmatprep.mubr.f32.mxu0 0.0
      %5777 = vmatmul.mubr.f32.gmra.mrb[0].mxu0 %v5617
      %v5778 = vpop.f32.mrb[0].mxu0
      %v5779 = vadd.f32 0.0, %v5778
      %v5780 = vpop.f32.mrb[0].mxu0
      %5781 = vmatprep.mubr.f32.mxu0 0.0
      %5782 = vmatmul.mubr.f32.gmra.mrb[0].mxu0 %v5620
      %v5783 = vpop.f32.mrb[0].mxu0
      %v5784 = vadd.f32 0.0, %v5783
      %v5785 = vpop.f32.mrb[0].mxu0
      %5786 = vmatprep.mubr.f32.mxu0 0.0
      %5787 = vmatmul.mubr.f32.gmra.mrb[0].mxu0 %v5623
      %v5788 = vpop.f32.mrb[0].mxu0
      %v5789 = vadd.f32 0.0, %v5788
      %v5790 = vpop.f32.mrb[0].mxu0
      %5791 = vmatprep.mubr.f32.mxu0 0.0
      %5792 = vmatmul.mubr.f32.gmra.mrb[0].mxu0 %v5626
      %v5793 = vpop.f32.mrb[0].mxu0
      %v5794 = vadd.f32 0.0, %v5793
      %v5795 = vpop.f32.mrb[0].mxu0
      %5796 = vmatprep.mubr.f32.mxu0 0.0
      %5797 = vmatmul.mubr.f32.gmra.mrb[0].mxu0 %v5629
      %v5798 = vpop.f32.mrb[0].mxu0
      %v5799 = vadd.f32 0.0, %v5798
      %v5800 = vpop.f32.mrb[0].mxu0
      %5801 = vmatprep.mubr.f32.mxu0 0.0
      %5802 = vmatmul.mubr.f32.gmra.mrb[0].mxu0 %v5632
      %v5803 = vpop.f32.mrb[0].mxu0
      %v5804 = vadd.f32 0.0, %v5803
      %v5805 = vpop.f32.mrb[0].mxu0
      %5806 = vmatprep.mubr.f32.mxu0 0.0
      %5807 = vmatmul.mubr.f32.gmra.mrb[0].mxu0 %v5635
      %v5808 = vpop.f32.mrb[0].mxu0
      %v5809 = vadd.f32 0.0, %v5808
      %v5810 = vpop.f32.mrb[0].mxu0
      %5811 = vmatprep.mubr.f32.mxu0 0.0
      %5812 = vmatmul.mubr.f32.gmra.mrb[0].mxu0 %v5638
      %v5813 = vpop.f32.mrb[0].mxu0
      %v5814 = vadd.f32 0.0, %v5813
      %v5815 = vpop.f32.mrb[0].mxu0
      %5816 = vmatprep.mubr.f32.mxu0 0.0
      %5817 = vmatmul.mubr.f32.gmra.mrb[0].mxu0 %v5641
      %v5818 = vpop.f32.mrb[0].mxu0
      %v5819 = vadd.f32 0.0, %v5818
      %v5820 = vpop.f32.mrb[0].mxu0
      %5821 = vmatprep.mubr.f32.mxu0 0.0
      %5822 = vmatmul.mubr.f32.gmra.mrb[0].mxu0 %v5644
      %v5823 = vpop.f32.mrb[0].mxu0
      %v5824 = vadd.f32 0.0, %v5823
      %v5825 = vpop.f32.mrb[0].mxu0
      %5826 = vmatprep.mubr.f32.mxu0 0.0
      %5827 = vmatmul.mubr.f32.gmra.mrb[0].mxu0 %v5647
      %v5828 = vpop.f32.mrb[0].mxu0
      %v5829 = vadd.f32 0.0, %v5828
      %v5830 = vpop.f32.mrb[0].mxu0
      %5831 = vmatprep.mubr.f32.mxu0 0.0
      %5832 = vmatmul.mubr.f32.gmra.mrb[0].mxu0 %v5650
      %v5833 = vpop.f32.mrb[0].mxu0
      %v5834 = vadd.f32 0.0, %v5833
      %v5835 = vpop.f32.mrb[0].mxu0
      %5836 = vmatprep.mubr.f32.mxu0 0.0
      %5837 = vmatmul.mubr.f32.gmra.mrb[0].mxu0 %v5653
      %v5838 = vpop.f32.mrb[0].mxu0
      %v5839 = vadd.f32 0.0, %v5838
      %v5840 = vpop.f32.mrb[0].mxu0
      %5841 = vmatprep.mubr.f32.mxu0 0.0
      %5842 = vmatmul.mubr.f32.gmra.mrb[0].mxu0 %v5656
      %v5843 = vpop.f32.mrb[0].mxu0
      %v5844 = vadd.f32 0.0, %v5843
      %v5845 = vpop.f32.mrb[0].mxu0
      %5846 = vmatprep.mubr.f32.mxu0 0.0
      %5847 = vmatmul.mubr.f32.gmra.mrb[0].mxu0 %v5659
      %v5848 = vpop.f32.mrb[0].mxu0
      %v5849 = vadd.f32 0.0, %v5848
      %v5850 = vpop.f32.mrb[0].mxu0
      %5851 = vmatprep.mubr.f32.mxu0 0.0
      %5852 = vmatmul.mubr.f32.gmra.mrb[0].mxu0 %v5662
      %v5853 = vpop.f32.mrb[0].mxu0
      %v5854 = vadd.f32 0.0, %v5853
      %v5855 = vpop.f32.mrb[0].mxu0
      %5856 = vmatprep.mubr.f32.mxu0 0.0
      %5857 = vmatmul.mubr.f32.gmra.mrb[0].mxu0 %v5665
      %v5858 = vpop.f32.mrb[0].mxu0
      %v5859 = vadd.f32 0.0, %v5858
      %v5860 = vpop.f32.mrb[0].mxu0
      %5861 = vmatprep.mubr.f32.mxu0 0.0
      %5862 = vmatmul.mubr.f32.gmra.mrb[0].mxu0 %v5668
      %v5863 = vpop.f32.mrb[0].mxu0
      %v5864 = vadd.f32 0.0, %v5863
      %v5865 = vpop.f32.mrb[0].mxu0
      %5866 = vmatprep.mubr.f32.mxu0 0.0
      %5867 = vmatmul.mubr.f32.gmra.mrb[0].mxu0 %v5671
      %v5868 = vpop.f32.mrb[0].mxu0
      %v5869 = vadd.f32 0.0, %v5868
      %v5870 = vpop.f32.mrb[0].mxu0
      %5871 = vmatprep.mubr.f32.mxu0 0.0
      %5872 = vmatmul.mubr.f32.gmra.mrb[0].mxu0 %v5674
      %v5873 = vpop.f32.mrb[0].mxu0
      %v5874 = vadd.f32 0.0, %v5873
      %v5875 = vpop.f32.mrb[0].mxu0
      %5876 = vmatprep.mubr.f32.mxu0 0.0
      %5877 = vmatmul.mubr.f32.gmra.mrb[0].mxu0 %v5677
      %v5878 = vpop.f32.mrb[0].mxu0
      %v5879 = vadd.f32 0.0, %v5878
      %v5880 = vpop.f32.mrb[0].mxu0
      %5881 = vmatprep.mubr.f32.mxu0 0.0
      %5882 = vmatmul.mubr.f32.gmra.mrb[0].mxu0 %v5680
      %v5883 = vpop.f32.mrb[0].mxu0
      %v5884 = vadd.f32 0.0, %v5883
      %v5885 = vpop.f32.mrb[0].mxu0
      %5886 = vmatprep.mubr.f32.mxu0 0.0
      %5887 = vmatmul.mubr.f32.gmra.mrb[0].mxu0 %v5683
      %v5888 = vpop.f32.mrb[0].mxu0
      %v5889 = vadd.f32 0.0, %v5888
      %v5890 = vpop.f32.mrb[0].mxu0
      %5891 = vmatprep.mubr.f32.mxu0 0.0
      %5892 = vmatmul.mubr.f32.gmra.mrb[0].mxu0 %v5686
      %v5893 = vpop.f32.mrb[0].mxu0
      %v5894 = vadd.f32 0.0, %v5893
      %v5895 = vpop.f32.mrb[0].mxu0
      %5896 = vmatprep.mubr.f32.mxu0 0.0
      %5897 = vmatmul.mubr.f32.gmra.mrb[0].mxu0 %v5689
      %v5898 = vpop.f32.mrb[0].mxu0
      %v5899 = vadd.f32 0.0, %v5898
      %v5900 = vpop.f32.mrb[0].mxu0
      %5901 = vmatprep.mubr.f32.mxu0 0.0
      %5902 = vmatmul.mubr.f32.gmra.mrb[0].mxu0 %v5692
      %v5903 = vpop.f32.mrb[0].mxu0
      %v5904 = vadd.f32 0.0, %v5903
      %v5905 = vpop.f32.mrb[0].mxu0
      %5906 = vmatprep.mubr.f32.mxu0 0.0
      %5907 = vmatmul.mubr.f32.gmra.mrb[0].mxu0 %v5695
      %v5908 = vpop.f32.mrb[0].mxu0
      %v5909 = vadd.f32 0.0, %v5908
      %v5910 = vpop.f32.mrb[0].mxu0
      %5911 = vmatprep.mubr.f32.mxu0 0.0
      %5912 = vmatmul.mubr.f32.gmra.mrb[0].mxu0 %v5698
      %v5913 = vpop.f32.mrb[0].mxu0
      %v5914 = vadd.f32 0.0, %v5913
      %v5915 = vpop.f32.mrb[0].mxu0
      %5916 = vmatprep.mubr.f32.mxu0 0.0
      %5917 = vmatmul.mubr.f32.gmra.mrb[0].mxu0 %v5701
      %v5918 = vpop.f32.mrb[0].mxu0
      %v5919 = vadd.f32 0.0, %v5918
      %v5920 = vpop.f32.mrb[0].mxu0
      %5921 = vmatprep.mubr.f32.mxu0 0.0
      %5922 = vmatmul.mubr.f32.gmra.mrb[0].mxu0 %v5704
      %v5923 = vpop.f32.mrb[0].mxu0
      %v5924 = vadd.f32 0.0, %v5923
      %v5925 = vpop.f32.mrb[0].mxu0
      %5926 = vmatprep.mubr.f32.mxu0 0.0
      %5927 = vmatmul.mubr.f32.gmra.mrb[0].mxu0 %v5707
      %v5928 = vpop.f32.mrb[0].mxu0
      %v5929 = vadd.f32 0.0, %v5928
      %v5930 = vpop.f32.mrb[0].mxu0
      %5931 = vmatprep.mubr.f32.mxu0 0.0
      %5932 = vmatmul.mubr.f32.gmra.mrb[0].mxu0 %v5710
      %v5933 = vpop.f32.mrb[0].mxu0
      %v5934 = vadd.f32 0.0, %v5933
      %v5935 = vpop.f32.mrb[0].mxu0
      %5936 = vdwg.mxu0
      %v5937 = vadd.f32 %v5550, %v5779
      %v5938 = vadd.f32 %v5551, %v5784
      %v5939 = vadd.f32 %v5552, %v5789
      %v5940 = vadd.f32 %v5553, %v5794
      %v5941 = vadd.f32 %v5554, %v5799
      %v5942 = vadd.f32 %v5555, %v5804
      %v5943 = vadd.f32 %v5556, %v5809
      %v5944 = vadd.f32 %v5557, %v5814
      %v5945 = vadd.f32 %v5558, %v5819
      %v5946 = vadd.f32 %v5559, %v5824
      %v5947 = vadd.f32 %v5560, %v5829
      %v5948 = vadd.f32 %v5561, %v5834
      %v5949 = vadd.f32 %v5562, %v5839
      %v5950 = vadd.f32 %v5563, %v5844
      %v5951 = vadd.f32 %v5564, %v5849
      %v5952 = vadd.f32 %v5565, %v5854
      %v5953 = vadd.f32 %v5566, %v5859
      %v5954 = vadd.f32 %v5567, %v5864
      %v5955 = vadd.f32 %v5568, %v5869
      %v5956 = vadd.f32 %v5569, %v5874
      %v5957 = vadd.f32 %v5570, %v5879
      %v5958 = vadd.f32 %v5571, %v5884
      %v5959 = vadd.f32 %v5572, %v5889
      %v5960 = vadd.f32 %v5573, %v5894
      %v5961 = vadd.f32 %v5574, %v5899
      %v5962 = vadd.f32 %v5575, %v5904
      %v5963 = vadd.f32 %v5576, %v5909
      %v5964 = vadd.f32 %v5577, %v5914
      %v5965 = vadd.f32 %v5578, %v5919
      %v5966 = vadd.f32 %v5579, %v5924
      %v5967 = vadd.f32 %v5580, %v5929
      %v5968 = vadd.f32 %v5581, %v5934
      %v5969 = vld [vmem:[%s4066 + $0x2] sm:$0xff]
      %v5970 = vld [vmem:[%s4066 + $0xa] sm:$0xff]
      %v5971 = vld [vmem:[%s4066 + $0x1a] sm:$0xff]
      %v5972 = vld [vmem:[%s4066 + $0x22] sm:$0xff]
      %v5973 = vld [vmem:[%s4066 + $0x32] sm:$0xff]
      %v5974 = vld [vmem:[%s4066 + $0x3a] sm:$0xff]
      %v5975 = vld [vmem:[%s4066 + $0x4a] sm:$0xff]
      %v5976 = vld [vmem:[%s4066 + $0x52] sm:$0xff]
      %v5977 = vld [vmem:[%s4066 + $0x62] sm:$0xff]
      %v5978 = vld [vmem:[%s4066 + $0x6a] sm:$0xff]
      %v5979 = vld [vmem:[%s4066 + $0x7a] sm:$0xff]
      %v5980 = vld [vmem:[%s4066 + $0x82] sm:$0xff]
      %v5981 = vld [vmem:[%s4066 + $0x92] sm:$0xff]
      %v5982 = vld [vmem:[%s4066 + $0x9a] sm:$0xff]
      %v5983 = vld [vmem:[%s4066 + $0xaa] sm:$0xff]
      %v5984 = vld [vmem:[%s4066 + $0xb2] sm:$0xff]
      %v5985 = vld [vmem:[%s4066 + $0xc2] sm:$0xff]
      %v5986 = vld [vmem:[%s4066 + $0xca] sm:$0xff]
      %v5987 = vld [vmem:[%s4066 + $0xda] sm:$0xff]
      %v5988 = vld [vmem:[%s4066 + $0xe2] sm:$0xff]
      %v5989 = vld [vmem:[%s4066 + $0xf2] sm:$0xff]
      %v5990 = vld [vmem:[%s4066 + $0xfa] sm:$0xff]
      %v5991 = vld [vmem:[%s4066 + $0x10a] sm:$0xff]
      %v5992 = vld [vmem:[%s4066 + $0x112] sm:$0xff]
      %v5993 = vld [vmem:[%s4066 + $0x122] sm:$0xff]
      %v5994 = vld [vmem:[%s4066 + $0x12a] sm:$0xff]
      %v5995 = vld [vmem:[%s4066 + $0x13a] sm:$0xff]
      %v5996 = vld [vmem:[%s4066 + $0x142] sm:$0xff]
      %v5997 = vld [vmem:[%s4066 + $0x152] sm:$0xff]
      %v5998 = vld [vmem:[%s4066 + $0x15a] sm:$0xff]
      %v5999 = vld [vmem:[%s4066 + $0x16a] sm:$0xff]
      %v6000 = vld [vmem:[%s4066 + $0x172] sm:$0xff]
      %s6001 = scalar_lea.vmem %s2, 40
      %v6002 = vld [vmem:[%s6001] sm:$0xff]
      %v6004 = vsel %vm3739, %v5969, 0
      %v6007 = vsel %vm3739, %v5970, 0
      %v6010 = vsel %vm3739, %v5971, 0
      %v6013 = vsel %vm3739, %v5972, 0
      %v6016 = vsel %vm3739, %v5973, 0
      %v6019 = vsel %vm3739, %v5974, 0
      %v6022 = vsel %vm3739, %v5975, 0
      %v6025 = vsel %vm3739, %v5976, 0
      %v6028 = vsel %vm3739, %v5977, 0
      %v6031 = vsel %vm3739, %v5978, 0
      %v6034 = vsel %vm3739, %v5979, 0
      %v6037 = vsel %vm3739, %v5980, 0
      %v6040 = vsel %vm3739, %v5981, 0
      %v6043 = vsel %vm3739, %v5982, 0
      %v6046 = vsel %vm3739, %v5983, 0
      %v6049 = vsel %vm3739, %v5984, 0
      %v6052 = vsel %vm3739, %v5985, 0
      %v6055 = vsel %vm3739, %v5986, 0
      %v6058 = vsel %vm3739, %v5987, 0
      %v6061 = vsel %vm3739, %v5988, 0
      %v6064 = vsel %vm3739, %v5989, 0
      %v6067 = vsel %vm3739, %v5990, 0
      %v6070 = vsel %vm3739, %v5991, 0
      %v6073 = vsel %vm3739, %v5992, 0
      %v6076 = vsel %vm3739, %v5993, 0
      %v6079 = vsel %vm3739, %v5994, 0
      %v6082 = vsel %vm3739, %v5995, 0
      %v6085 = vsel %vm3739, %v5996, 0
      %v6088 = vsel %vm3739, %v5997, 0
      %v6091 = vsel %vm3739, %v5998, 0
      %v6094 = vsel %vm3739, %v5999, 0
      %v6097 = vsel %vm3739, %v6000, 0
      %6099 = vmatprep.subr.mxu0 0.0
      %6100 = vmatpush1.msra.mxu0 %v6002
      %6101 = vmatprep.subr.mxu0 0.0
      %6102 = vmatpush1.msra.mxu0 0.0
      %6103 = vmatprep.subr.mxu0 0.0
      %6104 = vmatpush1.msra.mxu0 0.0
      %6105 = vmatprep.subr.mxu0 0.0
      %6106 = vmatpush1.msra.mxu0 0.0
      %6107 = vmatprep.subr.mxu0 0.0
      %6108 = vmatpush1.msra.mxu0 0.0
      %6109 = vmatprep.subr.mxu0 0.0
      %6110 = vmatpush1.msra.mxu0 0.0
      %6111 = vmatprep.subr.mxu0 0.0
      %6112 = vmatpush1.msra.mxu0 0.0
      %6113 = vmatprep.subr.mxu0 0.0
      %6114 = vmatpush1.msra.mxu0 0.0
      %6115 = vmatprep.subr.mxu0 0.0
      %6116 = vmatpush1.msra.mxu0 0.0
      %6117 = vmatprep.subr.mxu0 0.0
      %6118 = vmatpush1.msra.mxu0 0.0
      %6119 = vmatprep.subr.mxu0 0.0
      %6120 = vmatpush1.msra.mxu0 0.0
      %6121 = vmatprep.subr.mxu0 0.0
      %6122 = vmatpush1.msra.mxu0 0.0
      %6123 = vmatprep.subr.mxu0 0.0
      %6124 = vmatpush1.msra.mxu0 0.0
      %6125 = vmatprep.subr.mxu0 0.0
      %6126 = vmatpush1.msra.mxu0 0.0
      %6127 = vmatprep.subr.mxu0 0.0
      %6128 = vmatpush1.msra.mxu0 0.0
      %6129 = vmatprep.subr.mxu0 0.0
      %6130 = vmatpush1.msra.mxu0 0.0
      %6131 = vmatprep.subr.mxu0 0.0
      %6132 = vmatpush1.msra.mxu0 0.0
      %6133 = vmatprep.subr.mxu0 0.0
      %6134 = vmatpush1.msra.mxu0 0.0
      %6135 = vmatprep.subr.mxu0 0.0
      %6136 = vmatpush1.msra.mxu0 0.0
      %6137 = vmatprep.subr.mxu0 0.0
      %6138 = vmatpush1.msra.mxu0 0.0
      %6139 = vmatprep.subr.mxu0 0.0
      %6140 = vmatpush1.msra.mxu0 0.0
      %6141 = vmatprep.subr.mxu0 0.0
      %6142 = vmatpush1.msra.mxu0 0.0
      %6143 = vmatprep.subr.mxu0 0.0
      %6144 = vmatpush1.msra.mxu0 0.0
      %6145 = vmatprep.subr.mxu0 0.0
      %6146 = vmatpush1.msra.mxu0 0.0
      %6147 = vmatprep.subr.mxu0 0.0
      %6148 = vmatpush1.msra.mxu0 0.0
      %6149 = vmatprep.subr.mxu0 0.0
      %6150 = vmatpush1.msra.mxu0 0.0
      %6151 = vmatprep.subr.mxu0 0.0
      %6152 = vmatpush1.msra.mxu0 0.0
      %6153 = vmatprep.subr.mxu0 0.0
      %6154 = vmatpush1.msra.mxu0 0.0
      %6155 = vmatprep.subr.mxu0 0.0
      %6156 = vmatpush1.msra.mxu0 0.0
      %6157 = vmatprep.subr.mxu0 0.0
      %6158 = vmatpush1.msra.mxu0 0.0
      %6159 = vmatprep.subr.mxu0 0.0
      %6160 = vmatpush1.msra.mxu0 0.0
      %6161 = vmatprep.subr.mxu0 0.0
      %6162 = vmatpush1.msra.mxu0 0.0
      %6163 = vmatprep.mubr.f32.mxu0 0.0
      %6164 = vmatmul.mubr.f32.gmra.mrb[0].mxu0 %v6004
      %v6165 = vpop.f32.mrb[0].mxu0
      %v6166 = vadd.f32 0.0, %v6165
      %v6167 = vpop.f32.mrb[0].mxu0
      %6168 = vmatprep.mubr.f32.mxu0 0.0
      %6169 = vmatmul.mubr.f32.gmra.mrb[0].mxu0 %v6007
      %v6170 = vpop.f32.mrb[0].mxu0
      %v6171 = vadd.f32 0.0, %v6170
      %v6172 = vpop.f32.mrb[0].mxu0
      %6173 = vmatprep.mubr.f32.mxu0 0.0
      %6174 = vmatmul.mubr.f32.gmra.mrb[0].mxu0 %v6010
      %v6175 = vpop.f32.mrb[0].mxu0
      %v6176 = vadd.f32 0.0, %v6175
      %v6177 = vpop.f32.mrb[0].mxu0
      %6178 = vmatprep.mubr.f32.mxu0 0.0
      %6179 = vmatmul.mubr.f32.gmra.mrb[0].mxu0 %v6013
      %v6180 = vpop.f32.mrb[0].mxu0
      %v6181 = vadd.f32 0.0, %v6180
      %v6182 = vpop.f32.mrb[0].mxu0
      %6183 = vmatprep.mubr.f32.mxu0 0.0
      %6184 = vmatmul.mubr.f32.gmra.mrb[0].mxu0 %v6016
      %v6185 = vpop.f32.mrb[0].mxu0
      %v6186 = vadd.f32 0.0, %v6185
      %v6187 = vpop.f32.mrb[0].mxu0
      %6188 = vmatprep.mubr.f32.mxu0 0.0
      %6189 = vmatmul.mubr.f32.gmra.mrb[0].mxu0 %v6019
      %v6190 = vpop.f32.mrb[0].mxu0
      %v6191 = vadd.f32 0.0, %v6190
      %v6192 = vpop.f32.mrb[0].mxu0
      %6193 = vmatprep.mubr.f32.mxu0 0.0
      %6194 = vmatmul.mubr.f32.gmra.mrb[0].mxu0 %v6022
      %v6195 = vpop.f32.mrb[0].mxu0
      %v6196 = vadd.f32 0.0, %v6195
      %v6197 = vpop.f32.mrb[0].mxu0
      %6198 = vmatprep.mubr.f32.mxu0 0.0
      %6199 = vmatmul.mubr.f32.gmra.mrb[0].mxu0 %v6025
      %v6200 = vpop.f32.mrb[0].mxu0
      %v6201 = vadd.f32 0.0, %v6200
      %v6202 = vpop.f32.mrb[0].mxu0
      %6203 = vmatprep.mubr.f32.mxu0 0.0
      %6204 = vmatmul.mubr.f32.gmra.mrb[0].mxu0 %v6028
      %v6205 = vpop.f32.mrb[0].mxu0
      %v6206 = vadd.f32 0.0, %v6205
      %v6207 = vpop.f32.mrb[0].mxu0
      %6208 = vmatprep.mubr.f32.mxu0 0.0
      %6209 = vmatmul.mubr.f32.gmra.mrb[0].mxu0 %v6031
      %v6210 = vpop.f32.mrb[0].mxu0
      %v6211 = vadd.f32 0.0, %v6210
      %v6212 = vpop.f32.mrb[0].mxu0
      %6213 = vmatprep.mubr.f32.mxu0 0.0
      %6214 = vmatmul.mubr.f32.gmra.mrb[0].mxu0 %v6034
      %v6215 = vpop.f32.mrb[0].mxu0
      %v6216 = vadd.f32 0.0, %v6215
      %v6217 = vpop.f32.mrb[0].mxu0
      %6218 = vmatprep.mubr.f32.mxu0 0.0
      %6219 = vmatmul.mubr.f32.gmra.mrb[0].mxu0 %v6037
      %v6220 = vpop.f32.mrb[0].mxu0
      %v6221 = vadd.f32 0.0, %v6220
      %v6222 = vpop.f32.mrb[0].mxu0
      %6223 = vmatprep.mubr.f32.mxu0 0.0
      %6224 = vmatmul.mubr.f32.gmra.mrb[0].mxu0 %v6040
      %v6225 = vpop.f32.mrb[0].mxu0
      %v6226 = vadd.f32 0.0, %v6225
      %v6227 = vpop.f32.mrb[0].mxu0
      %6228 = vmatprep.mubr.f32.mxu0 0.0
      %6229 = vmatmul.mubr.f32.gmra.mrb[0].mxu0 %v6043
      %v6230 = vpop.f32.mrb[0].mxu0
      %v6231 = vadd.f32 0.0, %v6230
      %v6232 = vpop.f32.mrb[0].mxu0
      %6233 = vmatprep.mubr.f32.mxu0 0.0
      %6234 = vmatmul.mubr.f32.gmra.mrb[0].mxu0 %v6046
      %v6235 = vpop.f32.mrb[0].mxu0
      %v6236 = vadd.f32 0.0, %v6235
      %v6237 = vpop.f32.mrb[0].mxu0
      %6238 = vmatprep.mubr.f32.mxu0 0.0
      %6239 = vmatmul.mubr.f32.gmra.mrb[0].mxu0 %v6049
      %v6240 = vpop.f32.mrb[0].mxu0
      %v6241 = vadd.f32 0.0, %v6240
      %v6242 = vpop.f32.mrb[0].mxu0
      %6243 = vmatprep.mubr.f32.mxu0 0.0
      %6244 = vmatmul.mubr.f32.gmra.mrb[0].mxu0 %v6052
      %v6245 = vpop.f32.mrb[0].mxu0
      %v6246 = vadd.f32 0.0, %v6245
      %v6247 = vpop.f32.mrb[0].mxu0
      %6248 = vmatprep.mubr.f32.mxu0 0.0
      %6249 = vmatmul.mubr.f32.gmra.mrb[0].mxu0 %v6055
      %v6250 = vpop.f32.mrb[0].mxu0
      %v6251 = vadd.f32 0.0, %v6250
      %v6252 = vpop.f32.mrb[0].mxu0
      %6253 = vmatprep.mubr.f32.mxu0 0.0
      %6254 = vmatmul.mubr.f32.gmra.mrb[0].mxu0 %v6058
      %v6255 = vpop.f32.mrb[0].mxu0
      %v6256 = vadd.f32 0.0, %v6255
      %v6257 = vpop.f32.mrb[0].mxu0
      %6258 = vmatprep.mubr.f32.mxu0 0.0
      %6259 = vmatmul.mubr.f32.gmra.mrb[0].mxu0 %v6061
      %v6260 = vpop.f32.mrb[0].mxu0
      %v6261 = vadd.f32 0.0, %v6260
      %v6262 = vpop.f32.mrb[0].mxu0
      %6263 = vmatprep.mubr.f32.mxu0 0.0
      %6264 = vmatmul.mubr.f32.gmra.mrb[0].mxu0 %v6064
      %v6265 = vpop.f32.mrb[0].mxu0
      %v6266 = vadd.f32 0.0, %v6265
      %v6267 = vpop.f32.mrb[0].mxu0
      %6268 = vmatprep.mubr.f32.mxu0 0.0
      %6269 = vmatmul.mubr.f32.gmra.mrb[0].mxu0 %v6067
      %v6270 = vpop.f32.mrb[0].mxu0
      %v6271 = vadd.f32 0.0, %v6270
      %v6272 = vpop.f32.mrb[0].mxu0
      %6273 = vmatprep.mubr.f32.mxu0 0.0
      %6274 = vmatmul.mubr.f32.gmra.mrb[0].mxu0 %v6070
      %v6275 = vpop.f32.mrb[0].mxu0
      %v6276 = vadd.f32 0.0, %v6275
      %v6277 = vpop.f32.mrb[0].mxu0
      %6278 = vmatprep.mubr.f32.mxu0 0.0
      %6279 = vmatmul.mubr.f32.gmra.mrb[0].mxu0 %v6073
      %v6280 = vpop.f32.mrb[0].mxu0
      %v6281 = vadd.f32 0.0, %v6280
      %v6282 = vpop.f32.mrb[0].mxu0
      %6283 = vmatprep.mubr.f32.mxu0 0.0
      %6284 = vmatmul.mubr.f32.gmra.mrb[0].mxu0 %v6076
      %v6285 = vpop.f32.mrb[0].mxu0
      %v6286 = vadd.f32 0.0, %v6285
      %v6287 = vpop.f32.mrb[0].mxu0
      %6288 = vmatprep.mubr.f32.mxu0 0.0
      %6289 = vmatmul.mubr.f32.gmra.mrb[0].mxu0 %v6079
      %v6290 = vpop.f32.mrb[0].mxu0
      %v6291 = vadd.f32 0.0, %v6290
      %v6292 = vpop.f32.mrb[0].mxu0
      %6293 = vmatprep.mubr.f32.mxu0 0.0
      %6294 = vmatmul.mubr.f32.gmra.mrb[0].mxu0 %v6082
      %v6295 = vpop.f32.mrb[0].mxu0
      %v6296 = vadd.f32 0.0, %v6295
      %v6297 = vpop.f32.mrb[0].mxu0
      %6298 = vmatprep.mubr.f32.mxu0 0.0
      %6299 = vmatmul.mubr.f32.gmra.mrb[0].mxu0 %v6085
      %v6300 = vpop.f32.mrb[0].mxu0
      %v6301 = vadd.f32 0.0, %v6300
      %v6302 = vpop.f32.mrb[0].mxu0
      %6303 = vmatprep.mubr.f32.mxu0 0.0
      %6304 = vmatmul.mubr.f32.gmra.mrb[0].mxu0 %v6088
      %v6305 = vpop.f32.mrb[0].mxu0
      %v6306 = vadd.f32 0.0, %v6305
      %v6307 = vpop.f32.mrb[0].mxu0
      %6308 = vmatprep.mubr.f32.mxu0 0.0
      %6309 = vmatmul.mubr.f32.gmra.mrb[0].mxu0 %v6091
      %v6310 = vpop.f32.mrb[0].mxu0
      %v6311 = vadd.f32 0.0, %v6310
      %v6312 = vpop.f32.mrb[0].mxu0
      %6313 = vmatprep.mubr.f32.mxu0 0.0
      %6314 = vmatmul.mubr.f32.gmra.mrb[0].mxu0 %v6094
      %v6315 = vpop.f32.mrb[0].mxu0
      %v6316 = vadd.f32 0.0, %v6315
      %v6317 = vpop.f32.mrb[0].mxu0
      %6318 = vmatprep.mubr.f32.mxu0 0.0
      %6319 = vmatmul.mubr.f32.gmra.mrb[0].mxu0 %v6097
      %v6320 = vpop.f32.mrb[0].mxu0
      %v6321 = vadd.f32 0.0, %v6320
      %v6322 = vpop.f32.mrb[0].mxu0
      %6323 = vdwg.mxu0
      %v6324 = vadd.f32 %v5937, %v6166
      %v6325 = vadd.f32 %v5938, %v6171
      %v6326 = vadd.f32 %v5939, %v6176
      %v6327 = vadd.f32 %v5940, %v6181
      %v6328 = vadd.f32 %v5941, %v6186
      %v6329 = vadd.f32 %v5942, %v6191
      %v6330 = vadd.f32 %v5943, %v6196
      %v6331 = vadd.f32 %v5944, %v6201
      %v6332 = vadd.f32 %v5945, %v6206
      %v6333 = vadd.f32 %v5946, %v6211
      %v6334 = vadd.f32 %v5947, %v6216
      %v6335 = vadd.f32 %v5948, %v6221
      %v6336 = vadd.f32 %v5949, %v6226
      %v6337 = vadd.f32 %v5950, %v6231
      %v6338 = vadd.f32 %v5951, %v6236
      %v6339 = vadd.f32 %v5952, %v6241
      %v6340 = vadd.f32 %v5953, %v6246
      %v6341 = vadd.f32 %v5954, %v6251
      %v6342 = vadd.f32 %v5955, %v6256
      %v6343 = vadd.f32 %v5956, %v6261
      %v6344 = vadd.f32 %v5957, %v6266
      %v6345 = vadd.f32 %v5958, %v6271
      %v6346 = vadd.f32 %v5959, %v6276
      %v6347 = vadd.f32 %v5960, %v6281
      %v6348 = vadd.f32 %v5961, %v6286
      %v6349 = vadd.f32 %v5962, %v6291
      %v6350 = vadd.f32 %v5963, %v6296
      %v6351 = vadd.f32 %v5964, %v6301
      %v6352 = vadd.f32 %v5965, %v6306
      %v6353 = vadd.f32 %v5966, %v6311
      %v6354 = vadd.f32 %v5967, %v6316
      %v6355 = vadd.f32 %v5968, %v6321
      %s6356 = scalar_lea.vmem [#allocation3], 48
      %v6357 = vld [vmem:[%s6356] sm:$0xff]
      %v6358 = vld [vmem:[%s6356 + $0x8] sm:$0xff]
      %v6359 = vld [vmem:[%s6356 + $0x18] sm:$0xff]
      %v6360 = vld [vmem:[%s6356 + $0x20] sm:$0xff]
      %v6361 = vld [vmem:[%s6356 + $0x30] sm:$0xff]
      %v6362 = vld [vmem:[%s6356 + $0x38] sm:$0xff]
      %v6363 = vld [vmem:[%s6356 + $0x48] sm:$0xff]
      %v6364 = vld [vmem:[%s6356 + $0x50] sm:$0xff]
      %v6365 = vld [vmem:[%s6356 + $0x60] sm:$0xff]
      %v6366 = vld [vmem:[%s6356 + $0x68] sm:$0xff]
      %v6367 = vld [vmem:[%s6356 + $0x78] sm:$0xff]
      %v6368 = vld [vmem:[%s6356 + $0x80] sm:$0xff]
      %v6369 = vld [vmem:[%s6356 + $0x90] sm:$0xff]
      %v6370 = vld [vmem:[%s6356 + $0x98] sm:$0xff]
      %v6371 = vld [vmem:[%s6356 + $0xa8] sm:$0xff]
      %v6372 = vld [vmem:[%s6356 + $0xb0] sm:$0xff]
      %v6373 = vld [vmem:[%s6356 + $0xc0] sm:$0xff]
      %v6374 = vld [vmem:[%s6356 + $0xc8] sm:$0xff]
      %v6375 = vld [vmem:[%s6356 + $0xd8] sm:$0xff]
      %v6376 = vld [vmem:[%s6356 + $0xe0] sm:$0xff]
      %v6377 = vld [vmem:[%s6356 + $0xf0] sm:$0xff]
      %v6378 = vld [vmem:[%s6356 + $0xf8] sm:$0xff]
      %v6379 = vld [vmem:[%s6356 + $0x108] sm:$0xff]
      %v6380 = vld [vmem:[%s6356 + $0x110] sm:$0xff]
      %v6381 = vld [vmem:[%s6356 + $0x120] sm:$0xff]
      %v6382 = vld [vmem:[%s6356 + $0x128] sm:$0xff]
      %v6383 = vld [vmem:[%s6356 + $0x138] sm:$0xff]
      %v6384 = vld [vmem:[%s6356 + $0x140] sm:$0xff]
      %v6385 = vld [vmem:[%s6356 + $0x150] sm:$0xff]
      %v6386 = vld [vmem:[%s6356 + $0x158] sm:$0xff]
      %v6387 = vld [vmem:[%s6356 + $0x168] sm:$0xff]
      %v6388 = vld [vmem:[%s6356 + $0x170] sm:$0xff]
      %s6389 = scalar_lea.vmem %s2, 48
      %v6390 = vld [vmem:[%s6389] sm:$0xff]
      %v6392 = vsel %vm3739, %v6357, 0
      %v6395 = vsel %vm3739, %v6358, 0
      %v6398 = vsel %vm3739, %v6359, 0
      %v6401 = vsel %vm3739, %v6360, 0
      %v6404 = vsel %vm3739, %v6361, 0
      %v6407 = vsel %vm3739, %v6362, 0
      %v6410 = vsel %vm3739, %v6363, 0
      %v6413 = vsel %vm3739, %v6364, 0
      %v6416 = vsel %vm3739, %v6365, 0
      %v6419 = vsel %vm3739, %v6366, 0
      %v6422 = vsel %vm3739, %v6367, 0
      %v6425 = vsel %vm3739, %v6368, 0
      %v6428 = vsel %vm3739, %v6369, 0
      %v6431 = vsel %vm3739, %v6370, 0
      %v6434 = vsel %vm3739, %v6371, 0
      %v6437 = vsel %vm3739, %v6372, 0
      %v6440 = vsel %vm3739, %v6373, 0
      %v6443 = vsel %vm3739, %v6374, 0
      %v6446 = vsel %vm3739, %v6375, 0
      %v6449 = vsel %vm3739, %v6376, 0
      %v6452 = vsel %vm3739, %v6377, 0
      %v6455 = vsel %vm3739, %v6378, 0
      %v6458 = vsel %vm3739, %v6379, 0
      %v6461 = vsel %vm3739, %v6380, 0
      %v6464 = vsel %vm3739, %v6381, 0
      %v6467 = vsel %vm3739, %v6382, 0
      %v6470 = vsel %vm3739, %v6383, 0
      %v6473 = vsel %vm3739, %v6384, 0
      %v6476 = vsel %vm3739, %v6385, 0
      %v6479 = vsel %vm3739, %v6386, 0
      %v6482 = vsel %vm3739, %v6387, 0
      %v6485 = vsel %vm3739, %v6388, 0
      %6487 = vmatprep.subr.mxu0 0.0
      %6488 = vmatpush1.msra.mxu0 %v6390
      %6489 = vmatprep.subr.mxu0 0.0
      %6490 = vmatpush1.msra.mxu0 0.0
      %6491 = vmatprep.subr.mxu0 0.0
      %6492 = vmatpush1.msra.mxu0 0.0
      %6493 = vmatprep.subr.mxu0 0.0
      %6494 = vmatpush1.msra.mxu0 0.0
      %6495 = vmatprep.subr.mxu0 0.0
      %6496 = vmatpush1.msra.mxu0 0.0
      %6497 = vmatprep.subr.mxu0 0.0
      %6498 = vmatpush1.msra.mxu0 0.0
      %6499 = vmatprep.subr.mxu0 0.0
      %6500 = vmatpush1.msra.mxu0 0.0
      %6501 = vmatprep.subr.mxu0 0.0
      %6502 = vmatpush1.msra.mxu0 0.0
      %6503 = vmatprep.subr.mxu0 0.0
      %6504 = vmatpush1.msra.mxu0 0.0
      %6505 = vmatprep.subr.mxu0 0.0
      %6506 = vmatpush1.msra.mxu0 0.0
      %6507 = vmatprep.subr.mxu0 0.0
      %6508 = vmatpush1.msra.mxu0 0.0
      %6509 = vmatprep.subr.mxu0 0.0
      %6510 = vmatpush1.msra.mxu0 0.0
      %6511 = vmatprep.subr.mxu0 0.0
      %6512 = vmatpush1.msra.mxu0 0.0
      %6513 = vmatprep.subr.mxu0 0.0
      %6514 = vmatpush1.msra.mxu0 0.0
      %6515 = vmatprep.subr.mxu0 0.0
      %6516 = vmatpush1.msra.mxu0 0.0
      %6517 = vmatprep.subr.mxu0 0.0
      %6518 = vmatpush1.msra.mxu0 0.0
      %6519 = vmatprep.subr.mxu0 0.0
      %6520 = vmatpush1.msra.mxu0 0.0
      %6521 = vmatprep.subr.mxu0 0.0
      %6522 = vmatpush1.msra.mxu0 0.0
      %6523 = vmatprep.subr.mxu0 0.0
      %6524 = vmatpush1.msra.mxu0 0.0
      %6525 = vmatprep.subr.mxu0 0.0
      %6526 = vmatpush1.msra.mxu0 0.0
      %6527 = vmatprep.subr.mxu0 0.0
      %6528 = vmatpush1.msra.mxu0 0.0
      %6529 = vmatprep.subr.mxu0 0.0
      %6530 = vmatpush1.msra.mxu0 0.0
      %6531 = vmatprep.subr.mxu0 0.0
      %6532 = vmatpush1.msra.mxu0 0.0
      %6533 = vmatprep.subr.mxu0 0.0
      %6534 = vmatpush1.msra.mxu0 0.0
      %6535 = vmatprep.subr.mxu0 0.0
      %6536 = vmatpush1.msra.mxu0 0.0
      %6537 = vmatprep.subr.mxu0 0.0
      %6538 = vmatpush1.msra.mxu0 0.0
      %6539 = vmatprep.subr.mxu0 0.0
      %6540 = vmatpush1.msra.mxu0 0.0
      %6541 = vmatprep.subr.mxu0 0.0
      %6542 = vmatpush1.msra.mxu0 0.0
      %6543 = vmatprep.subr.mxu0 0.0
      %6544 = vmatpush1.msra.mxu0 0.0
      %6545 = vmatprep.subr.mxu0 0.0
      %6546 = vmatpush1.msra.mxu0 0.0
      %6547 = vmatprep.subr.mxu0 0.0
      %6548 = vmatpush1.msra.mxu0 0.0
      %6549 = vmatprep.subr.mxu0 0.0
      %6550 = vmatpush1.msra.mxu0 0.0
      %6551 = vmatprep.mubr.f32.mxu0 0.0
      %6552 = vmatmul.mubr.f32.gmra.mrb[0].mxu0 %v6392
      %v6553 = vpop.f32.mrb[0].mxu0
      %v6554 = vadd.f32 0.0, %v6553
      %v6555 = vpop.f32.mrb[0].mxu0
      %6556 = vmatprep.mubr.f32.mxu0 0.0
      %6557 = vmatmul.mubr.f32.gmra.mrb[0].mxu0 %v6395
      %v6558 = vpop.f32.mrb[0].mxu0
      %v6559 = vadd.f32 0.0, %v6558
      %v6560 = vpop.f32.mrb[0].mxu0
      %6561 = vmatprep.mubr.f32.mxu0 0.0
      %6562 = vmatmul.mubr.f32.gmra.mrb[0].mxu0 %v6398
      %v6563 = vpop.f32.mrb[0].mxu0
      %v6564 = vadd.f32 0.0, %v6563
      %v6565 = vpop.f32.mrb[0].mxu0
      %6566 = vmatprep.mubr.f32.mxu0 0.0
      %6567 = vmatmul.mubr.f32.gmra.mrb[0].mxu0 %v6401
      %v6568 = vpop.f32.mrb[0].mxu0
      %v6569 = vadd.f32 0.0, %v6568
      %v6570 = vpop.f32.mrb[0].mxu0
      %6571 = vmatprep.mubr.f32.mxu0 0.0
      %6572 = vmatmul.mubr.f32.gmra.mrb[0].mxu0 %v6404
      %v6573 = vpop.f32.mrb[0].mxu0
      %v6574 = vadd.f32 0.0, %v6573
      %v6575 = vpop.f32.mrb[0].mxu0
      %6576 = vmatprep.mubr.f32.mxu0 0.0
      %6577 = vmatmul.mubr.f32.gmra.mrb[0].mxu0 %v6407
      %v6578 = vpop.f32.mrb[0].mxu0
      %v6579 = vadd.f32 0.0, %v6578
      %v6580 = vpop.f32.mrb[0].mxu0
      %6581 = vmatprep.mubr.f32.mxu0 0.0
      %6582 = vmatmul.mubr.f32.gmra.mrb[0].mxu0 %v6410
      %v6583 = vpop.f32.mrb[0].mxu0
      %v6584 = vadd.f32 0.0, %v6583
      %v6585 = vpop.f32.mrb[0].mxu0
      %6586 = vmatprep.mubr.f32.mxu0 0.0
      %6587 = vmatmul.mubr.f32.gmra.mrb[0].mxu0 %v6413
      %v6588 = vpop.f32.mrb[0].mxu0
      %v6589 = vadd.f32 0.0, %v6588
      %v6590 = vpop.f32.mrb[0].mxu0
      %6591 = vmatprep.mubr.f32.mxu0 0.0
      %6592 = vmatmul.mubr.f32.gmra.mrb[0].mxu0 %v6416
      %v6593 = vpop.f32.mrb[0].mxu0
      %v6594 = vadd.f32 0.0, %v6593
      %v6595 = vpop.f32.mrb[0].mxu0
      %6596 = vmatprep.mubr.f32.mxu0 0.0
      %6597 = vmatmul.mubr.f32.gmra.mrb[0].mxu0 %v6419
      %v6598 = vpop.f32.mrb[0].mxu0
      %v6599 = vadd.f32 0.0, %v6598
      %v6600 = vpop.f32.mrb[0].mxu0
      %6601 = vmatprep.mubr.f32.mxu0 0.0
      %6602 = vmatmul.mubr.f32.gmra.mrb[0].mxu0 %v6422
      %v6603 = vpop.f32.mrb[0].mxu0
      %v6604 = vadd.f32 0.0, %v6603
      %v6605 = vpop.f32.mrb[0].mxu0
      %6606 = vmatprep.mubr.f32.mxu0 0.0
      %6607 = vmatmul.mubr.f32.gmra.mrb[0].mxu0 %v6425
      %v6608 = vpop.f32.mrb[0].mxu0
      %v6609 = vadd.f32 0.0, %v6608
      %v6610 = vpop.f32.mrb[0].mxu0
      %6611 = vmatprep.mubr.f32.mxu0 0.0
      %6612 = vmatmul.mubr.f32.gmra.mrb[0].mxu0 %v6428
      %v6613 = vpop.f32.mrb[0].mxu0
      %v6614 = vadd.f32 0.0, %v6613
      %v6615 = vpop.f32.mrb[0].mxu0
      %6616 = vmatprep.mubr.f32.mxu0 0.0
      %6617 = vmatmul.mubr.f32.gmra.mrb[0].mxu0 %v6431
      %v6618 = vpop.f32.mrb[0].mxu0
      %v6619 = vadd.f32 0.0, %v6618
      %v6620 = vpop.f32.mrb[0].mxu0
      %6621 = vmatprep.mubr.f32.mxu0 0.0
      %6622 = vmatmul.mubr.f32.gmra.mrb[0].mxu0 %v6434
      %v6623 = vpop.f32.mrb[0].mxu0
      %v6624 = vadd.f32 0.0, %v6623
      %v6625 = vpop.f32.mrb[0].mxu0
      %6626 = vmatprep.mubr.f32.mxu0 0.0
      %6627 = vmatmul.mubr.f32.gmra.mrb[0].mxu0 %v6437
      %v6628 = vpop.f32.mrb[0].mxu0
      %v6629 = vadd.f32 0.0, %v6628
      %v6630 = vpop.f32.mrb[0].mxu0
      %6631 = vmatprep.mubr.f32.mxu0 0.0
      %6632 = vmatmul.mubr.f32.gmra.mrb[0].mxu0 %v6440
      %v6633 = vpop.f32.mrb[0].mxu0
      %v6634 = vadd.f32 0.0, %v6633
      %v6635 = vpop.f32.mrb[0].mxu0
      %6636 = vmatprep.mubr.f32.mxu0 0.0
      %6637 = vmatmul.mubr.f32.gmra.mrb[0].mxu0 %v6443
      %v6638 = vpop.f32.mrb[0].mxu0
      %v6639 = vadd.f32 0.0, %v6638
      %v6640 = vpop.f32.mrb[0].mxu0
      %6641 = vmatprep.mubr.f32.mxu0 0.0
      %6642 = vmatmul.mubr.f32.gmra.mrb[0].mxu0 %v6446
      %v6643 = vpop.f32.mrb[0].mxu0
      %v6644 = vadd.f32 0.0, %v6643
      %v6645 = vpop.f32.mrb[0].mxu0
      %6646 = vmatprep.mubr.f32.mxu0 0.0
      %6647 = vmatmul.mubr.f32.gmra.mrb[0].mxu0 %v6449
      %v6648 = vpop.f32.mrb[0].mxu0
      %v6649 = vadd.f32 0.0, %v6648
      %v6650 = vpop.f32.mrb[0].mxu0
      %6651 = vmatprep.mubr.f32.mxu0 0.0
      %6652 = vmatmul.mubr.f32.gmra.mrb[0].mxu0 %v6452
      %v6653 = vpop.f32.mrb[0].mxu0
      %v6654 = vadd.f32 0.0, %v6653
      %v6655 = vpop.f32.mrb[0].mxu0
      %6656 = vmatprep.mubr.f32.mxu0 0.0
      %6657 = vmatmul.mubr.f32.gmra.mrb[0].mxu0 %v6455
      %v6658 = vpop.f32.mrb[0].mxu0
      %v6659 = vadd.f32 0.0, %v6658
      %v6660 = vpop.f32.mrb[0].mxu0
      %6661 = vmatprep.mubr.f32.mxu0 0.0
      %6662 = vmatmul.mubr.f32.gmra.mrb[0].mxu0 %v6458
      %v6663 = vpop.f32.mrb[0].mxu0
      %v6664 = vadd.f32 0.0, %v6663
      %v6665 = vpop.f32.mrb[0].mxu0
      %6666 = vmatprep.mubr.f32.mxu0 0.0
      %6667 = vmatmul.mubr.f32.gmra.mrb[0].mxu0 %v6461
      %v6668 = vpop.f32.mrb[0].mxu0
      %v6669 = vadd.f32 0.0, %v6668
      %v6670 = vpop.f32.mrb[0].mxu0
      %6671 = vmatprep.mubr.f32.mxu0 0.0
      %6672 = vmatmul.mubr.f32.gmra.mrb[0].mxu0 %v6464
      %v6673 = vpop.f32.mrb[0].mxu0
      %v6674 = vadd.f32 0.0, %v6673
      %v6675 = vpop.f32.mrb[0].mxu0
      %6676 = vmatprep.mubr.f32.mxu0 0.0
      %6677 = vmatmul.mubr.f32.gmra.mrb[0].mxu0 %v6467
      %v6678 = vpop.f32.mrb[0].mxu0
      %v6679 = vadd.f32 0.0, %v6678
      %v6680 = vpop.f32.mrb[0].mxu0
      %6681 = vmatprep.mubr.f32.mxu0 0.0
      %6682 = vmatmul.mubr.f32.gmra.mrb[0].mxu0 %v6470
      %v6683 = vpop.f32.mrb[0].mxu0
      %v6684 = vadd.f32 0.0, %v6683
      %v6685 = vpop.f32.mrb[0].mxu0
      %6686 = vmatprep.mubr.f32.mxu0 0.0
      %6687 = vmatmul.mubr.f32.gmra.mrb[0].mxu0 %v6473
      %v6688 = vpop.f32.mrb[0].mxu0
      %v6689 = vadd.f32 0.0, %v6688
      %v6690 = vpop.f32.mrb[0].mxu0
      %6691 = vmatprep.mubr.f32.mxu0 0.0
      %6692 = vmatmul.mubr.f32.gmra.mrb[0].mxu0 %v6476
      %v6693 = vpop.f32.mrb[0].mxu0
      %v6694 = vadd.f32 0.0, %v6693
      %v6695 = vpop.f32.mrb[0].mxu0
      %6696 = vmatprep.mubr.f32.mxu0 0.0
      %6697 = vmatmul.mubr.f32.gmra.mrb[0].mxu0 %v6479
      %v6698 = vpop.f32.mrb[0].mxu0
      %v6699 = vadd.f32 0.0, %v6698
      %v6700 = vpop.f32.mrb[0].mxu0
      %6701 = vmatprep.mubr.f32.mxu0 0.0
      %6702 = vmatmul.mubr.f32.gmra.mrb[0].mxu0 %v6482
      %v6703 = vpop.f32.mrb[0].mxu0
      %v6704 = vadd.f32 0.0, %v6703
      %v6705 = vpop.f32.mrb[0].mxu0
      %6706 = vmatprep.mubr.f32.mxu0 0.0
      %6707 = vmatmul.mubr.f32.gmra.mrb[0].mxu0 %v6485
      %v6708 = vpop.f32.mrb[0].mxu0
      %v6709 = vadd.f32 0.0, %v6708
      %v6710 = vpop.f32.mrb[0].mxu0
      %6711 = vdwg.mxu0
      %v6712 = vadd.f32 %v6324, %v6554
      %v6713 = vadd.f32 %v6325, %v6559
      %v6714 = vadd.f32 %v6326, %v6564
      %v6715 = vadd.f32 %v6327, %v6569
      %v6716 = vadd.f32 %v6328, %v6574
      %v6717 = vadd.f32 %v6329, %v6579
      %v6718 = vadd.f32 %v6330, %v6584
      %v6719 = vadd.f32 %v6331, %v6589
      %v6720 = vadd.f32 %v6332, %v6594
      %v6721 = vadd.f32 %v6333, %v6599
      %v6722 = vadd.f32 %v6334, %v6604
      %v6723 = vadd.f32 %v6335, %v6609
      %v6724 = vadd.f32 %v6336, %v6614
      %v6725 = vadd.f32 %v6337, %v6619
      %v6726 = vadd.f32 %v6338, %v6624
      %v6727 = vadd.f32 %v6339, %v6629
      %v6728 = vadd.f32 %v6340, %v6634
      %v6729 = vadd.f32 %v6341, %v6639
      %v6730 = vadd.f32 %v6342, %v6644
      %v6731 = vadd.f32 %v6343, %v6649
      %v6732 = vadd.f32 %v6344, %v6654
      %v6733 = vadd.f32 %v6345, %v6659
      %v6734 = vadd.f32 %v6346, %v6664
      %v6735 = vadd.f32 %v6347, %v6669
      %v6736 = vadd.f32 %v6348, %v6674
      %v6737 = vadd.f32 %v6349, %v6679
      %v6738 = vadd.f32 %v6350, %v6684
      %v6739 = vadd.f32 %v6351, %v6689
      %v6740 = vadd.f32 %v6352, %v6694
      %v6741 = vadd.f32 %v6353, %v6699
      %v6742 = vadd.f32 %v6354, %v6704
      %v6743 = vadd.f32 %v6355, %v6709
      %v6744 = vld [vmem:[%s6356 + $0x1] sm:$0xff]
      %v6745 = vld [vmem:[%s6356 + $0x9] sm:$0xff]
      %v6746 = vld [vmem:[%s6356 + $0x19] sm:$0xff]
      %v6747 = vld [vmem:[%s6356 + $0x21] sm:$0xff]
      %v6748 = vld [vmem:[%s6356 + $0x31] sm:$0xff]
      %v6749 = vld [vmem:[%s6356 + $0x39] sm:$0xff]
      %v6750 = vld [vmem:[%s6356 + $0x49] sm:$0xff]
      %v6751 = vld [vmem:[%s6356 + $0x51] sm:$0xff]
      %v6752 = vld [vmem:[%s6356 + $0x61] sm:$0xff]
      %v6753 = vld [vmem:[%s6356 + $0x69] sm:$0xff]
      %v6754 = vld [vmem:[%s6356 + $0x79] sm:$0xff]
      %v6755 = vld [vmem:[%s6356 + $0x81] sm:$0xff]
      %v6756 = vld [vmem:[%s6356 + $0x91] sm:$0xff]
      %v6757 = vld [vmem:[%s6356 + $0x99] sm:$0xff]
      %v6758 = vld [vmem:[%s6356 + $0xa9] sm:$0xff]
      %v6759 = vld [vmem:[%s6356 + $0xb1] sm:$0xff]
      %v6760 = vld [vmem:[%s6356 + $0xc1] sm:$0xff]
      %v6761 = vld [vmem:[%s6356 + $0xc9] sm:$0xff]
      %v6762 = vld [vmem:[%s6356 + $0xd9] sm:$0xff]
      %v6763 = vld [vmem:[%s6356 + $0xe1] sm:$0xff]
      %v6764 = vld [vmem:[%s6356 + $0xf1] sm:$0xff]
      %v6765 = vld [vmem:[%s6356 + $0xf9] sm:$0xff]
      %v6766 = vld [vmem:[%s6356 + $0x109] sm:$0xff]
      %v6767 = vld [vmem:[%s6356 + $0x111] sm:$0xff]
      %v6768 = vld [vmem:[%s6356 + $0x121] sm:$0xff]
      %v6769 = vld [vmem:[%s6356 + $0x129] sm:$0xff]
      %v6770 = vld [vmem:[%s6356 + $0x139] sm:$0xff]
      %v6771 = vld [vmem:[%s6356 + $0x141] sm:$0xff]
      %v6772 = vld [vmem:[%s6356 + $0x151] sm:$0xff]
      %v6773 = vld [vmem:[%s6356 + $0x159] sm:$0xff]
      %v6774 = vld [vmem:[%s6356 + $0x169] sm:$0xff]
      %v6775 = vld [vmem:[%s6356 + $0x171] sm:$0xff]
      %s6776 = scalar_lea.vmem %s2, 56
      %v6777 = vld [vmem:[%s6776] sm:$0xff]
      %v6779 = vsel %vm3739, %v6744, 0
      %v6782 = vsel %vm3739, %v6745, 0
      %v6785 = vsel %vm3739, %v6746, 0
      %v6788 = vsel %vm3739, %v6747, 0
      %v6791 = vsel %vm3739, %v6748, 0
      %v6794 = vsel %vm3739, %v6749, 0
      %v6797 = vsel %vm3739, %v6750, 0
      %v6800 = vsel %vm3739, %v6751, 0
      %v6803 = vsel %vm3739, %v6752, 0
      %v6806 = vsel %vm3739, %v6753, 0
      %v6809 = vsel %vm3739, %v6754, 0
      %v6812 = vsel %vm3739, %v6755, 0
      %v6815 = vsel %vm3739, %v6756, 0
      %v6818 = vsel %vm3739, %v6757, 0
      %v6821 = vsel %vm3739, %v6758, 0
      %v6824 = vsel %vm3739, %v6759, 0
      %v6827 = vsel %vm3739, %v6760, 0
      %v6830 = vsel %vm3739, %v6761, 0
      %v6833 = vsel %vm3739, %v6762, 0
      %v6836 = vsel %vm3739, %v6763, 0
      %v6839 = vsel %vm3739, %v6764, 0
      %v6842 = vsel %vm3739, %v6765, 0
      %v6845 = vsel %vm3739, %v6766, 0
      %v6848 = vsel %vm3739, %v6767, 0
      %v6851 = vsel %vm3739, %v6768, 0
      %v6854 = vsel %vm3739, %v6769, 0
      %v6857 = vsel %vm3739, %v6770, 0
      %v6860 = vsel %vm3739, %v6771, 0
      %v6863 = vsel %vm3739, %v6772, 0
      %v6866 = vsel %vm3739, %v6773, 0
      %v6869 = vsel %vm3739, %v6774, 0
      %v6872 = vsel %vm3739, %v6775, 0
      %6874 = vmatprep.subr.mxu0 0.0
      %6875 = vmatpush1.msra.mxu0 %v6777
      %6876 = vmatprep.subr.mxu0 0.0
      %6877 = vmatpush1.msra.mxu0 0.0
      %6878 = vmatprep.subr.mxu0 0.0
      %6879 = vmatpush1.msra.mxu0 0.0
      %6880 = vmatprep.subr.mxu0 0.0
      %6881 = vmatpush1.msra.mxu0 0.0
      %6882 = vmatprep.subr.mxu0 0.0
      %6883 = vmatpush1.msra.mxu0 0.0
      %6884 = vmatprep.subr.mxu0 0.0
      %6885 = vmatpush1.msra.mxu0 0.0
      %6886 = vmatprep.subr.mxu0 0.0
      %6887 = vmatpush1.msra.mxu0 0.0
      %6888 = vmatprep.subr.mxu0 0.0
      %6889 = vmatpush1.msra.mxu0 0.0
      %6890 = vmatprep.subr.mxu0 0.0
      %6891 = vmatpush1.msra.mxu0 0.0
      %6892 = vmatprep.subr.mxu0 0.0
      %6893 = vmatpush1.msra.mxu0 0.0
      %6894 = vmatprep.subr.mxu0 0.0
      %6895 = vmatpush1.msra.mxu0 0.0
      %6896 = vmatprep.subr.mxu0 0.0
      %6897 = vmatpush1.msra.mxu0 0.0
      %6898 = vmatprep.subr.mxu0 0.0
      %6899 = vmatpush1.msra.mxu0 0.0
      %6900 = vmatprep.subr.mxu0 0.0
      %6901 = vmatpush1.msra.mxu0 0.0
      %6902 = vmatprep.subr.mxu0 0.0
      %6903 = vmatpush1.msra.mxu0 0.0
      %6904 = vmatprep.subr.mxu0 0.0
      %6905 = vmatpush1.msra.mxu0 0.0
      %6906 = vmatprep.subr.mxu0 0.0
      %6907 = vmatpush1.msra.mxu0 0.0
      %6908 = vmatprep.subr.mxu0 0.0
      %6909 = vmatpush1.msra.mxu0 0.0
      %6910 = vmatprep.subr.mxu0 0.0
      %6911 = vmatpush1.msra.mxu0 0.0
      %6912 = vmatprep.subr.mxu0 0.0
      %6913 = vmatpush1.msra.mxu0 0.0
      %6914 = vmatprep.subr.mxu0 0.0
      %6915 = vmatpush1.msra.mxu0 0.0
      %6916 = vmatprep.subr.mxu0 0.0
      %6917 = vmatpush1.msra.mxu0 0.0
      %6918 = vmatprep.subr.mxu0 0.0
      %6919 = vmatpush1.msra.mxu0 0.0
      %6920 = vmatprep.subr.mxu0 0.0
      %6921 = vmatpush1.msra.mxu0 0.0
      %6922 = vmatprep.subr.mxu0 0.0
      %6923 = vmatpush1.msra.mxu0 0.0
      %6924 = vmatprep.subr.mxu0 0.0
      %6925 = vmatpush1.msra.mxu0 0.0
      %6926 = vmatprep.subr.mxu0 0.0
      %6927 = vmatpush1.msra.mxu0 0.0
      %6928 = vmatprep.subr.mxu0 0.0
      %6929 = vmatpush1.msra.mxu0 0.0
      %6930 = vmatprep.subr.mxu0 0.0
      %6931 = vmatpush1.msra.mxu0 0.0
      %6932 = vmatprep.subr.mxu0 0.0
      %6933 = vmatpush1.msra.mxu0 0.0
      %6934 = vmatprep.subr.mxu0 0.0
      %6935 = vmatpush1.msra.mxu0 0.0
      %6936 = vmatprep.subr.mxu0 0.0
      %6937 = vmatpush1.msra.mxu0 0.0
      %6938 = vmatprep.mubr.f32.mxu0 0.0
      %6939 = vmatmul.mubr.f32.gmra.mrb[0].mxu0 %v6779
      %v6940 = vpop.f32.mrb[0].mxu0
      %v6941 = vadd.f32 0.0, %v6940
      %v6942 = vpop.f32.mrb[0].mxu0
      %6943 = vmatprep.mubr.f32.mxu0 0.0
      %6944 = vmatmul.mubr.f32.gmra.mrb[0].mxu0 %v6782
      %v6945 = vpop.f32.mrb[0].mxu0
      %v6946 = vadd.f32 0.0, %v6945
      %v6947 = vpop.f32.mrb[0].mxu0
      %6948 = vmatprep.mubr.f32.mxu0 0.0
      %6949 = vmatmul.mubr.f32.gmra.mrb[0].mxu0 %v6785
      %v6950 = vpop.f32.mrb[0].mxu0
      %v6951 = vadd.f32 0.0, %v6950
      %v6952 = vpop.f32.mrb[0].mxu0
      %6953 = vmatprep.mubr.f32.mxu0 0.0
      %6954 = vmatmul.mubr.f32.gmra.mrb[0].mxu0 %v6788
      %v6955 = vpop.f32.mrb[0].mxu0
      %v6956 = vadd.f32 0.0, %v6955
      %v6957 = vpop.f32.mrb[0].mxu0
      %6958 = vmatprep.mubr.f32.mxu0 0.0
      %6959 = vmatmul.mubr.f32.gmra.mrb[0].mxu0 %v6791
      %v6960 = vpop.f32.mrb[0].mxu0
      %v6961 = vadd.f32 0.0, %v6960
      %v6962 = vpop.f32.mrb[0].mxu0
      %6963 = vmatprep.mubr.f32.mxu0 0.0
      %6964 = vmatmul.mubr.f32.gmra.mrb[0].mxu0 %v6794
      %v6965 = vpop.f32.mrb[0].mxu0
      %v6966 = vadd.f32 0.0, %v6965
      %v6967 = vpop.f32.mrb[0].mxu0
      %6968 = vmatprep.mubr.f32.mxu0 0.0
      %6969 = vmatmul.mubr.f32.gmra.mrb[0].mxu0 %v6797
      %v6970 = vpop.f32.mrb[0].mxu0
      %v6971 = vadd.f32 0.0, %v6970
      %v6972 = vpop.f32.mrb[0].mxu0
      %6973 = vmatprep.mubr.f32.mxu0 0.0
      %6974 = vmatmul.mubr.f32.gmra.mrb[0].mxu0 %v6800
      %v6975 = vpop.f32.mrb[0].mxu0
      %v6976 = vadd.f32 0.0, %v6975
      %v6977 = vpop.f32.mrb[0].mxu0
      %6978 = vmatprep.mubr.f32.mxu0 0.0
      %6979 = vmatmul.mubr.f32.gmra.mrb[0].mxu0 %v6803
      %v6980 = vpop.f32.mrb[0].mxu0
      %v6981 = vadd.f32 0.0, %v6980
      %v6982 = vpop.f32.mrb[0].mxu0
      %6983 = vmatprep.mubr.f32.mxu0 0.0
      %6984 = vmatmul.mubr.f32.gmra.mrb[0].mxu0 %v6806
      %v6985 = vpop.f32.mrb[0].mxu0
      %v6986 = vadd.f32 0.0, %v6985
      %v6987 = vpop.f32.mrb[0].mxu0
      %6988 = vmatprep.mubr.f32.mxu0 0.0
      %6989 = vmatmul.mubr.f32.gmra.mrb[0].mxu0 %v6809
      %v6990 = vpop.f32.mrb[0].mxu0
      %v6991 = vadd.f32 0.0, %v6990
      %v6992 = vpop.f32.mrb[0].mxu0
      %6993 = vmatprep.mubr.f32.mxu0 0.0
      %6994 = vmatmul.mubr.f32.gmra.mrb[0].mxu0 %v6812
      %v6995 = vpop.f32.mrb[0].mxu0
      %v6996 = vadd.f32 0.0, %v6995
      %v6997 = vpop.f32.mrb[0].mxu0
      %6998 = vmatprep.mubr.f32.mxu0 0.0
      %6999 = vmatmul.mubr.f32.gmra.mrb[0].mxu0 %v6815
      %v7000 = vpop.f32.mrb[0].mxu0
      %v7001 = vadd.f32 0.0, %v7000
      %v7002 = vpop.f32.mrb[0].mxu0
      %7003 = vmatprep.mubr.f32.mxu0 0.0
      %7004 = vmatmul.mubr.f32.gmra.mrb[0].mxu0 %v6818
      %v7005 = vpop.f32.mrb[0].mxu0
      %v7006 = vadd.f32 0.0, %v7005
      %v7007 = vpop.f32.mrb[0].mxu0
      %7008 = vmatprep.mubr.f32.mxu0 0.0
      %7009 = vmatmul.mubr.f32.gmra.mrb[0].mxu0 %v6821
      %v7010 = vpop.f32.mrb[0].mxu0
      %v7011 = vadd.f32 0.0, %v7010
      %v7012 = vpop.f32.mrb[0].mxu0
      %7013 = vmatprep.mubr.f32.mxu0 0.0
      %7014 = vmatmul.mubr.f32.gmra.mrb[0].mxu0 %v6824
      %v7015 = vpop.f32.mrb[0].mxu0
      %v7016 = vadd.f32 0.0, %v7015
      %v7017 = vpop.f32.mrb[0].mxu0
      %7018 = vmatprep.mubr.f32.mxu0 0.0
      %7019 = vmatmul.mubr.f32.gmra.mrb[0].mxu0 %v6827
      %v7020 = vpop.f32.mrb[0].mxu0
      %v7021 = vadd.f32 0.0, %v7020
      %v7022 = vpop.f32.mrb[0].mxu0
      %7023 = vmatprep.mubr.f32.mxu0 0.0
      %7024 = vmatmul.mubr.f32.gmra.mrb[0].mxu0 %v6830
      %v7025 = vpop.f32.mrb[0].mxu0
      %v7026 = vadd.f32 0.0, %v7025
      %v7027 = vpop.f32.mrb[0].mxu0
      %7028 = vmatprep.mubr.f32.mxu0 0.0
      %7029 = vmatmul.mubr.f32.gmra.mrb[0].mxu0 %v6833
      %v7030 = vpop.f32.mrb[0].mxu0
      %v7031 = vadd.f32 0.0, %v7030
      %v7032 = vpop.f32.mrb[0].mxu0
      %7033 = vmatprep.mubr.f32.mxu0 0.0
      %7034 = vmatmul.mubr.f32.gmra.mrb[0].mxu0 %v6836
      %v7035 = vpop.f32.mrb[0].mxu0
      %v7036 = vadd.f32 0.0, %v7035
      %v7037 = vpop.f32.mrb[0].mxu0
      %7038 = vmatprep.mubr.f32.mxu0 0.0
      %7039 = vmatmul.mubr.f32.gmra.mrb[0].mxu0 %v6839
      %v7040 = vpop.f32.mrb[0].mxu0
      %v7041 = vadd.f32 0.0, %v7040
      %v7042 = vpop.f32.mrb[0].mxu0
      %7043 = vmatprep.mubr.f32.mxu0 0.0
      %7044 = vmatmul.mubr.f32.gmra.mrb[0].mxu0 %v6842
      %v7045 = vpop.f32.mrb[0].mxu0
      %v7046 = vadd.f32 0.0, %v7045
      %v7047 = vpop.f32.mrb[0].mxu0
      %7048 = vmatprep.mubr.f32.mxu0 0.0
      %7049 = vmatmul.mubr.f32.gmra.mrb[0].mxu0 %v6845
      %v7050 = vpop.f32.mrb[0].mxu0
      %v7051 = vadd.f32 0.0, %v7050
      %v7052 = vpop.f32.mrb[0].mxu0
      %7053 = vmatprep.mubr.f32.mxu0 0.0
      %7054 = vmatmul.mubr.f32.gmra.mrb[0].mxu0 %v6848
      %v7055 = vpop.f32.mrb[0].mxu0
      %v7056 = vadd.f32 0.0, %v7055
      %v7057 = vpop.f32.mrb[0].mxu0
      %7058 = vmatprep.mubr.f32.mxu0 0.0
      %7059 = vmatmul.mubr.f32.gmra.mrb[0].mxu0 %v6851
      %v7060 = vpop.f32.mrb[0].mxu0
      %v7061 = vadd.f32 0.0, %v7060
      %v7062 = vpop.f32.mrb[0].mxu0
      %7063 = vmatprep.mubr.f32.mxu0 0.0
      %7064 = vmatmul.mubr.f32.gmra.mrb[0].mxu0 %v6854
      %v7065 = vpop.f32.mrb[0].mxu0
      %v7066 = vadd.f32 0.0, %v7065
      %v7067 = vpop.f32.mrb[0].mxu0
      %7068 = vmatprep.mubr.f32.mxu0 0.0
      %7069 = vmatmul.mubr.f32.gmra.mrb[0].mxu0 %v6857
      %v7070 = vpop.f32.mrb[0].mxu0
      %v7071 = vadd.f32 0.0, %v7070
      %v7072 = vpop.f32.mrb[0].mxu0
      %7073 = vmatprep.mubr.f32.mxu0 0.0
      %7074 = vmatmul.mubr.f32.gmra.mrb[0].mxu0 %v6860
      %v7075 = vpop.f32.mrb[0].mxu0
      %v7076 = vadd.f32 0.0, %v7075
      %v7077 = vpop.f32.mrb[0].mxu0
      %7078 = vmatprep.mubr.f32.mxu0 0.0
      %7079 = vmatmul.mubr.f32.gmra.mrb[0].mxu0 %v6863
      %v7080 = vpop.f32.mrb[0].mxu0
      %v7081 = vadd.f32 0.0, %v7080
      %v7082 = vpop.f32.mrb[0].mxu0
      %7083 = vmatprep.mubr.f32.mxu0 0.0
      %7084 = vmatmul.mubr.f32.gmra.mrb[0].mxu0 %v6866
      %v7085 = vpop.f32.mrb[0].mxu0
      %v7086 = vadd.f32 0.0, %v7085
      %v7087 = vpop.f32.mrb[0].mxu0
      %7088 = vmatprep.mubr.f32.mxu0 0.0
      %7089 = vmatmul.mubr.f32.gmra.mrb[0].mxu0 %v6869
      %v7090 = vpop.f32.mrb[0].mxu0
      %v7091 = vadd.f32 0.0, %v7090
      %v7092 = vpop.f32.mrb[0].mxu0
      %7093 = vmatprep.mubr.f32.mxu0 0.0
      %7094 = vmatmul.mubr.f32.gmra.mrb[0].mxu0 %v6872
      %v7095 = vpop.f32.mrb[0].mxu0
      %v7096 = vadd.f32 0.0, %v7095
      %v7097 = vpop.f32.mrb[0].mxu0
      %7098 = vdwg.mxu0
      %v7099 = vadd.f32 %v6712, %v6941
      %v7100 = vadd.f32 %v6713, %v6946
      %v7101 = vadd.f32 %v6714, %v6951
      %v7102 = vadd.f32 %v6715, %v6956
      %v7103 = vadd.f32 %v6716, %v6961
      %v7104 = vadd.f32 %v6717, %v6966
      %v7105 = vadd.f32 %v6718, %v6971
      %v7106 = vadd.f32 %v6719, %v6976
      %v7107 = vadd.f32 %v6720, %v6981
      %v7108 = vadd.f32 %v6721, %v6986
      %v7109 = vadd.f32 %v6722, %v6991
      %v7110 = vadd.f32 %v6723, %v6996
      %v7111 = vadd.f32 %v6724, %v7001
      %v7112 = vadd.f32 %v6725, %v7006
      %v7113 = vadd.f32 %v6726, %v7011
      %v7114 = vadd.f32 %v6727, %v7016
      %v7115 = vadd.f32 %v6728, %v7021
      %v7116 = vadd.f32 %v6729, %v7026
      %v7117 = vadd.f32 %v6730, %v7031
      %v7118 = vadd.f32 %v6731, %v7036
      %v7119 = vadd.f32 %v6732, %v7041
      %v7120 = vadd.f32 %v6733, %v7046
      %v7121 = vadd.f32 %v6734, %v7051
      %v7122 = vadd.f32 %v6735, %v7056
      %v7123 = vadd.f32 %v6736, %v7061
      %v7124 = vadd.f32 %v6737, %v7066
      %v7125 = vadd.f32 %v6738, %v7071
      %v7126 = vadd.f32 %v6739, %v7076
      %v7127 = vadd.f32 %v6740, %v7081
      %v7128 = vadd.f32 %v6741, %v7086
      %v7129 = vadd.f32 %v6742, %v7091
      %v7130 = vadd.f32 %v6743, %v7096
      %v7131 = vld [vmem:[%s6356 + $0x2] sm:$0xff]
      %v7132 = vld [vmem:[%s6356 + $0xa] sm:$0xff]
      %v7133 = vld [vmem:[%s6356 + $0x1a] sm:$0xff]
      %v7134 = vld [vmem:[%s6356 + $0x22] sm:$0xff]
      %v7135 = vld [vmem:[%s6356 + $0x32] sm:$0xff]
      %v7136 = vld [vmem:[%s6356 + $0x3a] sm:$0xff]
      %v7137 = vld [vmem:[%s6356 + $0x4a] sm:$0xff]
      %v7138 = vld [vmem:[%s6356 + $0x52] sm:$0xff]
      %v7139 = vld [vmem:[%s6356 + $0x62] sm:$0xff]
      %v7140 = vld [vmem:[%s6356 + $0x6a] sm:$0xff]
      %v7141 = vld [vmem:[%s6356 + $0x7a] sm:$0xff]
      %v7142 = vld [vmem:[%s6356 + $0x82] sm:$0xff]
      %v7143 = vld [vmem:[%s6356 + $0x92] sm:$0xff]
      %v7144 = vld [vmem:[%s6356 + $0x9a] sm:$0xff]
      %v7145 = vld [vmem:[%s6356 + $0xaa] sm:$0xff]
      %v7146 = vld [vmem:[%s6356 + $0xb2] sm:$0xff]
      %v7147 = vld [vmem:[%s6356 + $0xc2] sm:$0xff]
      %v7148 = vld [vmem:[%s6356 + $0xca] sm:$0xff]
      %v7149 = vld [vmem:[%s6356 + $0xda] sm:$0xff]
      %v7150 = vld [vmem:[%s6356 + $0xe2] sm:$0xff]
      %v7151 = vld [vmem:[%s6356 + $0xf2] sm:$0xff]
      %v7152 = vld [vmem:[%s6356 + $0xfa] sm:$0xff]
      %v7153 = vld [vmem:[%s6356 + $0x10a] sm:$0xff]
      %v7154 = vld [vmem:[%s6356 + $0x112] sm:$0xff]
      %v7155 = vld [vmem:[%s6356 + $0x122] sm:$0xff]
      %v7156 = vld [vmem:[%s6356 + $0x12a] sm:$0xff]
      %v7157 = vld [vmem:[%s6356 + $0x13a] sm:$0xff]
      %v7158 = vld [vmem:[%s6356 + $0x142] sm:$0xff]
      %v7159 = vld [vmem:[%s6356 + $0x152] sm:$0xff]
      %v7160 = vld [vmem:[%s6356 + $0x15a] sm:$0xff]
      %v7161 = vld [vmem:[%s6356 + $0x16a] sm:$0xff]
      %v7162 = vld [vmem:[%s6356 + $0x172] sm:$0xff]
      %s7163 = scalar_lea.vmem %s2, 64
      %v7164 = vld [vmem:[%s7163] sm:$0xff]
      %v7166 = vsel %vm3739, %v7131, 0
      %v7169 = vsel %vm3739, %v7132, 0
      %v7172 = vsel %vm3739, %v7133, 0
      %v7175 = vsel %vm3739, %v7134, 0
      %v7178 = vsel %vm3739, %v7135, 0
      %v7181 = vsel %vm3739, %v7136, 0
      %v7184 = vsel %vm3739, %v7137, 0
      %v7187 = vsel %vm3739, %v7138, 0
      %v7190 = vsel %vm3739, %v7139, 0
      %v7193 = vsel %vm3739, %v7140, 0
      %v7196 = vsel %vm3739, %v7141, 0
      %v7199 = vsel %vm3739, %v7142, 0
      %v7202 = vsel %vm3739, %v7143, 0
      %v7205 = vsel %vm3739, %v7144, 0
      %v7208 = vsel %vm3739, %v7145, 0
      %v7211 = vsel %vm3739, %v7146, 0
      %v7214 = vsel %vm3739, %v7147, 0
      %v7217 = vsel %vm3739, %v7148, 0
      %v7220 = vsel %vm3739, %v7149, 0
      %v7223 = vsel %vm3739, %v7150, 0
      %v7226 = vsel %vm3739, %v7151, 0
      %v7229 = vsel %vm3739, %v7152, 0
      %v7232 = vsel %vm3739, %v7153, 0
      %v7235 = vsel %vm3739, %v7154, 0
      %v7238 = vsel %vm3739, %v7155, 0
      %v7241 = vsel %vm3739, %v7156, 0
      %v7244 = vsel %vm3739, %v7157, 0
      %v7247 = vsel %vm3739, %v7158, 0
      %v7250 = vsel %vm3739, %v7159, 0
      %v7253 = vsel %vm3739, %v7160, 0
      %v7256 = vsel %vm3739, %v7161, 0
      %v7259 = vsel %vm3739, %v7162, 0
      %7261 = vmatprep.subr.mxu0 0.0
      %7262 = vmatpush1.msra.mxu0 %v7164
      %7263 = vmatprep.subr.mxu0 0.0
      %7264 = vmatpush1.msra.mxu0 0.0
      %7265 = vmatprep.subr.mxu0 0.0
      %7266 = vmatpush1.msra.mxu0 0.0
      %7267 = vmatprep.subr.mxu0 0.0
      %7268 = vmatpush1.msra.mxu0 0.0
      %7269 = vmatprep.subr.mxu0 0.0
      %7270 = vmatpush1.msra.mxu0 0.0
      %7271 = vmatprep.subr.mxu0 0.0
      %7272 = vmatpush1.msra.mxu0 0.0
      %7273 = vmatprep.subr.mxu0 0.0
      %7274 = vmatpush1.msra.mxu0 0.0
      %7275 = vmatprep.subr.mxu0 0.0
      %7276 = vmatpush1.msra.mxu0 0.0
      %7277 = vmatprep.subr.mxu0 0.0
      %7278 = vmatpush1.msra.mxu0 0.0
      %7279 = vmatprep.subr.mxu0 0.0
      %7280 = vmatpush1.msra.mxu0 0.0
      %7281 = vmatprep.subr.mxu0 0.0
      %7282 = vmatpush1.msra.mxu0 0.0
      %7283 = vmatprep.subr.mxu0 0.0
      %7284 = vmatpush1.msra.mxu0 0.0
      %7285 = vmatprep.subr.mxu0 0.0
      %7286 = vmatpush1.msra.mxu0 0.0
      %7287 = vmatprep.subr.mxu0 0.0
      %7288 = vmatpush1.msra.mxu0 0.0
      %7289 = vmatprep.subr.mxu0 0.0
      %7290 = vmatpush1.msra.mxu0 0.0
      %7291 = vmatprep.subr.mxu0 0.0
      %7292 = vmatpush1.msra.mxu0 0.0
      %7293 = vmatprep.subr.mxu0 0.0
      %7294 = vmatpush1.msra.mxu0 0.0
      %7295 = vmatprep.subr.mxu0 0.0
      %7296 = vmatpush1.msra.mxu0 0.0
      %7297 = vmatprep.subr.mxu0 0.0
      %7298 = vmatpush1.msra.mxu0 0.0
      %7299 = vmatprep.subr.mxu0 0.0
      %7300 = vmatpush1.msra.mxu0 0.0
      %7301 = vmatprep.subr.mxu0 0.0
      %7302 = vmatpush1.msra.mxu0 0.0
      %7303 = vmatprep.subr.mxu0 0.0
      %7304 = vmatpush1.msra.mxu0 0.0
      %7305 = vmatprep.subr.mxu0 0.0
      %7306 = vmatpush1.msra.mxu0 0.0
      %7307 = vmatprep.subr.mxu0 0.0
      %7308 = vmatpush1.msra.mxu0 0.0
      %7309 = vmatprep.subr.mxu0 0.0
      %7310 = vmatpush1.msra.mxu0 0.0
      %7311 = vmatprep.subr.mxu0 0.0
      %7312 = vmatpush1.msra.mxu0 0.0
      %7313 = vmatprep.subr.mxu0 0.0
      %7314 = vmatpush1.msra.mxu0 0.0
      %7315 = vmatprep.subr.mxu0 0.0
      %7316 = vmatpush1.msra.mxu0 0.0
      %7317 = vmatprep.subr.mxu0 0.0
      %7318 = vmatpush1.msra.mxu0 0.0
      %7319 = vmatprep.subr.mxu0 0.0
      %7320 = vmatpush1.msra.mxu0 0.0
      %7321 = vmatprep.subr.mxu0 0.0
      %7322 = vmatpush1.msra.mxu0 0.0
      %7323 = vmatprep.subr.mxu0 0.0
      %7324 = vmatpush1.msra.mxu0 0.0
      %7325 = vmatprep.mubr.f32.mxu0 0.0
      %7326 = vmatmul.mubr.f32.gmra.mrb[0].mxu0 %v7166
      %v7327 = vpop.f32.mrb[0].mxu0
      %v7328 = vadd.f32 0.0, %v7327
      %v7329 = vpop.f32.mrb[0].mxu0
      %7330 = vmatprep.mubr.f32.mxu0 0.0
      %7331 = vmatmul.mubr.f32.gmra.mrb[0].mxu0 %v7169
      %v7332 = vpop.f32.mrb[0].mxu0
      %v7333 = vadd.f32 0.0, %v7332
      %v7334 = vpop.f32.mrb[0].mxu0
      %7335 = vmatprep.mubr.f32.mxu0 0.0
      %7336 = vmatmul.mubr.f32.gmra.mrb[0].mxu0 %v7172
      %v7337 = vpop.f32.mrb[0].mxu0
      %v7338 = vadd.f32 0.0, %v7337
      %v7339 = vpop.f32.mrb[0].mxu0
      %7340 = vmatprep.mubr.f32.mxu0 0.0
      %7341 = vmatmul.mubr.f32.gmra.mrb[0].mxu0 %v7175
      %v7342 = vpop.f32.mrb[0].mxu0
      %v7343 = vadd.f32 0.0, %v7342
      %v7344 = vpop.f32.mrb[0].mxu0
      %7345 = vmatprep.mubr.f32.mxu0 0.0
      %7346 = vmatmul.mubr.f32.gmra.mrb[0].mxu0 %v7178
      %v7347 = vpop.f32.mrb[0].mxu0
      %v7348 = vadd.f32 0.0, %v7347
      %v7349 = vpop.f32.mrb[0].mxu0
      %7350 = vmatprep.mubr.f32.mxu0 0.0
      %7351 = vmatmul.mubr.f32.gmra.mrb[0].mxu0 %v7181
      %v7352 = vpop.f32.mrb[0].mxu0
      %v7353 = vadd.f32 0.0, %v7352
      %v7354 = vpop.f32.mrb[0].mxu0
      %7355 = vmatprep.mubr.f32.mxu0 0.0
      %7356 = vmatmul.mubr.f32.gmra.mrb[0].mxu0 %v7184
      %v7357 = vpop.f32.mrb[0].mxu0
      %v7358 = vadd.f32 0.0, %v7357
      %v7359 = vpop.f32.mrb[0].mxu0
      %7360 = vmatprep.mubr.f32.mxu0 0.0
      %7361 = vmatmul.mubr.f32.gmra.mrb[0].mxu0 %v7187
      %v7362 = vpop.f32.mrb[0].mxu0
      %v7363 = vadd.f32 0.0, %v7362
      %v7364 = vpop.f32.mrb[0].mxu0
      %7365 = vmatprep.mubr.f32.mxu0 0.0
      %7366 = vmatmul.mubr.f32.gmra.mrb[0].mxu0 %v7190
      %v7367 = vpop.f32.mrb[0].mxu0
      %v7368 = vadd.f32 0.0, %v7367
      %v7369 = vpop.f32.mrb[0].mxu0
      %7370 = vmatprep.mubr.f32.mxu0 0.0
      %7371 = vmatmul.mubr.f32.gmra.mrb[0].mxu0 %v7193
      %v7372 = vpop.f32.mrb[0].mxu0
      %v7373 = vadd.f32 0.0, %v7372
      %v7374 = vpop.f32.mrb[0].mxu0
      %7375 = vmatprep.mubr.f32.mxu0 0.0
      %7376 = vmatmul.mubr.f32.gmra.mrb[0].mxu0 %v7196
      %v7377 = vpop.f32.mrb[0].mxu0
      %v7378 = vadd.f32 0.0, %v7377
      %v7379 = vpop.f32.mrb[0].mxu0
      %7380 = vmatprep.mubr.f32.mxu0 0.0
      %7381 = vmatmul.mubr.f32.gmra.mrb[0].mxu0 %v7199
      %v7382 = vpop.f32.mrb[0].mxu0
      %v7383 = vadd.f32 0.0, %v7382
      %v7384 = vpop.f32.mrb[0].mxu0
      %7385 = vmatprep.mubr.f32.mxu0 0.0
      %7386 = vmatmul.mubr.f32.gmra.mrb[0].mxu0 %v7202
      %v7387 = vpop.f32.mrb[0].mxu0
      %v7388 = vadd.f32 0.0, %v7387
      %v7389 = vpop.f32.mrb[0].mxu0
      %7390 = vmatprep.mubr.f32.mxu0 0.0
      %7391 = vmatmul.mubr.f32.gmra.mrb[0].mxu0 %v7205
      %v7392 = vpop.f32.mrb[0].mxu0
      %v7393 = vadd.f32 0.0, %v7392
      %v7394 = vpop.f32.mrb[0].mxu0
      %7395 = vmatprep.mubr.f32.mxu0 0.0
      %7396 = vmatmul.mubr.f32.gmra.mrb[0].mxu0 %v7208
      %v7397 = vpop.f32.mrb[0].mxu0
      %v7398 = vadd.f32 0.0, %v7397
      %v7399 = vpop.f32.mrb[0].mxu0
      %7400 = vmatprep.mubr.f32.mxu0 0.0
      %7401 = vmatmul.mubr.f32.gmra.mrb[0].mxu0 %v7211
      %v7402 = vpop.f32.mrb[0].mxu0
      %v7403 = vadd.f32 0.0, %v7402
      %v7404 = vpop.f32.mrb[0].mxu0
      %7405 = vmatprep.mubr.f32.mxu0 0.0
      %7406 = vmatmul.mubr.f32.gmra.mrb[0].mxu0 %v7214
      %v7407 = vpop.f32.mrb[0].mxu0
      %v7408 = vadd.f32 0.0, %v7407
      %v7409 = vpop.f32.mrb[0].mxu0
      %7410 = vmatprep.mubr.f32.mxu0 0.0
      %7411 = vmatmul.mubr.f32.gmra.mrb[0].mxu0 %v7217
      %v7412 = vpop.f32.mrb[0].mxu0
      %v7413 = vadd.f32 0.0, %v7412
      %v7414 = vpop.f32.mrb[0].mxu0
      %7415 = vmatprep.mubr.f32.mxu0 0.0
      %7416 = vmatmul.mubr.f32.gmra.mrb[0].mxu0 %v7220
      %v7417 = vpop.f32.mrb[0].mxu0
      %v7418 = vadd.f32 0.0, %v7417
      %v7419 = vpop.f32.mrb[0].mxu0
      %7420 = vmatprep.mubr.f32.mxu0 0.0
      %7421 = vmatmul.mubr.f32.gmra.mrb[0].mxu0 %v7223
      %v7422 = vpop.f32.mrb[0].mxu0
      %v7423 = vadd.f32 0.0, %v7422
      %v7424 = vpop.f32.mrb[0].mxu0
      %7425 = vmatprep.mubr.f32.mxu0 0.0
      %7426 = vmatmul.mubr.f32.gmra.mrb[0].mxu0 %v7226
      %v7427 = vpop.f32.mrb[0].mxu0
      %v7428 = vadd.f32 0.0, %v7427
      %v7429 = vpop.f32.mrb[0].mxu0
      %7430 = vmatprep.mubr.f32.mxu0 0.0
      %7431 = vmatmul.mubr.f32.gmra.mrb[0].mxu0 %v7229
      %v7432 = vpop.f32.mrb[0].mxu0
      %v7433 = vadd.f32 0.0, %v7432
      %v7434 = vpop.f32.mrb[0].mxu0
      %7435 = vmatprep.mubr.f32.mxu0 0.0
      %7436 = vmatmul.mubr.f32.gmra.mrb[0].mxu0 %v7232
      %v7437 = vpop.f32.mrb[0].mxu0
      %v7438 = vadd.f32 0.0, %v7437
      %v7439 = vpop.f32.mrb[0].mxu0
      %7440 = vmatprep.mubr.f32.mxu0 0.0
      %7441 = vmatmul.mubr.f32.gmra.mrb[0].mxu0 %v7235
      %v7442 = vpop.f32.mrb[0].mxu0
      %v7443 = vadd.f32 0.0, %v7442
      %v7444 = vpop.f32.mrb[0].mxu0
      %7445 = vmatprep.mubr.f32.mxu0 0.0
      %7446 = vmatmul.mubr.f32.gmra.mrb[0].mxu0 %v7238
      %v7447 = vpop.f32.mrb[0].mxu0
      %v7448 = vadd.f32 0.0, %v7447
      %v7449 = vpop.f32.mrb[0].mxu0
      %7450 = vmatprep.mubr.f32.mxu0 0.0
      %7451 = vmatmul.mubr.f32.gmra.mrb[0].mxu0 %v7241
      %v7452 = vpop.f32.mrb[0].mxu0
      %v7453 = vadd.f32 0.0, %v7452
      %v7454 = vpop.f32.mrb[0].mxu0
      %7455 = vmatprep.mubr.f32.mxu0 0.0
      %7456 = vmatmul.mubr.f32.gmra.mrb[0].mxu0 %v7244
      %v7457 = vpop.f32.mrb[0].mxu0
      %v7458 = vadd.f32 0.0, %v7457
      %v7459 = vpop.f32.mrb[0].mxu0
      %7460 = vmatprep.mubr.f32.mxu0 0.0
      %7461 = vmatmul.mubr.f32.gmra.mrb[0].mxu0 %v7247
      %v7462 = vpop.f32.mrb[0].mxu0
      %v7463 = vadd.f32 0.0, %v7462
      %v7464 = vpop.f32.mrb[0].mxu0
      %7465 = vmatprep.mubr.f32.mxu0 0.0
      %7466 = vmatmul.mubr.f32.gmra.mrb[0].mxu0 %v7250
      %v7467 = vpop.f32.mrb[0].mxu0
      %v7468 = vadd.f32 0.0, %v7467
      %v7469 = vpop.f32.mrb[0].mxu0
      %7470 = vmatprep.mubr.f32.mxu0 0.0
      %7471 = vmatmul.mubr.f32.gmra.mrb[0].mxu0 %v7253
      %v7472 = vpop.f32.mrb[0].mxu0
      %v7473 = vadd.f32 0.0, %v7472
      %v7474 = vpop.f32.mrb[0].mxu0
      %7475 = vmatprep.mubr.f32.mxu0 0.0
      %7476 = vmatmul.mubr.f32.gmra.mrb[0].mxu0 %v7256
      %v7477 = vpop.f32.mrb[0].mxu0
      %v7478 = vadd.f32 0.0, %v7477
      %v7479 = vpop.f32.mrb[0].mxu0
      %7480 = vmatprep.mubr.f32.mxu0 0.0
      %7481 = vmatmul.mubr.f32.gmra.mrb[0].mxu0 %v7259
      %v7482 = vpop.f32.mrb[0].mxu0
      %v7483 = vadd.f32 0.0, %v7482
      %v7484 = vpop.f32.mrb[0].mxu0
      %7485 = vdwg.mxu0
      %v7486 = vadd.f32 %v7099, %v7328
      %v7487 = vadd.f32 %v7100, %v7333
      %v7488 = vadd.f32 %v7101, %v7338
      %v7489 = vadd.f32 %v7102, %v7343
      %v7490 = vadd.f32 %v7103, %v7348
      %v7491 = vadd.f32 %v7104, %v7353
      %v7492 = vadd.f32 %v7105, %v7358
      %v7493 = vadd.f32 %v7106, %v7363
      %v7494 = vadd.f32 %v7107, %v7368
      %v7495 = vadd.f32 %v7108, %v7373
      %v7496 = vadd.f32 %v7109, %v7378
      %v7497 = vadd.f32 %v7110, %v7383
      %v7498 = vadd.f32 %v7111, %v7388
      %v7499 = vadd.f32 %v7112, %v7393
      %v7500 = vadd.f32 %v7113, %v7398
      %v7501 = vadd.f32 %v7114, %v7403
      %v7502 = vadd.f32 %v7115, %v7408
      %v7503 = vadd.f32 %v7116, %v7413
      %v7504 = vadd.f32 %v7117, %v7418
      %v7505 = vadd.f32 %v7118, %v7423
      %v7506 = vadd.f32 %v7119, %v7428
      %v7507 = vadd.f32 %v7120, %v7433
      %v7508 = vadd.f32 %v7121, %v7438
      %v7509 = vadd.f32 %v7122, %v7443
      %v7510 = vadd.f32 %v7123, %v7448
      %v7511 = vadd.f32 %v7124, %v7453
      %v7512 = vadd.f32 %v7125, %v7458
      %v7513 = vadd.f32 %v7126, %v7463
      %v7514 = vadd.f32 %v7127, %v7468
      %v7515 = vadd.f32 %v7128, %v7473
      %v7516 = vadd.f32 %v7129, %v7478
      %v7517 = vadd.f32 %v7130, %v7483
      %v7518 = vsel %vm3739, %v7486, 0.0
      %v7519 = vsel %vm3739, %v7487, 0.0
      %v7520 = vadd.f32 %v7518, %v7519
      %v7521 = vsel %vm3739, %v7488, 0.0
      %v7522 = vadd.f32 %v7520, %v7521
      %v7523 = vsel %vm3739, %v7489, 0.0
      %v7524 = vadd.f32 %v7522, %v7523
      %v7525 = vsel %vm3739, %v7490, 0.0
      %v7526 = vadd.f32 %v7524, %v7525
      %v7527 = vsel %vm3739, %v7491, 0.0
      %v7528 = vadd.f32 %v7526, %v7527
      %v7529 = vsel %vm3739, %v7492, 0.0
      %v7530 = vadd.f32 %v7528, %v7529
      %v7531 = vsel %vm3739, %v7493, 0.0
      %v7532 = vadd.f32 %v7530, %v7531
      %v7533 = vsel %vm3739, %v7494, 0.0
      %v7534 = vadd.f32 %v7532, %v7533
      %v7535 = vsel %vm3739, %v7495, 0.0
      %v7536 = vadd.f32 %v7534, %v7535
      %v7537 = vsel %vm3739, %v7496, 0.0
      %v7538 = vadd.f32 %v7536, %v7537
      %v7539 = vsel %vm3739, %v7497, 0.0
      %v7540 = vadd.f32 %v7538, %v7539
      %v7541 = vsel %vm3739, %v7498, 0.0
      %v7542 = vadd.f32 %v7540, %v7541
      %v7543 = vsel %vm3739, %v7499, 0.0
      %v7544 = vadd.f32 %v7542, %v7543
      %v7545 = vsel %vm3739, %v7500, 0.0
      %v7546 = vadd.f32 %v7544, %v7545
      %v7547 = vsel %vm3739, %v7501, 0.0
      %v7548 = vadd.f32 %v7546, %v7547
      %v7549 = vsel %vm3739, %v7502, 0.0
      %v7550 = vadd.f32 %v7548, %v7549
      %v7551 = vsel %vm3739, %v7503, 0.0
      %v7552 = vadd.f32 %v7550, %v7551
      %v7553 = vsel %vm3739, %v7504, 0.0
      %v7554 = vadd.f32 %v7552, %v7553
      %v7555 = vsel %vm3739, %v7505, 0.0
      %v7556 = vadd.f32 %v7554, %v7555
      %v7557 = vsel %vm3739, %v7506, 0.0
      %v7558 = vadd.f32 %v7556, %v7557
      %v7559 = vsel %vm3739, %v7507, 0.0
      %v7560 = vadd.f32 %v7558, %v7559
      %v7561 = vsel %vm3739, %v7508, 0.0
      %v7562 = vadd.f32 %v7560, %v7561
      %v7563 = vsel %vm3739, %v7509, 0.0
      %v7564 = vadd.f32 %v7562, %v7563
      %v7565 = vsel %vm3739, %v7510, 0.0
      %v7566 = vadd.f32 %v7564, %v7565
      %v7567 = vsel %vm3739, %v7511, 0.0
      %v7568 = vadd.f32 %v7566, %v7567
      %v7569 = vsel %vm3739, %v7512, 0.0
      %v7570 = vadd.f32 %v7568, %v7569
      %v7571 = vsel %vm3739, %v7513, 0.0
      %v7572 = vadd.f32 %v7570, %v7571
      %v7573 = vsel %vm3739, %v7514, 0.0
      %v7574 = vadd.f32 %v7572, %v7573
      %v7575 = vsel %vm3739, %v7515, 0.0
      %v7576 = vadd.f32 %v7574, %v7575
      %v7577 = vsel %vm3739, %v7516, 0.0
      %v7578 = vadd.f32 %v7576, %v7577
      %v7579 = vsel %vm3739, %v7517, 0.0
      %v7580 = vadd.f32 %v7578, %v7579
      %v7581 = vrot.slane %v7580, 4
      %v7582 = vadd.f32 %v7580, %v7581
      %v7583 = vrot.slane %v7582, 2
      %v7584 = vadd.f32 %v7582, %v7583
      %v7585 = vrot.slane %v7584, 1
      %v7586 = vadd.f32 %v7584, %v7585
      %v7587 = vmul.f32 %v7586, %v3809
      %v7588 = vsub.f32 %v7486, %v7587
      %v7589 = vsub.f32 %v7487, %v7587
      %v7590 = vsub.f32 %v7488, %v7587
      %v7591 = vsub.f32 %v7489, %v7587
      %v7592 = vsub.f32 %v7490, %v7587
      %v7593 = vsub.f32 %v7491, %v7587
      %v7594 = vsub.f32 %v7492, %v7587
      %v7595 = vsub.f32 %v7493, %v7587
      %v7596 = vsub.f32 %v7494, %v7587
      %v7597 = vsub.f32 %v7495, %v7587
      %v7598 = vsub.f32 %v7496, %v7587
      %v7599 = vsub.f32 %v7497, %v7587
      %v7600 = vsub.f32 %v7498, %v7587
      %v7601 = vsub.f32 %v7499, %v7587
      %v7602 = vsub.f32 %v7500, %v7587
      %v7603 = vsub.f32 %v7501, %v7587
      %v7604 = vsub.f32 %v7502, %v7587
      %v7605 = vsub.f32 %v7503, %v7587
      %v7606 = vsub.f32 %v7504, %v7587
      %v7607 = vsub.f32 %v7505, %v7587
      %v7608 = vsub.f32 %v7506, %v7587
      %v7609 = vsub.f32 %v7507, %v7587
      %v7610 = vsub.f32 %v7508, %v7587
      %v7611 = vsub.f32 %v7509, %v7587
      %v7612 = vsub.f32 %v7510, %v7587
      %v7613 = vsub.f32 %v7511, %v7587
      %v7614 = vsub.f32 %v7512, %v7587
      %v7615 = vsub.f32 %v7513, %v7587
      %v7616 = vsub.f32 %v7514, %v7587
      %v7617 = vsub.f32 %v7515, %v7587
      %v7618 = vsub.f32 %v7516, %v7587
      %v7619 = vsub.f32 %v7517, %v7587
      %v7620 = vmul.f32 %v7588, %v7588
      %v7621 = vmul.f32 %v7589, %v7589
      %v7622 = vmul.f32 %v7590, %v7590
      %v7623 = vmul.f32 %v7591, %v7591
      %v7624 = vmul.f32 %v7592, %v7592
      %v7625 = vmul.f32 %v7593, %v7593
      %v7626 = vmul.f32 %v7594, %v7594
      %v7627 = vmul.f32 %v7595, %v7595
      %v7628 = vmul.f32 %v7596, %v7596
      %v7629 = vmul.f32 %v7597, %v7597
      %v7630 = vmul.f32 %v7598, %v7598
      %v7631 = vmul.f32 %v7599, %v7599
      %v7632 = vmul.f32 %v7600, %v7600
      %v7633 = vmul.f32 %v7601, %v7601
      %v7634 = vmul.f32 %v7602, %v7602
      %v7635 = vmul.f32 %v7603, %v7603
      %v7636 = vmul.f32 %v7604, %v7604
      %v7637 = vmul.f32 %v7605, %v7605
      %v7638 = vmul.f32 %v7606, %v7606
      %v7639 = vmul.f32 %v7607, %v7607
      %v7640 = vmul.f32 %v7608, %v7608
      %v7641 = vmul.f32 %v7609, %v7609
      %v7642 = vmul.f32 %v7610, %v7610
      %v7643 = vmul.f32 %v7611, %v7611
      %v7644 = vmul.f32 %v7612, %v7612
      %v7645 = vmul.f32 %v7613, %v7613
      %v7646 = vmul.f32 %v7614, %v7614
      %v7647 = vmul.f32 %v7615, %v7615
      %v7648 = vmul.f32 %v7616, %v7616
      %v7649 = vmul.f32 %v7617, %v7617
      %v7650 = vmul.f32 %v7618, %v7618
      %v7651 = vmul.f32 %v7619, %v7619
      %v7652 = vsel %vm3739, %v7620, 0.0
      %v7653 = vsel %vm3739, %v7621, 0.0
      %v7654 = vadd.f32 %v7652, %v7653
      %v7655 = vsel %vm3739, %v7622, 0.0
      %v7656 = vadd.f32 %v7654, %v7655
      %v7657 = vsel %vm3739, %v7623, 0.0
      %v7658 = vadd.f32 %v7656, %v7657
      %v7659 = vsel %vm3739, %v7624, 0.0
      %v7660 = vadd.f32 %v7658, %v7659
      %v7661 = vsel %vm3739, %v7625, 0.0
      %v7662 = vadd.f32 %v7660, %v7661
      %v7663 = vsel %vm3739, %v7626, 0.0
      %v7664 = vadd.f32 %v7662, %v7663
      %v7665 = vsel %vm3739, %v7627, 0.0
      %v7666 = vadd.f32 %v7664, %v7665
      %v7667 = vsel %vm3739, %v7628, 0.0
      %v7668 = vadd.f32 %v7666, %v7667
      %v7669 = vsel %vm3739, %v7629, 0.0
      %v7670 = vadd.f32 %v7668, %v7669
      %v7671 = vsel %vm3739, %v7630, 0.0
      %v7672 = vadd.f32 %v7670, %v7671
      %v7673 = vsel %vm3739, %v7631, 0.0
      %v7674 = vadd.f32 %v7672, %v7673
      %v7675 = vsel %vm3739, %v7632, 0.0
      %v7676 = vadd.f32 %v7674, %v7675
      %v7677 = vsel %vm3739, %v7633, 0.0
      %v7678 = vadd.f32 %v7676, %v7677
      %v7679 = vsel %vm3739, %v7634, 0.0
      %v7680 = vadd.f32 %v7678, %v7679
      %v7681 = vsel %vm3739, %v7635, 0.0
      %v7682 = vadd.f32 %v7680, %v7681
      %v7683 = vsel %vm3739, %v7636, 0.0
      %v7684 = vadd.f32 %v7682, %v7683
      %v7685 = vsel %vm3739, %v7637, 0.0
      %v7686 = vadd.f32 %v7684, %v7685
      %v7687 = vsel %vm3739, %v7638, 0.0
      %v7688 = vadd.f32 %v7686, %v7687
      %v7689 = vsel %vm3739, %v7639, 0.0
      %v7690 = vadd.f32 %v7688, %v7689
      %v7691 = vsel %vm3739, %v7640, 0.0
      %v7692 = vadd.f32 %v7690, %v7691
      %v7693 = vsel %vm3739, %v7641, 0.0
      %v7694 = vadd.f32 %v7692, %v7693
      %v7695 = vsel %vm3739, %v7642, 0.0
      %v7696 = vadd.f32 %v7694, %v7695
      %v7697 = vsel %vm3739, %v7643, 0.0
      %v7698 = vadd.f32 %v7696, %v7697
      %v7699 = vsel %vm3739, %v7644, 0.0
      %v7700 = vadd.f32 %v7698, %v7699
      %v7701 = vsel %vm3739, %v7645, 0.0
      %v7702 = vadd.f32 %v7700, %v7701
      %v7703 = vsel %vm3739, %v7646, 0.0
      %v7704 = vadd.f32 %v7702, %v7703
      %v7705 = vsel %vm3739, %v7647, 0.0
      %v7706 = vadd.f32 %v7704, %v7705
      %v7707 = vsel %vm3739, %v7648, 0.0
      %v7708 = vadd.f32 %v7706, %v7707
      %v7709 = vsel %vm3739, %v7649, 0.0
      %v7710 = vadd.f32 %v7708, %v7709
      %v7711 = vsel %vm3739, %v7650, 0.0
      %v7712 = vadd.f32 %v7710, %v7711
      %v7713 = vsel %vm3739, %v7651, 0.0
      %v7714 = vadd.f32 %v7712, %v7713
      %v7715 = vrot.slane %v7714, 4
      %v7716 = vadd.f32 %v7714, %v7715
      %v7717 = vrot.slane %v7716, 2
      %v7718 = vadd.f32 %v7716, %v7717
      %v7719 = vrot.slane %v7718, 1
      %v7720 = vadd.f32 %v7718, %v7719
      %v7721 = vmul.f32 %v7720, %v3809
      %v7722 = vadd.f32 %v7721, 1e-05
      %v7723 = vrsqrt.pop %v7722
      %v7724 = vmul.f32 %v7588, %v7723
      %v7725 = vmul.f32 %v7589, %v7723
      %v7726 = vmul.f32 %v7590, %v7723
      %v7727 = vmul.f32 %v7591, %v7723
      %v7728 = vmul.f32 %v7592, %v7723
      %v7729 = vmul.f32 %v7593, %v7723
      %v7730 = vmul.f32 %v7594, %v7723
      %v7731 = vmul.f32 %v7595, %v7723
      %v7732 = vmul.f32 %v7596, %v7723
      %v7733 = vmul.f32 %v7597, %v7723
      %v7734 = vmul.f32 %v7598, %v7723
      %v7735 = vmul.f32 %v7599, %v7723
      %v7736 = vmul.f32 %v7600, %v7723
      %v7737 = vmul.f32 %v7601, %v7723
      %v7738 = vmul.f32 %v7602, %v7723
      %v7739 = vmul.f32 %v7603, %v7723
      %v7740 = vmul.f32 %v7604, %v7723
      %v7741 = vmul.f32 %v7605, %v7723
      %v7742 = vmul.f32 %v7606, %v7723
      %v7743 = vmul.f32 %v7607, %v7723
      %v7744 = vmul.f32 %v7608, %v7723
      %v7745 = vmul.f32 %v7609, %v7723
      %v7746 = vmul.f32 %v7610, %v7723
      %v7747 = vmul.f32 %v7611, %v7723
      %v7748 = vmul.f32 %v7612, %v7723
      %v7749 = vmul.f32 %v7613, %v7723
      %v7750 = vmul.f32 %v7614, %v7723
      %v7751 = vmul.f32 %v7615, %v7723
      %v7752 = vmul.f32 %v7616, %v7723
      %v7753 = vmul.f32 %v7617, %v7723
      %v7754 = vmul.f32 %v7618, %v7723
      %v7755 = vmul.f32 %v7619, %v7723
      %v7756 = vmax.f32 %v7724, 0.0
      %v7757 = vmax.f32 %v7725, 0.0
      %v7758 = vmax.f32 %v7726, 0.0
      %v7759 = vmax.f32 %v7727, 0.0
      %v7760 = vmax.f32 %v7728, 0.0
      %v7761 = vmax.f32 %v7729, 0.0
      %v7762 = vmax.f32 %v7730, 0.0
      %v7763 = vmax.f32 %v7731, 0.0
      %v7764 = vmax.f32 %v7732, 0.0
      %v7765 = vmax.f32 %v7733, 0.0
      %v7766 = vmax.f32 %v7734, 0.0
      %v7767 = vmax.f32 %v7735, 0.0
      %v7768 = vmax.f32 %v7736, 0.0
      %v7769 = vmax.f32 %v7737, 0.0
      %v7770 = vmax.f32 %v7738, 0.0
      %v7771 = vmax.f32 %v7739, 0.0
      %v7772 = vmax.f32 %v7740, 0.0
      %v7773 = vmax.f32 %v7741, 0.0
      %v7774 = vmax.f32 %v7742, 0.0
      %v7775 = vmax.f32 %v7743, 0.0
      %v7776 = vmax.f32 %v7744, 0.0
      %v7777 = vmax.f32 %v7745, 0.0
      %v7778 = vmax.f32 %v7746, 0.0
      %v7779 = vmax.f32 %v7747, 0.0
      %v7780 = vmax.f32 %v7748, 0.0
      %v7781 = vmax.f32 %v7749, 0.0
      %v7782 = vmax.f32 %v7750, 0.0
      %v7783 = vmax.f32 %v7751, 0.0
      %v7784 = vmax.f32 %v7752, 0.0
      %v7785 = vmax.f32 %v7753, 0.0
      %v7786 = vmax.f32 %v7754, 0.0
      %v7787 = vmax.f32 %v7755, 0.0
      %7788 = vst.msk [vmem:[%s170] sm:$0xff] %vm3739, %v7756
      %7789 = vst.msk [vmem:[%s170 + $0x8] sm:$0xff] %vm3739, %v7757
      %7790 = vst.msk [vmem:[%s170 + $0x10] sm:$0xff] %vm3739, %v7758
      %7791 = vst.msk [vmem:[%s170 + $0x18] sm:$0xff] %vm3739, %v7759
      %7792 = vst.msk [vmem:[%s170 + $0x20] sm:$0xff] %vm3739, %v7760
      %7793 = vst.msk [vmem:[%s170 + $0x28] sm:$0xff] %vm3739, %v7761
      %7794 = vst.msk [vmem:[%s170 + $0x30] sm:$0xff] %vm3739, %v7762
      %7795 = vst.msk [vmem:[%s170 + $0x38] sm:$0xff] %vm3739, %v7763
      %7796 = vst.msk [vmem:[%s170 + $0x40] sm:$0xff] %vm3739, %v7764
      %7797 = vst.msk [vmem:[%s170 + $0x48] sm:$0xff] %vm3739, %v7765
      %7798 = vst.msk [vmem:[%s170 + $0x50] sm:$0xff] %vm3739, %v7766
      %7799 = vst.msk [vmem:[%s170 + $0x58] sm:$0xff] %vm3739, %v7767
      %7800 = vst.msk [vmem:[%s170 + $0x60] sm:$0xff] %vm3739, %v7768
      %7801 = vst.msk [vmem:[%s170 + $0x68] sm:$0xff] %vm3739, %v7769
      %7802 = vst.msk [vmem:[%s170 + $0x70] sm:$0xff] %vm3739, %v7770
      %7803 = vst.msk [vmem:[%s170 + $0x78] sm:$0xff] %vm3739, %v7771
      %7804 = vst.msk [vmem:[%s170 + $0x80] sm:$0xff] %vm3739, %v7772
      %7805 = vst.msk [vmem:[%s170 + $0x88] sm:$0xff] %vm3739, %v7773
      %7806 = vst.msk [vmem:[%s170 + $0x90] sm:$0xff] %vm3739, %v7774
      %7807 = vst.msk [vmem:[%s170 + $0x98] sm:$0xff] %vm3739, %v7775
      %7808 = vst.msk [vmem:[%s170 + $0xa0] sm:$0xff] %vm3739, %v7776
      %7809 = vst.msk [vmem:[%s170 + $0xa8] sm:$0xff] %vm3739, %v7777
      %7810 = vst.msk [vmem:[%s170 + $0xb0] sm:$0xff] %vm3739, %v7778
      %7811 = vst.msk [vmem:[%s170 + $0xb8] sm:$0xff] %vm3739, %v7779
      %7812 = vst.msk [vmem:[%s170 + $0xc0] sm:$0xff] %vm3739, %v7780
      %7813 = vst.msk [vmem:[%s170 + $0xc8] sm:$0xff] %vm3739, %v7781
      %7814 = vst.msk [vmem:[%s170 + $0xd0] sm:$0xff] %vm3739, %v7782
      %7815 = vst.msk [vmem:[%s170 + $0xd8] sm:$0xff] %vm3739, %v7783
      %7816 = vst.msk [vmem:[%s170 + $0xe0] sm:$0xff] %vm3739, %v7784
      %7817 = vst.msk [vmem:[%s170 + $0xe8] sm:$0xff] %vm3739, %v7785
      %7818 = vst.msk [vmem:[%s170 + $0xf0] sm:$0xff] %vm3739, %v7786
      %7819 = vst.msk [vmem:[%s170 + $0xf8] sm:$0xff] %vm3739, %v7787
      %p7820 = scmp.lt.s32.totalorder %s14, 1
      %s7821 = scalar_select %p7820, %s14, 1
      %s7822 = smul.addr %s7821, 32
      %s7823 = smul.addr %s7822, 8
      %s7824 = scalar_lea.vmem %s3, %s7823
      // Predicated region
      $region33: #{tpu_custom_call.1} parent=31 // pred_check
        %p7825 = pneg %p100
      $region34: #{tpu_custom_call.1} parent=31 // pred_check_branch
        %7827 = sbr.rel (%p7825) target = $region36
      $region35: #{tpu_custom_call.1} parent=31 // pred_region
        _
      $region36: #{tpu_custom_call.1} parent=31 // pred_fallthru
        _
    $region32: #{tpu_custom_call.1} parent=5 // pred_fallthru
      _
    %p7828 = scmp.le.s32.totalorder 2, %s9
    // Predicated region
    $region37: #{tpu_custom_call.1} parent=5 // pred_check
      %p7829 = pneg %p7828
    $region38: #{tpu_custom_call.1} parent=5 // pred_check_branch
      %7831 = sbr.rel (%p7829) target = $region40
    $region39: #{tpu_custom_call.1} parent=5 // pred_region
      %s7832 = ssub.s32 %s9, 2
      // Predicated region
      $region41: #{tpu_custom_call.1} parent=39 // pred_check
        %p7833 = pneg %p106
      $region42: #{tpu_custom_call.1} parent=39 // pred_check_branch
        %7835 = sbr.rel (%p7833) target = $region44
      $region43: #{tpu_custom_call.1} parent=39 // pred_region
        %p7836 = scmp.lt.s32.totalorder %s15, 1
        %s7837 = scalar_select %p7836, %s15, 1
        %s7838 = smul.addr %s7837, 32
        %s7839 = smul.addr %s7838, 8
        %s7840 = scalar_lea.vmem %s3, %s7839
      $region44: #{tpu_custom_call.1} parent=39 // pred_fallthru
        _
    $region40: #{tpu_custom_call.1} parent=5 // pred_fallthru
      _
  $region6: #{tpu_custom_call.1} parent=0 // loop_footer
    %s13 = sadd.s32 1, %s9
  $region7: #{tpu_custom_call.1} parent=0 // loop_footer_branch
    %8 = sbr.rel target = $region3
  $region8: #{tpu_custom_call.1} parent=0 // loop_exit
    _

</llo_original>
